<compile_context>
chip_gen: v5e
topology: v5e:2x2
jax: 0.10.0
libtpu: 0.0.40
codegen_flags: <defaults>
</compile_context>

<pallas_src>
import jax
import jax.numpy as jnp
from jax.experimental import pallas as pl
from jax.experimental.pallas import tpu as pltpu

CORR_DIM = 512
H1 = 512
H2 = 1024
OUT_H, OUT_W = 28, 28
OUT_DIM = OUT_H * OUT_W          # 784
OUT_PAD = 896                    # 7 * 128 — lane-dense last-layer width (do NOT pad to 1024)
BN_EPS = 1e-5
MAX_TB = 512                     # v7x VMEM-safe cap on the batch tile


def _round_up(n, m):
    return -(-n // m) * m


def _generator_kernel(x_ref, w1_ref, c1_ref, w2_ref, c2_ref, w3_ref, b3_ref, o_ref):
    """Fused 3-layer generator MLP on one batch tile:
       relu(x@W1' + c1) -> relu(.@W2' + c2) -> sigmoid(.@W3p + b3p)."""
    # In-kernel fp32 -> bf16 cast (VPU has slack under the MXU; saves a wrapper pass).
    x = x_ref[...].astype(jnp.bfloat16)                                 # (TB, 512) bf16

    # Layer 1: Linear (+folded BN affine) -> ReLU
    h1 = jnp.dot(x, w1_ref[...], preferred_element_type=jnp.float32)   # (TB, 512) f32
    h1 = jnp.maximum(h1 + c1_ref[...], 0.0).astype(jnp.bfloat16)

    # Layer 2: Linear (+folded BN affine) -> ReLU
    h2 = jnp.dot(h1, w2_ref[...], preferred_element_type=jnp.float32)  # (TB, 1024) f32
    h2 = jnp.maximum(h2 + c2_ref[...], 0.0).astype(jnp.bfloat16)

    # Layer 3: Linear (padded to 896 cols) -> Sigmoid
    h3 = jnp.dot(h2, w3_ref[...], preferred_element_type=jnp.float32)  # (TB, 896) f32
    h3 = h3 + b3_ref[...]
    # sigmoid(z) = 1 / (1 + exp(-z)): exp on the EUP, approx reciprocal on the EUP.
    o_ref[...] = pl.reciprocal(1.0 + jnp.exp(-h3), approx=True)


def _build_generator_call(Bp, tb, *, single_buffer_weights):
    """Construct the pallas_call for a (Bp, tb) batch tiling."""
    def const_spec(shape):
        if single_buffer_weights:
            # Grid-invariant operand: one VMEM buffer is enough (no re-DMA after step 0).
            return pl.BlockSpec(shape, lambda i: (0, 0),
                                pipeline_mode=pl.Buffered(1))
        return pl.BlockSpec(shape, lambda i: (0, 0))

    flops = 2 * Bp * (CORR_DIM * H1 + H1 * H2 + H2 * OUT_PAD)
    bytes_accessed = (
        Bp * CORR_DIM * 4                                           # f32 input
        + (CORR_DIM * H1 + H1 * H2 + H2 * OUT_PAD) * 2              # bf16 weights
        + (H1 + H2 + OUT_PAD) * 4                                   # f32 bias/shift rows
        + Bp * OUT_PAD * 4                                          # f32 output
    )
    cost = pl.CostEstimate(flops=flops,
                           transcendentals=2 * Bp * OUT_PAD,        # exp + reciprocal
                           bytes_accessed=bytes_accessed)

    return pl.pallas_call(
        _generator_kernel,
        out_shape=jax.ShapeDtypeStruct((Bp, OUT_PAD), jnp.float32),
        grid=(Bp // tb,),
        in_specs=[
            pl.BlockSpec((tb, CORR_DIM), lambda i: (i, 0)),         # x tile (f32), streamed
            const_spec((CORR_DIM, H1)),                             # weights: VMEM-resident
            const_spec((1, H1)),
            const_spec((H1, H2)),
            const_spec((1, H2)),
            const_spec((H2, OUT_PAD)),
            const_spec((1, OUT_PAD)),
        ],
        out_specs=pl.BlockSpec((tb, OUT_PAD), lambda i: (i, 0)),
        compiler_params=pltpu.CompilerParams(
            dimension_semantics=("parallel",),   # shards batch tiles across TCs on v7x
            vmem_limit_bytes=32 << 20,
        ),
        cost_estimate=cost,
    )


def miyawaki_gan_decoder_forward(x, kparams, *, tb=MAX_TB):
    """x: (B, 512) float32 -> (B, 28, 28) float32."""
    B = x.shape[0]

    # Batch tile: multiple of 16 (bf16 sublane packing), capped at 512 (v7x VMEM),
    # never larger than the padded batch.
    tb = max(16, _round_up(min(int(tb), MAX_TB), 16))
    tb = min(tb, _round_up(B, 16))
    Bp = _round_up(B, tb)

    xk = x.astype(jnp.float32)
    if Bp != B:
        xk = jnp.pad(xk, ((0, Bp - B), (0, 0)))

    args = (xk, kparams["w1"], kparams["c1"], kparams["w2"], kparams["c2"],
            kparams["w3"], kparams["b3"])

    try:
        out = _build_generator_call(Bp, tb, single_buffer_weights=True)(*args)
    except Exception:
        # Older Pallas versions may reject pipeline_mode on a top-level BlockSpec;
        # fall back to default double-buffering (correctness identical).
        out = _build_generator_call(Bp, tb, single_buffer_weights=False)(*args)

    # Glue: drop batch/feature padding, then `generated.view(-1, 28, 28)`.
    return out[:B, :OUT_DIM].reshape(B, OUT_H, OUT_W)


def init_params(key):
    """Deterministic synthetic parameters (shapes match nn.Module __init__), fp32."""
    ks = jax.random.split(key, 16)

    def lin(kw, kb, fan_in, fan_out):
        bound = 1.0 / jnp.sqrt(fan_in)
        w = jax.random.uniform(kw, (fan_in, fan_out), jnp.float32, -bound, bound)
        b = jax.random.uniform(kb, (1, fan_out), jnp.float32, -bound, bound)
        return w, b

    def bn(kg, kb, km, kv, dim):
        gamma = 1.0 + 0.1 * jax.random.normal(kg, (1, dim), jnp.float32)
        beta = 0.1 * jax.random.normal(kb, (1, dim), jnp.float32)
        r_mean = 0.05 * jax.random.normal(km, (1, dim), jnp.float32)
        r_var = 1.0 + 0.1 * jax.random.uniform(kv, (1, dim), jnp.float32)
        # Inference-mode BN folded to per-feature affine: y = x * scale + shift
        scale = gamma / jnp.sqrt(r_var + BN_EPS)
        shift = beta - r_mean * scale
        return scale, shift

    w1, b1 = lin(ks[0], ks[1], CORR_DIM, H1)
    s1, t1 = bn(ks[2], ks[3], ks[4], ks[5], H1)
    w2, b2 = lin(ks[6], ks[7], H1, H2)
    s2, t2 = bn(ks[8], ks[9], ks[10], ks[11], H2)
    w3, b3 = lin(ks[12], ks[13], H2, OUT_DIM)

    return dict(w1=w1, b1=b1, s1=s1, t1=t1,
                w2=w2, b2=b2, s2=s2, t2=t2,
                w3=w3, b3=b3)


def prepare_kernel_params(p):
    """Fold bias + BN affine into the weights, pad last layer to 896, cast to bf16."""
    w1 = (p["w1"] * p["s1"]).astype(jnp.bfloat16)
    c1 = (p["b1"] * p["s1"] + p["t1"]).astype(jnp.float32)
    w2 = (p["w2"] * p["s2"]).astype(jnp.bfloat16)
    c2 = (p["b2"] * p["s2"] + p["t2"]).astype(jnp.float32)
    pad = OUT_PAD - OUT_DIM
    w3 = jnp.pad(p["w3"], ((0, 0), (0, pad))).astype(jnp.bfloat16)   # zero pad columns
    b3 = jnp.pad(p["b3"], ((0, 0), (0, pad))).astype(jnp.float32)
    return dict(w1=w1, c1=c1, w2=w2, c2=c2, w3=w3, b3=b3)


def _reference_bf16(x, kp):
    """Pure-JAX reference with the same bf16/f32-accum numerics as the kernel
    (exact sigmoid; kernel uses an approx reciprocal, covered by the tolerance)."""
    xb = x.astype(jnp.bfloat16)
    h1 = jnp.maximum(
        jnp.dot(xb, kp["w1"], preferred_element_type=jnp.float32) + kp["c1"], 0.0
    ).astype(jnp.bfloat16)
    h2 = jnp.maximum(
        jnp.dot(h1, kp["w2"], preferred_element_type=jnp.float32) + kp["c2"], 0.0
    ).astype(jnp.bfloat16)
    h3 = jax.nn.sigmoid(
        jnp.dot(h2, kp["w3"], preferred_element_type=jnp.float32) + kp["b3"])
    return h3[:, :OUT_DIM].reshape(x.shape[0], OUT_H, OUT_W)


def _reference_fp32(x, p):
    """Full-precision reference of the original module's math."""
    h1 = jnp.maximum((x @ p["w1"] + p["b1"]) * p["s1"] + p["t1"], 0.0)
    h2 = jnp.maximum((h1 @ p["w2"] + p["b2"]) * p["s2"] + p["t2"], 0.0)
    h3 = jax.nn.sigmoid(h2 @ p["w3"] + p["b3"])
    return h3.reshape(x.shape[0], OUT_H, OUT_W)


if __name__ == "__main__":
    key = jax.random.PRNGKey(0)
    k_param, k_x = jax.random.split(key)

    B = 8  # small batch (demo path)
    raw_params = init_params(k_param)
    kparams = prepare_kernel_params(raw_params)
    x = jax.random.normal(k_x, (B, CORR_DIM), jnp.float32)

    out = jax.block_until_ready(miyawaki_gan_decoder_forward(x, kparams))
    assert out.shape == (B, OUT_H, OUT_W), out.shape

    # Tight check vs a reference with matching bf16/f32 numerics (approx-recip slack).
    ref_b = _reference_bf16(x, kparams)
    assert jnp.allclose(out, ref_b, atol=3e-3, rtol=0), "mismatch vs bf16 reference"

    # Loose sanity check vs the full fp32 module math (bf16 weight quantization error).
    ref_f = _reference_fp32(x, raw_params)
    assert jnp.allclose(out, ref_f, atol=1e-1, rtol=0), "mismatch vs fp32 reference"

    # Also exercise the multi-step grid / batch-padding path with a ragged batch.
    B2 = 40
    x2 = jax.random.normal(jax.random.PRNGKey(1), (B2, CORR_DIM), jnp.float32)
    out2 = jax.block_until_ready(miyawaki_gan_decoder_forward(x2, kparams, tb=16))
    assert out2.shape == (B2, OUT_H, OUT_W), out2.shape
    ref2 = _reference_bf16(x2, kparams)
    assert jnp.allclose(out2, ref2, atol=3e-3, rtol=0), "mismatch on multi-tile path"

    print("KERNEL_OK")
</pallas_src>

<mosaic_0001>
module attributes {stable_mosaic.version = 11 : i64} {
  func.func @_generator_kernel(%arg0: i32, %arg1: memref<16x512xf32, #tpu.memory_space<vmem>>, %arg2: memref<512x512xbf16, #tpu.memory_space<vmem>>, %arg3: memref<1x512xf32, #tpu.memory_space<vmem>>, %arg4: memref<512x1024xbf16, #tpu.memory_space<vmem>>, %arg5: memref<1x1024xf32, #tpu.memory_space<vmem>>, %arg6: memref<1024x896xbf16, #tpu.memory_space<vmem>>, %arg7: memref<1x896xf32, #tpu.memory_space<vmem>>, %arg8: memref<16x896xf32, #tpu.memory_space<vmem>>) attributes {dimension_semantics = [#tpu.dimension_semantics<parallel>], iteration_bounds = array<i64: 1>, scalar_prefetch = 0 : i64, scratch_operands = 0 : i64, tpu.core_type = #tpu.core_type<tc>, window_params = [{transform_indices = @transform_0, window_bounds = array<i64: 16, 512>}, {pipeline_mode = #tpu.pipeline_mode<synchronous>, transform_indices = @transform_1, window_bounds = array<i64: 512, 512>}, {pipeline_mode = #tpu.pipeline_mode<synchronous>, transform_indices = @transform_2, window_bounds = array<i64: 1, 512>}, {pipeline_mode = #tpu.pipeline_mode<synchronous>, transform_indices = @transform_3, window_bounds = array<i64: 512, 1024>}, {pipeline_mode = #tpu.pipeline_mode<synchronous>, transform_indices = @transform_4, window_bounds = array<i64: 1, 1024>}, {pipeline_mode = #tpu.pipeline_mode<synchronous>, transform_indices = @transform_5, window_bounds = array<i64: 1024, 896>}, {pipeline_mode = #tpu.pipeline_mode<synchronous>, transform_indices = @transform_6, window_bounds = array<i64: 1, 896>}, {transform_indices = @transform_7, window_bounds = array<i64: 16, 896>}]} {
    %c0 = arith.constant 0 : index
    %c0_0 = arith.constant 0 : index
    %0 = vector.load %arg1[%c0, %c0_0] : memref<16x512xf32, #tpu.memory_space<vmem>>, vector<16x512xf32>
    %1 = arith.truncf %0 : vector<16x512xf32> to vector<16x512xbf16>
    %c0_1 = arith.constant 0 : index
    %c0_2 = arith.constant 0 : index
    %2 = vector.load %arg2[%c0_1, %c0_2] : memref<512x512xbf16, #tpu.memory_space<vmem>>, vector<512x512xbf16>
    %cst = arith.constant dense<0.000000e+00> : vector<16x512xf32>
    %3 = tpu.matmul %1, %2, %cst {dimension_numbers = #tpu.dot_dimension_numbers<[1], [0], [0], [1], [0, 0, 1, 1], [], []>} : vector<16x512xbf16>, vector<512x512xbf16>, vector<16x512xf32> -> vector<16x512xf32>
    %c0_3 = arith.constant 0 : index
    %c0_4 = arith.constant 0 : index
    %4 = vector.load %arg3[%c0_3, %c0_4] : memref<1x512xf32, #tpu.memory_space<vmem>>, vector<1x512xf32>
    %5 = vector.broadcast %4 : vector<1x512xf32> to vector<16x512xf32>
    %6 = arith.addf %3, %5 : vector<16x512xf32>
    %cst_5 = arith.constant 0.000000e+00 : f32
    %7 = vector.broadcast %cst_5 : f32 to vector<16x512xf32>
    %8 = arith.maximumf %6, %7 : vector<16x512xf32>
    %9 = arith.truncf %8 : vector<16x512xf32> to vector<16x512xbf16>
    %c0_6 = arith.constant 0 : index
    %c0_7 = arith.constant 0 : index
    %10 = vector.load %arg4[%c0_6, %c0_7] : memref<512x1024xbf16, #tpu.memory_space<vmem>>, vector<512x1024xbf16>
    %cst_8 = arith.constant dense<0.000000e+00> : vector<16x1024xf32>
    %11 = tpu.matmul %9, %10, %cst_8 {dimension_numbers = #tpu.dot_dimension_numbers<[1], [0], [0], [1], [0, 0, 1, 1], [], []>} : vector<16x512xbf16>, vector<512x1024xbf16>, vector<16x1024xf32> -> vector<16x1024xf32>
    %c0_9 = arith.constant 0 : index
    %c0_10 = arith.constant 0 : index
    %12 = vector.load %arg5[%c0_9, %c0_10] : memref<1x1024xf32, #tpu.memory_space<vmem>>, vector<1x1024xf32>
    %13 = vector.broadcast %12 : vector<1x1024xf32> to vector<16x1024xf32>
    %14 = arith.addf %11, %13 : vector<16x1024xf32>
    %cst_11 = arith.constant 0.000000e+00 : f32
    %15 = vector.broadcast %cst_11 : f32 to vector<16x1024xf32>
    %16 = arith.maximumf %14, %15 : vector<16x1024xf32>
    %17 = arith.truncf %16 : vector<16x1024xf32> to vector<16x1024xbf16>
    %c0_12 = arith.constant 0 : index
    %c0_13 = arith.constant 0 : index
    %18 = vector.load %arg6[%c0_12, %c0_13] : memref<1024x896xbf16, #tpu.memory_space<vmem>>, vector<1024x896xbf16>
    %cst_14 = arith.constant dense<0.000000e+00> : vector<16x896xf32>
    %19 = tpu.matmul %17, %18, %cst_14 {dimension_numbers = #tpu.dot_dimension_numbers<[1], [0], [0], [1], [0, 0, 1, 1], [], []>} : vector<16x1024xbf16>, vector<1024x896xbf16>, vector<16x896xf32> -> vector<16x896xf32>
    %c0_15 = arith.constant 0 : index
    %c0_16 = arith.constant 0 : index
    %20 = vector.load %arg7[%c0_15, %c0_16] : memref<1x896xf32, #tpu.memory_space<vmem>>, vector<1x896xf32>
    %21 = vector.broadcast %20 : vector<1x896xf32> to vector<16x896xf32>
    %22 = arith.addf %19, %21 : vector<16x896xf32>
    %cst_17 = arith.constant 0.000000e+00 : f32
    %23 = vector.broadcast %cst_17 : f32 to vector<16x896xf32>
    %24 = arith.subf %23, %22 : vector<16x896xf32>
    %25 = math.exp %24 : vector<16x896xf32>
    %cst_18 = arith.constant 1.000000e+00 : f32
    %26 = vector.broadcast %cst_18 : f32 to vector<16x896xf32>
    %27 = arith.addf %26, %25 : vector<16x896xf32>
    %28 = tpu.reciprocal %27 {approx = true} : vector<16x896xf32> -> vector<16x896xf32>
    %c0_19 = arith.constant 0 : index
    %c0_20 = arith.constant 0 : index
    %29 = vector.load %arg8[%c0_19, %c0_20] : memref<16x896xf32, #tpu.memory_space<vmem>>, vector<16x896xf32>
    tpu.vector_store %arg8[%c0_19, %c0_20], %28 {strides = array<i32>} : memref<16x896xf32, #tpu.memory_space<vmem>>, vector<16x896xf32>,
    return
  }
  func.func @transform_0(%arg0: i32) -> (i32, i32) {
    %c0_i32 = arith.constant 0 : i32
    %c0_i32_0 = arith.constant 0 : i32
    return %arg0, %c0_i32 : i32, i32
  }
  func.func @transform_1(%arg0: i32) -> (i32, i32) {
    %c0_i32 = arith.constant 0 : i32
    %c0_i32_0 = arith.constant 0 : i32
    %c0_i32_1 = arith.constant 0 : i32
    return %c0_i32, %c0_i32_0 : i32, i32
  }
  func.func @transform_2(%arg0: i32) -> (i32, i32) {
    %c0_i32 = arith.constant 0 : i32
    %c0_i32_0 = arith.constant 0 : i32
    %c0_i32_1 = arith.constant 0 : i32
    return %c0_i32, %c0_i32_0 : i32, i32
  }
  func.func @transform_3(%arg0: i32) -> (i32, i32) {
    %c0_i32 = arith.constant 0 : i32
    %c0_i32_0 = arith.constant 0 : i32
    %c0_i32_1 = arith.constant 0 : i32
    return %c0_i32, %c0_i32_0 : i32, i32
  }
  func.func @transform_4(%arg0: i32) -> (i32, i32) {
    %c0_i32 = arith.constant 0 : i32
    %c0_i32_0 = arith.constant 0 : i32
    %c0_i32_1 = arith.constant 0 : i32
    return %c0_i32, %c0_i32_0 : i32, i32
  }
  func.func @transform_5(%arg0: i32) -> (i32, i32) {
    %c0_i32 = arith.constant 0 : i32
    %c0_i32_0 = arith.constant 0 : i32
    %c0_i32_1 = arith.constant 0 : i32
    return %c0_i32, %c0_i32_0 : i32, i32
  }
  func.func @transform_6(%arg0: i32) -> (i32, i32) {
    %c0_i32 = arith.constant 0 : i32
    %c0_i32_0 = arith.constant 0 : i32
    %c0_i32_1 = arith.constant 0 : i32
    return %c0_i32, %c0_i32_0 : i32, i32
  }
  func.func @transform_7(%arg0: i32) -> (i32, i32) {
    %c0_i32 = arith.constant 0 : i32
    %c0_i32_0 = arith.constant 0 : i32
    return %arg0, %c0_i32 : i32, i32
  }
}

module attributes {stable_mosaic.version = 11 : i64} {
  func.func @_generator_kernel(%arg0: i32, %arg1: memref<16x512xf32, #tpu.memory_space<vmem>>, %arg2: memref<512x512xbf16, #tpu.memory_space<vmem>>, %arg3: memref<1x512xf32, #tpu.memory_space<vmem>>, %arg4: memref<512x1024xbf16, #tpu.memory_space<vmem>>, %arg5: memref<1x1024xf32, #tpu.memory_space<vmem>>, %arg6: memref<1024x896xbf16, #tpu.memory_space<vmem>>, %arg7: memref<1x896xf32, #tpu.memory_space<vmem>>, %arg8: memref<16x896xf32, #tpu.memory_space<vmem>>) attributes {dimension_semantics = [#tpu.dimension_semantics<parallel>], iteration_bounds = array<i64: 1>, scalar_prefetch = 0 : i64, scratch_operands = 0 : i64, tpu.core_type = #tpu.core_type<tc>, window_params = [{transform_indices = @transform_0, window_bounds = array<i64: 16, 512>}, {pipeline_mode = #tpu.pipeline_mode<synchronous>, transform_indices = @transform_1, window_bounds = array<i64: 512, 512>}, {pipeline_mode = #tpu.pipeline_mode<synchronous>, transform_indices = @transform_2, window_bounds = array<i64: 1, 512>}, {pipeline_mode = #tpu.pipeline_mode<synchronous>, transform_indices = @transform_3, window_bounds = array<i64: 512, 1024>}, {pipeline_mode = #tpu.pipeline_mode<synchronous>, transform_indices = @transform_4, window_bounds = array<i64: 1, 1024>}, {pipeline_mode = #tpu.pipeline_mode<synchronous>, transform_indices = @transform_5, window_bounds = array<i64: 1024, 896>}, {pipeline_mode = #tpu.pipeline_mode<synchronous>, transform_indices = @transform_6, window_bounds = array<i64: 1, 896>}, {transform_indices = @transform_7, window_bounds = array<i64: 16, 896>}]} {
    %c0 = arith.constant 0 : index
    %c0_0 = arith.constant 0 : index
    %0 = vector.load %arg1[%c0, %c0_0] : memref<16x512xf32, #tpu.memory_space<vmem>>, vector<16x512xf32>
    %1 = arith.truncf %0 : vector<16x512xf32> to vector<16x512xbf16>
    %c0_1 = arith.constant 0 : index
    %c0_2 = arith.constant 0 : index
    %2 = vector.load %arg2[%c0_1, %c0_2] : memref<512x512xbf16, #tpu.memory_space<vmem>>, vector<512x512xbf16>
    %cst = arith.constant dense<0.000000e+00> : vector<16x512xf32>
    %3 = tpu.matmul %1, %2, %cst {dimension_numbers = #tpu.dot_dimension_numbers<[1], [0], [0], [1], [0, 0, 1, 1], [], []>} : vector<16x512xbf16>, vector<512x512xbf16>, vector<16x512xf32> -> vector<16x512xf32>
    %c0_3 = arith.constant 0 : index
    %c0_4 = arith.constant 0 : index
    %4 = vector.load %arg3[%c0_3, %c0_4] : memref<1x512xf32, #tpu.memory_space<vmem>>, vector<1x512xf32>
    %5 = vector.broadcast %4 : vector<1x512xf32> to vector<16x512xf32>
    %6 = arith.addf %3, %5 : vector<16x512xf32>
    %cst_5 = arith.constant 0.000000e+00 : f32
    %7 = vector.broadcast %cst_5 : f32 to vector<16x512xf32>
    %8 = arith.maximumf %6, %7 : vector<16x512xf32>
    %9 = arith.truncf %8 : vector<16x512xf32> to vector<16x512xbf16>
    %c0_6 = arith.constant 0 : index
    %c0_7 = arith.constant 0 : index
    %10 = vector.load %arg4[%c0_6, %c0_7] : memref<512x1024xbf16, #tpu.memory_space<vmem>>, vector<512x1024xbf16>
    %cst_8 = arith.constant dense<0.000000e+00> : vector<16x1024xf32>
    %11 = tpu.matmul %9, %10, %cst_8 {dimension_numbers = #tpu.dot_dimension_numbers<[1], [0], [0], [1], [0, 0, 1, 1], [], []>} : vector<16x512xbf16>, vector<512x1024xbf16>, vector<16x1024xf32> -> vector<16x1024xf32>
    %c0_9 = arith.constant 0 : index
    %c0_10 = arith.constant 0 : index
    %12 = vector.load %arg5[%c0_9, %c0_10] : memref<1x1024xf32, #tpu.memory_space<vmem>>, vector<1x1024xf32>
    %13 = vector.broadcast %12 : vector<1x1024xf32> to vector<16x1024xf32>
    %14 = arith.addf %11, %13 : vector<16x1024xf32>
    %cst_11 = arith.constant 0.000000e+00 : f32
    %15 = vector.broadcast %cst_11 : f32 to vector<16x1024xf32>
    %16 = arith.maximumf %14, %15 : vector<16x1024xf32>
    %17 = arith.truncf %16 : vector<16x1024xf32> to vector<16x1024xbf16>
    %c0_12 = arith.constant 0 : index
    %c0_13 = arith.constant 0 : index
    %18 = vector.load %arg6[%c0_12, %c0_13] : memref<1024x896xbf16, #tpu.memory_space<vmem>>, vector<1024x896xbf16>
    %cst_14 = arith.constant dense<0.000000e+00> : vector<16x896xf32>
    %19 = tpu.matmul %17, %18, %cst_14 {dimension_numbers = #tpu.dot_dimension_numbers<[1], [0], [0], [1], [0, 0, 1, 1], [], []>} : vector<16x1024xbf16>, vector<1024x896xbf16>, vector<16x896xf32> -> vector<16x896xf32>
    %c0_15 = arith.constant 0 : index
    %c0_16 = arith.constant 0 : index
    %20 = vector.load %arg7[%c0_15, %c0_16] : memref<1x896xf32, #tpu.memory_space<vmem>>, vector<1x896xf32>
    %21 = vector.broadcast %20 : vector<1x896xf32> to vector<16x896xf32>
    %22 = arith.addf %19, %21 : vector<16x896xf32>
    %cst_17 = arith.constant 0.000000e+00 : f32
    %23 = vector.broadcast %cst_17 : f32 to vector<16x896xf32>
    %24 = arith.subf %23, %22 : vector<16x896xf32>
    %25 = math.exp %24 : vector<16x896xf32>
    %cst_18 = arith.constant 1.000000e+00 : f32
    %26 = vector.broadcast %cst_18 : f32 to vector<16x896xf32>
    %27 = arith.addf %26, %25 : vector<16x896xf32>
    %28 = tpu.reciprocal %27 {approx = true} : vector<16x896xf32> -> vector<16x896xf32>
    %c0_19 = arith.constant 0 : index
    %c0_20 = arith.constant 0 : index
    %29 = vector.load %arg8[%c0_19, %c0_20] : memref<16x896xf32, #tpu.memory_space<vmem>>, vector<16x896xf32>
    tpu.vector_store %arg8[%c0_19, %c0_20], %28 {strides = array<i32>} : memref<16x896xf32, #tpu.memory_space<vmem>>, vector<16x896xf32>,
    return
  }
  func.func @transform_0(%arg0: i32) -> (i32, i32) {
    %c0_i32 = arith.constant 0 : i32
    %c0_i32_0 = arith.constant 0 : i32
    return %arg0, %c0_i32 : i32, i32
  }
  func.func @transform_1(%arg0: i32) -> (i32, i32) {
    %c0_i32 = arith.constant 0 : i32
    %c0_i32_0 = arith.constant 0 : i32
    %c0_i32_1 = arith.constant 0 : i32
    return %c0_i32, %c0_i32_0 : i32, i32
  }
  func.func @transform_2(%arg0: i32) -> (i32, i32) {
    %c0_i32 = arith.constant 0 : i32
    %c0_i32_0 = arith.constant 0 : i32
    %c0_i32_1 = arith.constant 0 : i32
    return %c0_i32, %c0_i32_0 : i32, i32
  }
  func.func @transform_3(%arg0: i32) -> (i32, i32) {
    %c0_i32 = arith.constant 0 : i32
    %c0_i32_0 = arith.constant 0 : i32
    %c0_i32_1 = arith.constant 0 : i32
    return %c0_i32, %c0_i32_0 : i32, i32
  }
  func.func @transform_4(%arg0: i32) -> (i32, i32) {
    %c0_i32 = arith.constant 0 : i32
    %c0_i32_0 = arith.constant 0 : i32
    %c0_i32_1 = arith.constant 0 : i32
    return %c0_i32, %c0_i32_0 : i32, i32
  }
  func.func @transform_5(%arg0: i32) -> (i32, i32) {
    %c0_i32 = arith.constant 0 : i32
    %c0_i32_0 = arith.constant 0 : i32
    %c0_i32_1 = arith.constant 0 : i32
    return %c0_i32, %c0_i32_0 : i32, i32
  }
  func.func @transform_6(%arg0: i32) -> (i32, i32) {
    %c0_i32 = arith.constant 0 : i32
    %c0_i32_0 = arith.constant 0 : i32
    %c0_i32_1 = arith.constant 0 : i32
    return %c0_i32, %c0_i32_0 : i32, i32
  }
  func.func @transform_7(%arg0: i32) -> (i32, i32) {
    %c0_i32 = arith.constant 0 : i32
    %c0_i32_0 = arith.constant 0 : i32
    return %arg0, %c0_i32 : i32, i32
  }
}

</mosaic_0001>

<llo_original>
// kernel: tpu_custom_call.1
$region0: #{tpu_custom_call.1}
  #allocation0 [shape = 'u32[]', space=smem, size = 0x4, offset = 0x4, fixed_abs, tag = 'smem constant byte address 0x4 - core index']
  #allocation1 [shape = 'u32[72,128]{1,0:T(1,128)}', space=vmem, size = 0x9000, scoped, tag = 'internal scratch']
  %s0 = inlined_call_operand.hbm [shape: f32[16,512], index: 0, kind: input, shape index: {}]
  %s1 = inlined_call_operand.hbm [shape: bf16[512,512], index: 1, kind: input, shape index: {}]
  %s2 = inlined_call_operand.hbm [shape: f32[1,512], index: 2, kind: input, shape index: {}]
  %s3 = inlined_call_operand.hbm [shape: bf16[512,1024], index: 3, kind: input, shape index: {}]
  %s4 = inlined_call_operand.hbm [shape: f32[1,1024], index: 4, kind: input, shape index: {}]
  %s5 = inlined_call_operand.hbm [shape: bf16[1024,896], index: 5, kind: input, shape index: {}]
  %s6 = inlined_call_operand.hbm [shape: f32[1,896], index: 6, kind: input, shape index: {}]
  %s7 = inlined_call_operand.hbm [shape: f32[16,896], index: 7, kind: output, shape index: {}]
  %s8 = sld [smem:[#allocation0]]
  $region66: #{tpu_custom_call.1} parent=0
    _
  %s10 = ssub.s32 1, %s8
  %s11 = scalar_select 0, %s10, %s8
  $region1: #{tpu_custom_call.1} parent=0
    #allocation2 [shape = 'u8[32768]{0}', space=vmem, size = 0x8000, scoped, tag = 'input window, operand 0, single buffered']
    #allocation3 [shape = 's32[1]{0}', space=sflag, size = 0x4, scoped, tag = 'scoped memory for tpu_custom_call.1']
    #allocation4 [shape = 's32[1]{0}', space=sflag, size = 0x4, scoped, tag = 'scoped memory for tpu_custom_call.1']
    #allocation5 [shape = 'u8[524288]{0}', space=vmem, size = 0x80000, scoped, tag = 'input window, operand 1, single buffered']
    #allocation6 [shape = 's32[1]{0}', space=sflag, size = 0x4, scoped, tag = 'scoped memory for tpu_custom_call.1']
    #allocation7 [shape = 'u8[2048]{0}', space=vmem, size = 0x800, scoped, tag = 'input window, operand 2, single buffered']
    #allocation8 [shape = 'u8[1048576]{0}', space=vmem, size = 0x100000, scoped, tag = 'input window, operand 3, single buffered']
    #allocation9 [shape = 's32[1]{0}', space=sflag, size = 0x4, scoped, tag = 'scoped memory for tpu_custom_call.1']
    #allocation10 [shape = 'u8[4096]{0}', space=vmem, size = 0x1000, scoped, tag = 'input window, operand 4, single buffered']
    #allocation11 [shape = 'u8[1835008]{0}', space=vmem, size = 0x1c0000, scoped, tag = 'input window, operand 5, single buffered']
    #allocation12 [shape = 's32[1]{0}', space=sflag, size = 0x4, scoped, tag = 'scoped memory for tpu_custom_call.1']
    #allocation13 [shape = 'u8[3584]{0}', space=vmem, size = 0x1000, scoped, tag = 'input window, operand 6, single buffered']
    #allocation14 [shape = 'u8[57344]{0}', space=vmem, size = 0xe000, scoped, tag = 'output window, operand 0, single buffered']
    %12 = vsyncpa [#allocation3], 0
    %13 = vsyncpa [#allocation6], 0
    %14 = vsyncpa [#allocation9], 0
    %15 = vsyncpa [#allocation12], 0
    %16 = vsyncpa [#allocation4], 0
    // Predicated region
    $region2: #{tpu_custom_call.1} parent=1 // pred_check
      _
    $region3: #{tpu_custom_call.1} parent=1 // pred_check_branch
      %18 = sbr.rel (0) target = $region5
    $region4: #{tpu_custom_call.1} parent=1 // pred_region
      %20 = vsyncadd [#allocation3], 0
      %s21 = sshll.u32 %s0, 4
      %s22 = int_to_ptr.hbm [resolvable:$true] %s21
      %s23 = sshll.u32 [#allocation2], 4
      %s24 = int_to_ptr.vmem [resolvable:$true] %s23
      %29 = dma.hbm_to_vmem [thread:$0]  %s22, 1024, %s24, [#allocation3], 512, 512, 32
    $region5: #{tpu_custom_call.1} parent=1 // pred_fallthru
      _
    // Predicated region
    $region6: #{tpu_custom_call.1} parent=1 // pred_check
      _
    $region7: #{tpu_custom_call.1} parent=1 // pred_check_branch
      %31 = sbr.rel (0) target = $region9
    $region8: #{tpu_custom_call.1} parent=1 // pred_region
      %33 = vsyncadd [#allocation6], 0
      %s34 = sshll.u32 %s1, 4
      %s35 = int_to_ptr.hbm [resolvable:$true] %s34
      %s36 = sshll.u32 [#allocation5], 4
      %s37 = int_to_ptr.vmem [resolvable:$true] %s36
      %42 = dma.hbm_to_vmem [thread:$0]  %s35, 16384, %s37, [#allocation6], 256, 256, 16
    $region9: #{tpu_custom_call.1} parent=1 // pred_fallthru
      _
    // Predicated region
    $region10: #{tpu_custom_call.1} parent=1 // pred_check
      _
    $region11: #{tpu_custom_call.1} parent=1 // pred_check_branch
      %44 = sbr.rel (0) target = $region13
    $region12: #{tpu_custom_call.1} parent=1 // pred_region
      %46 = vsyncadd [#allocation6], 0
      %s48 = sshll.u32 %s2, 4
      %s49 = int_to_ptr.hbm [resolvable:$true] %s48
      %s50 = sshll.u32 [#allocation7], 4
      %s51 = int_to_ptr.vmem [resolvable:$true] %s50
      %53 = dma.hbm_to_vmem [thread:$0]  %s49, 64, %s51, [#allocation6]
    $region13: #{tpu_custom_call.1} parent=1 // pred_fallthru
      _
    // Predicated region
    $region14: #{tpu_custom_call.1} parent=1 // pred_check
      _
    $region15: #{tpu_custom_call.1} parent=1 // pred_check_branch
      %55 = sbr.rel (0) target = $region17
    $region16: #{tpu_custom_call.1} parent=1 // pred_region
      %57 = vsyncadd [#allocation9], 0
      %s58 = sshll.u32 %s3, 4
      %s59 = int_to_ptr.hbm [resolvable:$true] %s58
      %s60 = sshll.u32 [#allocation8], 4
      %s61 = int_to_ptr.vmem [resolvable:$true] %s60
      %66 = dma.hbm_to_vmem [thread:$0]  %s59, 32768, %s61, [#allocation9], 512, 512, 32
    $region17: #{tpu_custom_call.1} parent=1 // pred_fallthru
      _
    // Predicated region
    $region18: #{tpu_custom_call.1} parent=1 // pred_check
      _
    $region19: #{tpu_custom_call.1} parent=1 // pred_check_branch
      %68 = sbr.rel (0) target = $region21
    $region20: #{tpu_custom_call.1} parent=1 // pred_region
      %70 = vsyncadd [#allocation9], 0
      %s72 = sshll.u32 %s4, 4
      %s73 = int_to_ptr.hbm [resolvable:$true] %s72
      %s74 = sshll.u32 [#allocation10], 4
      %s75 = int_to_ptr.vmem [resolvable:$true] %s74
      %77 = dma.hbm_to_vmem [thread:$0]  %s73, 128, %s75, [#allocation9]
    $region21: #{tpu_custom_call.1} parent=1 // pred_fallthru
      _
    // Predicated region
    $region22: #{tpu_custom_call.1} parent=1 // pred_check
      _
    $region23: #{tpu_custom_call.1} parent=1 // pred_check_branch
      %79 = sbr.rel (0) target = $region25
    $region24: #{tpu_custom_call.1} parent=1 // pred_region
      %81 = vsyncadd [#allocation12], 0
      %s82 = sshll.u32 %s5, 4
      %s83 = int_to_ptr.hbm [resolvable:$true] %s82
      %s84 = sshll.u32 [#allocation11], 4
      %s85 = int_to_ptr.vmem [resolvable:$true] %s84
      %90 = dma.hbm_to_vmem [thread:$0]  %s83, 57344, %s85, [#allocation12], 448, 448, 28
    $region25: #{tpu_custom_call.1} parent=1 // pred_fallthru
      _
    // Predicated region
    $region26: #{tpu_custom_call.1} parent=1 // pred_check
      _
    $region27: #{tpu_custom_call.1} parent=1 // pred_check_branch
      %92 = sbr.rel (0) target = $region29
    $region28: #{tpu_custom_call.1} parent=1 // pred_region
      %94 = vsyncadd [#allocation12], 0
      %s96 = sshll.u32 %s6, 4
      %s97 = int_to_ptr.hbm [resolvable:$true] %s96
      %s98 = sshll.u32 [#allocation13], 4
      %s99 = int_to_ptr.vmem [resolvable:$true] %s98
      %101 = dma.hbm_to_vmem [thread:$0]  %s97, 112, %s99, [#allocation12]
    $region29: #{tpu_custom_call.1} parent=1 // pred_fallthru
      _
    // Predicated region
    $region30: #{tpu_custom_call.1} parent=1 // pred_check
      _
    $region31: #{tpu_custom_call.1} parent=1 // pred_check_branch
      %103 = sbr.rel (0) target = $region33
    $region32: #{tpu_custom_call.1} parent=1 // pred_region
      %105 = dma.done [#allocation3], 1024
    $region33: #{tpu_custom_call.1} parent=1 // pred_fallthru
      _
    // Predicated region
    $region34: #{tpu_custom_call.1} parent=1 // pred_check
      _
    $region35: #{tpu_custom_call.1} parent=1 // pred_check_branch
      %107 = sbr.rel (0) target = $region37
    $region36: #{tpu_custom_call.1} parent=1 // pred_region
      %109 = dma.done [#allocation6], 16384
    $region37: #{tpu_custom_call.1} parent=1 // pred_fallthru
      _
    // Predicated region
    $region38: #{tpu_custom_call.1} parent=1 // pred_check
      _
    $region39: #{tpu_custom_call.1} parent=1 // pred_check_branch
      %111 = sbr.rel (0) target = $region41
    $region40: #{tpu_custom_call.1} parent=1 // pred_region
      %113 = dma.done [#allocation6], 64
    $region41: #{tpu_custom_call.1} parent=1 // pred_fallthru
      _
    // Predicated region
    $region42: #{tpu_custom_call.1} parent=1 // pred_check
      _
    $region43: #{tpu_custom_call.1} parent=1 // pred_check_branch
      %115 = sbr.rel (0) target = $region45
    $region44: #{tpu_custom_call.1} parent=1 // pred_region
      %117 = dma.done [#allocation9], 32768
    $region45: #{tpu_custom_call.1} parent=1 // pred_fallthru
      _
    // Predicated region
    $region46: #{tpu_custom_call.1} parent=1 // pred_check
      _
    $region47: #{tpu_custom_call.1} parent=1 // pred_check_branch
      %119 = sbr.rel (0) target = $region49
    $region48: #{tpu_custom_call.1} parent=1 // pred_region
      %121 = dma.done [#allocation9], 128
    $region49: #{tpu_custom_call.1} parent=1 // pred_fallthru
      _
    // Predicated region
    $region50: #{tpu_custom_call.1} parent=1 // pred_check
      _
    $region51: #{tpu_custom_call.1} parent=1 // pred_check_branch
      %123 = sbr.rel (0) target = $region53
    $region52: #{tpu_custom_call.1} parent=1 // pred_region
      %125 = dma.done [#allocation12], 57344
    $region53: #{tpu_custom_call.1} parent=1 // pred_fallthru
      _
    // Predicated region
    $region54: #{tpu_custom_call.1} parent=1 // pred_check
      _
    $region55: #{tpu_custom_call.1} parent=1 // pred_check_branch
      %127 = sbr.rel (0) target = $region57
    $region56: #{tpu_custom_call.1} parent=1 // pred_region
      %129 = dma.done [#allocation12], 112
    $region57: #{tpu_custom_call.1} parent=1 // pred_fallthru
      _
    %v130 = vld [vmem:[#allocation2] sm:$0xff]
    %v131 = vld [vmem:[#allocation2 + $0x8] sm:$0xff]
    %v132 = vld [vmem:[#allocation2 + $0x10] sm:$0xff]
    %v133 = vld [vmem:[#allocation2 + $0x18] sm:$0xff]
    %v134 = vld [vmem:[#allocation2 + $0x20] sm:$0xff]
    %v135 = vld [vmem:[#allocation2 + $0x28] sm:$0xff]
    %v136 = vld [vmem:[#allocation2 + $0x30] sm:$0xff]
    %v137 = vld [vmem:[#allocation2 + $0x38] sm:$0xff]
    %v138 = vpack.c.bf16 %v134, %v130
    %v139 = vpack.c.bf16 %v135, %v131
    %v140 = vpack.c.bf16 %v136, %v132
    %v141 = vpack.c.bf16 %v137, %v133
    %v142 = vld [vmem:[#allocation5] sm:$0xff]
    %v143 = vld [vmem:[#allocation5 + $0x8] sm:$0xff]
    %v144 = vld [vmem:[#allocation5 + $0x10] sm:$0xff]
    %v145 = vld [vmem:[#allocation5 + $0x18] sm:$0xff]
    %v146 = vld [vmem:[#allocation5 + $0x20] sm:$0xff]
    %v147 = vld [vmem:[#allocation5 + $0x28] sm:$0xff]
    %v148 = vld [vmem:[#allocation5 + $0x30] sm:$0xff]
    %v149 = vld [vmem:[#allocation5 + $0x38] sm:$0xff]
    %v150 = vld [vmem:[#allocation5 + $0x40] sm:$0xff]
    %v151 = vld [vmem:[#allocation5 + $0x48] sm:$0xff]
    %v152 = vld [vmem:[#allocation5 + $0x50] sm:$0xff]
    %v153 = vld [vmem:[#allocation5 + $0x58] sm:$0xff]
    %v154 = vld [vmem:[#allocation5 + $0x60] sm:$0xff]
    %v155 = vld [vmem:[#allocation5 + $0x68] sm:$0xff]
    %v156 = vld [vmem:[#allocation5 + $0x70] sm:$0xff]
    %v157 = vld [vmem:[#allocation5 + $0x78] sm:$0xff]
    %v158 = vld [vmem:[#allocation5 + $0x80] sm:$0xff]
    %v159 = vld [vmem:[#allocation5 + $0x88] sm:$0xff]
    %v160 = vld [vmem:[#allocation5 + $0x90] sm:$0xff]
    %v161 = vld [vmem:[#allocation5 + $0x98] sm:$0xff]
    %v162 = vld [vmem:[#allocation5 + $0xa0] sm:$0xff]
    %v163 = vld [vmem:[#allocation5 + $0xa8] sm:$0xff]
    %v164 = vld [vmem:[#allocation5 + $0xb0] sm:$0xff]
    %v165 = vld [vmem:[#allocation5 + $0xb8] sm:$0xff]
    %v166 = vld [vmem:[#allocation5 + $0xc0] sm:$0xff]
    %v167 = vld [vmem:[#allocation5 + $0xc8] sm:$0xff]
    %v168 = vld [vmem:[#allocation5 + $0xd0] sm:$0xff]
    %v169 = vld [vmem:[#allocation5 + $0xd8] sm:$0xff]
    %v170 = vld [vmem:[#allocation5 + $0xe0] sm:$0xff]
    %v171 = vld [vmem:[#allocation5 + $0xe8] sm:$0xff]
    %v172 = vld [vmem:[#allocation5 + $0xf0] sm:$0xff]
    %v173 = vld [vmem:[#allocation5 + $0xf8] sm:$0xff]
    %v174 = vld [vmem:[#allocation5 + $0x100] sm:$0xff]
    %v175 = vld [vmem:[#allocation5 + $0x108] sm:$0xff]
    %v176 = vld [vmem:[#allocation5 + $0x110] sm:$0xff]
    %v177 = vld [vmem:[#allocation5 + $0x118] sm:$0xff]
    %v178 = vld [vmem:[#allocation5 + $0x120] sm:$0xff]
    %v179 = vld [vmem:[#allocation5 + $0x128] sm:$0xff]
    %v180 = vld [vmem:[#allocation5 + $0x130] sm:$0xff]
    %v181 = vld [vmem:[#allocation5 + $0x138] sm:$0xff]
    %v182 = vld [vmem:[#allocation5 + $0x140] sm:$0xff]
    %v183 = vld [vmem:[#allocation5 + $0x148] sm:$0xff]
    %v184 = vld [vmem:[#allocation5 + $0x150] sm:$0xff]
    %v185 = vld [vmem:[#allocation5 + $0x158] sm:$0xff]
    %v186 = vld [vmem:[#allocation5 + $0x160] sm:$0xff]
    %v187 = vld [vmem:[#allocation5 + $0x168] sm:$0xff]
    %v188 = vld [vmem:[#allocation5 + $0x170] sm:$0xff]
    %v189 = vld [vmem:[#allocation5 + $0x178] sm:$0xff]
    %v190 = vld [vmem:[#allocation5 + $0x180] sm:$0xff]
    %v191 = vld [vmem:[#allocation5 + $0x188] sm:$0xff]
    %v192 = vld [vmem:[#allocation5 + $0x190] sm:$0xff]
    %v193 = vld [vmem:[#allocation5 + $0x198] sm:$0xff]
    %v194 = vld [vmem:[#allocation5 + $0x1a0] sm:$0xff]
    %v195 = vld [vmem:[#allocation5 + $0x1a8] sm:$0xff]
    %v196 = vld [vmem:[#allocation5 + $0x1b0] sm:$0xff]
    %v197 = vld [vmem:[#allocation5 + $0x1b8] sm:$0xff]
    %v198 = vld [vmem:[#allocation5 + $0x1c0] sm:$0xff]
    %v199 = vld [vmem:[#allocation5 + $0x1c8] sm:$0xff]
    %v200 = vld [vmem:[#allocation5 + $0x1d0] sm:$0xff]
    %v201 = vld [vmem:[#allocation5 + $0x1d8] sm:$0xff]
    %v202 = vld [vmem:[#allocation5 + $0x1e0] sm:$0xff]
    %v203 = vld [vmem:[#allocation5 + $0x1e8] sm:$0xff]
    %v204 = vld [vmem:[#allocation5 + $0x1f0] sm:$0xff]
    %v205 = vld [vmem:[#allocation5 + $0x1f8] sm:$0xff]
    %v206 = vld [vmem:[#allocation5 + $0x200] sm:$0xff]
    %v207 = vld [vmem:[#allocation5 + $0x208] sm:$0xff]
    %v208 = vld [vmem:[#allocation5 + $0x210] sm:$0xff]
    %v209 = vld [vmem:[#allocation5 + $0x218] sm:$0xff]
    %v210 = vld [vmem:[#allocation5 + $0x220] sm:$0xff]
    %v211 = vld [vmem:[#allocation5 + $0x228] sm:$0xff]
    %v212 = vld [vmem:[#allocation5 + $0x230] sm:$0xff]
    %v213 = vld [vmem:[#allocation5 + $0x238] sm:$0xff]
    %v214 = vld [vmem:[#allocation5 + $0x240] sm:$0xff]
    %v215 = vld [vmem:[#allocation5 + $0x248] sm:$0xff]
    %v216 = vld [vmem:[#allocation5 + $0x250] sm:$0xff]
    %v217 = vld [vmem:[#allocation5 + $0x258] sm:$0xff]
    %v218 = vld [vmem:[#allocation5 + $0x260] sm:$0xff]
    %v219 = vld [vmem:[#allocation5 + $0x268] sm:$0xff]
    %v220 = vld [vmem:[#allocation5 + $0x270] sm:$0xff]
    %v221 = vld [vmem:[#allocation5 + $0x278] sm:$0xff]
    %v222 = vld [vmem:[#allocation5 + $0x280] sm:$0xff]
    %v223 = vld [vmem:[#allocation5 + $0x288] sm:$0xff]
    %v224 = vld [vmem:[#allocation5 + $0x290] sm:$0xff]
    %v225 = vld [vmem:[#allocation5 + $0x298] sm:$0xff]
    %v226 = vld [vmem:[#allocation5 + $0x2a0] sm:$0xff]
    %v227 = vld [vmem:[#allocation5 + $0x2a8] sm:$0xff]
    %v228 = vld [vmem:[#allocation5 + $0x2b0] sm:$0xff]
    %v229 = vld [vmem:[#allocation5 + $0x2b8] sm:$0xff]
    %v230 = vld [vmem:[#allocation5 + $0x2c0] sm:$0xff]
    %v231 = vld [vmem:[#allocation5 + $0x2c8] sm:$0xff]
    %v232 = vld [vmem:[#allocation5 + $0x2d0] sm:$0xff]
    %v233 = vld [vmem:[#allocation5 + $0x2d8] sm:$0xff]
    %v234 = vld [vmem:[#allocation5 + $0x2e0] sm:$0xff]
    %v235 = vld [vmem:[#allocation5 + $0x2e8] sm:$0xff]
    %v236 = vld [vmem:[#allocation5 + $0x2f0] sm:$0xff]
    %v237 = vld [vmem:[#allocation5 + $0x2f8] sm:$0xff]
    %v238 = vld [vmem:[#allocation5 + $0x300] sm:$0xff]
    %v239 = vld [vmem:[#allocation5 + $0x308] sm:$0xff]
    %v240 = vld [vmem:[#allocation5 + $0x310] sm:$0xff]
    %v241 = vld [vmem:[#allocation5 + $0x318] sm:$0xff]
    %v242 = vld [vmem:[#allocation5 + $0x320] sm:$0xff]
    %v243 = vld [vmem:[#allocation5 + $0x328] sm:$0xff]
    %v244 = vld [vmem:[#allocation5 + $0x330] sm:$0xff]
    %v245 = vld [vmem:[#allocation5 + $0x338] sm:$0xff]
    %v246 = vld [vmem:[#allocation5 + $0x340] sm:$0xff]
    %v247 = vld [vmem:[#allocation5 + $0x348] sm:$0xff]
    %v248 = vld [vmem:[#allocation5 + $0x350] sm:$0xff]
    %v249 = vld [vmem:[#allocation5 + $0x358] sm:$0xff]
    %v250 = vld [vmem:[#allocation5 + $0x360] sm:$0xff]
    %v251 = vld [vmem:[#allocation5 + $0x368] sm:$0xff]
    %v252 = vld [vmem:[#allocation5 + $0x370] sm:$0xff]
    %v253 = vld [vmem:[#allocation5 + $0x378] sm:$0xff]
    %v254 = vld [vmem:[#allocation5 + $0x380] sm:$0xff]
    %v255 = vld [vmem:[#allocation5 + $0x388] sm:$0xff]
    %v256 = vld [vmem:[#allocation5 + $0x390] sm:$0xff]
    %v257 = vld [vmem:[#allocation5 + $0x398] sm:$0xff]
    %v258 = vld [vmem:[#allocation5 + $0x3a0] sm:$0xff]
    %v259 = vld [vmem:[#allocation5 + $0x3a8] sm:$0xff]
    %v260 = vld [vmem:[#allocation5 + $0x3b0] sm:$0xff]
    %v261 = vld [vmem:[#allocation5 + $0x3b8] sm:$0xff]
    %v262 = vld [vmem:[#allocation5 + $0x3c0] sm:$0xff]
    %v263 = vld [vmem:[#allocation5 + $0x3c8] sm:$0xff]
    %v264 = vld [vmem:[#allocation5 + $0x3d0] sm:$0xff]
    %v265 = vld [vmem:[#allocation5 + $0x3d8] sm:$0xff]
    %v266 = vld [vmem:[#allocation5 + $0x3e0] sm:$0xff]
    %v267 = vld [vmem:[#allocation5 + $0x3e8] sm:$0xff]
    %v268 = vld [vmem:[#allocation5 + $0x3f0] sm:$0xff]
    %v269 = vld [vmem:[#allocation5 + $0x3f8] sm:$0xff]
    %v270 = vld [vmem:[#allocation7] sm:$0xf]
    %v272 = vperm.slane %v270, 0
    %v273 = vperm.slane %v270, 1
    %v274 = vperm.slane %v270, 2
    %v275 = vperm.slane %v270, 3
    %v408 = vunpack.c.l.b16 %v142
    %v409 = vunpack.c.h.b16 %v142
    %v410 = vunpack.c.l.b16 %v143
    %v411 = vunpack.c.h.b16 %v143
    %v412 = vunpack.c.l.b16 %v144
    %v413 = vunpack.c.h.b16 %v144
    %v414 = vunpack.c.l.b16 %v145
    %v415 = vunpack.c.h.b16 %v145
    %v416 = vunpack.c.l.b16 %v146
    %v417 = vunpack.c.h.b16 %v146
    %v418 = vunpack.c.l.b16 %v147
    %v419 = vunpack.c.h.b16 %v147
    %v420 = vunpack.c.l.b16 %v148
    %v421 = vunpack.c.h.b16 %v148
    %v422 = vunpack.c.l.b16 %v149
    %v423 = vunpack.c.h.b16 %v149
    %v424 = vunpack.c.l.b16 %v150
    %v425 = vunpack.c.h.b16 %v150
    %v426 = vunpack.c.l.b16 %v151
    %v427 = vunpack.c.h.b16 %v151
    %v428 = vunpack.c.l.b16 %v152
    %v429 = vunpack.c.h.b16 %v152
    %v430 = vunpack.c.l.b16 %v153
    %v431 = vunpack.c.h.b16 %v153
    %v432 = vunpack.c.l.b16 %v154
    %v433 = vunpack.c.h.b16 %v154
    %v434 = vunpack.c.l.b16 %v155
    %v435 = vunpack.c.h.b16 %v155
    %v436 = vunpack.c.l.b16 %v156
    %v437 = vunpack.c.h.b16 %v156
    %v438 = vunpack.c.l.b16 %v157
    %v439 = vunpack.c.h.b16 %v157
    %v440 = vunpack.c.l.b16 %v158
    %v441 = vunpack.c.h.b16 %v158
    %v442 = vunpack.c.l.b16 %v159
    %v443 = vunpack.c.h.b16 %v159
    %v444 = vunpack.c.l.b16 %v160
    %v445 = vunpack.c.h.b16 %v160
    %v446 = vunpack.c.l.b16 %v161
    %v447 = vunpack.c.h.b16 %v161
    %v448 = vunpack.c.l.b16 %v162
    %v449 = vunpack.c.h.b16 %v162
    %v450 = vunpack.c.l.b16 %v163
    %v451 = vunpack.c.h.b16 %v163
    %v452 = vunpack.c.l.b16 %v164
    %v453 = vunpack.c.h.b16 %v164
    %v454 = vunpack.c.l.b16 %v165
    %v455 = vunpack.c.h.b16 %v165
    %v456 = vunpack.c.l.b16 %v166
    %v457 = vunpack.c.h.b16 %v166
    %v458 = vunpack.c.l.b16 %v167
    %v459 = vunpack.c.h.b16 %v167
    %v460 = vunpack.c.l.b16 %v168
    %v461 = vunpack.c.h.b16 %v168
    %v462 = vunpack.c.l.b16 %v169
    %v463 = vunpack.c.h.b16 %v169
    %v464 = vunpack.c.l.b16 %v170
    %v465 = vunpack.c.h.b16 %v170
    %v466 = vunpack.c.l.b16 %v171
    %v467 = vunpack.c.h.b16 %v171
    %v468 = vunpack.c.l.b16 %v172
    %v469 = vunpack.c.h.b16 %v172
    %v470 = vunpack.c.l.b16 %v173
    %v471 = vunpack.c.h.b16 %v173
    %v472 = vunpack.c.l.b16 %v174
    %v473 = vunpack.c.h.b16 %v174
    %v474 = vunpack.c.l.b16 %v175
    %v475 = vunpack.c.h.b16 %v175
    %v476 = vunpack.c.l.b16 %v176
    %v477 = vunpack.c.h.b16 %v176
    %v478 = vunpack.c.l.b16 %v177
    %v479 = vunpack.c.h.b16 %v177
    %v480 = vunpack.c.l.b16 %v178
    %v481 = vunpack.c.h.b16 %v178
    %v482 = vunpack.c.l.b16 %v179
    %v483 = vunpack.c.h.b16 %v179
    %v484 = vunpack.c.l.b16 %v180
    %v485 = vunpack.c.h.b16 %v180
    %v486 = vunpack.c.l.b16 %v181
    %v487 = vunpack.c.h.b16 %v181
    %v488 = vunpack.c.l.b16 %v182
    %v489 = vunpack.c.h.b16 %v182
    %v490 = vunpack.c.l.b16 %v183
    %v491 = vunpack.c.h.b16 %v183
    %v492 = vunpack.c.l.b16 %v184
    %v493 = vunpack.c.h.b16 %v184
    %v494 = vunpack.c.l.b16 %v185
    %v495 = vunpack.c.h.b16 %v185
    %v496 = vunpack.c.l.b16 %v186
    %v497 = vunpack.c.h.b16 %v186
    %v498 = vunpack.c.l.b16 %v187
    %v499 = vunpack.c.h.b16 %v187
    %v500 = vunpack.c.l.b16 %v188
    %v501 = vunpack.c.h.b16 %v188
    %v502 = vunpack.c.l.b16 %v189
    %v503 = vunpack.c.h.b16 %v189
    %v504 = vunpack.c.l.b16 %v190
    %v505 = vunpack.c.h.b16 %v190
    %v506 = vunpack.c.l.b16 %v191
    %v507 = vunpack.c.h.b16 %v191
    %v508 = vunpack.c.l.b16 %v192
    %v509 = vunpack.c.h.b16 %v192
    %v510 = vunpack.c.l.b16 %v193
    %v511 = vunpack.c.h.b16 %v193
    %v512 = vunpack.c.l.b16 %v194
    %v513 = vunpack.c.h.b16 %v194
    %v514 = vunpack.c.l.b16 %v195
    %v515 = vunpack.c.h.b16 %v195
    %v516 = vunpack.c.l.b16 %v196
    %v517 = vunpack.c.h.b16 %v196
    %v518 = vunpack.c.l.b16 %v197
    %v519 = vunpack.c.h.b16 %v197
    %v520 = vunpack.c.l.b16 %v198
    %v521 = vunpack.c.h.b16 %v198
    %v522 = vunpack.c.l.b16 %v199
    %v523 = vunpack.c.h.b16 %v199
    %v524 = vunpack.c.l.b16 %v200
    %v525 = vunpack.c.h.b16 %v200
    %v526 = vunpack.c.l.b16 %v201
    %v527 = vunpack.c.h.b16 %v201
    %v528 = vunpack.c.l.b16 %v202
    %v529 = vunpack.c.h.b16 %v202
    %v530 = vunpack.c.l.b16 %v203
    %v531 = vunpack.c.h.b16 %v203
    %v532 = vunpack.c.l.b16 %v204
    %v533 = vunpack.c.h.b16 %v204
    %v534 = vunpack.c.l.b16 %v205
    %v535 = vunpack.c.h.b16 %v205
    %v536 = vunpack.c.l.b16 %v206
    %v537 = vunpack.c.h.b16 %v206
    %v538 = vunpack.c.l.b16 %v207
    %v539 = vunpack.c.h.b16 %v207
    %v540 = vunpack.c.l.b16 %v208
    %v541 = vunpack.c.h.b16 %v208
    %v542 = vunpack.c.l.b16 %v209
    %v543 = vunpack.c.h.b16 %v209
    %v544 = vunpack.c.l.b16 %v210
    %v545 = vunpack.c.h.b16 %v210
    %v546 = vunpack.c.l.b16 %v211
    %v547 = vunpack.c.h.b16 %v211
    %v548 = vunpack.c.l.b16 %v212
    %v549 = vunpack.c.h.b16 %v212
    %v550 = vunpack.c.l.b16 %v213
    %v551 = vunpack.c.h.b16 %v213
    %v552 = vunpack.c.l.b16 %v214
    %v553 = vunpack.c.h.b16 %v214
    %v554 = vunpack.c.l.b16 %v215
    %v555 = vunpack.c.h.b16 %v215
    %v556 = vunpack.c.l.b16 %v216
    %v557 = vunpack.c.h.b16 %v216
    %v558 = vunpack.c.l.b16 %v217
    %v559 = vunpack.c.h.b16 %v217
    %v560 = vunpack.c.l.b16 %v218
    %v561 = vunpack.c.h.b16 %v218
    %v562 = vunpack.c.l.b16 %v219
    %v563 = vunpack.c.h.b16 %v219
    %v564 = vunpack.c.l.b16 %v220
    %v565 = vunpack.c.h.b16 %v220
    %v566 = vunpack.c.l.b16 %v221
    %v567 = vunpack.c.h.b16 %v221
    %v568 = vunpack.c.l.b16 %v222
    %v569 = vunpack.c.h.b16 %v222
    %v570 = vunpack.c.l.b16 %v223
    %v571 = vunpack.c.h.b16 %v223
    %v572 = vunpack.c.l.b16 %v224
    %v573 = vunpack.c.h.b16 %v224
    %v574 = vunpack.c.l.b16 %v225
    %v575 = vunpack.c.h.b16 %v225
    %v576 = vunpack.c.l.b16 %v226
    %v577 = vunpack.c.h.b16 %v226
    %v578 = vunpack.c.l.b16 %v227
    %v579 = vunpack.c.h.b16 %v227
    %v580 = vunpack.c.l.b16 %v228
    %v581 = vunpack.c.h.b16 %v228
    %v582 = vunpack.c.l.b16 %v229
    %v583 = vunpack.c.h.b16 %v229
    %v584 = vunpack.c.l.b16 %v230
    %v585 = vunpack.c.h.b16 %v230
    %v586 = vunpack.c.l.b16 %v231
    %v587 = vunpack.c.h.b16 %v231
    %v588 = vunpack.c.l.b16 %v232
    %v589 = vunpack.c.h.b16 %v232
    %v590 = vunpack.c.l.b16 %v233
    %v591 = vunpack.c.h.b16 %v233
    %v592 = vunpack.c.l.b16 %v234
    %v593 = vunpack.c.h.b16 %v234
    %v594 = vunpack.c.l.b16 %v235
    %v595 = vunpack.c.h.b16 %v235
    %v596 = vunpack.c.l.b16 %v236
    %v597 = vunpack.c.h.b16 %v236
    %v598 = vunpack.c.l.b16 %v237
    %v599 = vunpack.c.h.b16 %v237
    %v600 = vunpack.c.l.b16 %v238
    %v601 = vunpack.c.h.b16 %v238
    %v602 = vunpack.c.l.b16 %v239
    %v603 = vunpack.c.h.b16 %v239
    %v604 = vunpack.c.l.b16 %v240
    %v605 = vunpack.c.h.b16 %v240
    %v606 = vunpack.c.l.b16 %v241
    %v607 = vunpack.c.h.b16 %v241
    %v608 = vunpack.c.l.b16 %v242
    %v609 = vunpack.c.h.b16 %v242
    %v610 = vunpack.c.l.b16 %v243
    %v611 = vunpack.c.h.b16 %v243
    %v612 = vunpack.c.l.b16 %v244
    %v613 = vunpack.c.h.b16 %v244
    %v614 = vunpack.c.l.b16 %v245
    %v615 = vunpack.c.h.b16 %v245
    %v616 = vunpack.c.l.b16 %v246
    %v617 = vunpack.c.h.b16 %v246
    %v618 = vunpack.c.l.b16 %v247
    %v619 = vunpack.c.h.b16 %v247
    %v620 = vunpack.c.l.b16 %v248
    %v621 = vunpack.c.h.b16 %v248
    %v622 = vunpack.c.l.b16 %v249
    %v623 = vunpack.c.h.b16 %v249
    %v624 = vunpack.c.l.b16 %v250
    %v625 = vunpack.c.h.b16 %v250
    %v626 = vunpack.c.l.b16 %v251
    %v627 = vunpack.c.h.b16 %v251
    %v628 = vunpack.c.l.b16 %v252
    %v629 = vunpack.c.h.b16 %v252
    %v630 = vunpack.c.l.b16 %v253
    %v631 = vunpack.c.h.b16 %v253
    %v632 = vunpack.c.l.b16 %v254
    %v633 = vunpack.c.h.b16 %v254
    %v634 = vunpack.c.l.b16 %v255
    %v635 = vunpack.c.h.b16 %v255
    %v636 = vunpack.c.l.b16 %v256
    %v637 = vunpack.c.h.b16 %v256
    %v638 = vunpack.c.l.b16 %v257
    %v639 = vunpack.c.h.b16 %v257
    %v640 = vunpack.c.l.b16 %v258
    %v641 = vunpack.c.h.b16 %v258
    %v642 = vunpack.c.l.b16 %v259
    %v643 = vunpack.c.h.b16 %v259
    %v644 = vunpack.c.l.b16 %v260
    %v645 = vunpack.c.h.b16 %v260
    %v646 = vunpack.c.l.b16 %v261
    %v647 = vunpack.c.h.b16 %v261
    %v648 = vunpack.c.l.b16 %v262
    %v649 = vunpack.c.h.b16 %v262
    %v650 = vunpack.c.l.b16 %v263
    %v651 = vunpack.c.h.b16 %v263
    %v652 = vunpack.c.l.b16 %v264
    %v653 = vunpack.c.h.b16 %v264
    %v654 = vunpack.c.l.b16 %v265
    %v655 = vunpack.c.h.b16 %v265
    %v656 = vunpack.c.l.b16 %v266
    %v657 = vunpack.c.h.b16 %v266
    %v658 = vunpack.c.l.b16 %v267
    %v659 = vunpack.c.h.b16 %v267
    %v660 = vunpack.c.l.b16 %v268
    %v661 = vunpack.c.h.b16 %v268
    %v662 = vunpack.c.l.b16 %v269
    %v663 = vunpack.c.h.b16 %v269
    %v664 = vpack.c.b16 %v412, %v408
    %v665 = vpack.c.b16 %v413, %v409
    %v666 = vpack.c.b16 %v414, %v410
    %v667 = vpack.c.b16 %v415, %v411
    %v668 = vpack.c.b16 %v420, %v416
    %v669 = vpack.c.b16 %v421, %v417
    %v670 = vpack.c.b16 %v422, %v418
    %v671 = vpack.c.b16 %v423, %v419
    %v672 = vpack.c.b16 %v428, %v424
    %v673 = vpack.c.b16 %v429, %v425
    %v674 = vpack.c.b16 %v430, %v426
    %v675 = vpack.c.b16 %v431, %v427
    %v676 = vpack.c.b16 %v436, %v432
    %v677 = vpack.c.b16 %v437, %v433
    %v678 = vpack.c.b16 %v438, %v434
    %v679 = vpack.c.b16 %v439, %v435
    %v680 = vpack.c.b16 %v444, %v440
    %v681 = vpack.c.b16 %v445, %v441
    %v682 = vpack.c.b16 %v446, %v442
    %v683 = vpack.c.b16 %v447, %v443
    %v684 = vpack.c.b16 %v452, %v448
    %v685 = vpack.c.b16 %v453, %v449
    %v686 = vpack.c.b16 %v454, %v450
    %v687 = vpack.c.b16 %v455, %v451
    %v688 = vpack.c.b16 %v460, %v456
    %v689 = vpack.c.b16 %v461, %v457
    %v690 = vpack.c.b16 %v462, %v458
    %v691 = vpack.c.b16 %v463, %v459
    %v692 = vpack.c.b16 %v468, %v464
    %v693 = vpack.c.b16 %v469, %v465
    %v694 = vpack.c.b16 %v470, %v466
    %v695 = vpack.c.b16 %v471, %v467
    %v696 = vpack.c.b16 %v476, %v472
    %v697 = vpack.c.b16 %v477, %v473
    %v698 = vpack.c.b16 %v478, %v474
    %v699 = vpack.c.b16 %v479, %v475
    %v700 = vpack.c.b16 %v484, %v480
    %v701 = vpack.c.b16 %v485, %v481
    %v702 = vpack.c.b16 %v486, %v482
    %v703 = vpack.c.b16 %v487, %v483
    %v704 = vpack.c.b16 %v492, %v488
    %v705 = vpack.c.b16 %v493, %v489
    %v706 = vpack.c.b16 %v494, %v490
    %v707 = vpack.c.b16 %v495, %v491
    %v708 = vpack.c.b16 %v500, %v496
    %v709 = vpack.c.b16 %v501, %v497
    %v710 = vpack.c.b16 %v502, %v498
    %v711 = vpack.c.b16 %v503, %v499
    %v712 = vpack.c.b16 %v508, %v504
    %v713 = vpack.c.b16 %v509, %v505
    %v714 = vpack.c.b16 %v510, %v506
    %v715 = vpack.c.b16 %v511, %v507
    %v716 = vpack.c.b16 %v516, %v512
    %v717 = vpack.c.b16 %v517, %v513
    %v718 = vpack.c.b16 %v518, %v514
    %v719 = vpack.c.b16 %v519, %v515
    %v720 = vpack.c.b16 %v524, %v520
    %v721 = vpack.c.b16 %v525, %v521
    %v722 = vpack.c.b16 %v526, %v522
    %v723 = vpack.c.b16 %v527, %v523
    %v724 = vpack.c.b16 %v532, %v528
    %v725 = vpack.c.b16 %v533, %v529
    %v726 = vpack.c.b16 %v534, %v530
    %v727 = vpack.c.b16 %v535, %v531
    %v728 = vpack.c.b16 %v540, %v536
    %v729 = vpack.c.b16 %v541, %v537
    %v730 = vpack.c.b16 %v542, %v538
    %v731 = vpack.c.b16 %v543, %v539
    %v732 = vpack.c.b16 %v548, %v544
    %v733 = vpack.c.b16 %v549, %v545
    %v734 = vpack.c.b16 %v550, %v546
    %v735 = vpack.c.b16 %v551, %v547
    %v736 = vpack.c.b16 %v556, %v552
    %v737 = vpack.c.b16 %v557, %v553
    %v738 = vpack.c.b16 %v558, %v554
    %v739 = vpack.c.b16 %v559, %v555
    %v740 = vpack.c.b16 %v564, %v560
    %v741 = vpack.c.b16 %v565, %v561
    %v742 = vpack.c.b16 %v566, %v562
    %v743 = vpack.c.b16 %v567, %v563
    %v744 = vpack.c.b16 %v572, %v568
    %v745 = vpack.c.b16 %v573, %v569
    %v746 = vpack.c.b16 %v574, %v570
    %v747 = vpack.c.b16 %v575, %v571
    %v748 = vpack.c.b16 %v580, %v576
    %v749 = vpack.c.b16 %v581, %v577
    %v750 = vpack.c.b16 %v582, %v578
    %v751 = vpack.c.b16 %v583, %v579
    %v752 = vpack.c.b16 %v588, %v584
    %v753 = vpack.c.b16 %v589, %v585
    %v754 = vpack.c.b16 %v590, %v586
    %v755 = vpack.c.b16 %v591, %v587
    %v756 = vpack.c.b16 %v596, %v592
    %v757 = vpack.c.b16 %v597, %v593
    %v758 = vpack.c.b16 %v598, %v594
    %v759 = vpack.c.b16 %v599, %v595
    %v760 = vpack.c.b16 %v604, %v600
    %v761 = vpack.c.b16 %v605, %v601
    %v762 = vpack.c.b16 %v606, %v602
    %v763 = vpack.c.b16 %v607, %v603
    %v764 = vpack.c.b16 %v612, %v608
    %v765 = vpack.c.b16 %v613, %v609
    %v766 = vpack.c.b16 %v614, %v610
    %v767 = vpack.c.b16 %v615, %v611
    %v768 = vpack.c.b16 %v620, %v616
    %v769 = vpack.c.b16 %v621, %v617
    %v770 = vpack.c.b16 %v622, %v618
    %v771 = vpack.c.b16 %v623, %v619
    %v772 = vpack.c.b16 %v628, %v624
    %v773 = vpack.c.b16 %v629, %v625
    %v774 = vpack.c.b16 %v630, %v626
    %v775 = vpack.c.b16 %v631, %v627
    %v776 = vpack.c.b16 %v636, %v632
    %v777 = vpack.c.b16 %v637, %v633
    %v778 = vpack.c.b16 %v638, %v634
    %v779 = vpack.c.b16 %v639, %v635
    %v780 = vpack.c.b16 %v644, %v640
    %v781 = vpack.c.b16 %v645, %v641
    %v782 = vpack.c.b16 %v646, %v642
    %v783 = vpack.c.b16 %v647, %v643
    %v784 = vpack.c.b16 %v652, %v648
    %v785 = vpack.c.b16 %v653, %v649
    %v786 = vpack.c.b16 %v654, %v650
    %v787 = vpack.c.b16 %v655, %v651
    %v788 = vpack.c.b16 %v660, %v656
    %v789 = vpack.c.b16 %v661, %v657
    %v790 = vpack.c.b16 %v662, %v658
    %v791 = vpack.c.b16 %v663, %v659
    %920 = vmatpush.bf16.msra.mxu0 %v692
    %921 = vmatpush.bf16.msra.mxu0 %v688
    %922 = vmatpush.bf16.msra.mxu0 %v684
    %923 = vmatpush.bf16.msra.mxu0 %v680
    %924 = vmatpush.bf16.msra.mxu0 %v676
    %925 = vmatpush.bf16.msra.mxu0 %v672
    %926 = vmatpush.bf16.msra.mxu0 %v668
    %927 = vmatpush.bf16.msra.mxu0 %v664
    %928 = vmatmul.bf16.gmra.mxu0 %v138
    %v929 = vpop.f32.mrf.mxu0
    %v930 = vadd.f32 %v272, %v929
    %v931 = vpop.f32.mrf.mxu0
    %v932 = vadd.f32 %v272, %v931
    %933 = vdwg.mxu0
    %934 = vmatpush.bf16.msra.mxu0 %v724
    %935 = vmatpush.bf16.msra.mxu0 %v720
    %936 = vmatpush.bf16.msra.mxu0 %v716
    %937 = vmatpush.bf16.msra.mxu0 %v712
    %938 = vmatpush.bf16.msra.mxu0 %v708
    %939 = vmatpush.bf16.msra.mxu0 %v704
    %940 = vmatpush.bf16.msra.mxu0 %v700
    %941 = vmatpush.bf16.msra.mxu0 %v696
    %942 = vmatmul.bf16.gmra.mxu0 %v139
    %v943 = vpop.f32.mrf.mxu0
    %v944 = vadd.f32 %v930, %v943
    %v945 = vpop.f32.mrf.mxu0
    %v946 = vadd.f32 %v932, %v945
    %947 = vdwg.mxu0
    %948 = vmatpush.bf16.msra.mxu0 %v756
    %949 = vmatpush.bf16.msra.mxu0 %v752
    %950 = vmatpush.bf16.msra.mxu0 %v748
    %951 = vmatpush.bf16.msra.mxu0 %v744
    %952 = vmatpush.bf16.msra.mxu0 %v740
    %953 = vmatpush.bf16.msra.mxu0 %v736
    %954 = vmatpush.bf16.msra.mxu0 %v732
    %955 = vmatpush.bf16.msra.mxu0 %v728
    %956 = vmatmul.bf16.gmra.mxu0 %v140
    %v957 = vpop.f32.mrf.mxu0
    %v958 = vadd.f32 %v944, %v957
    %v959 = vpop.f32.mrf.mxu0
    %v960 = vadd.f32 %v946, %v959
    %961 = vdwg.mxu0
    %962 = vmatpush.bf16.msra.mxu0 %v788
    %963 = vmatpush.bf16.msra.mxu0 %v784
    %964 = vmatpush.bf16.msra.mxu0 %v780
    %965 = vmatpush.bf16.msra.mxu0 %v776
    %966 = vmatpush.bf16.msra.mxu0 %v772
    %967 = vmatpush.bf16.msra.mxu0 %v768
    %968 = vmatpush.bf16.msra.mxu0 %v764
    %969 = vmatpush.bf16.msra.mxu0 %v760
    %970 = vmatmul.bf16.gmra.mxu0 %v141
    %v971 = vpop.f32.mrf.mxu0
    %v972 = vadd.f32 %v958, %v971
    %v973 = vpop.f32.mrf.mxu0
    %v974 = vadd.f32 %v960, %v973
    %975 = vdwg.mxu0
    %976 = vmatpush.bf16.msra.mxu0 %v693
    %977 = vmatpush.bf16.msra.mxu0 %v689
    %978 = vmatpush.bf16.msra.mxu0 %v685
    %979 = vmatpush.bf16.msra.mxu0 %v681
    %980 = vmatpush.bf16.msra.mxu0 %v677
    %981 = vmatpush.bf16.msra.mxu0 %v673
    %982 = vmatpush.bf16.msra.mxu0 %v669
    %983 = vmatpush.bf16.msra.mxu0 %v665
    %984 = vmatmul.bf16.gmra.mxu0 %v138
    %v985 = vpop.f32.mrf.mxu0
    %v986 = vadd.f32 %v273, %v985
    %v987 = vpop.f32.mrf.mxu0
    %v988 = vadd.f32 %v273, %v987
    %989 = vdwg.mxu0
    %990 = vmatpush.bf16.msra.mxu0 %v725
    %991 = vmatpush.bf16.msra.mxu0 %v721
    %992 = vmatpush.bf16.msra.mxu0 %v717
    %993 = vmatpush.bf16.msra.mxu0 %v713
    %994 = vmatpush.bf16.msra.mxu0 %v709
    %995 = vmatpush.bf16.msra.mxu0 %v705
    %996 = vmatpush.bf16.msra.mxu0 %v701
    %997 = vmatpush.bf16.msra.mxu0 %v697
    %998 = vmatmul.bf16.gmra.mxu0 %v139
    %v999 = vpop.f32.mrf.mxu0
    %v1000 = vadd.f32 %v986, %v999
    %v1001 = vpop.f32.mrf.mxu0
    %v1002 = vadd.f32 %v988, %v1001
    %1003 = vdwg.mxu0
    %1004 = vmatpush.bf16.msra.mxu0 %v757
    %1005 = vmatpush.bf16.msra.mxu0 %v753
    %1006 = vmatpush.bf16.msra.mxu0 %v749
    %1007 = vmatpush.bf16.msra.mxu0 %v745
    %1008 = vmatpush.bf16.msra.mxu0 %v741
    %1009 = vmatpush.bf16.msra.mxu0 %v737
    %1010 = vmatpush.bf16.msra.mxu0 %v733
    %1011 = vmatpush.bf16.msra.mxu0 %v729
    %1012 = vmatmul.bf16.gmra.mxu0 %v140
    %v1013 = vpop.f32.mrf.mxu0
    %v1014 = vadd.f32 %v1000, %v1013
    %v1015 = vpop.f32.mrf.mxu0
    %v1016 = vadd.f32 %v1002, %v1015
    %1017 = vdwg.mxu0
    %1018 = vmatpush.bf16.msra.mxu0 %v789
    %1019 = vmatpush.bf16.msra.mxu0 %v785
    %1020 = vmatpush.bf16.msra.mxu0 %v781
    %1021 = vmatpush.bf16.msra.mxu0 %v777
    %1022 = vmatpush.bf16.msra.mxu0 %v773
    %1023 = vmatpush.bf16.msra.mxu0 %v769
    %1024 = vmatpush.bf16.msra.mxu0 %v765
    %1025 = vmatpush.bf16.msra.mxu0 %v761
    %1026 = vmatmul.bf16.gmra.mxu0 %v141
    %v1027 = vpop.f32.mrf.mxu0
    %v1028 = vadd.f32 %v1014, %v1027
    %v1029 = vpop.f32.mrf.mxu0
    %v1030 = vadd.f32 %v1016, %v1029
    %1031 = vdwg.mxu0
    %1032 = vmatpush.bf16.msra.mxu0 %v694
    %1033 = vmatpush.bf16.msra.mxu0 %v690
    %1034 = vmatpush.bf16.msra.mxu0 %v686
    %1035 = vmatpush.bf16.msra.mxu0 %v682
    %1036 = vmatpush.bf16.msra.mxu0 %v678
    %1037 = vmatpush.bf16.msra.mxu0 %v674
    %1038 = vmatpush.bf16.msra.mxu0 %v670
    %1039 = vmatpush.bf16.msra.mxu0 %v666
    %1040 = vmatmul.bf16.gmra.mxu0 %v138
    %v1041 = vpop.f32.mrf.mxu0
    %v1042 = vadd.f32 %v274, %v1041
    %v1043 = vpop.f32.mrf.mxu0
    %v1044 = vadd.f32 %v274, %v1043
    %1045 = vdwg.mxu0
    %1046 = vmatpush.bf16.msra.mxu0 %v726
    %1047 = vmatpush.bf16.msra.mxu0 %v722
    %1048 = vmatpush.bf16.msra.mxu0 %v718
    %1049 = vmatpush.bf16.msra.mxu0 %v714
    %1050 = vmatpush.bf16.msra.mxu0 %v710
    %1051 = vmatpush.bf16.msra.mxu0 %v706
    %1052 = vmatpush.bf16.msra.mxu0 %v702
    %1053 = vmatpush.bf16.msra.mxu0 %v698
    %1054 = vmatmul.bf16.gmra.mxu0 %v139
    %v1055 = vpop.f32.mrf.mxu0
    %v1056 = vadd.f32 %v1042, %v1055
    %v1057 = vpop.f32.mrf.mxu0
    %v1058 = vadd.f32 %v1044, %v1057
    %1059 = vdwg.mxu0
    %1060 = vmatpush.bf16.msra.mxu0 %v758
    %1061 = vmatpush.bf16.msra.mxu0 %v754
    %1062 = vmatpush.bf16.msra.mxu0 %v750
    %1063 = vmatpush.bf16.msra.mxu0 %v746
    %1064 = vmatpush.bf16.msra.mxu0 %v742
    %1065 = vmatpush.bf16.msra.mxu0 %v738
    %1066 = vmatpush.bf16.msra.mxu0 %v734
    %1067 = vmatpush.bf16.msra.mxu0 %v730
    %1068 = vmatmul.bf16.gmra.mxu0 %v140
    %v1069 = vpop.f32.mrf.mxu0
    %v1070 = vadd.f32 %v1056, %v1069
    %v1071 = vpop.f32.mrf.mxu0
    %v1072 = vadd.f32 %v1058, %v1071
    %1073 = vdwg.mxu0
    %1074 = vmatpush.bf16.msra.mxu0 %v790
    %1075 = vmatpush.bf16.msra.mxu0 %v786
    %1076 = vmatpush.bf16.msra.mxu0 %v782
    %1077 = vmatpush.bf16.msra.mxu0 %v778
    %1078 = vmatpush.bf16.msra.mxu0 %v774
    %1079 = vmatpush.bf16.msra.mxu0 %v770
    %1080 = vmatpush.bf16.msra.mxu0 %v766
    %1081 = vmatpush.bf16.msra.mxu0 %v762
    %1082 = vmatmul.bf16.gmra.mxu0 %v141
    %v1083 = vpop.f32.mrf.mxu0
    %v1084 = vadd.f32 %v1070, %v1083
    %v1085 = vpop.f32.mrf.mxu0
    %v1086 = vadd.f32 %v1072, %v1085
    %1087 = vdwg.mxu0
    %1088 = vmatpush.bf16.msra.mxu0 %v695
    %1089 = vmatpush.bf16.msra.mxu0 %v691
    %1090 = vmatpush.bf16.msra.mxu0 %v687
    %1091 = vmatpush.bf16.msra.mxu0 %v683
    %1092 = vmatpush.bf16.msra.mxu0 %v679
    %1093 = vmatpush.bf16.msra.mxu0 %v675
    %1094 = vmatpush.bf16.msra.mxu0 %v671
    %1095 = vmatpush.bf16.msra.mxu0 %v667
    %1096 = vmatmul.bf16.gmra.mxu0 %v138
    %v1097 = vpop.f32.mrf.mxu0
    %v1098 = vadd.f32 %v275, %v1097
    %v1099 = vpop.f32.mrf.mxu0
    %v1100 = vadd.f32 %v275, %v1099
    %1101 = vdwg.mxu0
    %1102 = vmatpush.bf16.msra.mxu0 %v727
    %1103 = vmatpush.bf16.msra.mxu0 %v723
    %1104 = vmatpush.bf16.msra.mxu0 %v719
    %1105 = vmatpush.bf16.msra.mxu0 %v715
    %1106 = vmatpush.bf16.msra.mxu0 %v711
    %1107 = vmatpush.bf16.msra.mxu0 %v707
    %1108 = vmatpush.bf16.msra.mxu0 %v703
    %1109 = vmatpush.bf16.msra.mxu0 %v699
    %1110 = vmatmul.bf16.gmra.mxu0 %v139
    %v1111 = vpop.f32.mrf.mxu0
    %v1112 = vadd.f32 %v1098, %v1111
    %v1113 = vpop.f32.mrf.mxu0
    %v1114 = vadd.f32 %v1100, %v1113
    %1115 = vdwg.mxu0
    %1116 = vmatpush.bf16.msra.mxu0 %v759
    %1117 = vmatpush.bf16.msra.mxu0 %v755
    %1118 = vmatpush.bf16.msra.mxu0 %v751
    %1119 = vmatpush.bf16.msra.mxu0 %v747
    %1120 = vmatpush.bf16.msra.mxu0 %v743
    %1121 = vmatpush.bf16.msra.mxu0 %v739
    %1122 = vmatpush.bf16.msra.mxu0 %v735
    %1123 = vmatpush.bf16.msra.mxu0 %v731
    %1124 = vmatmul.bf16.gmra.mxu0 %v140
    %v1125 = vpop.f32.mrf.mxu0
    %v1126 = vadd.f32 %v1112, %v1125
    %v1127 = vpop.f32.mrf.mxu0
    %v1128 = vadd.f32 %v1114, %v1127
    %1129 = vdwg.mxu0
    %1130 = vmatpush.bf16.msra.mxu0 %v791
    %1131 = vmatpush.bf16.msra.mxu0 %v787
    %1132 = vmatpush.bf16.msra.mxu0 %v783
    %1133 = vmatpush.bf16.msra.mxu0 %v779
    %1134 = vmatpush.bf16.msra.mxu0 %v775
    %1135 = vmatpush.bf16.msra.mxu0 %v771
    %1136 = vmatpush.bf16.msra.mxu0 %v767
    %1137 = vmatpush.bf16.msra.mxu0 %v763
    %1138 = vmatmul.bf16.gmra.mxu0 %v141
    %v1139 = vpop.f32.mrf.mxu0
    %v1140 = vadd.f32 %v1126, %v1139
    %v1141 = vpop.f32.mrf.mxu0
    %v1142 = vadd.f32 %v1128, %v1141
    %1143 = vdwg.mxu0
    %v1144 = vmax.f32 %v972, 0.0
    %v1145 = vmax.f32 %v1028, 0.0
    %v1146 = vmax.f32 %v1084, 0.0
    %v1147 = vmax.f32 %v1140, 0.0
    %v1148 = vmax.f32 %v974, 0.0
    %v1149 = vmax.f32 %v1030, 0.0
    %v1150 = vmax.f32 %v1086, 0.0
    %v1151 = vmax.f32 %v1142, 0.0
    %v1152 = vpack.c.bf16 %v1148, %v1144
    %v1153 = vpack.c.bf16 %v1149, %v1145
    %v1154 = vpack.c.bf16 %v1150, %v1146
    %v1155 = vpack.c.bf16 %v1151, %v1147
    %v1156 = vld [vmem:[#allocation8] sm:$0xff]
    %v1157 = vld [vmem:[#allocation8 + $0x8] sm:$0xff]
    %v1158 = vld [vmem:[#allocation8 + $0x10] sm:$0xff]
    %v1159 = vld [vmem:[#allocation8 + $0x18] sm:$0xff]
    %v1160 = vld [vmem:[#allocation8 + $0x20] sm:$0xff]
    %v1161 = vld [vmem:[#allocation8 + $0x28] sm:$0xff]
    %v1162 = vld [vmem:[#allocation8 + $0x30] sm:$0xff]
    %v1163 = vld [vmem:[#allocation8 + $0x38] sm:$0xff]
    %v1164 = vld [vmem:[#allocation8 + $0x40] sm:$0xff]
    %v1165 = vld [vmem:[#allocation8 + $0x48] sm:$0xff]
    %v1166 = vld [vmem:[#allocation8 + $0x50] sm:$0xff]
    %v1167 = vld [vmem:[#allocation8 + $0x58] sm:$0xff]
    %v1168 = vld [vmem:[#allocation8 + $0x60] sm:$0xff]
    %v1169 = vld [vmem:[#allocation8 + $0x68] sm:$0xff]
    %v1170 = vld [vmem:[#allocation8 + $0x70] sm:$0xff]
    %v1171 = vld [vmem:[#allocation8 + $0x78] sm:$0xff]
    %v1172 = vld [vmem:[#allocation8 + $0x80] sm:$0xff]
    %v1173 = vld [vmem:[#allocation8 + $0x88] sm:$0xff]
    %v1174 = vld [vmem:[#allocation8 + $0x90] sm:$0xff]
    %v1175 = vld [vmem:[#allocation8 + $0x98] sm:$0xff]
    %v1176 = vld [vmem:[#allocation8 + $0xa0] sm:$0xff]
    %v1177 = vld [vmem:[#allocation8 + $0xa8] sm:$0xff]
    %v1178 = vld [vmem:[#allocation8 + $0xb0] sm:$0xff]
    %v1179 = vld [vmem:[#allocation8 + $0xb8] sm:$0xff]
    %v1180 = vld [vmem:[#allocation8 + $0xc0] sm:$0xff]
    %v1181 = vld [vmem:[#allocation8 + $0xc8] sm:$0xff]
    %v1182 = vld [vmem:[#allocation8 + $0xd0] sm:$0xff]
    %v1183 = vld [vmem:[#allocation8 + $0xd8] sm:$0xff]
    %v1184 = vld [vmem:[#allocation8 + $0xe0] sm:$0xff]
    %v1185 = vld [vmem:[#allocation8 + $0xe8] sm:$0xff]
    %v1186 = vld [vmem:[#allocation8 + $0xf0] sm:$0xff]
    %v1187 = vld [vmem:[#allocation8 + $0xf8] sm:$0xff]
    %v1188 = vld [vmem:[#allocation8 + $0x100] sm:$0xff]
    %v1189 = vld [vmem:[#allocation8 + $0x108] sm:$0xff]
    %v1190 = vld [vmem:[#allocation8 + $0x110] sm:$0xff]
    %v1191 = vld [vmem:[#allocation8 + $0x118] sm:$0xff]
    %v1192 = vld [vmem:[#allocation8 + $0x120] sm:$0xff]
    %v1193 = vld [vmem:[#allocation8 + $0x128] sm:$0xff]
    %v1194 = vld [vmem:[#allocation8 + $0x130] sm:$0xff]
    %v1195 = vld [vmem:[#allocation8 + $0x138] sm:$0xff]
    %v1196 = vld [vmem:[#allocation8 + $0x140] sm:$0xff]
    %v1197 = vld [vmem:[#allocation8 + $0x148] sm:$0xff]
    %v1198 = vld [vmem:[#allocation8 + $0x150] sm:$0xff]
    %v1199 = vld [vmem:[#allocation8 + $0x158] sm:$0xff]
    %v1200 = vld [vmem:[#allocation8 + $0x160] sm:$0xff]
    %v1201 = vld [vmem:[#allocation8 + $0x168] sm:$0xff]
    %v1202 = vld [vmem:[#allocation8 + $0x170] sm:$0xff]
    %v1203 = vld [vmem:[#allocation8 + $0x178] sm:$0xff]
    %v1204 = vld [vmem:[#allocation8 + $0x180] sm:$0xff]
    %v1205 = vld [vmem:[#allocation8 + $0x188] sm:$0xff]
    %v1206 = vld [vmem:[#allocation8 + $0x190] sm:$0xff]
    %v1207 = vld [vmem:[#allocation8 + $0x198] sm:$0xff]
    %v1208 = vld [vmem:[#allocation8 + $0x1a0] sm:$0xff]
    %v1209 = vld [vmem:[#allocation8 + $0x1a8] sm:$0xff]
    %v1210 = vld [vmem:[#allocation8 + $0x1b0] sm:$0xff]
    %v1211 = vld [vmem:[#allocation8 + $0x1b8] sm:$0xff]
    %v1212 = vld [vmem:[#allocation8 + $0x1c0] sm:$0xff]
    %v1213 = vld [vmem:[#allocation8 + $0x1c8] sm:$0xff]
    %v1214 = vld [vmem:[#allocation8 + $0x1d0] sm:$0xff]
    %v1215 = vld [vmem:[#allocation8 + $0x1d8] sm:$0xff]
    %v1216 = vld [vmem:[#allocation8 + $0x1e0] sm:$0xff]
    %v1217 = vld [vmem:[#allocation8 + $0x1e8] sm:$0xff]
    %v1218 = vld [vmem:[#allocation8 + $0x1f0] sm:$0xff]
    %v1219 = vld [vmem:[#allocation8 + $0x1f8] sm:$0xff]
    %v1220 = vld [vmem:[#allocation8 + $0x200] sm:$0xff]
    %v1221 = vld [vmem:[#allocation8 + $0x208] sm:$0xff]
    %v1222 = vld [vmem:[#allocation8 + $0x210] sm:$0xff]
    %v1223 = vld [vmem:[#allocation8 + $0x218] sm:$0xff]
    %v1224 = vld [vmem:[#allocation8 + $0x220] sm:$0xff]
    %v1225 = vld [vmem:[#allocation8 + $0x228] sm:$0xff]
    %v1226 = vld [vmem:[#allocation8 + $0x230] sm:$0xff]
    %v1227 = vld [vmem:[#allocation8 + $0x238] sm:$0xff]
    %v1228 = vld [vmem:[#allocation8 + $0x240] sm:$0xff]
    %v1229 = vld [vmem:[#allocation8 + $0x248] sm:$0xff]
    %v1230 = vld [vmem:[#allocation8 + $0x250] sm:$0xff]
    %v1231 = vld [vmem:[#allocation8 + $0x258] sm:$0xff]
    %v1232 = vld [vmem:[#allocation8 + $0x260] sm:$0xff]
    %v1233 = vld [vmem:[#allocation8 + $0x268] sm:$0xff]
    %v1234 = vld [vmem:[#allocation8 + $0x270] sm:$0xff]
    %v1235 = vld [vmem:[#allocation8 + $0x278] sm:$0xff]
    %v1236 = vld [vmem:[#allocation8 + $0x280] sm:$0xff]
    %v1237 = vld [vmem:[#allocation8 + $0x288] sm:$0xff]
    %v1238 = vld [vmem:[#allocation8 + $0x290] sm:$0xff]
    %v1239 = vld [vmem:[#allocation8 + $0x298] sm:$0xff]
    %v1240 = vld [vmem:[#allocation8 + $0x2a0] sm:$0xff]
    %v1241 = vld [vmem:[#allocation8 + $0x2a8] sm:$0xff]
    %v1242 = vld [vmem:[#allocation8 + $0x2b0] sm:$0xff]
    %v1243 = vld [vmem:[#allocation8 + $0x2b8] sm:$0xff]
    %v1244 = vld [vmem:[#allocation8 + $0x2c0] sm:$0xff]
    %v1245 = vld [vmem:[#allocation8 + $0x2c8] sm:$0xff]
    %v1246 = vld [vmem:[#allocation8 + $0x2d0] sm:$0xff]
    %v1247 = vld [vmem:[#allocation8 + $0x2d8] sm:$0xff]
    %v1248 = vld [vmem:[#allocation8 + $0x2e0] sm:$0xff]
    %v1249 = vld [vmem:[#allocation8 + $0x2e8] sm:$0xff]
    %v1250 = vld [vmem:[#allocation8 + $0x2f0] sm:$0xff]
    %v1251 = vld [vmem:[#allocation8 + $0x2f8] sm:$0xff]
    %v1252 = vld [vmem:[#allocation8 + $0x300] sm:$0xff]
    %v1253 = vld [vmem:[#allocation8 + $0x308] sm:$0xff]
    %v1254 = vld [vmem:[#allocation8 + $0x310] sm:$0xff]
    %v1255 = vld [vmem:[#allocation8 + $0x318] sm:$0xff]
    %v1256 = vld [vmem:[#allocation8 + $0x320] sm:$0xff]
    %v1257 = vld [vmem:[#allocation8 + $0x328] sm:$0xff]
    %v1258 = vld [vmem:[#allocation8 + $0x330] sm:$0xff]
    %v1259 = vld [vmem:[#allocation8 + $0x338] sm:$0xff]
    %v1260 = vld [vmem:[#allocation8 + $0x340] sm:$0xff]
    %v1261 = vld [vmem:[#allocation8 + $0x348] sm:$0xff]
    %v1262 = vld [vmem:[#allocation8 + $0x350] sm:$0xff]
    %v1263 = vld [vmem:[#allocation8 + $0x358] sm:$0xff]
    %v1264 = vld [vmem:[#allocation8 + $0x360] sm:$0xff]
    %v1265 = vld [vmem:[#allocation8 + $0x368] sm:$0xff]
    %v1266 = vld [vmem:[#allocation8 + $0x370] sm:$0xff]
    %v1267 = vld [vmem:[#allocation8 + $0x378] sm:$0xff]
    %v1268 = vld [vmem:[#allocation8 + $0x380] sm:$0xff]
    %v1269 = vld [vmem:[#allocation8 + $0x388] sm:$0xff]
    %v1270 = vld [vmem:[#allocation8 + $0x390] sm:$0xff]
    %v1271 = vld [vmem:[#allocation8 + $0x398] sm:$0xff]
    %v1272 = vld [vmem:[#allocation8 + $0x3a0] sm:$0xff]
    %v1273 = vld [vmem:[#allocation8 + $0x3a8] sm:$0xff]
    %v1274 = vld [vmem:[#allocation8 + $0x3b0] sm:$0xff]
    %v1275 = vld [vmem:[#allocation8 + $0x3b8] sm:$0xff]
    %v1276 = vld [vmem:[#allocation8 + $0x3c0] sm:$0xff]
    %v1277 = vld [vmem:[#allocation8 + $0x3c8] sm:$0xff]
    %v1278 = vld [vmem:[#allocation8 + $0x3d0] sm:$0xff]
    %v1279 = vld [vmem:[#allocation8 + $0x3d8] sm:$0xff]
    %v1280 = vld [vmem:[#allocation8 + $0x3e0] sm:$0xff]
    %v1281 = vld [vmem:[#allocation8 + $0x3e8] sm:$0xff]
    %v1282 = vld [vmem:[#allocation8 + $0x3f0] sm:$0xff]
    %v1283 = vld [vmem:[#allocation8 + $0x3f8] sm:$0xff]
    %v1284 = vld [vmem:[#allocation8 + $0x400] sm:$0xff]
    %v1285 = vld [vmem:[#allocation8 + $0x408] sm:$0xff]
    %v1286 = vld [vmem:[#allocation8 + $0x410] sm:$0xff]
    %v1287 = vld [vmem:[#allocation8 + $0x418] sm:$0xff]
    %v1288 = vld [vmem:[#allocation8 + $0x420] sm:$0xff]
    %v1289 = vld [vmem:[#allocation8 + $0x428] sm:$0xff]
    %v1290 = vld [vmem:[#allocation8 + $0x430] sm:$0xff]
    %v1291 = vld [vmem:[#allocation8 + $0x438] sm:$0xff]
    %v1292 = vld [vmem:[#allocation8 + $0x440] sm:$0xff]
    %v1293 = vld [vmem:[#allocation8 + $0x448] sm:$0xff]
    %v1294 = vld [vmem:[#allocation8 + $0x450] sm:$0xff]
    %v1295 = vld [vmem:[#allocation8 + $0x458] sm:$0xff]
    %v1296 = vld [vmem:[#allocation8 + $0x460] sm:$0xff]
    %v1297 = vld [vmem:[#allocation8 + $0x468] sm:$0xff]
    %v1298 = vld [vmem:[#allocation8 + $0x470] sm:$0xff]
    %v1299 = vld [vmem:[#allocation8 + $0x478] sm:$0xff]
    %v1300 = vld [vmem:[#allocation8 + $0x480] sm:$0xff]
    %v1301 = vld [vmem:[#allocation8 + $0x488] sm:$0xff]
    %v1302 = vld [vmem:[#allocation8 + $0x490] sm:$0xff]
    %v1303 = vld [vmem:[#allocation8 + $0x498] sm:$0xff]
    %v1304 = vld [vmem:[#allocation8 + $0x4a0] sm:$0xff]
    %v1305 = vld [vmem:[#allocation8 + $0x4a8] sm:$0xff]
    %v1306 = vld [vmem:[#allocation8 + $0x4b0] sm:$0xff]
    %v1307 = vld [vmem:[#allocation8 + $0x4b8] sm:$0xff]
    %v1308 = vld [vmem:[#allocation8 + $0x4c0] sm:$0xff]
    %v1309 = vld [vmem:[#allocation8 + $0x4c8] sm:$0xff]
    %v1310 = vld [vmem:[#allocation8 + $0x4d0] sm:$0xff]
    %v1311 = vld [vmem:[#allocation8 + $0x4d8] sm:$0xff]
    %v1312 = vld [vmem:[#allocation8 + $0x4e0] sm:$0xff]
    %v1313 = vld [vmem:[#allocation8 + $0x4e8] sm:$0xff]
    %v1314 = vld [vmem:[#allocation8 + $0x4f0] sm:$0xff]
    %v1315 = vld [vmem:[#allocation8 + $0x4f8] sm:$0xff]
    %v1316 = vld [vmem:[#allocation8 + $0x500] sm:$0xff]
    %v1317 = vld [vmem:[#allocation8 + $0x508] sm:$0xff]
    %v1318 = vld [vmem:[#allocation8 + $0x510] sm:$0xff]
    %v1319 = vld [vmem:[#allocation8 + $0x518] sm:$0xff]
    %v1320 = vld [vmem:[#allocation8 + $0x520] sm:$0xff]
    %v1321 = vld [vmem:[#allocation8 + $0x528] sm:$0xff]
    %v1322 = vld [vmem:[#allocation8 + $0x530] sm:$0xff]
    %v1323 = vld [vmem:[#allocation8 + $0x538] sm:$0xff]
    %v1324 = vld [vmem:[#allocation8 + $0x540] sm:$0xff]
    %v1325 = vld [vmem:[#allocation8 + $0x548] sm:$0xff]
    %v1326 = vld [vmem:[#allocation8 + $0x550] sm:$0xff]
    %v1327 = vld [vmem:[#allocation8 + $0x558] sm:$0xff]
    %v1328 = vld [vmem:[#allocation8 + $0x560] sm:$0xff]
    %v1329 = vld [vmem:[#allocation8 + $0x568] sm:$0xff]
    %v1330 = vld [vmem:[#allocation8 + $0x570] sm:$0xff]
    %v1331 = vld [vmem:[#allocation8 + $0x578] sm:$0xff]
    %v1332 = vld [vmem:[#allocation8 + $0x580] sm:$0xff]
    %v1333 = vld [vmem:[#allocation8 + $0x588] sm:$0xff]
    %v1334 = vld [vmem:[#allocation8 + $0x590] sm:$0xff]
    %v1335 = vld [vmem:[#allocation8 + $0x598] sm:$0xff]
    %v1336 = vld [vmem:[#allocation8 + $0x5a0] sm:$0xff]
    %v1337 = vld [vmem:[#allocation8 + $0x5a8] sm:$0xff]
    %v1338 = vld [vmem:[#allocation8 + $0x5b0] sm:$0xff]
    %v1339 = vld [vmem:[#allocation8 + $0x5b8] sm:$0xff]
    %v1340 = vld [vmem:[#allocation8 + $0x5c0] sm:$0xff]
    %v1341 = vld [vmem:[#allocation8 + $0x5c8] sm:$0xff]
    %v1342 = vld [vmem:[#allocation8 + $0x5d0] sm:$0xff]
    %v1343 = vld [vmem:[#allocation8 + $0x5d8] sm:$0xff]
    %v1344 = vld [vmem:[#allocation8 + $0x5e0] sm:$0xff]
    %v1345 = vld [vmem:[#allocation8 + $0x5e8] sm:$0xff]
    %v1346 = vld [vmem:[#allocation8 + $0x5f0] sm:$0xff]
    %v1347 = vld [vmem:[#allocation8 + $0x5f8] sm:$0xff]
    %v1348 = vld [vmem:[#allocation8 + $0x600] sm:$0xff]
    %v1349 = vld [vmem:[#allocation8 + $0x608] sm:$0xff]
    %v1350 = vld [vmem:[#allocation8 + $0x610] sm:$0xff]
    %v1351 = vld [vmem:[#allocation8 + $0x618] sm:$0xff]
    %v1352 = vld [vmem:[#allocation8 + $0x620] sm:$0xff]
    %v1353 = vld [vmem:[#allocation8 + $0x628] sm:$0xff]
    %v1354 = vld [vmem:[#allocation8 + $0x630] sm:$0xff]
    %v1355 = vld [vmem:[#allocation8 + $0x638] sm:$0xff]
    %v1356 = vld [vmem:[#allocation8 + $0x640] sm:$0xff]
    %v1357 = vld [vmem:[#allocation8 + $0x648] sm:$0xff]
    %v1358 = vld [vmem:[#allocation8 + $0x650] sm:$0xff]
    %v1359 = vld [vmem:[#allocation8 + $0x658] sm:$0xff]
    %v1360 = vld [vmem:[#allocation8 + $0x660] sm:$0xff]
    %v1361 = vld [vmem:[#allocation8 + $0x668] sm:$0xff]
    %v1362 = vld [vmem:[#allocation8 + $0x670] sm:$0xff]
    %v1363 = vld [vmem:[#allocation8 + $0x678] sm:$0xff]
    %v1364 = vld [vmem:[#allocation8 + $0x680] sm:$0xff]
    %v1365 = vld [vmem:[#allocation8 + $0x688] sm:$0xff]
    %v1366 = vld [vmem:[#allocation8 + $0x690] sm:$0xff]
    %v1367 = vld [vmem:[#allocation8 + $0x698] sm:$0xff]
    %v1368 = vld [vmem:[#allocation8 + $0x6a0] sm:$0xff]
    %v1369 = vld [vmem:[#allocation8 + $0x6a8] sm:$0xff]
    %v1370 = vld [vmem:[#allocation8 + $0x6b0] sm:$0xff]
    %v1371 = vld [vmem:[#allocation8 + $0x6b8] sm:$0xff]
    %v1372 = vld [vmem:[#allocation8 + $0x6c0] sm:$0xff]
    %v1373 = vld [vmem:[#allocation8 + $0x6c8] sm:$0xff]
    %v1374 = vld [vmem:[#allocation8 + $0x6d0] sm:$0xff]
    %v1375 = vld [vmem:[#allocation8 + $0x6d8] sm:$0xff]
    %v1376 = vld [vmem:[#allocation8 + $0x6e0] sm:$0xff]
    %v1377 = vld [vmem:[#allocation8 + $0x6e8] sm:$0xff]
    %v1378 = vld [vmem:[#allocation8 + $0x6f0] sm:$0xff]
    %v1379 = vld [vmem:[#allocation8 + $0x6f8] sm:$0xff]
    %v1380 = vld [vmem:[#allocation8 + $0x700] sm:$0xff]
    %v1381 = vld [vmem:[#allocation8 + $0x708] sm:$0xff]
    %v1382 = vld [vmem:[#allocation8 + $0x710] sm:$0xff]
    %v1383 = vld [vmem:[#allocation8 + $0x718] sm:$0xff]
    %v1384 = vld [vmem:[#allocation8 + $0x720] sm:$0xff]
    %v1385 = vld [vmem:[#allocation8 + $0x728] sm:$0xff]
    %v1386 = vld [vmem:[#allocation8 + $0x730] sm:$0xff]
    %v1387 = vld [vmem:[#allocation8 + $0x738] sm:$0xff]
    %v1388 = vld [vmem:[#allocation8 + $0x740] sm:$0xff]
    %v1389 = vld [vmem:[#allocation8 + $0x748] sm:$0xff]
    %v1390 = vld [vmem:[#allocation8 + $0x750] sm:$0xff]
    %v1391 = vld [vmem:[#allocation8 + $0x758] sm:$0xff]
    %v1392 = vld [vmem:[#allocation8 + $0x760] sm:$0xff]
    %v1393 = vld [vmem:[#allocation8 + $0x768] sm:$0xff]
    %v1394 = vld [vmem:[#allocation8 + $0x770] sm:$0xff]
    %v1395 = vld [vmem:[#allocation8 + $0x778] sm:$0xff]
    %v1396 = vld [vmem:[#allocation8 + $0x780] sm:$0xff]
    %v1397 = vld [vmem:[#allocation8 + $0x788] sm:$0xff]
    %v1398 = vld [vmem:[#allocation8 + $0x790] sm:$0xff]
    %v1399 = vld [vmem:[#allocation8 + $0x798] sm:$0xff]
    %v1400 = vld [vmem:[#allocation8 + $0x7a0] sm:$0xff]
    %v1401 = vld [vmem:[#allocation8 + $0x7a8] sm:$0xff]
    %v1402 = vld [vmem:[#allocation8 + $0x7b0] sm:$0xff]
    %v1403 = vld [vmem:[#allocation8 + $0x7b8] sm:$0xff]
    %v1404 = vld [vmem:[#allocation8 + $0x7c0] sm:$0xff]
    %v1405 = vld [vmem:[#allocation8 + $0x7c8] sm:$0xff]
    %v1406 = vld [vmem:[#allocation8 + $0x7d0] sm:$0xff]
    %v1407 = vld [vmem:[#allocation8 + $0x7d8] sm:$0xff]
    %v1408 = vld [vmem:[#allocation8 + $0x7e0] sm:$0xff]
    %v1409 = vld [vmem:[#allocation8 + $0x7e8] sm:$0xff]
    %v1410 = vld [vmem:[#allocation8 + $0x7f0] sm:$0xff]
    %v1411 = vld [vmem:[#allocation8 + $0x7f8] sm:$0xff]
    %v1412 = vld [vmem:[#allocation10] sm:$0xff]
    %v1414 = vperm.slane %v1412, 0
    %v1415 = vperm.slane %v1412, 1
    %v1416 = vperm.slane %v1412, 2
    %v1417 = vperm.slane %v1412, 3
    %v1418 = vperm.slane %v1412, 4
    %v1419 = vperm.slane %v1412, 5
    %v1420 = vperm.slane %v1412, 6
    %v1421 = vperm.slane %v1412, 7
    %v1686 = vunpack.c.l.b16 %v1156
    %v1687 = vunpack.c.h.b16 %v1156
    %v1688 = vunpack.c.l.b16 %v1157
    %v1689 = vunpack.c.h.b16 %v1157
    %v1690 = vunpack.c.l.b16 %v1158
    %v1691 = vunpack.c.h.b16 %v1158
    %v1692 = vunpack.c.l.b16 %v1159
    %v1693 = vunpack.c.h.b16 %v1159
    %v1694 = vunpack.c.l.b16 %v1160
    %v1695 = vunpack.c.h.b16 %v1160
    %v1696 = vunpack.c.l.b16 %v1161
    %v1697 = vunpack.c.h.b16 %v1161
    %v1698 = vunpack.c.l.b16 %v1162
    %v1699 = vunpack.c.h.b16 %v1162
    %v1700 = vunpack.c.l.b16 %v1163
    %v1701 = vunpack.c.h.b16 %v1163
    %v1702 = vunpack.c.l.b16 %v1164
    %v1703 = vunpack.c.h.b16 %v1164
    %v1704 = vunpack.c.l.b16 %v1165
    %v1705 = vunpack.c.h.b16 %v1165
    %v1706 = vunpack.c.l.b16 %v1166
    %v1707 = vunpack.c.h.b16 %v1166
    %v1708 = vunpack.c.l.b16 %v1167
    %v1709 = vunpack.c.h.b16 %v1167
    %v1710 = vunpack.c.l.b16 %v1168
    %v1711 = vunpack.c.h.b16 %v1168
    %v1712 = vunpack.c.l.b16 %v1169
    %v1713 = vunpack.c.h.b16 %v1169
    %v1714 = vunpack.c.l.b16 %v1170
    %v1715 = vunpack.c.h.b16 %v1170
    %v1716 = vunpack.c.l.b16 %v1171
    %v1717 = vunpack.c.h.b16 %v1171
    %v1718 = vunpack.c.l.b16 %v1172
    %v1719 = vunpack.c.h.b16 %v1172
    %v1720 = vunpack.c.l.b16 %v1173
    %v1721 = vunpack.c.h.b16 %v1173
    %v1722 = vunpack.c.l.b16 %v1174
    %v1723 = vunpack.c.h.b16 %v1174
    %v1724 = vunpack.c.l.b16 %v1175
    %v1725 = vunpack.c.h.b16 %v1175
    %v1726 = vunpack.c.l.b16 %v1176
    %v1727 = vunpack.c.h.b16 %v1176
    %v1728 = vunpack.c.l.b16 %v1177
    %v1729 = vunpack.c.h.b16 %v1177
    %v1730 = vunpack.c.l.b16 %v1178
    %v1731 = vunpack.c.h.b16 %v1178
    %v1732 = vunpack.c.l.b16 %v1179
    %v1733 = vunpack.c.h.b16 %v1179
    %v1734 = vunpack.c.l.b16 %v1180
    %v1735 = vunpack.c.h.b16 %v1180
    %v1736 = vunpack.c.l.b16 %v1181
    %v1737 = vunpack.c.h.b16 %v1181
    %v1738 = vunpack.c.l.b16 %v1182
    %v1739 = vunpack.c.h.b16 %v1182
    %v1740 = vunpack.c.l.b16 %v1183
    %v1741 = vunpack.c.h.b16 %v1183
    %v1742 = vunpack.c.l.b16 %v1184
    %v1743 = vunpack.c.h.b16 %v1184
    %v1744 = vunpack.c.l.b16 %v1185
    %v1745 = vunpack.c.h.b16 %v1185
    %v1746 = vunpack.c.l.b16 %v1186
    %v1747 = vunpack.c.h.b16 %v1186
    %v1748 = vunpack.c.l.b16 %v1187
    %v1749 = vunpack.c.h.b16 %v1187
    %v1750 = vunpack.c.l.b16 %v1188
    %v1751 = vunpack.c.h.b16 %v1188
    %v1752 = vunpack.c.l.b16 %v1189
    %v1753 = vunpack.c.h.b16 %v1189
    %v1754 = vunpack.c.l.b16 %v1190
    %v1755 = vunpack.c.h.b16 %v1190
    %v1756 = vunpack.c.l.b16 %v1191
    %v1757 = vunpack.c.h.b16 %v1191
    %v1758 = vunpack.c.l.b16 %v1192
    %v1759 = vunpack.c.h.b16 %v1192
    %v1760 = vunpack.c.l.b16 %v1193
    %v1761 = vunpack.c.h.b16 %v1193
    %v1762 = vunpack.c.l.b16 %v1194
    %v1763 = vunpack.c.h.b16 %v1194
    %v1764 = vunpack.c.l.b16 %v1195
    %v1765 = vunpack.c.h.b16 %v1195
    %v1766 = vunpack.c.l.b16 %v1196
    %v1767 = vunpack.c.h.b16 %v1196
    %v1768 = vunpack.c.l.b16 %v1197
    %v1769 = vunpack.c.h.b16 %v1197
    %v1770 = vunpack.c.l.b16 %v1198
    %v1771 = vunpack.c.h.b16 %v1198
    %v1772 = vunpack.c.l.b16 %v1199
    %v1773 = vunpack.c.h.b16 %v1199
    %v1774 = vunpack.c.l.b16 %v1200
    %v1775 = vunpack.c.h.b16 %v1200
    %v1776 = vunpack.c.l.b16 %v1201
    %v1777 = vunpack.c.h.b16 %v1201
    %v1778 = vunpack.c.l.b16 %v1202
    %v1779 = vunpack.c.h.b16 %v1202
    %v1780 = vunpack.c.l.b16 %v1203
    %v1781 = vunpack.c.h.b16 %v1203
    %v1782 = vunpack.c.l.b16 %v1204
    %v1783 = vunpack.c.h.b16 %v1204
    %v1784 = vunpack.c.l.b16 %v1205
    %v1785 = vunpack.c.h.b16 %v1205
    %v1786 = vunpack.c.l.b16 %v1206
    %v1787 = vunpack.c.h.b16 %v1206
    %v1788 = vunpack.c.l.b16 %v1207
    %v1789 = vunpack.c.h.b16 %v1207
    %v1790 = vunpack.c.l.b16 %v1208
    %v1791 = vunpack.c.h.b16 %v1208
    %v1792 = vunpack.c.l.b16 %v1209
    %v1793 = vunpack.c.h.b16 %v1209
    %v1794 = vunpack.c.l.b16 %v1210
    %v1795 = vunpack.c.h.b16 %v1210
    %v1796 = vunpack.c.l.b16 %v1211
    %v1797 = vunpack.c.h.b16 %v1211
    %v1798 = vunpack.c.l.b16 %v1212
    %v1799 = vunpack.c.h.b16 %v1212
    %v1800 = vunpack.c.l.b16 %v1213
    %v1801 = vunpack.c.h.b16 %v1213
    %v1802 = vunpack.c.l.b16 %v1214
    %v1803 = vunpack.c.h.b16 %v1214
    %v1804 = vunpack.c.l.b16 %v1215
    %v1805 = vunpack.c.h.b16 %v1215
    %v1806 = vunpack.c.l.b16 %v1216
    %v1807 = vunpack.c.h.b16 %v1216
    %v1808 = vunpack.c.l.b16 %v1217
    %v1809 = vunpack.c.h.b16 %v1217
    %v1810 = vunpack.c.l.b16 %v1218
    %v1811 = vunpack.c.h.b16 %v1218
    %v1812 = vunpack.c.l.b16 %v1219
    %v1813 = vunpack.c.h.b16 %v1219
    %v1814 = vunpack.c.l.b16 %v1220
    %v1815 = vunpack.c.h.b16 %v1220
    %v1816 = vunpack.c.l.b16 %v1221
    %v1817 = vunpack.c.h.b16 %v1221
    %v1818 = vunpack.c.l.b16 %v1222
    %v1819 = vunpack.c.h.b16 %v1222
    %v1820 = vunpack.c.l.b16 %v1223
    %v1821 = vunpack.c.h.b16 %v1223
    %v1822 = vunpack.c.l.b16 %v1224
    %v1823 = vunpack.c.h.b16 %v1224
    %v1824 = vunpack.c.l.b16 %v1225
    %v1825 = vunpack.c.h.b16 %v1225
    %v1826 = vunpack.c.l.b16 %v1226
    %v1827 = vunpack.c.h.b16 %v1226
    %v1828 = vunpack.c.l.b16 %v1227
    %v1829 = vunpack.c.h.b16 %v1227
    %v1830 = vunpack.c.l.b16 %v1228
    %v1831 = vunpack.c.h.b16 %v1228
    %v1832 = vunpack.c.l.b16 %v1229
    %v1833 = vunpack.c.h.b16 %v1229
    %v1834 = vunpack.c.l.b16 %v1230
    %v1835 = vunpack.c.h.b16 %v1230
    %v1836 = vunpack.c.l.b16 %v1231
    %v1837 = vunpack.c.h.b16 %v1231
    %v1838 = vunpack.c.l.b16 %v1232
    %v1839 = vunpack.c.h.b16 %v1232
    %v1840 = vunpack.c.l.b16 %v1233
    %v1841 = vunpack.c.h.b16 %v1233
    %v1842 = vunpack.c.l.b16 %v1234
    %v1843 = vunpack.c.h.b16 %v1234
    %v1844 = vunpack.c.l.b16 %v1235
    %v1845 = vunpack.c.h.b16 %v1235
    %v1846 = vunpack.c.l.b16 %v1236
    %v1847 = vunpack.c.h.b16 %v1236
    %v1848 = vunpack.c.l.b16 %v1237
    %v1849 = vunpack.c.h.b16 %v1237
    %v1850 = vunpack.c.l.b16 %v1238
    %v1851 = vunpack.c.h.b16 %v1238
    %v1852 = vunpack.c.l.b16 %v1239
    %v1853 = vunpack.c.h.b16 %v1239
    %v1854 = vunpack.c.l.b16 %v1240
    %v1855 = vunpack.c.h.b16 %v1240
    %v1856 = vunpack.c.l.b16 %v1241
    %v1857 = vunpack.c.h.b16 %v1241
    %v1858 = vunpack.c.l.b16 %v1242
    %v1859 = vunpack.c.h.b16 %v1242
    %v1860 = vunpack.c.l.b16 %v1243
    %v1861 = vunpack.c.h.b16 %v1243
    %v1862 = vunpack.c.l.b16 %v1244
    %v1863 = vunpack.c.h.b16 %v1244
    %v1864 = vunpack.c.l.b16 %v1245
    %v1865 = vunpack.c.h.b16 %v1245
    %v1866 = vunpack.c.l.b16 %v1246
    %v1867 = vunpack.c.h.b16 %v1246
    %v1868 = vunpack.c.l.b16 %v1247
    %v1869 = vunpack.c.h.b16 %v1247
    %v1870 = vunpack.c.l.b16 %v1248
    %v1871 = vunpack.c.h.b16 %v1248
    %v1872 = vunpack.c.l.b16 %v1249
    %v1873 = vunpack.c.h.b16 %v1249
    %v1874 = vunpack.c.l.b16 %v1250
    %v1875 = vunpack.c.h.b16 %v1250
    %v1876 = vunpack.c.l.b16 %v1251
    %v1877 = vunpack.c.h.b16 %v1251
    %v1878 = vunpack.c.l.b16 %v1252
    %v1879 = vunpack.c.h.b16 %v1252
    %v1880 = vunpack.c.l.b16 %v1253
    %v1881 = vunpack.c.h.b16 %v1253
    %v1882 = vunpack.c.l.b16 %v1254
    %v1883 = vunpack.c.h.b16 %v1254
    %v1884 = vunpack.c.l.b16 %v1255
    %v1885 = vunpack.c.h.b16 %v1255
    %v1886 = vunpack.c.l.b16 %v1256
    %v1887 = vunpack.c.h.b16 %v1256
    %v1888 = vunpack.c.l.b16 %v1257
    %v1889 = vunpack.c.h.b16 %v1257
    %v1890 = vunpack.c.l.b16 %v1258
    %v1891 = vunpack.c.h.b16 %v1258
    %v1892 = vunpack.c.l.b16 %v1259
    %v1893 = vunpack.c.h.b16 %v1259
    %v1894 = vunpack.c.l.b16 %v1260
    %v1895 = vunpack.c.h.b16 %v1260
    %v1896 = vunpack.c.l.b16 %v1261
    %v1897 = vunpack.c.h.b16 %v1261
    %v1898 = vunpack.c.l.b16 %v1262
    %v1899 = vunpack.c.h.b16 %v1262
    %v1900 = vunpack.c.l.b16 %v1263
    %v1901 = vunpack.c.h.b16 %v1263
    %v1902 = vunpack.c.l.b16 %v1264
    %v1903 = vunpack.c.h.b16 %v1264
    %v1904 = vunpack.c.l.b16 %v1265
    %v1905 = vunpack.c.h.b16 %v1265
    %v1906 = vunpack.c.l.b16 %v1266
    %v1907 = vunpack.c.h.b16 %v1266
    %v1908 = vunpack.c.l.b16 %v1267
    %v1909 = vunpack.c.h.b16 %v1267
    %v1910 = vunpack.c.l.b16 %v1268
    %v1911 = vunpack.c.h.b16 %v1268
    %v1912 = vunpack.c.l.b16 %v1269
    %v1913 = vunpack.c.h.b16 %v1269
    %v1914 = vunpack.c.l.b16 %v1270
    %v1915 = vunpack.c.h.b16 %v1270
    %v1916 = vunpack.c.l.b16 %v1271
    %v1917 = vunpack.c.h.b16 %v1271
    %v1918 = vunpack.c.l.b16 %v1272
    %v1919 = vunpack.c.h.b16 %v1272
    %v1920 = vunpack.c.l.b16 %v1273
    %v1921 = vunpack.c.h.b16 %v1273
    %v1922 = vunpack.c.l.b16 %v1274
    %v1923 = vunpack.c.h.b16 %v1274
    %v1924 = vunpack.c.l.b16 %v1275
    %v1925 = vunpack.c.h.b16 %v1275
    %v1926 = vunpack.c.l.b16 %v1276
    %v1927 = vunpack.c.h.b16 %v1276
    %v1928 = vunpack.c.l.b16 %v1277
    %v1929 = vunpack.c.h.b16 %v1277
    %v1930 = vunpack.c.l.b16 %v1278
    %v1931 = vunpack.c.h.b16 %v1278
    %v1932 = vunpack.c.l.b16 %v1279
    %v1933 = vunpack.c.h.b16 %v1279
    %v1934 = vunpack.c.l.b16 %v1280
    %v1935 = vunpack.c.h.b16 %v1280
    %v1936 = vunpack.c.l.b16 %v1281
    %v1937 = vunpack.c.h.b16 %v1281
    %v1938 = vunpack.c.l.b16 %v1282
    %v1939 = vunpack.c.h.b16 %v1282
    %v1940 = vunpack.c.l.b16 %v1283
    %v1941 = vunpack.c.h.b16 %v1283
    %v1942 = vunpack.c.l.b16 %v1284
    %v1943 = vunpack.c.h.b16 %v1284
    %v1944 = vunpack.c.l.b16 %v1285
    %v1945 = vunpack.c.h.b16 %v1285
    %v1946 = vunpack.c.l.b16 %v1286
    %v1947 = vunpack.c.h.b16 %v1286
    %v1948 = vunpack.c.l.b16 %v1287
    %v1949 = vunpack.c.h.b16 %v1287
    %v1950 = vunpack.c.l.b16 %v1288
    %v1951 = vunpack.c.h.b16 %v1288
    %v1952 = vunpack.c.l.b16 %v1289
    %v1953 = vunpack.c.h.b16 %v1289
    %v1954 = vunpack.c.l.b16 %v1290
    %v1955 = vunpack.c.h.b16 %v1290
    %v1956 = vunpack.c.l.b16 %v1291
    %v1957 = vunpack.c.h.b16 %v1291
    %v1958 = vunpack.c.l.b16 %v1292
    %v1959 = vunpack.c.h.b16 %v1292
    %v1960 = vunpack.c.l.b16 %v1293
    %v1961 = vunpack.c.h.b16 %v1293
    %v1962 = vunpack.c.l.b16 %v1294
    %v1963 = vunpack.c.h.b16 %v1294
    %v1964 = vunpack.c.l.b16 %v1295
    %v1965 = vunpack.c.h.b16 %v1295
    %v1966 = vunpack.c.l.b16 %v1296
    %v1967 = vunpack.c.h.b16 %v1296
    %v1968 = vunpack.c.l.b16 %v1297
    %v1969 = vunpack.c.h.b16 %v1297
    %v1970 = vunpack.c.l.b16 %v1298
    %v1971 = vunpack.c.h.b16 %v1298
    %v1972 = vunpack.c.l.b16 %v1299
    %v1973 = vunpack.c.h.b16 %v1299
    %v1974 = vunpack.c.l.b16 %v1300
    %v1975 = vunpack.c.h.b16 %v1300
    %v1976 = vunpack.c.l.b16 %v1301
    %v1977 = vunpack.c.h.b16 %v1301
    %v1978 = vunpack.c.l.b16 %v1302
    %v1979 = vunpack.c.h.b16 %v1302
    %v1980 = vunpack.c.l.b16 %v1303
    %v1981 = vunpack.c.h.b16 %v1303
    %v1982 = vunpack.c.l.b16 %v1304
    %v1983 = vunpack.c.h.b16 %v1304
    %v1984 = vunpack.c.l.b16 %v1305
    %v1985 = vunpack.c.h.b16 %v1305
    %v1986 = vunpack.c.l.b16 %v1306
    %v1987 = vunpack.c.h.b16 %v1306
    %v1988 = vunpack.c.l.b16 %v1307
    %v1989 = vunpack.c.h.b16 %v1307
    %v1990 = vunpack.c.l.b16 %v1308
    %v1991 = vunpack.c.h.b16 %v1308
    %v1992 = vunpack.c.l.b16 %v1309
    %v1993 = vunpack.c.h.b16 %v1309
    %v1994 = vunpack.c.l.b16 %v1310
    %v1995 = vunpack.c.h.b16 %v1310
    %v1996 = vunpack.c.l.b16 %v1311
    %v1997 = vunpack.c.h.b16 %v1311
    %v1998 = vunpack.c.l.b16 %v1312
    %v1999 = vunpack.c.h.b16 %v1312
    %v2000 = vunpack.c.l.b16 %v1313
    %v2001 = vunpack.c.h.b16 %v1313
    %v2002 = vunpack.c.l.b16 %v1314
    %v2003 = vunpack.c.h.b16 %v1314
    %v2004 = vunpack.c.l.b16 %v1315
    %v2005 = vunpack.c.h.b16 %v1315
    %v2006 = vunpack.c.l.b16 %v1316
    %v2007 = vunpack.c.h.b16 %v1316
    %v2008 = vunpack.c.l.b16 %v1317
    %v2009 = vunpack.c.h.b16 %v1317
    %v2010 = vunpack.c.l.b16 %v1318
    %v2011 = vunpack.c.h.b16 %v1318
    %v2012 = vunpack.c.l.b16 %v1319
    %v2013 = vunpack.c.h.b16 %v1319
    %v2014 = vunpack.c.l.b16 %v1320
    %v2015 = vunpack.c.h.b16 %v1320
    %v2016 = vunpack.c.l.b16 %v1321
    %v2017 = vunpack.c.h.b16 %v1321
    %v2018 = vunpack.c.l.b16 %v1322
    %v2019 = vunpack.c.h.b16 %v1322
    %v2020 = vunpack.c.l.b16 %v1323
    %v2021 = vunpack.c.h.b16 %v1323
    %v2022 = vunpack.c.l.b16 %v1324
    %v2023 = vunpack.c.h.b16 %v1324
    %v2024 = vunpack.c.l.b16 %v1325
    %v2025 = vunpack.c.h.b16 %v1325
    %v2026 = vunpack.c.l.b16 %v1326
    %v2027 = vunpack.c.h.b16 %v1326
    %v2028 = vunpack.c.l.b16 %v1327
    %v2029 = vunpack.c.h.b16 %v1327
    %v2030 = vunpack.c.l.b16 %v1328
    %v2031 = vunpack.c.h.b16 %v1328
    %v2032 = vunpack.c.l.b16 %v1329
    %v2033 = vunpack.c.h.b16 %v1329
    %v2034 = vunpack.c.l.b16 %v1330
    %v2035 = vunpack.c.h.b16 %v1330
    %v2036 = vunpack.c.l.b16 %v1331
    %v2037 = vunpack.c.h.b16 %v1331
    %v2038 = vunpack.c.l.b16 %v1332
    %v2039 = vunpack.c.h.b16 %v1332
    %v2040 = vunpack.c.l.b16 %v1333
    %v2041 = vunpack.c.h.b16 %v1333
    %v2042 = vunpack.c.l.b16 %v1334
    %v2043 = vunpack.c.h.b16 %v1334
    %v2044 = vunpack.c.l.b16 %v1335
    %v2045 = vunpack.c.h.b16 %v1335
    %v2046 = vunpack.c.l.b16 %v1336
    %v2047 = vunpack.c.h.b16 %v1336
    %v2048 = vunpack.c.l.b16 %v1337
    %v2049 = vunpack.c.h.b16 %v1337
    %v2050 = vunpack.c.l.b16 %v1338
    %v2051 = vunpack.c.h.b16 %v1338
    %v2052 = vunpack.c.l.b16 %v1339
    %v2053 = vunpack.c.h.b16 %v1339
    %v2054 = vunpack.c.l.b16 %v1340
    %v2055 = vunpack.c.h.b16 %v1340
    %v2056 = vunpack.c.l.b16 %v1341
    %v2057 = vunpack.c.h.b16 %v1341
    %v2058 = vunpack.c.l.b16 %v1342
    %v2059 = vunpack.c.h.b16 %v1342
    %v2060 = vunpack.c.l.b16 %v1343
    %v2061 = vunpack.c.h.b16 %v1343
    %v2062 = vunpack.c.l.b16 %v1344
    %v2063 = vunpack.c.h.b16 %v1344
    %v2064 = vunpack.c.l.b16 %v1345
    %v2065 = vunpack.c.h.b16 %v1345
    %v2066 = vunpack.c.l.b16 %v1346
    %v2067 = vunpack.c.h.b16 %v1346
    %v2068 = vunpack.c.l.b16 %v1347
    %v2069 = vunpack.c.h.b16 %v1347
    %v2070 = vunpack.c.l.b16 %v1348
    %v2071 = vunpack.c.h.b16 %v1348
    %v2072 = vunpack.c.l.b16 %v1349
    %v2073 = vunpack.c.h.b16 %v1349
    %v2074 = vunpack.c.l.b16 %v1350
    %v2075 = vunpack.c.h.b16 %v1350
    %v2076 = vunpack.c.l.b16 %v1351
    %v2077 = vunpack.c.h.b16 %v1351
    %v2078 = vunpack.c.l.b16 %v1352
    %v2079 = vunpack.c.h.b16 %v1352
    %v2080 = vunpack.c.l.b16 %v1353
    %v2081 = vunpack.c.h.b16 %v1353
    %v2082 = vunpack.c.l.b16 %v1354
    %v2083 = vunpack.c.h.b16 %v1354
    %v2084 = vunpack.c.l.b16 %v1355
    %v2085 = vunpack.c.h.b16 %v1355
    %v2086 = vunpack.c.l.b16 %v1356
    %v2087 = vunpack.c.h.b16 %v1356
    %v2088 = vunpack.c.l.b16 %v1357
    %v2089 = vunpack.c.h.b16 %v1357
    %v2090 = vunpack.c.l.b16 %v1358
    %v2091 = vunpack.c.h.b16 %v1358
    %v2092 = vunpack.c.l.b16 %v1359
    %v2093 = vunpack.c.h.b16 %v1359
    %v2094 = vunpack.c.l.b16 %v1360
    %v2095 = vunpack.c.h.b16 %v1360
    %v2096 = vunpack.c.l.b16 %v1361
    %v2097 = vunpack.c.h.b16 %v1361
    %v2098 = vunpack.c.l.b16 %v1362
    %v2099 = vunpack.c.h.b16 %v1362
    %v2100 = vunpack.c.l.b16 %v1363
    %v2101 = vunpack.c.h.b16 %v1363
    %v2102 = vunpack.c.l.b16 %v1364
    %v2103 = vunpack.c.h.b16 %v1364
    %v2104 = vunpack.c.l.b16 %v1365
    %v2105 = vunpack.c.h.b16 %v1365
    %v2106 = vunpack.c.l.b16 %v1366
    %v2107 = vunpack.c.h.b16 %v1366
    %v2108 = vunpack.c.l.b16 %v1367
    %v2109 = vunpack.c.h.b16 %v1367
    %v2110 = vunpack.c.l.b16 %v1368
    %v2111 = vunpack.c.h.b16 %v1368
    %v2112 = vunpack.c.l.b16 %v1369
    %v2113 = vunpack.c.h.b16 %v1369
    %v2114 = vunpack.c.l.b16 %v1370
    %v2115 = vunpack.c.h.b16 %v1370
    %v2116 = vunpack.c.l.b16 %v1371
    %v2117 = vunpack.c.h.b16 %v1371
    %v2118 = vunpack.c.l.b16 %v1372
    %v2119 = vunpack.c.h.b16 %v1372
    %v2120 = vunpack.c.l.b16 %v1373
    %v2121 = vunpack.c.h.b16 %v1373
    %v2122 = vunpack.c.l.b16 %v1374
    %v2123 = vunpack.c.h.b16 %v1374
    %v2124 = vunpack.c.l.b16 %v1375
    %v2125 = vunpack.c.h.b16 %v1375
    %v2126 = vunpack.c.l.b16 %v1376
    %v2127 = vunpack.c.h.b16 %v1376
    %v2128 = vunpack.c.l.b16 %v1377
    %v2129 = vunpack.c.h.b16 %v1377
    %v2130 = vunpack.c.l.b16 %v1378
    %v2131 = vunpack.c.h.b16 %v1378
    %v2132 = vunpack.c.l.b16 %v1379
    %v2133 = vunpack.c.h.b16 %v1379
    %v2134 = vunpack.c.l.b16 %v1380
    %v2135 = vunpack.c.h.b16 %v1380
    %v2136 = vunpack.c.l.b16 %v1381
    %v2137 = vunpack.c.h.b16 %v1381
    %v2138 = vunpack.c.l.b16 %v1382
    %v2139 = vunpack.c.h.b16 %v1382
    %v2140 = vunpack.c.l.b16 %v1383
    %v2141 = vunpack.c.h.b16 %v1383
    %v2142 = vunpack.c.l.b16 %v1384
    %v2143 = vunpack.c.h.b16 %v1384
    %v2144 = vunpack.c.l.b16 %v1385
    %v2145 = vunpack.c.h.b16 %v1385
    %v2146 = vunpack.c.l.b16 %v1386
    %v2147 = vunpack.c.h.b16 %v1386
    %v2148 = vunpack.c.l.b16 %v1387
    %v2149 = vunpack.c.h.b16 %v1387
    %v2150 = vunpack.c.l.b16 %v1388
    %v2151 = vunpack.c.h.b16 %v1388
    %v2152 = vunpack.c.l.b16 %v1389
    %v2153 = vunpack.c.h.b16 %v1389
    %v2154 = vunpack.c.l.b16 %v1390
    %v2155 = vunpack.c.h.b16 %v1390
    %v2156 = vunpack.c.l.b16 %v1391
    %v2157 = vunpack.c.h.b16 %v1391
    %v2158 = vunpack.c.l.b16 %v1392
    %v2159 = vunpack.c.h.b16 %v1392
    %v2160 = vunpack.c.l.b16 %v1393
    %v2161 = vunpack.c.h.b16 %v1393
    %v2162 = vunpack.c.l.b16 %v1394
    %v2163 = vunpack.c.h.b16 %v1394
    %v2164 = vunpack.c.l.b16 %v1395
    %v2165 = vunpack.c.h.b16 %v1395
    %v2166 = vunpack.c.l.b16 %v1396
    %v2167 = vunpack.c.h.b16 %v1396
    %v2168 = vunpack.c.l.b16 %v1397
    %v2169 = vunpack.c.h.b16 %v1397
    %v2170 = vunpack.c.l.b16 %v1398
    %v2171 = vunpack.c.h.b16 %v1398
    %v2172 = vunpack.c.l.b16 %v1399
    %v2173 = vunpack.c.h.b16 %v1399
    %v2174 = vunpack.c.l.b16 %v1400
    %v2175 = vunpack.c.h.b16 %v1400
    %v2176 = vunpack.c.l.b16 %v1401
    %v2177 = vunpack.c.h.b16 %v1401
    %v2178 = vunpack.c.l.b16 %v1402
    %v2179 = vunpack.c.h.b16 %v1402
    %v2180 = vunpack.c.l.b16 %v1403
    %v2181 = vunpack.c.h.b16 %v1403
    %v2182 = vunpack.c.l.b16 %v1404
    %v2183 = vunpack.c.h.b16 %v1404
    %v2184 = vunpack.c.l.b16 %v1405
    %v2185 = vunpack.c.h.b16 %v1405
    %v2186 = vunpack.c.l.b16 %v1406
    %v2187 = vunpack.c.h.b16 %v1406
    %v2188 = vunpack.c.l.b16 %v1407
    %v2189 = vunpack.c.h.b16 %v1407
    %v2190 = vunpack.c.l.b16 %v1408
    %v2191 = vunpack.c.h.b16 %v1408
    %v2192 = vunpack.c.l.b16 %v1409
    %v2193 = vunpack.c.h.b16 %v1409
    %v2194 = vunpack.c.l.b16 %v1410
    %v2195 = vunpack.c.h.b16 %v1410
    %v2196 = vunpack.c.l.b16 %v1411
    %v2197 = vunpack.c.h.b16 %v1411
    %v2198 = vpack.c.b16 %v1694, %v1686
    %v2199 = vpack.c.b16 %v1695, %v1687
    %v2200 = vpack.c.b16 %v1696, %v1688
    %v2201 = vpack.c.b16 %v1697, %v1689
    %v2202 = vpack.c.b16 %v1698, %v1690
    %v2203 = vpack.c.b16 %v1699, %v1691
    %v2204 = vpack.c.b16 %v1700, %v1692
    %v2205 = vpack.c.b16 %v1701, %v1693
    %v2206 = vpack.c.b16 %v1710, %v1702
    %v2207 = vpack.c.b16 %v1711, %v1703
    %v2208 = vpack.c.b16 %v1712, %v1704
    %v2209 = vpack.c.b16 %v1713, %v1705
    %v2210 = vpack.c.b16 %v1714, %v1706
    %v2211 = vpack.c.b16 %v1715, %v1707
    %v2212 = vpack.c.b16 %v1716, %v1708
    %v2213 = vpack.c.b16 %v1717, %v1709
    %v2214 = vpack.c.b16 %v1726, %v1718
    %v2215 = vpack.c.b16 %v1727, %v1719
    %v2216 = vpack.c.b16 %v1728, %v1720
    %v2217 = vpack.c.b16 %v1729, %v1721
    %v2218 = vpack.c.b16 %v1730, %v1722
    %v2219 = vpack.c.b16 %v1731, %v1723
    %v2220 = vpack.c.b16 %v1732, %v1724
    %v2221 = vpack.c.b16 %v1733, %v1725
    %v2222 = vpack.c.b16 %v1742, %v1734
    %v2223 = vpack.c.b16 %v1743, %v1735
    %v2224 = vpack.c.b16 %v1744, %v1736
    %v2225 = vpack.c.b16 %v1745, %v1737
    %v2226 = vpack.c.b16 %v1746, %v1738
    %v2227 = vpack.c.b16 %v1747, %v1739
    %v2228 = vpack.c.b16 %v1748, %v1740
    %v2229 = vpack.c.b16 %v1749, %v1741
    %v2230 = vpack.c.b16 %v1758, %v1750
    %v2231 = vpack.c.b16 %v1759, %v1751
    %v2232 = vpack.c.b16 %v1760, %v1752
    %v2233 = vpack.c.b16 %v1761, %v1753
    %v2234 = vpack.c.b16 %v1762, %v1754
    %v2235 = vpack.c.b16 %v1763, %v1755
    %v2236 = vpack.c.b16 %v1764, %v1756
    %v2237 = vpack.c.b16 %v1765, %v1757
    %v2238 = vpack.c.b16 %v1774, %v1766
    %v2239 = vpack.c.b16 %v1775, %v1767
    %v2240 = vpack.c.b16 %v1776, %v1768
    %v2241 = vpack.c.b16 %v1777, %v1769
    %v2242 = vpack.c.b16 %v1778, %v1770
    %v2243 = vpack.c.b16 %v1779, %v1771
    %v2244 = vpack.c.b16 %v1780, %v1772
    %v2245 = vpack.c.b16 %v1781, %v1773
    %v2246 = vpack.c.b16 %v1790, %v1782
    %v2247 = vpack.c.b16 %v1791, %v1783
    %v2248 = vpack.c.b16 %v1792, %v1784
    %v2249 = vpack.c.b16 %v1793, %v1785
    %v2250 = vpack.c.b16 %v1794, %v1786
    %v2251 = vpack.c.b16 %v1795, %v1787
    %v2252 = vpack.c.b16 %v1796, %v1788
    %v2253 = vpack.c.b16 %v1797, %v1789
    %v2254 = vpack.c.b16 %v1806, %v1798
    %v2255 = vpack.c.b16 %v1807, %v1799
    %v2256 = vpack.c.b16 %v1808, %v1800
    %v2257 = vpack.c.b16 %v1809, %v1801
    %v2258 = vpack.c.b16 %v1810, %v1802
    %v2259 = vpack.c.b16 %v1811, %v1803
    %v2260 = vpack.c.b16 %v1812, %v1804
    %v2261 = vpack.c.b16 %v1813, %v1805
    %v2262 = vpack.c.b16 %v1822, %v1814
    %v2263 = vpack.c.b16 %v1823, %v1815
    %v2264 = vpack.c.b16 %v1824, %v1816
    %v2265 = vpack.c.b16 %v1825, %v1817
    %v2266 = vpack.c.b16 %v1826, %v1818
    %v2267 = vpack.c.b16 %v1827, %v1819
    %v2268 = vpack.c.b16 %v1828, %v1820
    %v2269 = vpack.c.b16 %v1829, %v1821
    %v2270 = vpack.c.b16 %v1838, %v1830
    %v2271 = vpack.c.b16 %v1839, %v1831
    %v2272 = vpack.c.b16 %v1840, %v1832
    %v2273 = vpack.c.b16 %v1841, %v1833
    %v2274 = vpack.c.b16 %v1842, %v1834
    %v2275 = vpack.c.b16 %v1843, %v1835
    %v2276 = vpack.c.b16 %v1844, %v1836
    %v2277 = vpack.c.b16 %v1845, %v1837
    %v2278 = vpack.c.b16 %v1854, %v1846
    %v2279 = vpack.c.b16 %v1855, %v1847
    %v2280 = vpack.c.b16 %v1856, %v1848
    %v2281 = vpack.c.b16 %v1857, %v1849
    %v2282 = vpack.c.b16 %v1858, %v1850
    %v2283 = vpack.c.b16 %v1859, %v1851
    %v2284 = vpack.c.b16 %v1860, %v1852
    %v2285 = vpack.c.b16 %v1861, %v1853
    %v2286 = vpack.c.b16 %v1870, %v1862
    %v2287 = vpack.c.b16 %v1871, %v1863
    %v2288 = vpack.c.b16 %v1872, %v1864
    %v2289 = vpack.c.b16 %v1873, %v1865
    %v2290 = vpack.c.b16 %v1874, %v1866
    %v2291 = vpack.c.b16 %v1875, %v1867
    %v2292 = vpack.c.b16 %v1876, %v1868
    %v2293 = vpack.c.b16 %v1877, %v1869
    %v2294 = vpack.c.b16 %v1886, %v1878
    %v2295 = vpack.c.b16 %v1887, %v1879
    %v2296 = vpack.c.b16 %v1888, %v1880
    %v2297 = vpack.c.b16 %v1889, %v1881
    %v2298 = vpack.c.b16 %v1890, %v1882
    %v2299 = vpack.c.b16 %v1891, %v1883
    %v2300 = vpack.c.b16 %v1892, %v1884
    %v2301 = vpack.c.b16 %v1893, %v1885
    %v2302 = vpack.c.b16 %v1902, %v1894
    %v2303 = vpack.c.b16 %v1903, %v1895
    %v2304 = vpack.c.b16 %v1904, %v1896
    %v2305 = vpack.c.b16 %v1905, %v1897
    %v2306 = vpack.c.b16 %v1906, %v1898
    %v2307 = vpack.c.b16 %v1907, %v1899
    %v2308 = vpack.c.b16 %v1908, %v1900
    %v2309 = vpack.c.b16 %v1909, %v1901
    %v2310 = vpack.c.b16 %v1918, %v1910
    %v2311 = vpack.c.b16 %v1919, %v1911
    %v2312 = vpack.c.b16 %v1920, %v1912
    %v2313 = vpack.c.b16 %v1921, %v1913
    %v2314 = vpack.c.b16 %v1922, %v1914
    %v2315 = vpack.c.b16 %v1923, %v1915
    %v2316 = vpack.c.b16 %v1924, %v1916
    %v2317 = vpack.c.b16 %v1925, %v1917
    %v2318 = vpack.c.b16 %v1934, %v1926
    %v2319 = vpack.c.b16 %v1935, %v1927
    %v2320 = vpack.c.b16 %v1936, %v1928
    %v2321 = vpack.c.b16 %v1937, %v1929
    %v2322 = vpack.c.b16 %v1938, %v1930
    %v2323 = vpack.c.b16 %v1939, %v1931
    %v2324 = vpack.c.b16 %v1940, %v1932
    %v2325 = vpack.c.b16 %v1941, %v1933
    %v2326 = vpack.c.b16 %v1950, %v1942
    %v2327 = vpack.c.b16 %v1951, %v1943
    %v2328 = vpack.c.b16 %v1952, %v1944
    %v2329 = vpack.c.b16 %v1953, %v1945
    %v2330 = vpack.c.b16 %v1954, %v1946
    %v2331 = vpack.c.b16 %v1955, %v1947
    %v2332 = vpack.c.b16 %v1956, %v1948
    %v2333 = vpack.c.b16 %v1957, %v1949
    %v2334 = vpack.c.b16 %v1966, %v1958
    %v2335 = vpack.c.b16 %v1967, %v1959
    %v2336 = vpack.c.b16 %v1968, %v1960
    %v2337 = vpack.c.b16 %v1969, %v1961
    %v2338 = vpack.c.b16 %v1970, %v1962
    %v2339 = vpack.c.b16 %v1971, %v1963
    %v2340 = vpack.c.b16 %v1972, %v1964
    %v2341 = vpack.c.b16 %v1973, %v1965
    %v2342 = vpack.c.b16 %v1982, %v1974
    %v2343 = vpack.c.b16 %v1983, %v1975
    %v2344 = vpack.c.b16 %v1984, %v1976
    %v2345 = vpack.c.b16 %v1985, %v1977
    %v2346 = vpack.c.b16 %v1986, %v1978
    %v2347 = vpack.c.b16 %v1987, %v1979
    %v2348 = vpack.c.b16 %v1988, %v1980
    %v2349 = vpack.c.b16 %v1989, %v1981
    %v2350 = vpack.c.b16 %v1998, %v1990
    %v2351 = vpack.c.b16 %v1999, %v1991
    %v2352 = vpack.c.b16 %v2000, %v1992
    %v2353 = vpack.c.b16 %v2001, %v1993
    %v2354 = vpack.c.b16 %v2002, %v1994
    %v2355 = vpack.c.b16 %v2003, %v1995
    %v2356 = vpack.c.b16 %v2004, %v1996
    %v2357 = vpack.c.b16 %v2005, %v1997
    %v2358 = vpack.c.b16 %v2014, %v2006
    %v2359 = vpack.c.b16 %v2015, %v2007
    %v2360 = vpack.c.b16 %v2016, %v2008
    %v2361 = vpack.c.b16 %v2017, %v2009
    %v2362 = vpack.c.b16 %v2018, %v2010
    %v2363 = vpack.c.b16 %v2019, %v2011
    %v2364 = vpack.c.b16 %v2020, %v2012
    %v2365 = vpack.c.b16 %v2021, %v2013
    %v2366 = vpack.c.b16 %v2030, %v2022
    %v2367 = vpack.c.b16 %v2031, %v2023
    %v2368 = vpack.c.b16 %v2032, %v2024
    %v2369 = vpack.c.b16 %v2033, %v2025
    %v2370 = vpack.c.b16 %v2034, %v2026
    %v2371 = vpack.c.b16 %v2035, %v2027
    %v2372 = vpack.c.b16 %v2036, %v2028
    %v2373 = vpack.c.b16 %v2037, %v2029
    %v2374 = vpack.c.b16 %v2046, %v2038
    %v2375 = vpack.c.b16 %v2047, %v2039
    %v2376 = vpack.c.b16 %v2048, %v2040
    %v2377 = vpack.c.b16 %v2049, %v2041
    %v2378 = vpack.c.b16 %v2050, %v2042
    %v2379 = vpack.c.b16 %v2051, %v2043
    %v2380 = vpack.c.b16 %v2052, %v2044
    %v2381 = vpack.c.b16 %v2053, %v2045
    %v2382 = vpack.c.b16 %v2062, %v2054
    %v2383 = vpack.c.b16 %v2063, %v2055
    %v2384 = vpack.c.b16 %v2064, %v2056
    %v2385 = vpack.c.b16 %v2065, %v2057
    %v2386 = vpack.c.b16 %v2066, %v2058
    %v2387 = vpack.c.b16 %v2067, %v2059
    %v2388 = vpack.c.b16 %v2068, %v2060
    %v2389 = vpack.c.b16 %v2069, %v2061
    %v2390 = vpack.c.b16 %v2078, %v2070
    %v2391 = vpack.c.b16 %v2079, %v2071
    %v2392 = vpack.c.b16 %v2080, %v2072
    %v2393 = vpack.c.b16 %v2081, %v2073
    %v2394 = vpack.c.b16 %v2082, %v2074
    %v2395 = vpack.c.b16 %v2083, %v2075
    %v2396 = vpack.c.b16 %v2084, %v2076
    %v2397 = vpack.c.b16 %v2085, %v2077
    %v2398 = vpack.c.b16 %v2094, %v2086
    %v2399 = vpack.c.b16 %v2095, %v2087
    %v2400 = vpack.c.b16 %v2096, %v2088
    %v2401 = vpack.c.b16 %v2097, %v2089
    %v2402 = vpack.c.b16 %v2098, %v2090
    %v2403 = vpack.c.b16 %v2099, %v2091
    %v2404 = vpack.c.b16 %v2100, %v2092
    %v2405 = vpack.c.b16 %v2101, %v2093
    %v2406 = vpack.c.b16 %v2110, %v2102
    %v2407 = vpack.c.b16 %v2111, %v2103
    %v2408 = vpack.c.b16 %v2112, %v2104
    %v2409 = vpack.c.b16 %v2113, %v2105
    %v2410 = vpack.c.b16 %v2114, %v2106
    %v2411 = vpack.c.b16 %v2115, %v2107
    %v2412 = vpack.c.b16 %v2116, %v2108
    %v2413 = vpack.c.b16 %v2117, %v2109
    %v2414 = vpack.c.b16 %v2126, %v2118
    %v2415 = vpack.c.b16 %v2127, %v2119
    %v2416 = vpack.c.b16 %v2128, %v2120
    %v2417 = vpack.c.b16 %v2129, %v2121
    %v2418 = vpack.c.b16 %v2130, %v2122
    %v2419 = vpack.c.b16 %v2131, %v2123
    %v2420 = vpack.c.b16 %v2132, %v2124
    %v2421 = vpack.c.b16 %v2133, %v2125
    %v2422 = vpack.c.b16 %v2142, %v2134
    %v2423 = vpack.c.b16 %v2143, %v2135
    %v2424 = vpack.c.b16 %v2144, %v2136
    %v2425 = vpack.c.b16 %v2145, %v2137
    %v2426 = vpack.c.b16 %v2146, %v2138
    %v2427 = vpack.c.b16 %v2147, %v2139
    %v2428 = vpack.c.b16 %v2148, %v2140
    %v2429 = vpack.c.b16 %v2149, %v2141
    %v2430 = vpack.c.b16 %v2158, %v2150
    %v2431 = vpack.c.b16 %v2159, %v2151
    %v2432 = vpack.c.b16 %v2160, %v2152
    %v2433 = vpack.c.b16 %v2161, %v2153
    %v2434 = vpack.c.b16 %v2162, %v2154
    %v2435 = vpack.c.b16 %v2163, %v2155
    %v2436 = vpack.c.b16 %v2164, %v2156
    %v2437 = vpack.c.b16 %v2165, %v2157
    %v2438 = vpack.c.b16 %v2174, %v2166
    %v2439 = vpack.c.b16 %v2175, %v2167
    %v2440 = vpack.c.b16 %v2176, %v2168
    %v2441 = vpack.c.b16 %v2177, %v2169
    %v2442 = vpack.c.b16 %v2178, %v2170
    %v2443 = vpack.c.b16 %v2179, %v2171
    %v2444 = vpack.c.b16 %v2180, %v2172
    %v2445 = vpack.c.b16 %v2181, %v2173
    %v2446 = vpack.c.b16 %v2190, %v2182
    %v2447 = vpack.c.b16 %v2191, %v2183
    %v2448 = vpack.c.b16 %v2192, %v2184
    %v2449 = vpack.c.b16 %v2193, %v2185
    %v2450 = vpack.c.b16 %v2194, %v2186
    %v2451 = vpack.c.b16 %v2195, %v2187
    %v2452 = vpack.c.b16 %v2196, %v2188
    %v2453 = vpack.c.b16 %v2197, %v2189
    %2710 = vmatpush.bf16.msra.mxu0 %v2254
    %2711 = vmatpush.bf16.msra.mxu0 %v2246
    %2712 = vmatpush.bf16.msra.mxu0 %v2238
    %2713 = vmatpush.bf16.msra.mxu0 %v2230
    %2714 = vmatpush.bf16.msra.mxu0 %v2222
    %2715 = vmatpush.bf16.msra.mxu0 %v2214
    %2716 = vmatpush.bf16.msra.mxu0 %v2206
    %2717 = vmatpush.bf16.msra.mxu0 %v2198
    %2718 = vmatmul.bf16.gmra.mxu0 %v1152
    %v2719 = vpop.f32.mrf.mxu0
    %v2720 = vadd.f32 %v1414, %v2719
    %v2721 = vpop.f32.mrf.mxu0
    %v2722 = vadd.f32 %v1414, %v2721
    %2723 = vdwg.mxu0
    %2724 = vmatpush.bf16.msra.mxu0 %v2318
    %2725 = vmatpush.bf16.msra.mxu0 %v2310
    %2726 = vmatpush.bf16.msra.mxu0 %v2302
    %2727 = vmatpush.bf16.msra.mxu0 %v2294
    %2728 = vmatpush.bf16.msra.mxu0 %v2286
    %2729 = vmatpush.bf16.msra.mxu0 %v2278
    %2730 = vmatpush.bf16.msra.mxu0 %v2270
    %2731 = vmatpush.bf16.msra.mxu0 %v2262
    %2732 = vmatmul.bf16.gmra.mxu0 %v1153
    %v2733 = vpop.f32.mrf.mxu0
    %v2734 = vadd.f32 %v2720, %v2733
    %v2735 = vpop.f32.mrf.mxu0
    %v2736 = vadd.f32 %v2722, %v2735
    %2737 = vdwg.mxu0
    %2738 = vmatpush.bf16.msra.mxu0 %v2382
    %2739 = vmatpush.bf16.msra.mxu0 %v2374
    %2740 = vmatpush.bf16.msra.mxu0 %v2366
    %2741 = vmatpush.bf16.msra.mxu0 %v2358
    %2742 = vmatpush.bf16.msra.mxu0 %v2350
    %2743 = vmatpush.bf16.msra.mxu0 %v2342
    %2744 = vmatpush.bf16.msra.mxu0 %v2334
    %2745 = vmatpush.bf16.msra.mxu0 %v2326
    %2746 = vmatmul.bf16.gmra.mxu0 %v1154
    %v2747 = vpop.f32.mrf.mxu0
    %v2748 = vadd.f32 %v2734, %v2747
    %v2749 = vpop.f32.mrf.mxu0
    %v2750 = vadd.f32 %v2736, %v2749
    %2751 = vdwg.mxu0
    %2752 = vmatpush.bf16.msra.mxu0 %v2446
    %2753 = vmatpush.bf16.msra.mxu0 %v2438
    %2754 = vmatpush.bf16.msra.mxu0 %v2430
    %2755 = vmatpush.bf16.msra.mxu0 %v2422
    %2756 = vmatpush.bf16.msra.mxu0 %v2414
    %2757 = vmatpush.bf16.msra.mxu0 %v2406
    %2758 = vmatpush.bf16.msra.mxu0 %v2398
    %2759 = vmatpush.bf16.msra.mxu0 %v2390
    %2760 = vmatmul.bf16.gmra.mxu0 %v1155
    %v2761 = vpop.f32.mrf.mxu0
    %v2762 = vadd.f32 %v2748, %v2761
    %v2763 = vpop.f32.mrf.mxu0
    %v2764 = vadd.f32 %v2750, %v2763
    %2765 = vdwg.mxu0
    %2766 = vmatpush.bf16.msra.mxu0 %v2255
    %2767 = vmatpush.bf16.msra.mxu0 %v2247
    %2768 = vmatpush.bf16.msra.mxu0 %v2239
    %2769 = vmatpush.bf16.msra.mxu0 %v2231
    %2770 = vmatpush.bf16.msra.mxu0 %v2223
    %2771 = vmatpush.bf16.msra.mxu0 %v2215
    %2772 = vmatpush.bf16.msra.mxu0 %v2207
    %2773 = vmatpush.bf16.msra.mxu0 %v2199
    %2774 = vmatmul.bf16.gmra.mxu0 %v1152
    %v2775 = vpop.f32.mrf.mxu0
    %v2776 = vadd.f32 %v1415, %v2775
    %v2777 = vpop.f32.mrf.mxu0
    %v2778 = vadd.f32 %v1415, %v2777
    %2779 = vdwg.mxu0
    %2780 = vmatpush.bf16.msra.mxu0 %v2319
    %2781 = vmatpush.bf16.msra.mxu0 %v2311
    %2782 = vmatpush.bf16.msra.mxu0 %v2303
    %2783 = vmatpush.bf16.msra.mxu0 %v2295
    %2784 = vmatpush.bf16.msra.mxu0 %v2287
    %2785 = vmatpush.bf16.msra.mxu0 %v2279
    %2786 = vmatpush.bf16.msra.mxu0 %v2271
    %2787 = vmatpush.bf16.msra.mxu0 %v2263
    %2788 = vmatmul.bf16.gmra.mxu0 %v1153
    %v2789 = vpop.f32.mrf.mxu0
    %v2790 = vadd.f32 %v2776, %v2789
    %v2791 = vpop.f32.mrf.mxu0
    %v2792 = vadd.f32 %v2778, %v2791
    %2793 = vdwg.mxu0
    %2794 = vmatpush.bf16.msra.mxu0 %v2383
    %2795 = vmatpush.bf16.msra.mxu0 %v2375
    %2796 = vmatpush.bf16.msra.mxu0 %v2367
    %2797 = vmatpush.bf16.msra.mxu0 %v2359
    %2798 = vmatpush.bf16.msra.mxu0 %v2351
    %2799 = vmatpush.bf16.msra.mxu0 %v2343
    %2800 = vmatpush.bf16.msra.mxu0 %v2335
    %2801 = vmatpush.bf16.msra.mxu0 %v2327
    %2802 = vmatmul.bf16.gmra.mxu0 %v1154
    %v2803 = vpop.f32.mrf.mxu0
    %v2804 = vadd.f32 %v2790, %v2803
    %v2805 = vpop.f32.mrf.mxu0
    %v2806 = vadd.f32 %v2792, %v2805
    %2807 = vdwg.mxu0
    %2808 = vmatpush.bf16.msra.mxu0 %v2447
    %2809 = vmatpush.bf16.msra.mxu0 %v2439
    %2810 = vmatpush.bf16.msra.mxu0 %v2431
    %2811 = vmatpush.bf16.msra.mxu0 %v2423
    %2812 = vmatpush.bf16.msra.mxu0 %v2415
    %2813 = vmatpush.bf16.msra.mxu0 %v2407
    %2814 = vmatpush.bf16.msra.mxu0 %v2399
    %2815 = vmatpush.bf16.msra.mxu0 %v2391
    %2816 = vmatmul.bf16.gmra.mxu0 %v1155
    %v2817 = vpop.f32.mrf.mxu0
    %v2818 = vadd.f32 %v2804, %v2817
    %v2819 = vpop.f32.mrf.mxu0
    %v2820 = vadd.f32 %v2806, %v2819
    %2821 = vdwg.mxu0
    %2822 = vmatpush.bf16.msra.mxu0 %v2256
    %2823 = vmatpush.bf16.msra.mxu0 %v2248
    %2824 = vmatpush.bf16.msra.mxu0 %v2240
    %2825 = vmatpush.bf16.msra.mxu0 %v2232
    %2826 = vmatpush.bf16.msra.mxu0 %v2224
    %2827 = vmatpush.bf16.msra.mxu0 %v2216
    %2828 = vmatpush.bf16.msra.mxu0 %v2208
    %2829 = vmatpush.bf16.msra.mxu0 %v2200
    %2830 = vmatmul.bf16.gmra.mxu0 %v1152
    %v2831 = vpop.f32.mrf.mxu0
    %v2832 = vadd.f32 %v1416, %v2831
    %v2833 = vpop.f32.mrf.mxu0
    %v2834 = vadd.f32 %v1416, %v2833
    %2835 = vdwg.mxu0
    %2836 = vmatpush.bf16.msra.mxu0 %v2320
    %2837 = vmatpush.bf16.msra.mxu0 %v2312
    %2838 = vmatpush.bf16.msra.mxu0 %v2304
    %2839 = vmatpush.bf16.msra.mxu0 %v2296
    %2840 = vmatpush.bf16.msra.mxu0 %v2288
    %2841 = vmatpush.bf16.msra.mxu0 %v2280
    %2842 = vmatpush.bf16.msra.mxu0 %v2272
    %2843 = vmatpush.bf16.msra.mxu0 %v2264
    %2844 = vmatmul.bf16.gmra.mxu0 %v1153
    %v2845 = vpop.f32.mrf.mxu0
    %v2846 = vadd.f32 %v2832, %v2845
    %v2847 = vpop.f32.mrf.mxu0
    %v2848 = vadd.f32 %v2834, %v2847
    %2849 = vdwg.mxu0
    %2850 = vmatpush.bf16.msra.mxu0 %v2384
    %2851 = vmatpush.bf16.msra.mxu0 %v2376
    %2852 = vmatpush.bf16.msra.mxu0 %v2368
    %2853 = vmatpush.bf16.msra.mxu0 %v2360
    %2854 = vmatpush.bf16.msra.mxu0 %v2352
    %2855 = vmatpush.bf16.msra.mxu0 %v2344
    %2856 = vmatpush.bf16.msra.mxu0 %v2336
    %2857 = vmatpush.bf16.msra.mxu0 %v2328
    %2858 = vmatmul.bf16.gmra.mxu0 %v1154
    %v2859 = vpop.f32.mrf.mxu0
    %v2860 = vadd.f32 %v2846, %v2859
    %v2861 = vpop.f32.mrf.mxu0
    %v2862 = vadd.f32 %v2848, %v2861
    %2863 = vdwg.mxu0
    %2864 = vmatpush.bf16.msra.mxu0 %v2448
    %2865 = vmatpush.bf16.msra.mxu0 %v2440
    %2866 = vmatpush.bf16.msra.mxu0 %v2432
    %2867 = vmatpush.bf16.msra.mxu0 %v2424
    %2868 = vmatpush.bf16.msra.mxu0 %v2416
    %2869 = vmatpush.bf16.msra.mxu0 %v2408
    %2870 = vmatpush.bf16.msra.mxu0 %v2400
    %2871 = vmatpush.bf16.msra.mxu0 %v2392
    %2872 = vmatmul.bf16.gmra.mxu0 %v1155
    %v2873 = vpop.f32.mrf.mxu0
    %v2874 = vadd.f32 %v2860, %v2873
    %v2875 = vpop.f32.mrf.mxu0
    %v2876 = vadd.f32 %v2862, %v2875
    %2877 = vdwg.mxu0
    %2878 = vmatpush.bf16.msra.mxu0 %v2257
    %2879 = vmatpush.bf16.msra.mxu0 %v2249
    %2880 = vmatpush.bf16.msra.mxu0 %v2241
    %2881 = vmatpush.bf16.msra.mxu0 %v2233
    %2882 = vmatpush.bf16.msra.mxu0 %v2225
    %2883 = vmatpush.bf16.msra.mxu0 %v2217
    %2884 = vmatpush.bf16.msra.mxu0 %v2209
    %2885 = vmatpush.bf16.msra.mxu0 %v2201
    %2886 = vmatmul.bf16.gmra.mxu0 %v1152
    %v2887 = vpop.f32.mrf.mxu0
    %v2888 = vadd.f32 %v1417, %v2887
    %v2889 = vpop.f32.mrf.mxu0
    %v2890 = vadd.f32 %v1417, %v2889
    %2891 = vdwg.mxu0
    %2892 = vmatpush.bf16.msra.mxu0 %v2321
    %2893 = vmatpush.bf16.msra.mxu0 %v2313
    %2894 = vmatpush.bf16.msra.mxu0 %v2305
    %2895 = vmatpush.bf16.msra.mxu0 %v2297
    %2896 = vmatpush.bf16.msra.mxu0 %v2289
    %2897 = vmatpush.bf16.msra.mxu0 %v2281
    %2898 = vmatpush.bf16.msra.mxu0 %v2273
    %2899 = vmatpush.bf16.msra.mxu0 %v2265
    %2900 = vmatmul.bf16.gmra.mxu0 %v1153
    %v2901 = vpop.f32.mrf.mxu0
    %v2902 = vadd.f32 %v2888, %v2901
    %v2903 = vpop.f32.mrf.mxu0
    %v2904 = vadd.f32 %v2890, %v2903
    %2905 = vdwg.mxu0
    %2906 = vmatpush.bf16.msra.mxu0 %v2385
    %2907 = vmatpush.bf16.msra.mxu0 %v2377
    %2908 = vmatpush.bf16.msra.mxu0 %v2369
    %2909 = vmatpush.bf16.msra.mxu0 %v2361
    %2910 = vmatpush.bf16.msra.mxu0 %v2353
    %2911 = vmatpush.bf16.msra.mxu0 %v2345
    %2912 = vmatpush.bf16.msra.mxu0 %v2337
    %2913 = vmatpush.bf16.msra.mxu0 %v2329
    %2914 = vmatmul.bf16.gmra.mxu0 %v1154
    %v2915 = vpop.f32.mrf.mxu0
    %v2916 = vadd.f32 %v2902, %v2915
    %v2917 = vpop.f32.mrf.mxu0
    %v2918 = vadd.f32 %v2904, %v2917
    %2919 = vdwg.mxu0
    %2920 = vmatpush.bf16.msra.mxu0 %v2449
    %2921 = vmatpush.bf16.msra.mxu0 %v2441
    %2922 = vmatpush.bf16.msra.mxu0 %v2433
    %2923 = vmatpush.bf16.msra.mxu0 %v2425
    %2924 = vmatpush.bf16.msra.mxu0 %v2417
    %2925 = vmatpush.bf16.msra.mxu0 %v2409
    %2926 = vmatpush.bf16.msra.mxu0 %v2401
    %2927 = vmatpush.bf16.msra.mxu0 %v2393
    %2928 = vmatmul.bf16.gmra.mxu0 %v1155
    %v2929 = vpop.f32.mrf.mxu0
    %v2930 = vadd.f32 %v2916, %v2929
    %v2931 = vpop.f32.mrf.mxu0
    %v2932 = vadd.f32 %v2918, %v2931
    %2933 = vdwg.mxu0
    %2934 = vmatpush.bf16.msra.mxu0 %v2258
    %2935 = vmatpush.bf16.msra.mxu0 %v2250
    %2936 = vmatpush.bf16.msra.mxu0 %v2242
    %2937 = vmatpush.bf16.msra.mxu0 %v2234
    %2938 = vmatpush.bf16.msra.mxu0 %v2226
    %2939 = vmatpush.bf16.msra.mxu0 %v2218
    %2940 = vmatpush.bf16.msra.mxu0 %v2210
    %2941 = vmatpush.bf16.msra.mxu0 %v2202
    %2942 = vmatmul.bf16.gmra.mxu0 %v1152
    %v2943 = vpop.f32.mrf.mxu0
    %v2944 = vadd.f32 %v1418, %v2943
    %v2945 = vpop.f32.mrf.mxu0
    %v2946 = vadd.f32 %v1418, %v2945
    %2947 = vdwg.mxu0
    %2948 = vmatpush.bf16.msra.mxu0 %v2322
    %2949 = vmatpush.bf16.msra.mxu0 %v2314
    %2950 = vmatpush.bf16.msra.mxu0 %v2306
    %2951 = vmatpush.bf16.msra.mxu0 %v2298
    %2952 = vmatpush.bf16.msra.mxu0 %v2290
    %2953 = vmatpush.bf16.msra.mxu0 %v2282
    %2954 = vmatpush.bf16.msra.mxu0 %v2274
    %2955 = vmatpush.bf16.msra.mxu0 %v2266
    %2956 = vmatmul.bf16.gmra.mxu0 %v1153
    %v2957 = vpop.f32.mrf.mxu0
    %v2958 = vadd.f32 %v2944, %v2957
    %v2959 = vpop.f32.mrf.mxu0
    %v2960 = vadd.f32 %v2946, %v2959
    %2961 = vdwg.mxu0
    %2962 = vmatpush.bf16.msra.mxu0 %v2386
    %2963 = vmatpush.bf16.msra.mxu0 %v2378
    %2964 = vmatpush.bf16.msra.mxu0 %v2370
    %2965 = vmatpush.bf16.msra.mxu0 %v2362
    %2966 = vmatpush.bf16.msra.mxu0 %v2354
    %2967 = vmatpush.bf16.msra.mxu0 %v2346
    %2968 = vmatpush.bf16.msra.mxu0 %v2338
    %2969 = vmatpush.bf16.msra.mxu0 %v2330
    %2970 = vmatmul.bf16.gmra.mxu0 %v1154
    %v2971 = vpop.f32.mrf.mxu0
    %v2972 = vadd.f32 %v2958, %v2971
    %v2973 = vpop.f32.mrf.mxu0
    %v2974 = vadd.f32 %v2960, %v2973
    %2975 = vdwg.mxu0
    %2976 = vmatpush.bf16.msra.mxu0 %v2450
    %2977 = vmatpush.bf16.msra.mxu0 %v2442
    %2978 = vmatpush.bf16.msra.mxu0 %v2434
    %2979 = vmatpush.bf16.msra.mxu0 %v2426
    %2980 = vmatpush.bf16.msra.mxu0 %v2418
    %2981 = vmatpush.bf16.msra.mxu0 %v2410
    %2982 = vmatpush.bf16.msra.mxu0 %v2402
    %2983 = vmatpush.bf16.msra.mxu0 %v2394
    %2984 = vmatmul.bf16.gmra.mxu0 %v1155
    %v2985 = vpop.f32.mrf.mxu0
    %v2986 = vadd.f32 %v2972, %v2985
    %v2987 = vpop.f32.mrf.mxu0
    %v2988 = vadd.f32 %v2974, %v2987
    %2989 = vdwg.mxu0
    %2990 = vmatpush.bf16.msra.mxu0 %v2259
    %2991 = vmatpush.bf16.msra.mxu0 %v2251
    %2992 = vmatpush.bf16.msra.mxu0 %v2243
    %2993 = vmatpush.bf16.msra.mxu0 %v2235
    %2994 = vmatpush.bf16.msra.mxu0 %v2227
    %2995 = vmatpush.bf16.msra.mxu0 %v2219
    %2996 = vmatpush.bf16.msra.mxu0 %v2211
    %2997 = vmatpush.bf16.msra.mxu0 %v2203
    %2998 = vmatmul.bf16.gmra.mxu0 %v1152
    %v2999 = vpop.f32.mrf.mxu0
    %v3000 = vadd.f32 %v1419, %v2999
    %v3001 = vpop.f32.mrf.mxu0
    %v3002 = vadd.f32 %v1419, %v3001
    %3003 = vdwg.mxu0
    %3004 = vmatpush.bf16.msra.mxu0 %v2323
    %3005 = vmatpush.bf16.msra.mxu0 %v2315
    %3006 = vmatpush.bf16.msra.mxu0 %v2307
    %3007 = vmatpush.bf16.msra.mxu0 %v2299
    %3008 = vmatpush.bf16.msra.mxu0 %v2291
    %3009 = vmatpush.bf16.msra.mxu0 %v2283
    %3010 = vmatpush.bf16.msra.mxu0 %v2275
    %3011 = vmatpush.bf16.msra.mxu0 %v2267
    %3012 = vmatmul.bf16.gmra.mxu0 %v1153
    %v3013 = vpop.f32.mrf.mxu0
    %v3014 = vadd.f32 %v3000, %v3013
    %v3015 = vpop.f32.mrf.mxu0
    %v3016 = vadd.f32 %v3002, %v3015
    %3017 = vdwg.mxu0
    %3018 = vmatpush.bf16.msra.mxu0 %v2387
    %3019 = vmatpush.bf16.msra.mxu0 %v2379
    %3020 = vmatpush.bf16.msra.mxu0 %v2371
    %3021 = vmatpush.bf16.msra.mxu0 %v2363
    %3022 = vmatpush.bf16.msra.mxu0 %v2355
    %3023 = vmatpush.bf16.msra.mxu0 %v2347
    %3024 = vmatpush.bf16.msra.mxu0 %v2339
    %3025 = vmatpush.bf16.msra.mxu0 %v2331
    %3026 = vmatmul.bf16.gmra.mxu0 %v1154
    %v3027 = vpop.f32.mrf.mxu0
    %v3028 = vadd.f32 %v3014, %v3027
    %v3029 = vpop.f32.mrf.mxu0
    %v3030 = vadd.f32 %v3016, %v3029
    %3031 = vdwg.mxu0
    %3032 = vmatpush.bf16.msra.mxu0 %v2451
    %3033 = vmatpush.bf16.msra.mxu0 %v2443
    %3034 = vmatpush.bf16.msra.mxu0 %v2435
    %3035 = vmatpush.bf16.msra.mxu0 %v2427
    %3036 = vmatpush.bf16.msra.mxu0 %v2419
    %3037 = vmatpush.bf16.msra.mxu0 %v2411
    %3038 = vmatpush.bf16.msra.mxu0 %v2403
    %3039 = vmatpush.bf16.msra.mxu0 %v2395
    %3040 = vmatmul.bf16.gmra.mxu0 %v1155
    %v3041 = vpop.f32.mrf.mxu0
    %v3042 = vadd.f32 %v3028, %v3041
    %v3043 = vpop.f32.mrf.mxu0
    %v3044 = vadd.f32 %v3030, %v3043
    %3045 = vdwg.mxu0
    %3046 = vmatpush.bf16.msra.mxu0 %v2260
    %3047 = vmatpush.bf16.msra.mxu0 %v2252
    %3048 = vmatpush.bf16.msra.mxu0 %v2244
    %3049 = vmatpush.bf16.msra.mxu0 %v2236
    %3050 = vmatpush.bf16.msra.mxu0 %v2228
    %3051 = vmatpush.bf16.msra.mxu0 %v2220
    %3052 = vmatpush.bf16.msra.mxu0 %v2212
    %3053 = vmatpush.bf16.msra.mxu0 %v2204
    %3054 = vmatmul.bf16.gmra.mxu0 %v1152
    %v3055 = vpop.f32.mrf.mxu0
    %v3056 = vadd.f32 %v1420, %v3055
    %v3057 = vpop.f32.mrf.mxu0
    %v3058 = vadd.f32 %v1420, %v3057
    %3059 = vdwg.mxu0
    %3060 = vmatpush.bf16.msra.mxu0 %v2324
    %3061 = vmatpush.bf16.msra.mxu0 %v2316
    %3062 = vmatpush.bf16.msra.mxu0 %v2308
    %3063 = vmatpush.bf16.msra.mxu0 %v2300
    %3064 = vmatpush.bf16.msra.mxu0 %v2292
    %3065 = vmatpush.bf16.msra.mxu0 %v2284
    %3066 = vmatpush.bf16.msra.mxu0 %v2276
    %3067 = vmatpush.bf16.msra.mxu0 %v2268
    %3068 = vmatmul.bf16.gmra.mxu0 %v1153
    %v3069 = vpop.f32.mrf.mxu0
    %v3070 = vadd.f32 %v3056, %v3069
    %v3071 = vpop.f32.mrf.mxu0
    %v3072 = vadd.f32 %v3058, %v3071
    %3073 = vdwg.mxu0
    %3074 = vmatpush.bf16.msra.mxu0 %v2388
    %3075 = vmatpush.bf16.msra.mxu0 %v2380
    %3076 = vmatpush.bf16.msra.mxu0 %v2372
    %3077 = vmatpush.bf16.msra.mxu0 %v2364
    %3078 = vmatpush.bf16.msra.mxu0 %v2356
    %3079 = vmatpush.bf16.msra.mxu0 %v2348
    %3080 = vmatpush.bf16.msra.mxu0 %v2340
    %3081 = vmatpush.bf16.msra.mxu0 %v2332
    %3082 = vmatmul.bf16.gmra.mxu0 %v1154
    %v3083 = vpop.f32.mrf.mxu0
    %v3084 = vadd.f32 %v3070, %v3083
    %v3085 = vpop.f32.mrf.mxu0
    %v3086 = vadd.f32 %v3072, %v3085
    %3087 = vdwg.mxu0
    %3088 = vmatpush.bf16.msra.mxu0 %v2452
    %3089 = vmatpush.bf16.msra.mxu0 %v2444
    %3090 = vmatpush.bf16.msra.mxu0 %v2436
    %3091 = vmatpush.bf16.msra.mxu0 %v2428
    %3092 = vmatpush.bf16.msra.mxu0 %v2420
    %3093 = vmatpush.bf16.msra.mxu0 %v2412
    %3094 = vmatpush.bf16.msra.mxu0 %v2404
    %3095 = vmatpush.bf16.msra.mxu0 %v2396
    %3096 = vmatmul.bf16.gmra.mxu0 %v1155
    %v3097 = vpop.f32.mrf.mxu0
    %v3098 = vadd.f32 %v3084, %v3097
    %v3099 = vpop.f32.mrf.mxu0
    %v3100 = vadd.f32 %v3086, %v3099
    %3101 = vdwg.mxu0
    %3102 = vmatpush.bf16.msra.mxu0 %v2261
    %3103 = vmatpush.bf16.msra.mxu0 %v2253
    %3104 = vmatpush.bf16.msra.mxu0 %v2245
    %3105 = vmatpush.bf16.msra.mxu0 %v2237
    %3106 = vmatpush.bf16.msra.mxu0 %v2229
    %3107 = vmatpush.bf16.msra.mxu0 %v2221
    %3108 = vmatpush.bf16.msra.mxu0 %v2213
    %3109 = vmatpush.bf16.msra.mxu0 %v2205
    %3110 = vmatmul.bf16.gmra.mxu0 %v1152
    %v3111 = vpop.f32.mrf.mxu0
    %v3112 = vadd.f32 %v1421, %v3111
    %v3113 = vpop.f32.mrf.mxu0
    %v3114 = vadd.f32 %v1421, %v3113
    %3115 = vdwg.mxu0
    %3116 = vmatpush.bf16.msra.mxu0 %v2325
    %3117 = vmatpush.bf16.msra.mxu0 %v2317
    %3118 = vmatpush.bf16.msra.mxu0 %v2309
    %3119 = vmatpush.bf16.msra.mxu0 %v2301
    %3120 = vmatpush.bf16.msra.mxu0 %v2293
    %3121 = vmatpush.bf16.msra.mxu0 %v2285
    %3122 = vmatpush.bf16.msra.mxu0 %v2277
    %3123 = vmatpush.bf16.msra.mxu0 %v2269
    %3124 = vmatmul.bf16.gmra.mxu0 %v1153
    %v3125 = vpop.f32.mrf.mxu0
    %v3126 = vadd.f32 %v3112, %v3125
    %v3127 = vpop.f32.mrf.mxu0
    %v3128 = vadd.f32 %v3114, %v3127
    %3129 = vdwg.mxu0
    %3130 = vmatpush.bf16.msra.mxu0 %v2389
    %3131 = vmatpush.bf16.msra.mxu0 %v2381
    %3132 = vmatpush.bf16.msra.mxu0 %v2373
    %3133 = vmatpush.bf16.msra.mxu0 %v2365
    %3134 = vmatpush.bf16.msra.mxu0 %v2357
    %3135 = vmatpush.bf16.msra.mxu0 %v2349
    %3136 = vmatpush.bf16.msra.mxu0 %v2341
    %3137 = vmatpush.bf16.msra.mxu0 %v2333
    %3138 = vmatmul.bf16.gmra.mxu0 %v1154
    %v3139 = vpop.f32.mrf.mxu0
    %v3140 = vadd.f32 %v3126, %v3139
    %v3141 = vpop.f32.mrf.mxu0
    %v3142 = vadd.f32 %v3128, %v3141
    %3143 = vdwg.mxu0
    %3144 = vmatpush.bf16.msra.mxu0 %v2453
    %3145 = vmatpush.bf16.msra.mxu0 %v2445
    %3146 = vmatpush.bf16.msra.mxu0 %v2437
    %3147 = vmatpush.bf16.msra.mxu0 %v2429
    %3148 = vmatpush.bf16.msra.mxu0 %v2421
    %3149 = vmatpush.bf16.msra.mxu0 %v2413
    %3150 = vmatpush.bf16.msra.mxu0 %v2405
    %3151 = vmatpush.bf16.msra.mxu0 %v2397
    %3152 = vmatmul.bf16.gmra.mxu0 %v1155
    %v3153 = vpop.f32.mrf.mxu0
    %v3154 = vadd.f32 %v3140, %v3153
    %v3155 = vpop.f32.mrf.mxu0
    %v3156 = vadd.f32 %v3142, %v3155
    %3157 = vdwg.mxu0
    %v3158 = vmax.f32 %v2762, 0.0
    %v3159 = vmax.f32 %v2818, 0.0
    %v3160 = vmax.f32 %v2874, 0.0
    %v3161 = vmax.f32 %v2930, 0.0
    %v3162 = vmax.f32 %v2986, 0.0
    %v3163 = vmax.f32 %v3042, 0.0
    %v3164 = vmax.f32 %v3098, 0.0
    %v3165 = vmax.f32 %v3154, 0.0
    %v3166 = vmax.f32 %v2764, 0.0
    %v3167 = vmax.f32 %v2820, 0.0
    %v3168 = vmax.f32 %v2876, 0.0
    %v3169 = vmax.f32 %v2932, 0.0
    %v3170 = vmax.f32 %v2988, 0.0
    %v3171 = vmax.f32 %v3044, 0.0
    %v3172 = vmax.f32 %v3100, 0.0
    %v3173 = vmax.f32 %v3156, 0.0
    %v3174 = vpack.c.bf16 %v3166, %v3158
    %v3175 = vpack.c.bf16 %v3167, %v3159
    %v3176 = vpack.c.bf16 %v3168, %v3160
    %v3177 = vpack.c.bf16 %v3169, %v3161
    %v3178 = vpack.c.bf16 %v3170, %v3162
    %v3179 = vpack.c.bf16 %v3171, %v3163
    %v3180 = vpack.c.bf16 %v3172, %v3164
    %v3181 = vpack.c.bf16 %v3173, %v3165
    %v3182 = vld [vmem:[#allocation11] sm:$0xff]
    %v3183 = vld [vmem:[#allocation11 + $0x8] sm:$0xff]
    %v3184 = vld [vmem:[#allocation11 + $0x10] sm:$0xff]
    %v3185 = vld [vmem:[#allocation11 + $0x18] sm:$0xf]
    %v3186 = vld [vmem:[#allocation11 + $0x1c] sm:$0xff]
    %v3187 = vld [vmem:[#allocation11 + $0x24] sm:$0xff]
    %v3188 = vld [vmem:[#allocation11 + $0x2c] sm:$0xff]
    %v3189 = vld [vmem:[#allocation11 + $0x34] sm:$0xf]
    %v3190 = vld [vmem:[#allocation11 + $0x38] sm:$0xff]
    %v3191 = vld [vmem:[#allocation11 + $0x40] sm:$0xff]
    %v3192 = vld [vmem:[#allocation11 + $0x48] sm:$0xff]
    %v3193 = vld [vmem:[#allocation11 + $0x50] sm:$0xf]
    %v3194 = vld [vmem:[#allocation11 + $0x54] sm:$0xff]
    %v3195 = vld [vmem:[#allocation11 + $0x5c] sm:$0xff]
    %v3196 = vld [vmem:[#allocation11 + $0x64] sm:$0xff]
    %v3197 = vld [vmem:[#allocation11 + $0x6c] sm:$0xf]
    %v3198 = vld [vmem:[#allocation11 + $0x70] sm:$0xff]
    %v3199 = vld [vmem:[#allocation11 + $0x78] sm:$0xff]
    %v3200 = vld [vmem:[#allocation11 + $0x80] sm:$0xff]
    %v3201 = vld [vmem:[#allocation11 + $0x88] sm:$0xf]
    %v3202 = vld [vmem:[#allocation11 + $0x8c] sm:$0xff]
    %v3203 = vld [vmem:[#allocation11 + $0x94] sm:$0xff]
    %v3204 = vld [vmem:[#allocation11 + $0x9c] sm:$0xff]
    %v3205 = vld [vmem:[#allocation11 + $0xa4] sm:$0xf]
    %v3206 = vld [vmem:[#allocation11 + $0xa8] sm:$0xff]
    %v3207 = vld [vmem:[#allocation11 + $0xb0] sm:$0xff]
    %v3208 = vld [vmem:[#allocation11 + $0xb8] sm:$0xff]
    %v3209 = vld [vmem:[#allocation11 + $0xc0] sm:$0xf]
    %v3210 = vld [vmem:[#allocation11 + $0xc4] sm:$0xff]
    %v3211 = vld [vmem:[#allocation11 + $0xcc] sm:$0xff]
    %v3212 = vld [vmem:[#allocation11 + $0xd4] sm:$0xff]
    %v3213 = vld [vmem:[#allocation11 + $0xdc] sm:$0xf]
    %v3214 = vld [vmem:[#allocation11 + $0xe0] sm:$0xff]
    %v3215 = vld [vmem:[#allocation11 + $0xe8] sm:$0xff]
    %v3216 = vld [vmem:[#allocation11 + $0xf0] sm:$0xff]
    %v3217 = vld [vmem:[#allocation11 + $0xf8] sm:$0xf]
    %v3218 = vld [vmem:[#allocation11 + $0xfc] sm:$0xff]
    %v3219 = vld [vmem:[#allocation11 + $0x104] sm:$0xff]
    %v3220 = vld [vmem:[#allocation11 + $0x10c] sm:$0xff]
    %v3221 = vld [vmem:[#allocation11 + $0x114] sm:$0xf]
    %v3222 = vld [vmem:[#allocation11 + $0x118] sm:$0xff]
    %v3223 = vld [vmem:[#allocation11 + $0x120] sm:$0xff]
    %v3224 = vld [vmem:[#allocation11 + $0x128] sm:$0xff]
    %v3225 = vld [vmem:[#allocation11 + $0x130] sm:$0xf]
    %v3226 = vld [vmem:[#allocation11 + $0x134] sm:$0xff]
    %v3227 = vld [vmem:[#allocation11 + $0x13c] sm:$0xff]
    %v3228 = vld [vmem:[#allocation11 + $0x144] sm:$0xff]
    %v3229 = vld [vmem:[#allocation11 + $0x14c] sm:$0xf]
    %v3230 = vld [vmem:[#allocation11 + $0x150] sm:$0xff]
    %v3231 = vld [vmem:[#allocation11 + $0x158] sm:$0xff]
    %v3232 = vld [vmem:[#allocation11 + $0x160] sm:$0xff]
    %v3233 = vld [vmem:[#allocation11 + $0x168] sm:$0xf]
    %v3234 = vld [vmem:[#allocation11 + $0x16c] sm:$0xff]
    %v3235 = vld [vmem:[#allocation11 + $0x174] sm:$0xff]
    %v3236 = vld [vmem:[#allocation11 + $0x17c] sm:$0xff]
    %v3237 = vld [vmem:[#allocation11 + $0x184] sm:$0xf]
    %v3238 = vld [vmem:[#allocation11 + $0x188] sm:$0xff]
    %v3239 = vld [vmem:[#allocation11 + $0x190] sm:$0xff]
    %v3240 = vld [vmem:[#allocation11 + $0x198] sm:$0xff]
    %v3241 = vld [vmem:[#allocation11 + $0x1a0] sm:$0xf]
    %v3242 = vld [vmem:[#allocation11 + $0x1a4] sm:$0xff]
    %v3243 = vld [vmem:[#allocation11 + $0x1ac] sm:$0xff]
    %v3244 = vld [vmem:[#allocation11 + $0x1b4] sm:$0xff]
    %v3245 = vld [vmem:[#allocation11 + $0x1bc] sm:$0xf]
    %v3246 = vld [vmem:[#allocation11 + $0x1c0] sm:$0xff]
    %v3247 = vld [vmem:[#allocation11 + $0x1c8] sm:$0xff]
    %v3248 = vld [vmem:[#allocation11 + $0x1d0] sm:$0xff]
    %v3249 = vld [vmem:[#allocation11 + $0x1d8] sm:$0xf]
    %v3250 = vld [vmem:[#allocation11 + $0x1dc] sm:$0xff]
    %v3251 = vld [vmem:[#allocation11 + $0x1e4] sm:$0xff]
    %v3252 = vld [vmem:[#allocation11 + $0x1ec] sm:$0xff]
    %v3253 = vld [vmem:[#allocation11 + $0x1f4] sm:$0xf]
    %v3254 = vld [vmem:[#allocation11 + $0x1f8] sm:$0xff]
    %v3255 = vld [vmem:[#allocation11 + $0x200] sm:$0xff]
    %v3256 = vld [vmem:[#allocation11 + $0x208] sm:$0xff]
    %v3257 = vld [vmem:[#allocation11 + $0x210] sm:$0xf]
    %v3258 = vld [vmem:[#allocation11 + $0x214] sm:$0xff]
    %v3259 = vld [vmem:[#allocation11 + $0x21c] sm:$0xff]
    %v3260 = vld [vmem:[#allocation11 + $0x224] sm:$0xff]
    %v3261 = vld [vmem:[#allocation11 + $0x22c] sm:$0xf]
    %v3262 = vld [vmem:[#allocation11 + $0x230] sm:$0xff]
    %v3263 = vld [vmem:[#allocation11 + $0x238] sm:$0xff]
    %v3264 = vld [vmem:[#allocation11 + $0x240] sm:$0xff]
    %v3265 = vld [vmem:[#allocation11 + $0x248] sm:$0xf]
    %v3266 = vld [vmem:[#allocation11 + $0x24c] sm:$0xff]
    %v3267 = vld [vmem:[#allocation11 + $0x254] sm:$0xff]
    %v3268 = vld [vmem:[#allocation11 + $0x25c] sm:$0xff]
    %v3269 = vld [vmem:[#allocation11 + $0x264] sm:$0xf]
    %v3270 = vld [vmem:[#allocation11 + $0x268] sm:$0xff]
    %v3271 = vld [vmem:[#allocation11 + $0x270] sm:$0xff]
    %v3272 = vld [vmem:[#allocation11 + $0x278] sm:$0xff]
    %v3273 = vld [vmem:[#allocation11 + $0x280] sm:$0xf]
    %v3274 = vld [vmem:[#allocation11 + $0x284] sm:$0xff]
    %v3275 = vld [vmem:[#allocation11 + $0x28c] sm:$0xff]
    %v3276 = vld [vmem:[#allocation11 + $0x294] sm:$0xff]
    %v3277 = vld [vmem:[#allocation11 + $0x29c] sm:$0xf]
    %v3278 = vld [vmem:[#allocation11 + $0x2a0] sm:$0xff]
    %v3279 = vld [vmem:[#allocation11 + $0x2a8] sm:$0xff]
    %v3280 = vld [vmem:[#allocation11 + $0x2b0] sm:$0xff]
    %v3281 = vld [vmem:[#allocation11 + $0x2b8] sm:$0xf]
    %v3282 = vld [vmem:[#allocation11 + $0x2bc] sm:$0xff]
    %v3283 = vld [vmem:[#allocation11 + $0x2c4] sm:$0xff]
    %v3284 = vld [vmem:[#allocation11 + $0x2cc] sm:$0xff]
    %v3285 = vld [vmem:[#allocation11 + $0x2d4] sm:$0xf]
    %v3286 = vld [vmem:[#allocation11 + $0x2d8] sm:$0xff]
    %v3287 = vld [vmem:[#allocation11 + $0x2e0] sm:$0xff]
    %v3288 = vld [vmem:[#allocation11 + $0x2e8] sm:$0xff]
    %v3289 = vld [vmem:[#allocation11 + $0x2f0] sm:$0xf]
    %v3290 = vld [vmem:[#allocation11 + $0x2f4] sm:$0xff]
    %v3291 = vld [vmem:[#allocation11 + $0x2fc] sm:$0xff]
    %v3292 = vld [vmem:[#allocation11 + $0x304] sm:$0xff]
    %v3293 = vld [vmem:[#allocation11 + $0x30c] sm:$0xf]
    %v3294 = vld [vmem:[#allocation11 + $0x310] sm:$0xff]
    %v3295 = vld [vmem:[#allocation11 + $0x318] sm:$0xff]
    %v3296 = vld [vmem:[#allocation11 + $0x320] sm:$0xff]
    %v3297 = vld [vmem:[#allocation11 + $0x328] sm:$0xf]
    %v3298 = vld [vmem:[#allocation11 + $0x32c] sm:$0xff]
    %v3299 = vld [vmem:[#allocation11 + $0x334] sm:$0xff]
    %v3300 = vld [vmem:[#allocation11 + $0x33c] sm:$0xff]
    %v3301 = vld [vmem:[#allocation11 + $0x344] sm:$0xf]
    %v3302 = vld [vmem:[#allocation11 + $0x348] sm:$0xff]
    %v3303 = vld [vmem:[#allocation11 + $0x350] sm:$0xff]
    %v3304 = vld [vmem:[#allocation11 + $0x358] sm:$0xff]
    %v3305 = vld [vmem:[#allocation11 + $0x360] sm:$0xf]
    %v3306 = vld [vmem:[#allocation11 + $0x364] sm:$0xff]
    %v3307 = vld [vmem:[#allocation11 + $0x36c] sm:$0xff]
    %v3308 = vld [vmem:[#allocation11 + $0x374] sm:$0xff]
    %v3309 = vld [vmem:[#allocation11 + $0x37c] sm:$0xf]
    %v3310 = vld [vmem:[#allocation11 + $0x380] sm:$0xff]
    %v3311 = vld [vmem:[#allocation11 + $0x388] sm:$0xff]
    %v3312 = vld [vmem:[#allocation11 + $0x390] sm:$0xff]
    %v3313 = vld [vmem:[#allocation11 + $0x398] sm:$0xf]
    %v3314 = vld [vmem:[#allocation11 + $0x39c] sm:$0xff]
    %v3315 = vld [vmem:[#allocation11 + $0x3a4] sm:$0xff]
    %v3316 = vld [vmem:[#allocation11 + $0x3ac] sm:$0xff]
    %v3317 = vld [vmem:[#allocation11 + $0x3b4] sm:$0xf]
    %v3318 = vld [vmem:[#allocation11 + $0x3b8] sm:$0xff]
    %v3319 = vld [vmem:[#allocation11 + $0x3c0] sm:$0xff]
    %v3320 = vld [vmem:[#allocation11 + $0x3c8] sm:$0xff]
    %v3321 = vld [vmem:[#allocation11 + $0x3d0] sm:$0xf]
    %v3322 = vld [vmem:[#allocation11 + $0x3d4] sm:$0xff]
    %v3323 = vld [vmem:[#allocation11 + $0x3dc] sm:$0xff]
    %v3324 = vld [vmem:[#allocation11 + $0x3e4] sm:$0xff]
    %v3325 = vld [vmem:[#allocation11 + $0x3ec] sm:$0xf]
    %v3326 = vld [vmem:[#allocation11 + $0x3f0] sm:$0xff]
    %v3327 = vld [vmem:[#allocation11 + $0x3f8] sm:$0xff]
    %v3328 = vld [vmem:[#allocation11 + $0x400] sm:$0xff]
    %v3329 = vld [vmem:[#allocation11 + $0x408] sm:$0xf]
    %v3330 = vld [vmem:[#allocation11 + $0x40c] sm:$0xff]
    %v3331 = vld [vmem:[#allocation11 + $0x414] sm:$0xff]
    %v3332 = vld [vmem:[#allocation11 + $0x41c] sm:$0xff]
    %v3333 = vld [vmem:[#allocation11 + $0x424] sm:$0xf]
    %v3334 = vld [vmem:[#allocation11 + $0x428] sm:$0xff]
    %v3335 = vld [vmem:[#allocation11 + $0x430] sm:$0xff]
    %v3336 = vld [vmem:[#allocation11 + $0x438] sm:$0xff]
    %v3337 = vld [vmem:[#allocation11 + $0x440] sm:$0xf]
    %v3338 = vld [vmem:[#allocation11 + $0x444] sm:$0xff]
    %v3339 = vld [vmem:[#allocation11 + $0x44c] sm:$0xff]
    %v3340 = vld [vmem:[#allocation11 + $0x454] sm:$0xff]
    %v3341 = vld [vmem:[#allocation11 + $0x45c] sm:$0xf]
    %v3342 = vld [vmem:[#allocation11 + $0x460] sm:$0xff]
    %v3343 = vld [vmem:[#allocation11 + $0x468] sm:$0xff]
    %v3344 = vld [vmem:[#allocation11 + $0x470] sm:$0xff]
    %v3345 = vld [vmem:[#allocation11 + $0x478] sm:$0xf]
    %v3346 = vld [vmem:[#allocation11 + $0x47c] sm:$0xff]
    %v3347 = vld [vmem:[#allocation11 + $0x484] sm:$0xff]
    %v3348 = vld [vmem:[#allocation11 + $0x48c] sm:$0xff]
    %v3349 = vld [vmem:[#allocation11 + $0x494] sm:$0xf]
    %v3350 = vld [vmem:[#allocation11 + $0x498] sm:$0xff]
    %v3351 = vld [vmem:[#allocation11 + $0x4a0] sm:$0xff]
    %v3352 = vld [vmem:[#allocation11 + $0x4a8] sm:$0xff]
    %v3353 = vld [vmem:[#allocation11 + $0x4b0] sm:$0xf]
    %v3354 = vld [vmem:[#allocation11 + $0x4b4] sm:$0xff]
    %v3355 = vld [vmem:[#allocation11 + $0x4bc] sm:$0xff]
    %v3356 = vld [vmem:[#allocation11 + $0x4c4] sm:$0xff]
    %v3357 = vld [vmem:[#allocation11 + $0x4cc] sm:$0xf]
    %v3358 = vld [vmem:[#allocation11 + $0x4d0] sm:$0xff]
    %v3359 = vld [vmem:[#allocation11 + $0x4d8] sm:$0xff]
    %v3360 = vld [vmem:[#allocation11 + $0x4e0] sm:$0xff]
    %v3361 = vld [vmem:[#allocation11 + $0x4e8] sm:$0xf]
    %v3362 = vld [vmem:[#allocation11 + $0x4ec] sm:$0xff]
    %v3363 = vld [vmem:[#allocation11 + $0x4f4] sm:$0xff]
    %v3364 = vld [vmem:[#allocation11 + $0x4fc] sm:$0xff]
    %v3365 = vld [vmem:[#allocation11 + $0x504] sm:$0xf]
    %v3366 = vld [vmem:[#allocation11 + $0x508] sm:$0xff]
    %v3367 = vld [vmem:[#allocation11 + $0x510] sm:$0xff]
    %v3368 = vld [vmem:[#allocation11 + $0x518] sm:$0xff]
    %v3369 = vld [vmem:[#allocation11 + $0x520] sm:$0xf]
    %v3370 = vld [vmem:[#allocation11 + $0x524] sm:$0xff]
    %v3371 = vld [vmem:[#allocation11 + $0x52c] sm:$0xff]
    %v3372 = vld [vmem:[#allocation11 + $0x534] sm:$0xff]
    %v3373 = vld [vmem:[#allocation11 + $0x53c] sm:$0xf]
    %v3374 = vld [vmem:[#allocation11 + $0x540] sm:$0xff]
    %v3375 = vld [vmem:[#allocation11 + $0x548] sm:$0xff]
    %v3376 = vld [vmem:[#allocation11 + $0x550] sm:$0xff]
    %v3377 = vld [vmem:[#allocation11 + $0x558] sm:$0xf]
    %v3378 = vld [vmem:[#allocation11 + $0x55c] sm:$0xff]
    %v3379 = vld [vmem:[#allocation11 + $0x564] sm:$0xff]
    %v3380 = vld [vmem:[#allocation11 + $0x56c] sm:$0xff]
    %v3381 = vld [vmem:[#allocation11 + $0x574] sm:$0xf]
    %v3382 = vld [vmem:[#allocation11 + $0x578] sm:$0xff]
    %v3383 = vld [vmem:[#allocation11 + $0x580] sm:$0xff]
    %v3384 = vld [vmem:[#allocation11 + $0x588] sm:$0xff]
    %v3385 = vld [vmem:[#allocation11 + $0x590] sm:$0xf]
    %v3386 = vld [vmem:[#allocation11 + $0x594] sm:$0xff]
    %v3387 = vld [vmem:[#allocation11 + $0x59c] sm:$0xff]
    %v3388 = vld [vmem:[#allocation11 + $0x5a4] sm:$0xff]
    %v3389 = vld [vmem:[#allocation11 + $0x5ac] sm:$0xf]
    %v3390 = vld [vmem:[#allocation11 + $0x5b0] sm:$0xff]
    %v3391 = vld [vmem:[#allocation11 + $0x5b8] sm:$0xff]
    %v3392 = vld [vmem:[#allocation11 + $0x5c0] sm:$0xff]
    %v3393 = vld [vmem:[#allocation11 + $0x5c8] sm:$0xf]
    %v3394 = vld [vmem:[#allocation11 + $0x5cc] sm:$0xff]
    %v3395 = vld [vmem:[#allocation11 + $0x5d4] sm:$0xff]
    %v3396 = vld [vmem:[#allocation11 + $0x5dc] sm:$0xff]
    %v3397 = vld [vmem:[#allocation11 + $0x5e4] sm:$0xf]
    %v3398 = vld [vmem:[#allocation11 + $0x5e8] sm:$0xff]
    %v3399 = vld [vmem:[#allocation11 + $0x5f0] sm:$0xff]
    %v3400 = vld [vmem:[#allocation11 + $0x5f8] sm:$0xff]
    %v3401 = vld [vmem:[#allocation11 + $0x600] sm:$0xf]
    %v3402 = vld [vmem:[#allocation11 + $0x604] sm:$0xff]
    %v3403 = vld [vmem:[#allocation11 + $0x60c] sm:$0xff]
    %v3404 = vld [vmem:[#allocation11 + $0x614] sm:$0xff]
    %v3405 = vld [vmem:[#allocation11 + $0x61c] sm:$0xf]
    %v3406 = vld [vmem:[#allocation11 + $0x620] sm:$0xff]
    %v3407 = vld [vmem:[#allocation11 + $0x628] sm:$0xff]
    %v3408 = vld [vmem:[#allocation11 + $0x630] sm:$0xff]
    %v3409 = vld [vmem:[#allocation11 + $0x638] sm:$0xf]
    %v3410 = vld [vmem:[#allocation11 + $0x63c] sm:$0xff]
    %v3411 = vld [vmem:[#allocation11 + $0x644] sm:$0xff]
    %v3412 = vld [vmem:[#allocation11 + $0x64c] sm:$0xff]
    %v3413 = vld [vmem:[#allocation11 + $0x654] sm:$0xf]
    %v3414 = vld [vmem:[#allocation11 + $0x658] sm:$0xff]
    %v3415 = vld [vmem:[#allocation11 + $0x660] sm:$0xff]
    %v3416 = vld [vmem:[#allocation11 + $0x668] sm:$0xff]
    %v3417 = vld [vmem:[#allocation11 + $0x670] sm:$0xf]
    %v3418 = vld [vmem:[#allocation11 + $0x674] sm:$0xff]
    %v3419 = vld [vmem:[#allocation11 + $0x67c] sm:$0xff]
    %v3420 = vld [vmem:[#allocation11 + $0x684] sm:$0xff]
    %v3421 = vld [vmem:[#allocation11 + $0x68c] sm:$0xf]
    %v3422 = vld [vmem:[#allocation11 + $0x690] sm:$0xff]
    %v3423 = vld [vmem:[#allocation11 + $0x698] sm:$0xff]
    %v3424 = vld [vmem:[#allocation11 + $0x6a0] sm:$0xff]
    %v3425 = vld [vmem:[#allocation11 + $0x6a8] sm:$0xf]
    %v3426 = vld [vmem:[#allocation11 + $0x6ac] sm:$0xff]
    %v3427 = vld [vmem:[#allocation11 + $0x6b4] sm:$0xff]
    %v3428 = vld [vmem:[#allocation11 + $0x6bc] sm:$0xff]
    %v3429 = vld [vmem:[#allocation11 + $0x6c4] sm:$0xf]
    %v3430 = vld [vmem:[#allocation11 + $0x6c8] sm:$0xff]
    %v3431 = vld [vmem:[#allocation11 + $0x6d0] sm:$0xff]
    %v3432 = vld [vmem:[#allocation11 + $0x6d8] sm:$0xff]
    %v3433 = vld [vmem:[#allocation11 + $0x6e0] sm:$0xf]
    %v3434 = vld [vmem:[#allocation11 + $0x6e4] sm:$0xff]
    %v3435 = vld [vmem:[#allocation11 + $0x6ec] sm:$0xff]
    %v3436 = vld [vmem:[#allocation11 + $0x6f4] sm:$0xff]
    %v3437 = vld [vmem:[#allocation11 + $0x6fc] sm:$0xf]
    %v3438 = vld [vmem:[#allocation11 + $0x700] sm:$0xff]
    %v3439 = vld [vmem:[#allocation11 + $0x708] sm:$0xff]
    %v3440 = vld [vmem:[#allocation11 + $0x710] sm:$0xff]
    %v3441 = vld [vmem:[#allocation11 + $0x718] sm:$0xf]
    %v3442 = vld [vmem:[#allocation11 + $0x71c] sm:$0xff]
    %v3443 = vld [vmem:[#allocation11 + $0x724] sm:$0xff]
    %v3444 = vld [vmem:[#allocation11 + $0x72c] sm:$0xff]
    %v3445 = vld [vmem:[#allocation11 + $0x734] sm:$0xf]
    %v3446 = vld [vmem:[#allocation11 + $0x738] sm:$0xff]
    %v3447 = vld [vmem:[#allocation11 + $0x740] sm:$0xff]
    %v3448 = vld [vmem:[#allocation11 + $0x748] sm:$0xff]
    %v3449 = vld [vmem:[#allocation11 + $0x750] sm:$0xf]
    %v3450 = vld [vmem:[#allocation11 + $0x754] sm:$0xff]
    %v3451 = vld [vmem:[#allocation11 + $0x75c] sm:$0xff]
    %v3452 = vld [vmem:[#allocation11 + $0x764] sm:$0xff]
    %v3453 = vld [vmem:[#allocation11 + $0x76c] sm:$0xf]
    %v3454 = vld [vmem:[#allocation11 + $0x770] sm:$0xff]
    %v3455 = vld [vmem:[#allocation11 + $0x778] sm:$0xff]
    %v3456 = vld [vmem:[#allocation11 + $0x780] sm:$0xff]
    %v3457 = vld [vmem:[#allocation11 + $0x788] sm:$0xf]
    %v3458 = vld [vmem:[#allocation11 + $0x78c] sm:$0xff]
    %v3459 = vld [vmem:[#allocation11 + $0x794] sm:$0xff]
    %v3460 = vld [vmem:[#allocation11 + $0x79c] sm:$0xff]
    %v3461 = vld [vmem:[#allocation11 + $0x7a4] sm:$0xf]
    %v3462 = vld [vmem:[#allocation11 + $0x7a8] sm:$0xff]
    %v3463 = vld [vmem:[#allocation11 + $0x7b0] sm:$0xff]
    %v3464 = vld [vmem:[#allocation11 + $0x7b8] sm:$0xff]
    %v3465 = vld [vmem:[#allocation11 + $0x7c0] sm:$0xf]
    %v3466 = vld [vmem:[#allocation11 + $0x7c4] sm:$0xff]
    %v3467 = vld [vmem:[#allocation11 + $0x7cc] sm:$0xff]
    %v3468 = vld [vmem:[#allocation11 + $0x7d4] sm:$0xff]
    %v3469 = vld [vmem:[#allocation11 + $0x7dc] sm:$0xf]
    %v3470 = vld [vmem:[#allocation11 + $0x7e0] sm:$0xff]
    %v3471 = vld [vmem:[#allocation11 + $0x7e8] sm:$0xff]
    %v3472 = vld [vmem:[#allocation11 + $0x7f0] sm:$0xff]
    %v3473 = vld [vmem:[#allocation11 + $0x7f8] sm:$0xf]
    %v3474 = vld [vmem:[#allocation11 + $0x7fc] sm:$0xff]
    %v3475 = vld [vmem:[#allocation11 + $0x804] sm:$0xff]
    %v3476 = vld [vmem:[#allocation11 + $0x80c] sm:$0xff]
    %v3477 = vld [vmem:[#allocation11 + $0x814] sm:$0xf]
    %v3478 = vld [vmem:[#allocation11 + $0x818] sm:$0xff]
    %v3479 = vld [vmem:[#allocation11 + $0x820] sm:$0xff]
    %v3480 = vld [vmem:[#allocation11 + $0x828] sm:$0xff]
    %v3481 = vld [vmem:[#allocation11 + $0x830] sm:$0xf]
    %v3482 = vld [vmem:[#allocation11 + $0x834] sm:$0xff]
    %v3483 = vld [vmem:[#allocation11 + $0x83c] sm:$0xff]
    %v3484 = vld [vmem:[#allocation11 + $0x844] sm:$0xff]
    %v3485 = vld [vmem:[#allocation11 + $0x84c] sm:$0xf]
    %v3486 = vld [vmem:[#allocation11 + $0x850] sm:$0xff]
    %v3487 = vld [vmem:[#allocation11 + $0x858] sm:$0xff]
    %v3488 = vld [vmem:[#allocation11 + $0x860] sm:$0xff]
    %v3489 = vld [vmem:[#allocation11 + $0x868] sm:$0xf]
    %v3490 = vld [vmem:[#allocation11 + $0x86c] sm:$0xff]
    %v3491 = vld [vmem:[#allocation11 + $0x874] sm:$0xff]
    %v3492 = vld [vmem:[#allocation11 + $0x87c] sm:$0xff]
    %v3493 = vld [vmem:[#allocation11 + $0x884] sm:$0xf]
    %v3494 = vld [vmem:[#allocation11 + $0x888] sm:$0xff]
    %v3495 = vld [vmem:[#allocation11 + $0x890] sm:$0xff]
    %v3496 = vld [vmem:[#allocation11 + $0x898] sm:$0xff]
    %v3497 = vld [vmem:[#allocation11 + $0x8a0] sm:$0xf]
    %v3498 = vld [vmem:[#allocation11 + $0x8a4] sm:$0xff]
    %v3499 = vld [vmem:[#allocation11 + $0x8ac] sm:$0xff]
    %v3500 = vld [vmem:[#allocation11 + $0x8b4] sm:$0xff]
    %v3501 = vld [vmem:[#allocation11 + $0x8bc] sm:$0xf]
    %v3502 = vld [vmem:[#allocation11 + $0x8c0] sm:$0xff]
    %v3503 = vld [vmem:[#allocation11 + $0x8c8] sm:$0xff]
    %v3504 = vld [vmem:[#allocation11 + $0x8d0] sm:$0xff]
    %v3505 = vld [vmem:[#allocation11 + $0x8d8] sm:$0xf]
    %v3506 = vld [vmem:[#allocation11 + $0x8dc] sm:$0xff]
    %v3507 = vld [vmem:[#allocation11 + $0x8e4] sm:$0xff]
    %v3508 = vld [vmem:[#allocation11 + $0x8ec] sm:$0xff]
    %v3509 = vld [vmem:[#allocation11 + $0x8f4] sm:$0xf]
    %v3510 = vld [vmem:[#allocation11 + $0x8f8] sm:$0xff]
    %v3511 = vld [vmem:[#allocation11 + $0x900] sm:$0xff]
    %v3512 = vld [vmem:[#allocation11 + $0x908] sm:$0xff]
    %v3513 = vld [vmem:[#allocation11 + $0x910] sm:$0xf]
    %v3514 = vld [vmem:[#allocation11 + $0x914] sm:$0xff]
    %v3515 = vld [vmem:[#allocation11 + $0x91c] sm:$0xff]
    %v3516 = vld [vmem:[#allocation11 + $0x924] sm:$0xff]
    %v3517 = vld [vmem:[#allocation11 + $0x92c] sm:$0xf]
    %v3518 = vld [vmem:[#allocation11 + $0x930] sm:$0xff]
    %v3519 = vld [vmem:[#allocation11 + $0x938] sm:$0xff]
    %v3520 = vld [vmem:[#allocation11 + $0x940] sm:$0xff]
    %v3521 = vld [vmem:[#allocation11 + $0x948] sm:$0xf]
    %v3522 = vld [vmem:[#allocation11 + $0x94c] sm:$0xff]
    %v3523 = vld [vmem:[#allocation11 + $0x954] sm:$0xff]
    %v3524 = vld [vmem:[#allocation11 + $0x95c] sm:$0xff]
    %v3525 = vld [vmem:[#allocation11 + $0x964] sm:$0xf]
    %v3526 = vld [vmem:[#allocation11 + $0x968] sm:$0xff]
    %v3527 = vld [vmem:[#allocation11 + $0x970] sm:$0xff]
    %v3528 = vld [vmem:[#allocation11 + $0x978] sm:$0xff]
    %v3529 = vld [vmem:[#allocation11 + $0x980] sm:$0xf]
    %v3530 = vld [vmem:[#allocation11 + $0x984] sm:$0xff]
    %v3531 = vld [vmem:[#allocation11 + $0x98c] sm:$0xff]
    %v3532 = vld [vmem:[#allocation11 + $0x994] sm:$0xff]
    %v3533 = vld [vmem:[#allocation11 + $0x99c] sm:$0xf]
    %v3534 = vld [vmem:[#allocation11 + $0x9a0] sm:$0xff]
    %v3535 = vld [vmem:[#allocation11 + $0x9a8] sm:$0xff]
    %v3536 = vld [vmem:[#allocation11 + $0x9b0] sm:$0xff]
    %v3537 = vld [vmem:[#allocation11 + $0x9b8] sm:$0xf]
    %v3538 = vld [vmem:[#allocation11 + $0x9bc] sm:$0xff]
    %v3539 = vld [vmem:[#allocation11 + $0x9c4] sm:$0xff]
    %v3540 = vld [vmem:[#allocation11 + $0x9cc] sm:$0xff]
    %v3541 = vld [vmem:[#allocation11 + $0x9d4] sm:$0xf]
    %v3542 = vld [vmem:[#allocation11 + $0x9d8] sm:$0xff]
    %v3543 = vld [vmem:[#allocation11 + $0x9e0] sm:$0xff]
    %v3544 = vld [vmem:[#allocation11 + $0x9e8] sm:$0xff]
    %v3545 = vld [vmem:[#allocation11 + $0x9f0] sm:$0xf]
    %v3546 = vld [vmem:[#allocation11 + $0x9f4] sm:$0xff]
    %v3547 = vld [vmem:[#allocation11 + $0x9fc] sm:$0xff]
    %v3548 = vld [vmem:[#allocation11 + $0xa04] sm:$0xff]
    %v3549 = vld [vmem:[#allocation11 + $0xa0c] sm:$0xf]
    %v3550 = vld [vmem:[#allocation11 + $0xa10] sm:$0xff]
    %v3551 = vld [vmem:[#allocation11 + $0xa18] sm:$0xff]
    %v3552 = vld [vmem:[#allocation11 + $0xa20] sm:$0xff]
    %v3553 = vld [vmem:[#allocation11 + $0xa28] sm:$0xf]
    %v3554 = vld [vmem:[#allocation11 + $0xa2c] sm:$0xff]
    %v3555 = vld [vmem:[#allocation11 + $0xa34] sm:$0xff]
    %v3556 = vld [vmem:[#allocation11 + $0xa3c] sm:$0xff]
    %v3557 = vld [vmem:[#allocation11 + $0xa44] sm:$0xf]
    %v3558 = vld [vmem:[#allocation11 + $0xa48] sm:$0xff]
    %v3559 = vld [vmem:[#allocation11 + $0xa50] sm:$0xff]
    %v3560 = vld [vmem:[#allocation11 + $0xa58] sm:$0xff]
    %v3561 = vld [vmem:[#allocation11 + $0xa60] sm:$0xf]
    %v3562 = vld [vmem:[#allocation11 + $0xa64] sm:$0xff]
    %v3563 = vld [vmem:[#allocation11 + $0xa6c] sm:$0xff]
    %v3564 = vld [vmem:[#allocation11 + $0xa74] sm:$0xff]
    %v3565 = vld [vmem:[#allocation11 + $0xa7c] sm:$0xf]
    %v3566 = vld [vmem:[#allocation11 + $0xa80] sm:$0xff]
    %v3567 = vld [vmem:[#allocation11 + $0xa88] sm:$0xff]
    %v3568 = vld [vmem:[#allocation11 + $0xa90] sm:$0xff]
    %v3569 = vld [vmem:[#allocation11 + $0xa98] sm:$0xf]
    %v3570 = vld [vmem:[#allocation11 + $0xa9c] sm:$0xff]
    %v3571 = vld [vmem:[#allocation11 + $0xaa4] sm:$0xff]
    %v3572 = vld [vmem:[#allocation11 + $0xaac] sm:$0xff]
    %v3573 = vld [vmem:[#allocation11 + $0xab4] sm:$0xf]
    %v3574 = vld [vmem:[#allocation11 + $0xab8] sm:$0xff]
    %v3575 = vld [vmem:[#allocation11 + $0xac0] sm:$0xff]
    %v3576 = vld [vmem:[#allocation11 + $0xac8] sm:$0xff]
    %v3577 = vld [vmem:[#allocation11 + $0xad0] sm:$0xf]
    %v3578 = vld [vmem:[#allocation11 + $0xad4] sm:$0xff]
    %v3579 = vld [vmem:[#allocation11 + $0xadc] sm:$0xff]
    %v3580 = vld [vmem:[#allocation11 + $0xae4] sm:$0xff]
    %v3581 = vld [vmem:[#allocation11 + $0xaec] sm:$0xf]
    %v3582 = vld [vmem:[#allocation11 + $0xaf0] sm:$0xff]
    %v3583 = vld [vmem:[#allocation11 + $0xaf8] sm:$0xff]
    %v3584 = vld [vmem:[#allocation11 + $0xb00] sm:$0xff]
    %v3585 = vld [vmem:[#allocation11 + $0xb08] sm:$0xf]
    %v3586 = vld [vmem:[#allocation11 + $0xb0c] sm:$0xff]
    %v3587 = vld [vmem:[#allocation11 + $0xb14] sm:$0xff]
    %v3588 = vld [vmem:[#allocation11 + $0xb1c] sm:$0xff]
    %v3589 = vld [vmem:[#allocation11 + $0xb24] sm:$0xf]
    %v3590 = vld [vmem:[#allocation11 + $0xb28] sm:$0xff]
    %v3591 = vld [vmem:[#allocation11 + $0xb30] sm:$0xff]
    %v3592 = vld [vmem:[#allocation11 + $0xb38] sm:$0xff]
    %v3593 = vld [vmem:[#allocation11 + $0xb40] sm:$0xf]
    %v3594 = vld [vmem:[#allocation11 + $0xb44] sm:$0xff]
    %v3595 = vld [vmem:[#allocation11 + $0xb4c] sm:$0xff]
    %v3596 = vld [vmem:[#allocation11 + $0xb54] sm:$0xff]
    %v3597 = vld [vmem:[#allocation11 + $0xb5c] sm:$0xf]
    %v3598 = vld [vmem:[#allocation11 + $0xb60] sm:$0xff]
    %v3599 = vld [vmem:[#allocation11 + $0xb68] sm:$0xff]
    %v3600 = vld [vmem:[#allocation11 + $0xb70] sm:$0xff]
    %v3601 = vld [vmem:[#allocation11 + $0xb78] sm:$0xf]
    %v3602 = vld [vmem:[#allocation11 + $0xb7c] sm:$0xff]
    %v3603 = vld [vmem:[#allocation11 + $0xb84] sm:$0xff]
    %v3604 = vld [vmem:[#allocation11 + $0xb8c] sm:$0xff]
    %v3605 = vld [vmem:[#allocation11 + $0xb94] sm:$0xf]
    %v3606 = vld [vmem:[#allocation11 + $0xb98] sm:$0xff]
    %v3607 = vld [vmem:[#allocation11 + $0xba0] sm:$0xff]
    %v3608 = vld [vmem:[#allocation11 + $0xba8] sm:$0xff]
    %v3609 = vld [vmem:[#allocation11 + $0xbb0] sm:$0xf]
    %v3610 = vld [vmem:[#allocation11 + $0xbb4] sm:$0xff]
    %v3611 = vld [vmem:[#allocation11 + $0xbbc] sm:$0xff]
    %v3612 = vld [vmem:[#allocation11 + $0xbc4] sm:$0xff]
    %v3613 = vld [vmem:[#allocation11 + $0xbcc] sm:$0xf]
    %v3614 = vld [vmem:[#allocation11 + $0xbd0] sm:$0xff]
    %v3615 = vld [vmem:[#allocation11 + $0xbd8] sm:$0xff]
    %v3616 = vld [vmem:[#allocation11 + $0xbe0] sm:$0xff]
    %v3617 = vld [vmem:[#allocation11 + $0xbe8] sm:$0xf]
    %v3618 = vld [vmem:[#allocation11 + $0xbec] sm:$0xff]
    %v3619 = vld [vmem:[#allocation11 + $0xbf4] sm:$0xff]
    %v3620 = vld [vmem:[#allocation11 + $0xbfc] sm:$0xff]
    %v3621 = vld [vmem:[#allocation11 + $0xc04] sm:$0xf]
    %v3622 = vld [vmem:[#allocation11 + $0xc08] sm:$0xff]
    %v3623 = vld [vmem:[#allocation11 + $0xc10] sm:$0xff]
    %v3624 = vld [vmem:[#allocation11 + $0xc18] sm:$0xff]
    %v3625 = vld [vmem:[#allocation11 + $0xc20] sm:$0xf]
    %v3626 = vld [vmem:[#allocation11 + $0xc24] sm:$0xff]
    %v3627 = vld [vmem:[#allocation11 + $0xc2c] sm:$0xff]
    %v3628 = vld [vmem:[#allocation11 + $0xc34] sm:$0xff]
    %v3629 = vld [vmem:[#allocation11 + $0xc3c] sm:$0xf]
    %v3630 = vld [vmem:[#allocation11 + $0xc40] sm:$0xff]
    %v3631 = vld [vmem:[#allocation11 + $0xc48] sm:$0xff]
    %v3632 = vld [vmem:[#allocation11 + $0xc50] sm:$0xff]
    %v3633 = vld [vmem:[#allocation11 + $0xc58] sm:$0xf]
    %v3634 = vld [vmem:[#allocation11 + $0xc5c] sm:$0xff]
    %v3635 = vld [vmem:[#allocation11 + $0xc64] sm:$0xff]
    %v3636 = vld [vmem:[#allocation11 + $0xc6c] sm:$0xff]
    %v3637 = vld [vmem:[#allocation11 + $0xc74] sm:$0xf]
    %v3638 = vld [vmem:[#allocation11 + $0xc78] sm:$0xff]
    %v3639 = vld [vmem:[#allocation11 + $0xc80] sm:$0xff]
    %v3640 = vld [vmem:[#allocation11 + $0xc88] sm:$0xff]
    %v3641 = vld [vmem:[#allocation11 + $0xc90] sm:$0xf]
    %v3642 = vld [vmem:[#allocation11 + $0xc94] sm:$0xff]
    %v3643 = vld [vmem:[#allocation11 + $0xc9c] sm:$0xff]
    %v3644 = vld [vmem:[#allocation11 + $0xca4] sm:$0xff]
    %v3645 = vld [vmem:[#allocation11 + $0xcac] sm:$0xf]
    %v3646 = vld [vmem:[#allocation11 + $0xcb0] sm:$0xff]
    %v3647 = vld [vmem:[#allocation11 + $0xcb8] sm:$0xff]
    %v3648 = vld [vmem:[#allocation11 + $0xcc0] sm:$0xff]
    %v3649 = vld [vmem:[#allocation11 + $0xcc8] sm:$0xf]
    %v3650 = vld [vmem:[#allocation11 + $0xccc] sm:$0xff]
    %v3651 = vld [vmem:[#allocation11 + $0xcd4] sm:$0xff]
    %v3652 = vld [vmem:[#allocation11 + $0xcdc] sm:$0xff]
    %v3653 = vld [vmem:[#allocation11 + $0xce4] sm:$0xf]
    %v3654 = vld [vmem:[#allocation11 + $0xce8] sm:$0xff]
    %v3655 = vld [vmem:[#allocation11 + $0xcf0] sm:$0xff]
    %v3656 = vld [vmem:[#allocation11 + $0xcf8] sm:$0xff]
    %v3657 = vld [vmem:[#allocation11 + $0xd00] sm:$0xf]
    %v3658 = vld [vmem:[#allocation11 + $0xd04] sm:$0xff]
    %v3659 = vld [vmem:[#allocation11 + $0xd0c] sm:$0xff]
    %v3660 = vld [vmem:[#allocation11 + $0xd14] sm:$0xff]
    %v3661 = vld [vmem:[#allocation11 + $0xd1c] sm:$0xf]
    %v3662 = vld [vmem:[#allocation11 + $0xd20] sm:$0xff]
    %v3663 = vld [vmem:[#allocation11 + $0xd28] sm:$0xff]
    %v3664 = vld [vmem:[#allocation11 + $0xd30] sm:$0xff]
    %v3665 = vld [vmem:[#allocation11 + $0xd38] sm:$0xf]
    %v3666 = vld [vmem:[#allocation11 + $0xd3c] sm:$0xff]
    %v3667 = vld [vmem:[#allocation11 + $0xd44] sm:$0xff]
    %v3668 = vld [vmem:[#allocation11 + $0xd4c] sm:$0xff]
    %v3669 = vld [vmem:[#allocation11 + $0xd54] sm:$0xf]
    %v3670 = vld [vmem:[#allocation11 + $0xd58] sm:$0xff]
    %v3671 = vld [vmem:[#allocation11 + $0xd60] sm:$0xff]
    %v3672 = vld [vmem:[#allocation11 + $0xd68] sm:$0xff]
    %v3673 = vld [vmem:[#allocation11 + $0xd70] sm:$0xf]
    %v3674 = vld [vmem:[#allocation11 + $0xd74] sm:$0xff]
    %v3675 = vld [vmem:[#allocation11 + $0xd7c] sm:$0xff]
    %v3676 = vld [vmem:[#allocation11 + $0xd84] sm:$0xff]
    %v3677 = vld [vmem:[#allocation11 + $0xd8c] sm:$0xf]
    %v3678 = vld [vmem:[#allocation11 + $0xd90] sm:$0xff]
    %v3679 = vld [vmem:[#allocation11 + $0xd98] sm:$0xff]
    %v3680 = vld [vmem:[#allocation11 + $0xda0] sm:$0xff]
    %v3681 = vld [vmem:[#allocation11 + $0xda8] sm:$0xf]
    %v3682 = vld [vmem:[#allocation11 + $0xdac] sm:$0xff]
    %v3683 = vld [vmem:[#allocation11 + $0xdb4] sm:$0xff]
    %v3684 = vld [vmem:[#allocation11 + $0xdbc] sm:$0xff]
    %v3685 = vld [vmem:[#allocation11 + $0xdc4] sm:$0xf]
    %v3686 = vld [vmem:[#allocation11 + $0xdc8] sm:$0xff]
    %v3687 = vld [vmem:[#allocation11 + $0xdd0] sm:$0xff]
    %v3688 = vld [vmem:[#allocation11 + $0xdd8] sm:$0xff]
    %v3689 = vld [vmem:[#allocation11 + $0xde0] sm:$0xf]
    %v3690 = vld [vmem:[#allocation11 + $0xde4] sm:$0xff]
    %v3691 = vld [vmem:[#allocation11 + $0xdec] sm:$0xff]
    %v3692 = vld [vmem:[#allocation11 + $0xdf4] sm:$0xff]
    %v3693 = vld [vmem:[#allocation11 + $0xdfc] sm:$0xf]
    %v3694 = vld [vmem:[#allocation13] sm:$0xff]
    %v3696 = vperm.slane %v3694, 0
    %v3697 = vperm.slane %v3694, 1
    %v3698 = vperm.slane %v3694, 2
    %v3699 = vperm.slane %v3694, 3
    %v3700 = vperm.slane %v3694, 4
    %v3701 = vperm.slane %v3694, 5
    %v3702 = vperm.slane %v3694, 6
    %v4222 = vunpack.c.l.b16 %v3182
    %v4223 = vunpack.c.h.b16 %v3182
    %v4224 = vunpack.c.l.b16 %v3183
    %v4225 = vunpack.c.h.b16 %v3183
    %v4226 = vunpack.c.l.b16 %v3184
    %v4227 = vunpack.c.h.b16 %v3184
    %v4228 = vunpack.c.l.b16 %v3185
    %v4229 = vunpack.c.l.b16 %v3186
    %v4230 = vunpack.c.h.b16 %v3186
    %v4231 = vunpack.c.l.b16 %v3187
    %v4232 = vunpack.c.h.b16 %v3187
    %v4233 = vunpack.c.l.b16 %v3188
    %v4234 = vunpack.c.h.b16 %v3188
    %v4235 = vunpack.c.l.b16 %v3189
    %v4236 = vunpack.c.l.b16 %v3190
    %v4237 = vunpack.c.h.b16 %v3190
    %v4238 = vunpack.c.l.b16 %v3191
    %v4239 = vunpack.c.h.b16 %v3191
    %v4240 = vunpack.c.l.b16 %v3192
    %v4241 = vunpack.c.h.b16 %v3192
    %v4242 = vunpack.c.l.b16 %v3193
    %v4243 = vunpack.c.l.b16 %v3194
    %v4244 = vunpack.c.h.b16 %v3194
    %v4245 = vunpack.c.l.b16 %v3195
    %v4246 = vunpack.c.h.b16 %v3195
    %v4247 = vunpack.c.l.b16 %v3196
    %v4248 = vunpack.c.h.b16 %v3196
    %v4249 = vunpack.c.l.b16 %v3197
    %v4250 = vunpack.c.l.b16 %v3198
    %v4251 = vunpack.c.h.b16 %v3198
    %v4252 = vunpack.c.l.b16 %v3199
    %v4253 = vunpack.c.h.b16 %v3199
    %v4254 = vunpack.c.l.b16 %v3200
    %v4255 = vunpack.c.h.b16 %v3200
    %v4256 = vunpack.c.l.b16 %v3201
    %v4257 = vunpack.c.l.b16 %v3202
    %v4258 = vunpack.c.h.b16 %v3202
    %v4259 = vunpack.c.l.b16 %v3203
    %v4260 = vunpack.c.h.b16 %v3203
    %v4261 = vunpack.c.l.b16 %v3204
    %v4262 = vunpack.c.h.b16 %v3204
    %v4263 = vunpack.c.l.b16 %v3205
    %v4264 = vunpack.c.l.b16 %v3206
    %v4265 = vunpack.c.h.b16 %v3206
    %v4266 = vunpack.c.l.b16 %v3207
    %v4267 = vunpack.c.h.b16 %v3207
    %v4268 = vunpack.c.l.b16 %v3208
    %v4269 = vunpack.c.h.b16 %v3208
    %v4270 = vunpack.c.l.b16 %v3209
    %v4271 = vunpack.c.l.b16 %v3210
    %v4272 = vunpack.c.h.b16 %v3210
    %v4273 = vunpack.c.l.b16 %v3211
    %v4274 = vunpack.c.h.b16 %v3211
    %v4275 = vunpack.c.l.b16 %v3212
    %v4276 = vunpack.c.h.b16 %v3212
    %v4277 = vunpack.c.l.b16 %v3213
    %v4278 = vunpack.c.l.b16 %v3214
    %v4279 = vunpack.c.h.b16 %v3214
    %v4280 = vunpack.c.l.b16 %v3215
    %v4281 = vunpack.c.h.b16 %v3215
    %v4282 = vunpack.c.l.b16 %v3216
    %v4283 = vunpack.c.h.b16 %v3216
    %v4284 = vunpack.c.l.b16 %v3217
    %v4285 = vunpack.c.l.b16 %v3218
    %v4286 = vunpack.c.h.b16 %v3218
    %v4287 = vunpack.c.l.b16 %v3219
    %v4288 = vunpack.c.h.b16 %v3219
    %v4289 = vunpack.c.l.b16 %v3220
    %v4290 = vunpack.c.h.b16 %v3220
    %v4291 = vunpack.c.l.b16 %v3221
    %v4292 = vunpack.c.l.b16 %v3222
    %v4293 = vunpack.c.h.b16 %v3222
    %v4294 = vunpack.c.l.b16 %v3223
    %v4295 = vunpack.c.h.b16 %v3223
    %v4296 = vunpack.c.l.b16 %v3224
    %v4297 = vunpack.c.h.b16 %v3224
    %v4298 = vunpack.c.l.b16 %v3225
    %v4299 = vunpack.c.l.b16 %v3226
    %v4300 = vunpack.c.h.b16 %v3226
    %v4301 = vunpack.c.l.b16 %v3227
    %v4302 = vunpack.c.h.b16 %v3227
    %v4303 = vunpack.c.l.b16 %v3228
    %v4304 = vunpack.c.h.b16 %v3228
    %v4305 = vunpack.c.l.b16 %v3229
    %v4306 = vunpack.c.l.b16 %v3230
    %v4307 = vunpack.c.h.b16 %v3230
    %v4308 = vunpack.c.l.b16 %v3231
    %v4309 = vunpack.c.h.b16 %v3231
    %v4310 = vunpack.c.l.b16 %v3232
    %v4311 = vunpack.c.h.b16 %v3232
    %v4312 = vunpack.c.l.b16 %v3233
    %v4313 = vunpack.c.l.b16 %v3234
    %v4314 = vunpack.c.h.b16 %v3234
    %v4315 = vunpack.c.l.b16 %v3235
    %v4316 = vunpack.c.h.b16 %v3235
    %v4317 = vunpack.c.l.b16 %v3236
    %v4318 = vunpack.c.h.b16 %v3236
    %v4319 = vunpack.c.l.b16 %v3237
    %v4320 = vunpack.c.l.b16 %v3238
    %v4321 = vunpack.c.h.b16 %v3238
    %v4322 = vunpack.c.l.b16 %v3239
    %v4323 = vunpack.c.h.b16 %v3239
    %v4324 = vunpack.c.l.b16 %v3240
    %v4325 = vunpack.c.h.b16 %v3240
    %v4326 = vunpack.c.l.b16 %v3241
    %v4327 = vunpack.c.l.b16 %v3242
    %v4328 = vunpack.c.h.b16 %v3242
    %v4329 = vunpack.c.l.b16 %v3243
    %v4330 = vunpack.c.h.b16 %v3243
    %v4331 = vunpack.c.l.b16 %v3244
    %v4332 = vunpack.c.h.b16 %v3244
    %v4333 = vunpack.c.l.b16 %v3245
    %v4334 = vunpack.c.l.b16 %v3246
    %v4335 = vunpack.c.h.b16 %v3246
    %v4336 = vunpack.c.l.b16 %v3247
    %v4337 = vunpack.c.h.b16 %v3247
    %v4338 = vunpack.c.l.b16 %v3248
    %v4339 = vunpack.c.h.b16 %v3248
    %v4340 = vunpack.c.l.b16 %v3249
    %v4341 = vunpack.c.l.b16 %v3250
    %v4342 = vunpack.c.h.b16 %v3250
    %v4343 = vunpack.c.l.b16 %v3251
    %v4344 = vunpack.c.h.b16 %v3251
    %v4345 = vunpack.c.l.b16 %v3252
    %v4346 = vunpack.c.h.b16 %v3252
    %v4347 = vunpack.c.l.b16 %v3253
    %v4348 = vunpack.c.l.b16 %v3254
    %v4349 = vunpack.c.h.b16 %v3254
    %v4350 = vunpack.c.l.b16 %v3255
    %v4351 = vunpack.c.h.b16 %v3255
    %v4352 = vunpack.c.l.b16 %v3256
    %v4353 = vunpack.c.h.b16 %v3256
    %v4354 = vunpack.c.l.b16 %v3257
    %v4355 = vunpack.c.l.b16 %v3258
    %v4356 = vunpack.c.h.b16 %v3258
    %v4357 = vunpack.c.l.b16 %v3259
    %v4358 = vunpack.c.h.b16 %v3259
    %v4359 = vunpack.c.l.b16 %v3260
    %v4360 = vunpack.c.h.b16 %v3260
    %v4361 = vunpack.c.l.b16 %v3261
    %v4362 = vunpack.c.l.b16 %v3262
    %v4363 = vunpack.c.h.b16 %v3262
    %v4364 = vunpack.c.l.b16 %v3263
    %v4365 = vunpack.c.h.b16 %v3263
    %v4366 = vunpack.c.l.b16 %v3264
    %v4367 = vunpack.c.h.b16 %v3264
    %v4368 = vunpack.c.l.b16 %v3265
    %v4369 = vunpack.c.l.b16 %v3266
    %v4370 = vunpack.c.h.b16 %v3266
    %v4371 = vunpack.c.l.b16 %v3267
    %v4372 = vunpack.c.h.b16 %v3267
    %v4373 = vunpack.c.l.b16 %v3268
    %v4374 = vunpack.c.h.b16 %v3268
    %v4375 = vunpack.c.l.b16 %v3269
    %v4376 = vunpack.c.l.b16 %v3270
    %v4377 = vunpack.c.h.b16 %v3270
    %v4378 = vunpack.c.l.b16 %v3271
    %v4379 = vunpack.c.h.b16 %v3271
    %v4380 = vunpack.c.l.b16 %v3272
    %v4381 = vunpack.c.h.b16 %v3272
    %v4382 = vunpack.c.l.b16 %v3273
    %v4383 = vunpack.c.l.b16 %v3274
    %v4384 = vunpack.c.h.b16 %v3274
    %v4385 = vunpack.c.l.b16 %v3275
    %v4386 = vunpack.c.h.b16 %v3275
    %v4387 = vunpack.c.l.b16 %v3276
    %v4388 = vunpack.c.h.b16 %v3276
    %v4389 = vunpack.c.l.b16 %v3277
    %v4390 = vunpack.c.l.b16 %v3278
    %v4391 = vunpack.c.h.b16 %v3278
    %v4392 = vunpack.c.l.b16 %v3279
    %v4393 = vunpack.c.h.b16 %v3279
    %v4394 = vunpack.c.l.b16 %v3280
    %v4395 = vunpack.c.h.b16 %v3280
    %v4396 = vunpack.c.l.b16 %v3281
    %v4397 = vunpack.c.l.b16 %v3282
    %v4398 = vunpack.c.h.b16 %v3282
    %v4399 = vunpack.c.l.b16 %v3283
    %v4400 = vunpack.c.h.b16 %v3283
    %v4401 = vunpack.c.l.b16 %v3284
    %v4402 = vunpack.c.h.b16 %v3284
    %v4403 = vunpack.c.l.b16 %v3285
    %v4404 = vunpack.c.l.b16 %v3286
    %v4405 = vunpack.c.h.b16 %v3286
    %v4406 = vunpack.c.l.b16 %v3287
    %v4407 = vunpack.c.h.b16 %v3287
    %v4408 = vunpack.c.l.b16 %v3288
    %v4409 = vunpack.c.h.b16 %v3288
    %v4410 = vunpack.c.l.b16 %v3289
    %v4411 = vunpack.c.l.b16 %v3290
    %v4412 = vunpack.c.h.b16 %v3290
    %v4413 = vunpack.c.l.b16 %v3291
    %v4414 = vunpack.c.h.b16 %v3291
    %v4415 = vunpack.c.l.b16 %v3292
    %v4416 = vunpack.c.h.b16 %v3292
    %v4417 = vunpack.c.l.b16 %v3293
    %v4418 = vunpack.c.l.b16 %v3294
    %v4419 = vunpack.c.h.b16 %v3294
    %v4420 = vunpack.c.l.b16 %v3295
    %v4421 = vunpack.c.h.b16 %v3295
    %v4422 = vunpack.c.l.b16 %v3296
    %v4423 = vunpack.c.h.b16 %v3296
    %v4424 = vunpack.c.l.b16 %v3297
    %v4425 = vunpack.c.l.b16 %v3298
    %v4426 = vunpack.c.h.b16 %v3298
    %v4427 = vunpack.c.l.b16 %v3299
    %v4428 = vunpack.c.h.b16 %v3299
    %v4429 = vunpack.c.l.b16 %v3300
    %v4430 = vunpack.c.h.b16 %v3300
    %v4431 = vunpack.c.l.b16 %v3301
    %v4432 = vunpack.c.l.b16 %v3302
    %v4433 = vunpack.c.h.b16 %v3302
    %v4434 = vunpack.c.l.b16 %v3303
    %v4435 = vunpack.c.h.b16 %v3303
    %v4436 = vunpack.c.l.b16 %v3304
    %v4437 = vunpack.c.h.b16 %v3304
    %v4438 = vunpack.c.l.b16 %v3305
    %v4439 = vunpack.c.l.b16 %v3306
    %v4440 = vunpack.c.h.b16 %v3306
    %v4441 = vunpack.c.l.b16 %v3307
    %v4442 = vunpack.c.h.b16 %v3307
    %v4443 = vunpack.c.l.b16 %v3308
    %v4444 = vunpack.c.h.b16 %v3308
    %v4445 = vunpack.c.l.b16 %v3309
    %v4446 = vunpack.c.l.b16 %v3310
    %v4447 = vunpack.c.h.b16 %v3310
    %v4448 = vunpack.c.l.b16 %v3311
    %v4449 = vunpack.c.h.b16 %v3311
    %v4450 = vunpack.c.l.b16 %v3312
    %v4451 = vunpack.c.h.b16 %v3312
    %v4452 = vunpack.c.l.b16 %v3313
    %v4453 = vunpack.c.l.b16 %v3314
    %v4454 = vunpack.c.h.b16 %v3314
    %v4455 = vunpack.c.l.b16 %v3315
    %v4456 = vunpack.c.h.b16 %v3315
    %v4457 = vunpack.c.l.b16 %v3316
    %v4458 = vunpack.c.h.b16 %v3316
    %v4459 = vunpack.c.l.b16 %v3317
    %v4460 = vunpack.c.l.b16 %v3318
    %v4461 = vunpack.c.h.b16 %v3318
    %v4462 = vunpack.c.l.b16 %v3319
    %v4463 = vunpack.c.h.b16 %v3319
    %v4464 = vunpack.c.l.b16 %v3320
    %v4465 = vunpack.c.h.b16 %v3320
    %v4466 = vunpack.c.l.b16 %v3321
    %v4467 = vunpack.c.l.b16 %v3322
    %v4468 = vunpack.c.h.b16 %v3322
    %v4469 = vunpack.c.l.b16 %v3323
    %v4470 = vunpack.c.h.b16 %v3323
    %v4471 = vunpack.c.l.b16 %v3324
    %v4472 = vunpack.c.h.b16 %v3324
    %v4473 = vunpack.c.l.b16 %v3325
    %v4474 = vunpack.c.l.b16 %v3326
    %v4475 = vunpack.c.h.b16 %v3326
    %v4476 = vunpack.c.l.b16 %v3327
    %v4477 = vunpack.c.h.b16 %v3327
    %v4478 = vunpack.c.l.b16 %v3328
    %v4479 = vunpack.c.h.b16 %v3328
    %v4480 = vunpack.c.l.b16 %v3329
    %v4481 = vunpack.c.l.b16 %v3330
    %v4482 = vunpack.c.h.b16 %v3330
    %v4483 = vunpack.c.l.b16 %v3331
    %v4484 = vunpack.c.h.b16 %v3331
    %v4485 = vunpack.c.l.b16 %v3332
    %v4486 = vunpack.c.h.b16 %v3332
    %v4487 = vunpack.c.l.b16 %v3333
    %v4488 = vunpack.c.l.b16 %v3334
    %v4489 = vunpack.c.h.b16 %v3334
    %v4490 = vunpack.c.l.b16 %v3335
    %v4491 = vunpack.c.h.b16 %v3335
    %v4492 = vunpack.c.l.b16 %v3336
    %v4493 = vunpack.c.h.b16 %v3336
    %v4494 = vunpack.c.l.b16 %v3337
    %v4495 = vunpack.c.l.b16 %v3338
    %v4496 = vunpack.c.h.b16 %v3338
    %v4497 = vunpack.c.l.b16 %v3339
    %v4498 = vunpack.c.h.b16 %v3339
    %v4499 = vunpack.c.l.b16 %v3340
    %v4500 = vunpack.c.h.b16 %v3340
    %v4501 = vunpack.c.l.b16 %v3341
    %v4502 = vunpack.c.l.b16 %v3342
    %v4503 = vunpack.c.h.b16 %v3342
    %v4504 = vunpack.c.l.b16 %v3343
    %v4505 = vunpack.c.h.b16 %v3343
    %v4506 = vunpack.c.l.b16 %v3344
    %v4507 = vunpack.c.h.b16 %v3344
    %v4508 = vunpack.c.l.b16 %v3345
    %v4509 = vunpack.c.l.b16 %v3346
    %v4510 = vunpack.c.h.b16 %v3346
    %v4511 = vunpack.c.l.b16 %v3347
    %v4512 = vunpack.c.h.b16 %v3347
    %v4513 = vunpack.c.l.b16 %v3348
    %v4514 = vunpack.c.h.b16 %v3348
    %v4515 = vunpack.c.l.b16 %v3349
    %v4516 = vunpack.c.l.b16 %v3350
    %v4517 = vunpack.c.h.b16 %v3350
    %v4518 = vunpack.c.l.b16 %v3351
    %v4519 = vunpack.c.h.b16 %v3351
    %v4520 = vunpack.c.l.b16 %v3352
    %v4521 = vunpack.c.h.b16 %v3352
    %v4522 = vunpack.c.l.b16 %v3353
    %v4523 = vunpack.c.l.b16 %v3354
    %v4524 = vunpack.c.h.b16 %v3354
    %v4525 = vunpack.c.l.b16 %v3355
    %v4526 = vunpack.c.h.b16 %v3355
    %v4527 = vunpack.c.l.b16 %v3356
    %v4528 = vunpack.c.h.b16 %v3356
    %v4529 = vunpack.c.l.b16 %v3357
    %v4530 = vunpack.c.l.b16 %v3358
    %v4531 = vunpack.c.h.b16 %v3358
    %v4532 = vunpack.c.l.b16 %v3359
    %v4533 = vunpack.c.h.b16 %v3359
    %v4534 = vunpack.c.l.b16 %v3360
    %v4535 = vunpack.c.h.b16 %v3360
    %v4536 = vunpack.c.l.b16 %v3361
    %v4537 = vunpack.c.l.b16 %v3362
    %v4538 = vunpack.c.h.b16 %v3362
    %v4539 = vunpack.c.l.b16 %v3363
    %v4540 = vunpack.c.h.b16 %v3363
    %v4541 = vunpack.c.l.b16 %v3364
    %v4542 = vunpack.c.h.b16 %v3364
    %v4543 = vunpack.c.l.b16 %v3365
    %v4544 = vunpack.c.l.b16 %v3366
    %v4545 = vunpack.c.h.b16 %v3366
    %v4546 = vunpack.c.l.b16 %v3367
    %v4547 = vunpack.c.h.b16 %v3367
    %v4548 = vunpack.c.l.b16 %v3368
    %v4549 = vunpack.c.h.b16 %v3368
    %v4550 = vunpack.c.l.b16 %v3369
    %v4551 = vunpack.c.l.b16 %v3370
    %v4552 = vunpack.c.h.b16 %v3370
    %v4553 = vunpack.c.l.b16 %v3371
    %v4554 = vunpack.c.h.b16 %v3371
    %v4555 = vunpack.c.l.b16 %v3372
    %v4556 = vunpack.c.h.b16 %v3372
    %v4557 = vunpack.c.l.b16 %v3373
    %v4558 = vunpack.c.l.b16 %v3374
    %v4559 = vunpack.c.h.b16 %v3374
    %v4560 = vunpack.c.l.b16 %v3375
    %v4561 = vunpack.c.h.b16 %v3375
    %v4562 = vunpack.c.l.b16 %v3376
    %v4563 = vunpack.c.h.b16 %v3376
    %v4564 = vunpack.c.l.b16 %v3377
    %v4565 = vunpack.c.l.b16 %v3378
    %v4566 = vunpack.c.h.b16 %v3378
    %v4567 = vunpack.c.l.b16 %v3379
    %v4568 = vunpack.c.h.b16 %v3379
    %v4569 = vunpack.c.l.b16 %v3380
    %v4570 = vunpack.c.h.b16 %v3380
    %v4571 = vunpack.c.l.b16 %v3381
    %v4572 = vunpack.c.l.b16 %v3382
    %v4573 = vunpack.c.h.b16 %v3382
    %v4574 = vunpack.c.l.b16 %v3383
    %v4575 = vunpack.c.h.b16 %v3383
    %v4576 = vunpack.c.l.b16 %v3384
    %v4577 = vunpack.c.h.b16 %v3384
    %v4578 = vunpack.c.l.b16 %v3385
    %v4579 = vunpack.c.l.b16 %v3386
    %v4580 = vunpack.c.h.b16 %v3386
    %v4581 = vunpack.c.l.b16 %v3387
    %v4582 = vunpack.c.h.b16 %v3387
    %v4583 = vunpack.c.l.b16 %v3388
    %v4584 = vunpack.c.h.b16 %v3388
    %v4585 = vunpack.c.l.b16 %v3389
    %v4586 = vunpack.c.l.b16 %v3390
    %v4587 = vunpack.c.h.b16 %v3390
    %v4588 = vunpack.c.l.b16 %v3391
    %v4589 = vunpack.c.h.b16 %v3391
    %v4590 = vunpack.c.l.b16 %v3392
    %v4591 = vunpack.c.h.b16 %v3392
    %v4592 = vunpack.c.l.b16 %v3393
    %v4593 = vunpack.c.l.b16 %v3394
    %v4594 = vunpack.c.h.b16 %v3394
    %v4595 = vunpack.c.l.b16 %v3395
    %v4596 = vunpack.c.h.b16 %v3395
    %v4597 = vunpack.c.l.b16 %v3396
    %v4598 = vunpack.c.h.b16 %v3396
    %v4599 = vunpack.c.l.b16 %v3397
    %v4600 = vunpack.c.l.b16 %v3398
    %v4601 = vunpack.c.h.b16 %v3398
    %v4602 = vunpack.c.l.b16 %v3399
    %v4603 = vunpack.c.h.b16 %v3399
    %v4604 = vunpack.c.l.b16 %v3400
    %v4605 = vunpack.c.h.b16 %v3400
    %v4606 = vunpack.c.l.b16 %v3401
    %v4607 = vunpack.c.l.b16 %v3402
    %v4608 = vunpack.c.h.b16 %v3402
    %v4609 = vunpack.c.l.b16 %v3403
    %v4610 = vunpack.c.h.b16 %v3403
    %v4611 = vunpack.c.l.b16 %v3404
    %v4612 = vunpack.c.h.b16 %v3404
    %v4613 = vunpack.c.l.b16 %v3405
    %v4614 = vunpack.c.l.b16 %v3406
    %v4615 = vunpack.c.h.b16 %v3406
    %v4616 = vunpack.c.l.b16 %v3407
    %v4617 = vunpack.c.h.b16 %v3407
    %v4618 = vunpack.c.l.b16 %v3408
    %v4619 = vunpack.c.h.b16 %v3408
    %v4620 = vunpack.c.l.b16 %v3409
    %v4621 = vunpack.c.l.b16 %v3410
    %v4622 = vunpack.c.h.b16 %v3410
    %v4623 = vunpack.c.l.b16 %v3411
    %v4624 = vunpack.c.h.b16 %v3411
    %v4625 = vunpack.c.l.b16 %v3412
    %v4626 = vunpack.c.h.b16 %v3412
    %v4627 = vunpack.c.l.b16 %v3413
    %v4628 = vunpack.c.l.b16 %v3414
    %v4629 = vunpack.c.h.b16 %v3414
    %v4630 = vunpack.c.l.b16 %v3415
    %v4631 = vunpack.c.h.b16 %v3415
    %v4632 = vunpack.c.l.b16 %v3416
    %v4633 = vunpack.c.h.b16 %v3416
    %v4634 = vunpack.c.l.b16 %v3417
    %v4635 = vunpack.c.l.b16 %v3418
    %v4636 = vunpack.c.h.b16 %v3418
    %v4637 = vunpack.c.l.b16 %v3419
    %v4638 = vunpack.c.h.b16 %v3419
    %v4639 = vunpack.c.l.b16 %v3420
    %v4640 = vunpack.c.h.b16 %v3420
    %v4641 = vunpack.c.l.b16 %v3421
    %v4642 = vunpack.c.l.b16 %v3422
    %v4643 = vunpack.c.h.b16 %v3422
    %v4644 = vunpack.c.l.b16 %v3423
    %v4645 = vunpack.c.h.b16 %v3423
    %v4646 = vunpack.c.l.b16 %v3424
    %v4647 = vunpack.c.h.b16 %v3424
    %v4648 = vunpack.c.l.b16 %v3425
    %v4649 = vunpack.c.l.b16 %v3426
    %v4650 = vunpack.c.h.b16 %v3426
    %v4651 = vunpack.c.l.b16 %v3427
    %v4652 = vunpack.c.h.b16 %v3427
    %v4653 = vunpack.c.l.b16 %v3428
    %v4654 = vunpack.c.h.b16 %v3428
    %v4655 = vunpack.c.l.b16 %v3429
    %v4656 = vunpack.c.l.b16 %v3430
    %v4657 = vunpack.c.h.b16 %v3430
    %v4658 = vunpack.c.l.b16 %v3431
    %v4659 = vunpack.c.h.b16 %v3431
    %v4660 = vunpack.c.l.b16 %v3432
    %v4661 = vunpack.c.h.b16 %v3432
    %v4662 = vunpack.c.l.b16 %v3433
    %v4663 = vunpack.c.l.b16 %v3434
    %v4664 = vunpack.c.h.b16 %v3434
    %v4665 = vunpack.c.l.b16 %v3435
    %v4666 = vunpack.c.h.b16 %v3435
    %v4667 = vunpack.c.l.b16 %v3436
    %v4668 = vunpack.c.h.b16 %v3436
    %v4669 = vunpack.c.l.b16 %v3437
    %v4670 = vunpack.c.l.b16 %v3438
    %v4671 = vunpack.c.h.b16 %v3438
    %v4672 = vunpack.c.l.b16 %v3439
    %v4673 = vunpack.c.h.b16 %v3439
    %v4674 = vunpack.c.l.b16 %v3440
    %v4675 = vunpack.c.h.b16 %v3440
    %v4676 = vunpack.c.l.b16 %v3441
    %v4677 = vunpack.c.l.b16 %v3442
    %v4678 = vunpack.c.h.b16 %v3442
    %v4679 = vunpack.c.l.b16 %v3443
    %v4680 = vunpack.c.h.b16 %v3443
    %v4681 = vunpack.c.l.b16 %v3444
    %v4682 = vunpack.c.h.b16 %v3444
    %v4683 = vunpack.c.l.b16 %v3445
    %v4684 = vunpack.c.l.b16 %v3446
    %v4685 = vunpack.c.h.b16 %v3446
    %v4686 = vunpack.c.l.b16 %v3447
    %v4687 = vunpack.c.h.b16 %v3447
    %v4688 = vunpack.c.l.b16 %v3448
    %v4689 = vunpack.c.h.b16 %v3448
    %v4690 = vunpack.c.l.b16 %v3449
    %v4691 = vunpack.c.l.b16 %v3450
    %v4692 = vunpack.c.h.b16 %v3450
    %v4693 = vunpack.c.l.b16 %v3451
    %v4694 = vunpack.c.h.b16 %v3451
    %v4695 = vunpack.c.l.b16 %v3452
    %v4696 = vunpack.c.h.b16 %v3452
    %v4697 = vunpack.c.l.b16 %v3453
    %v4698 = vunpack.c.l.b16 %v3454
    %v4699 = vunpack.c.h.b16 %v3454
    %v4700 = vunpack.c.l.b16 %v3455
    %v4701 = vunpack.c.h.b16 %v3455
    %v4702 = vunpack.c.l.b16 %v3456
    %v4703 = vunpack.c.h.b16 %v3456
    %v4704 = vunpack.c.l.b16 %v3457
    %v4705 = vunpack.c.l.b16 %v3458
    %v4706 = vunpack.c.h.b16 %v3458
    %v4707 = vunpack.c.l.b16 %v3459
    %v4708 = vunpack.c.h.b16 %v3459
    %v4709 = vunpack.c.l.b16 %v3460
    %v4710 = vunpack.c.h.b16 %v3460
    %v4711 = vunpack.c.l.b16 %v3461
    %v4712 = vunpack.c.l.b16 %v3462
    %v4713 = vunpack.c.h.b16 %v3462
    %v4714 = vunpack.c.l.b16 %v3463
    %v4715 = vunpack.c.h.b16 %v3463
    %v4716 = vunpack.c.l.b16 %v3464
    %v4717 = vunpack.c.h.b16 %v3464
    %v4718 = vunpack.c.l.b16 %v3465
    %v4719 = vunpack.c.l.b16 %v3466
    %v4720 = vunpack.c.h.b16 %v3466
    %v4721 = vunpack.c.l.b16 %v3467
    %v4722 = vunpack.c.h.b16 %v3467
    %v4723 = vunpack.c.l.b16 %v3468
    %v4724 = vunpack.c.h.b16 %v3468
    %v4725 = vunpack.c.l.b16 %v3469
    %v4726 = vunpack.c.l.b16 %v3470
    %v4727 = vunpack.c.h.b16 %v3470
    %v4728 = vunpack.c.l.b16 %v3471
    %v4729 = vunpack.c.h.b16 %v3471
    %v4730 = vunpack.c.l.b16 %v3472
    %v4731 = vunpack.c.h.b16 %v3472
    %v4732 = vunpack.c.l.b16 %v3473
    %v4733 = vunpack.c.l.b16 %v3474
    %v4734 = vunpack.c.h.b16 %v3474
    %v4735 = vunpack.c.l.b16 %v3475
    %v4736 = vunpack.c.h.b16 %v3475
    %v4737 = vunpack.c.l.b16 %v3476
    %v4738 = vunpack.c.h.b16 %v3476
    %v4739 = vunpack.c.l.b16 %v3477
    %v4740 = vunpack.c.l.b16 %v3478
    %v4741 = vunpack.c.h.b16 %v3478
    %v4742 = vunpack.c.l.b16 %v3479
    %v4743 = vunpack.c.h.b16 %v3479
    %v4744 = vunpack.c.l.b16 %v3480
    %v4745 = vunpack.c.h.b16 %v3480
    %v4746 = vunpack.c.l.b16 %v3481
    %v4747 = vunpack.c.l.b16 %v3482
    %v4748 = vunpack.c.h.b16 %v3482
    %v4749 = vunpack.c.l.b16 %v3483
    %v4750 = vunpack.c.h.b16 %v3483
    %v4751 = vunpack.c.l.b16 %v3484
    %v4752 = vunpack.c.h.b16 %v3484
    %v4753 = vunpack.c.l.b16 %v3485
    %v4754 = vunpack.c.l.b16 %v3486
    %v4755 = vunpack.c.h.b16 %v3486
    %v4756 = vunpack.c.l.b16 %v3487
    %v4757 = vunpack.c.h.b16 %v3487
    %v4758 = vunpack.c.l.b16 %v3488
    %v4759 = vunpack.c.h.b16 %v3488
    %v4760 = vunpack.c.l.b16 %v3489
    %v4761 = vunpack.c.l.b16 %v3490
    %v4762 = vunpack.c.h.b16 %v3490
    %v4763 = vunpack.c.l.b16 %v3491
    %v4764 = vunpack.c.h.b16 %v3491
    %v4765 = vunpack.c.l.b16 %v3492
    %v4766 = vunpack.c.h.b16 %v3492
    %v4767 = vunpack.c.l.b16 %v3493
    %v4768 = vunpack.c.l.b16 %v3494
    %v4769 = vunpack.c.h.b16 %v3494
    %v4770 = vunpack.c.l.b16 %v3495
    %v4771 = vunpack.c.h.b16 %v3495
    %v4772 = vunpack.c.l.b16 %v3496
    %v4773 = vunpack.c.h.b16 %v3496
    %v4774 = vunpack.c.l.b16 %v3497
    %v4775 = vunpack.c.l.b16 %v3498
    %v4776 = vunpack.c.h.b16 %v3498
    %v4777 = vunpack.c.l.b16 %v3499
    %v4778 = vunpack.c.h.b16 %v3499
    %v4779 = vunpack.c.l.b16 %v3500
    %v4780 = vunpack.c.h.b16 %v3500
    %v4781 = vunpack.c.l.b16 %v3501
    %v4782 = vunpack.c.l.b16 %v3502
    %v4783 = vunpack.c.h.b16 %v3502
    %v4784 = vunpack.c.l.b16 %v3503
    %v4785 = vunpack.c.h.b16 %v3503
    %v4786 = vunpack.c.l.b16 %v3504
    %v4787 = vunpack.c.h.b16 %v3504
    %v4788 = vunpack.c.l.b16 %v3505
    %v4789 = vunpack.c.l.b16 %v3506
    %v4790 = vunpack.c.h.b16 %v3506
    %v4791 = vunpack.c.l.b16 %v3507
    %v4792 = vunpack.c.h.b16 %v3507
    %v4793 = vunpack.c.l.b16 %v3508
    %v4794 = vunpack.c.h.b16 %v3508
    %v4795 = vunpack.c.l.b16 %v3509
    %v4796 = vunpack.c.l.b16 %v3510
    %v4797 = vunpack.c.h.b16 %v3510
    %v4798 = vunpack.c.l.b16 %v3511
    %v4799 = vunpack.c.h.b16 %v3511
    %v4800 = vunpack.c.l.b16 %v3512
    %v4801 = vunpack.c.h.b16 %v3512
    %v4802 = vunpack.c.l.b16 %v3513
    %v4803 = vunpack.c.l.b16 %v3514
    %v4804 = vunpack.c.h.b16 %v3514
    %v4805 = vunpack.c.l.b16 %v3515
    %v4806 = vunpack.c.h.b16 %v3515
    %v4807 = vunpack.c.l.b16 %v3516
    %v4808 = vunpack.c.h.b16 %v3516
    %v4809 = vunpack.c.l.b16 %v3517
    %v4810 = vunpack.c.l.b16 %v3518
    %v4811 = vunpack.c.h.b16 %v3518
    %v4812 = vunpack.c.l.b16 %v3519
    %v4813 = vunpack.c.h.b16 %v3519
    %v4814 = vunpack.c.l.b16 %v3520
    %v4815 = vunpack.c.h.b16 %v3520
    %v4816 = vunpack.c.l.b16 %v3521
    %v4817 = vunpack.c.l.b16 %v3522
    %v4818 = vunpack.c.h.b16 %v3522
    %v4819 = vunpack.c.l.b16 %v3523
    %v4820 = vunpack.c.h.b16 %v3523
    %v4821 = vunpack.c.l.b16 %v3524
    %v4822 = vunpack.c.h.b16 %v3524
    %v4823 = vunpack.c.l.b16 %v3525
    %v4824 = vunpack.c.l.b16 %v3526
    %v4825 = vunpack.c.h.b16 %v3526
    %v4826 = vunpack.c.l.b16 %v3527
    %v4827 = vunpack.c.h.b16 %v3527
    %v4828 = vunpack.c.l.b16 %v3528
    %v4829 = vunpack.c.h.b16 %v3528
    %v4830 = vunpack.c.l.b16 %v3529
    %v4831 = vunpack.c.l.b16 %v3530
    %v4832 = vunpack.c.h.b16 %v3530
    %v4833 = vunpack.c.l.b16 %v3531
    %v4834 = vunpack.c.h.b16 %v3531
    %v4835 = vunpack.c.l.b16 %v3532
    %v4836 = vunpack.c.h.b16 %v3532
    %v4837 = vunpack.c.l.b16 %v3533
    %v4838 = vunpack.c.l.b16 %v3534
    %v4839 = vunpack.c.h.b16 %v3534
    %v4840 = vunpack.c.l.b16 %v3535
    %v4841 = vunpack.c.h.b16 %v3535
    %v4842 = vunpack.c.l.b16 %v3536
    %v4843 = vunpack.c.h.b16 %v3536
    %v4844 = vunpack.c.l.b16 %v3537
    %v4845 = vunpack.c.l.b16 %v3538
    %v4846 = vunpack.c.h.b16 %v3538
    %v4847 = vunpack.c.l.b16 %v3539
    %v4848 = vunpack.c.h.b16 %v3539
    %v4849 = vunpack.c.l.b16 %v3540
    %v4850 = vunpack.c.h.b16 %v3540
    %v4851 = vunpack.c.l.b16 %v3541
    %v4852 = vunpack.c.l.b16 %v3542
    %v4853 = vunpack.c.h.b16 %v3542
    %v4854 = vunpack.c.l.b16 %v3543
    %v4855 = vunpack.c.h.b16 %v3543
    %v4856 = vunpack.c.l.b16 %v3544
    %v4857 = vunpack.c.h.b16 %v3544
    %v4858 = vunpack.c.l.b16 %v3545
    %v4859 = vunpack.c.l.b16 %v3546
    %v4860 = vunpack.c.h.b16 %v3546
    %v4861 = vunpack.c.l.b16 %v3547
    %v4862 = vunpack.c.h.b16 %v3547
    %v4863 = vunpack.c.l.b16 %v3548
    %v4864 = vunpack.c.h.b16 %v3548
    %v4865 = vunpack.c.l.b16 %v3549
    %v4866 = vunpack.c.l.b16 %v3550
    %v4867 = vunpack.c.h.b16 %v3550
    %v4868 = vunpack.c.l.b16 %v3551
    %v4869 = vunpack.c.h.b16 %v3551
    %v4870 = vunpack.c.l.b16 %v3552
    %v4871 = vunpack.c.h.b16 %v3552
    %v4872 = vunpack.c.l.b16 %v3553
    %v4873 = vunpack.c.l.b16 %v3554
    %v4874 = vunpack.c.h.b16 %v3554
    %v4875 = vunpack.c.l.b16 %v3555
    %v4876 = vunpack.c.h.b16 %v3555
    %v4877 = vunpack.c.l.b16 %v3556
    %v4878 = vunpack.c.h.b16 %v3556
    %v4879 = vunpack.c.l.b16 %v3557
    %v4880 = vunpack.c.l.b16 %v3558
    %v4881 = vunpack.c.h.b16 %v3558
    %v4882 = vunpack.c.l.b16 %v3559
    %v4883 = vunpack.c.h.b16 %v3559
    %v4884 = vunpack.c.l.b16 %v3560
    %v4885 = vunpack.c.h.b16 %v3560
    %v4886 = vunpack.c.l.b16 %v3561
    %v4887 = vunpack.c.l.b16 %v3562
    %v4888 = vunpack.c.h.b16 %v3562
    %v4889 = vunpack.c.l.b16 %v3563
    %v4890 = vunpack.c.h.b16 %v3563
    %v4891 = vunpack.c.l.b16 %v3564
    %v4892 = vunpack.c.h.b16 %v3564
    %v4893 = vunpack.c.l.b16 %v3565
    %v4894 = vunpack.c.l.b16 %v3566
    %v4895 = vunpack.c.h.b16 %v3566
    %v4896 = vunpack.c.l.b16 %v3567
    %v4897 = vunpack.c.h.b16 %v3567
    %v4898 = vunpack.c.l.b16 %v3568
    %v4899 = vunpack.c.h.b16 %v3568
    %v4900 = vunpack.c.l.b16 %v3569
    %v4901 = vunpack.c.l.b16 %v3570
    %v4902 = vunpack.c.h.b16 %v3570
    %v4903 = vunpack.c.l.b16 %v3571
    %v4904 = vunpack.c.h.b16 %v3571
    %v4905 = vunpack.c.l.b16 %v3572
    %v4906 = vunpack.c.h.b16 %v3572
    %v4907 = vunpack.c.l.b16 %v3573
    %v4908 = vunpack.c.l.b16 %v3574
    %v4909 = vunpack.c.h.b16 %v3574
    %v4910 = vunpack.c.l.b16 %v3575
    %v4911 = vunpack.c.h.b16 %v3575
    %v4912 = vunpack.c.l.b16 %v3576
    %v4913 = vunpack.c.h.b16 %v3576
    %v4914 = vunpack.c.l.b16 %v3577
    %v4915 = vunpack.c.l.b16 %v3578
    %v4916 = vunpack.c.h.b16 %v3578
    %v4917 = vunpack.c.l.b16 %v3579
    %v4918 = vunpack.c.h.b16 %v3579
    %v4919 = vunpack.c.l.b16 %v3580
    %v4920 = vunpack.c.h.b16 %v3580
    %v4921 = vunpack.c.l.b16 %v3581
    %v4922 = vunpack.c.l.b16 %v3582
    %v4923 = vunpack.c.h.b16 %v3582
    %v4924 = vunpack.c.l.b16 %v3583
    %v4925 = vunpack.c.h.b16 %v3583
    %v4926 = vunpack.c.l.b16 %v3584
    %v4927 = vunpack.c.h.b16 %v3584
    %v4928 = vunpack.c.l.b16 %v3585
    %v4929 = vunpack.c.l.b16 %v3586
    %v4930 = vunpack.c.h.b16 %v3586
    %v4931 = vunpack.c.l.b16 %v3587
    %v4932 = vunpack.c.h.b16 %v3587
    %v4933 = vunpack.c.l.b16 %v3588
    %v4934 = vunpack.c.h.b16 %v3588
    %v4935 = vunpack.c.l.b16 %v3589
    %v4936 = vunpack.c.l.b16 %v3590
    %v4937 = vunpack.c.h.b16 %v3590
    %v4938 = vunpack.c.l.b16 %v3591
    %v4939 = vunpack.c.h.b16 %v3591
    %v4940 = vunpack.c.l.b16 %v3592
    %v4941 = vunpack.c.h.b16 %v3592
    %v4942 = vunpack.c.l.b16 %v3593
    %v4943 = vunpack.c.l.b16 %v3594
    %v4944 = vunpack.c.h.b16 %v3594
    %v4945 = vunpack.c.l.b16 %v3595
    %v4946 = vunpack.c.h.b16 %v3595
    %v4947 = vunpack.c.l.b16 %v3596
    %v4948 = vunpack.c.h.b16 %v3596
    %v4949 = vunpack.c.l.b16 %v3597
    %v4950 = vunpack.c.l.b16 %v3598
    %v4951 = vunpack.c.h.b16 %v3598
    %v4952 = vunpack.c.l.b16 %v3599
    %v4953 = vunpack.c.h.b16 %v3599
    %v4954 = vunpack.c.l.b16 %v3600
    %v4955 = vunpack.c.h.b16 %v3600
    %v4956 = vunpack.c.l.b16 %v3601
    %v4957 = vunpack.c.l.b16 %v3602
    %v4958 = vunpack.c.h.b16 %v3602
    %v4959 = vunpack.c.l.b16 %v3603
    %v4960 = vunpack.c.h.b16 %v3603
    %v4961 = vunpack.c.l.b16 %v3604
    %v4962 = vunpack.c.h.b16 %v3604
    %v4963 = vunpack.c.l.b16 %v3605
    %v4964 = vunpack.c.l.b16 %v3606
    %v4965 = vunpack.c.h.b16 %v3606
    %v4966 = vunpack.c.l.b16 %v3607
    %v4967 = vunpack.c.h.b16 %v3607
    %v4968 = vunpack.c.l.b16 %v3608
    %v4969 = vunpack.c.h.b16 %v3608
    %v4970 = vunpack.c.l.b16 %v3609
    %v4971 = vunpack.c.l.b16 %v3610
    %v4972 = vunpack.c.h.b16 %v3610
    %v4973 = vunpack.c.l.b16 %v3611
    %v4974 = vunpack.c.h.b16 %v3611
    %v4975 = vunpack.c.l.b16 %v3612
    %v4976 = vunpack.c.h.b16 %v3612
    %v4977 = vunpack.c.l.b16 %v3613
    %v4978 = vunpack.c.l.b16 %v3614
    %v4979 = vunpack.c.h.b16 %v3614
    %v4980 = vunpack.c.l.b16 %v3615
    %v4981 = vunpack.c.h.b16 %v3615
    %v4982 = vunpack.c.l.b16 %v3616
    %v4983 = vunpack.c.h.b16 %v3616
    %v4984 = vunpack.c.l.b16 %v3617
    %v4985 = vunpack.c.l.b16 %v3618
    %v4986 = vunpack.c.h.b16 %v3618
    %v4987 = vunpack.c.l.b16 %v3619
    %v4988 = vunpack.c.h.b16 %v3619
    %v4989 = vunpack.c.l.b16 %v3620
    %v4990 = vunpack.c.h.b16 %v3620
    %v4991 = vunpack.c.l.b16 %v3621
    %v4992 = vunpack.c.l.b16 %v3622
    %v4993 = vunpack.c.h.b16 %v3622
    %v4994 = vunpack.c.l.b16 %v3623
    %v4995 = vunpack.c.h.b16 %v3623
    %v4996 = vunpack.c.l.b16 %v3624
    %v4997 = vunpack.c.h.b16 %v3624
    %v4998 = vunpack.c.l.b16 %v3625
    %v4999 = vunpack.c.l.b16 %v3626
    %v5000 = vunpack.c.h.b16 %v3626
    %v5001 = vunpack.c.l.b16 %v3627
    %v5002 = vunpack.c.h.b16 %v3627
    %v5003 = vunpack.c.l.b16 %v3628
    %v5004 = vunpack.c.h.b16 %v3628
    %v5005 = vunpack.c.l.b16 %v3629
    %v5006 = vunpack.c.l.b16 %v3630
    %v5007 = vunpack.c.h.b16 %v3630
    %v5008 = vunpack.c.l.b16 %v3631
    %v5009 = vunpack.c.h.b16 %v3631
    %v5010 = vunpack.c.l.b16 %v3632
    %v5011 = vunpack.c.h.b16 %v3632
    %v5012 = vunpack.c.l.b16 %v3633
    %v5013 = vunpack.c.l.b16 %v3634
    %v5014 = vunpack.c.h.b16 %v3634
    %v5015 = vunpack.c.l.b16 %v3635
    %v5016 = vunpack.c.h.b16 %v3635
    %v5017 = vunpack.c.l.b16 %v3636
    %v5018 = vunpack.c.h.b16 %v3636
    %v5019 = vunpack.c.l.b16 %v3637
    %v5020 = vunpack.c.l.b16 %v3638
    %v5021 = vunpack.c.h.b16 %v3638
    %v5022 = vunpack.c.l.b16 %v3639
    %v5023 = vunpack.c.h.b16 %v3639
    %v5024 = vunpack.c.l.b16 %v3640
    %v5025 = vunpack.c.h.b16 %v3640
    %v5026 = vunpack.c.l.b16 %v3641
    %v5027 = vunpack.c.l.b16 %v3642
    %v5028 = vunpack.c.h.b16 %v3642
    %v5029 = vunpack.c.l.b16 %v3643
    %v5030 = vunpack.c.h.b16 %v3643
    %v5031 = vunpack.c.l.b16 %v3644
    %v5032 = vunpack.c.h.b16 %v3644
    %v5033 = vunpack.c.l.b16 %v3645
    %v5034 = vunpack.c.l.b16 %v3646
    %v5035 = vunpack.c.h.b16 %v3646
    %v5036 = vunpack.c.l.b16 %v3647
    %v5037 = vunpack.c.h.b16 %v3647
    %v5038 = vunpack.c.l.b16 %v3648
    %v5039 = vunpack.c.h.b16 %v3648
    %v5040 = vunpack.c.l.b16 %v3649
    %v5041 = vunpack.c.l.b16 %v3650
    %v5042 = vunpack.c.h.b16 %v3650
    %v5043 = vunpack.c.l.b16 %v3651
    %v5044 = vunpack.c.h.b16 %v3651
    %v5045 = vunpack.c.l.b16 %v3652
    %v5046 = vunpack.c.h.b16 %v3652
    %v5047 = vunpack.c.l.b16 %v3653
    %v5048 = vunpack.c.l.b16 %v3654
    %v5049 = vunpack.c.h.b16 %v3654
    %v5050 = vunpack.c.l.b16 %v3655
    %v5051 = vunpack.c.h.b16 %v3655
    %v5052 = vunpack.c.l.b16 %v3656
    %v5053 = vunpack.c.h.b16 %v3656
    %v5054 = vunpack.c.l.b16 %v3657
    %v5055 = vunpack.c.l.b16 %v3658
    %v5056 = vunpack.c.h.b16 %v3658
    %v5057 = vunpack.c.l.b16 %v3659
    %v5058 = vunpack.c.h.b16 %v3659
    %v5059 = vunpack.c.l.b16 %v3660
    %v5060 = vunpack.c.h.b16 %v3660
    %v5061 = vunpack.c.l.b16 %v3661
    %v5062 = vunpack.c.l.b16 %v3662
    %v5063 = vunpack.c.h.b16 %v3662
    %v5064 = vunpack.c.l.b16 %v3663
    %v5065 = vunpack.c.h.b16 %v3663
    %v5066 = vunpack.c.l.b16 %v3664
    %v5067 = vunpack.c.h.b16 %v3664
    %v5068 = vunpack.c.l.b16 %v3665
    %v5069 = vunpack.c.l.b16 %v3666
    %v5070 = vunpack.c.h.b16 %v3666
    %v5071 = vunpack.c.l.b16 %v3667
    %v5072 = vunpack.c.h.b16 %v3667
    %v5073 = vunpack.c.l.b16 %v3668
    %v5074 = vunpack.c.h.b16 %v3668
    %v5075 = vunpack.c.l.b16 %v3669
    %v5076 = vunpack.c.l.b16 %v3670
    %v5077 = vunpack.c.h.b16 %v3670
    %v5078 = vunpack.c.l.b16 %v3671
    %v5079 = vunpack.c.h.b16 %v3671
    %v5080 = vunpack.c.l.b16 %v3672
    %v5081 = vunpack.c.h.b16 %v3672
    %v5082 = vunpack.c.l.b16 %v3673
    %v5083 = vunpack.c.l.b16 %v3674
    %v5084 = vunpack.c.h.b16 %v3674
    %v5085 = vunpack.c.l.b16 %v3675
    %v5086 = vunpack.c.h.b16 %v3675
    %v5087 = vunpack.c.l.b16 %v3676
    %v5088 = vunpack.c.h.b16 %v3676
    %v5089 = vunpack.c.l.b16 %v3677
    %v5090 = vunpack.c.l.b16 %v3678
    %v5091 = vunpack.c.h.b16 %v3678
    %v5092 = vunpack.c.l.b16 %v3679
    %v5093 = vunpack.c.h.b16 %v3679
    %v5094 = vunpack.c.l.b16 %v3680
    %v5095 = vunpack.c.h.b16 %v3680
    %v5096 = vunpack.c.l.b16 %v3681
    %v5097 = vunpack.c.l.b16 %v3682
    %v5098 = vunpack.c.h.b16 %v3682
    %v5099 = vunpack.c.l.b16 %v3683
    %v5100 = vunpack.c.h.b16 %v3683
    %v5101 = vunpack.c.l.b16 %v3684
    %v5102 = vunpack.c.h.b16 %v3684
    %v5103 = vunpack.c.l.b16 %v3685
    %v5104 = vunpack.c.l.b16 %v3686
    %v5105 = vunpack.c.h.b16 %v3686
    %v5106 = vunpack.c.l.b16 %v3687
    %v5107 = vunpack.c.h.b16 %v3687
    %v5108 = vunpack.c.l.b16 %v3688
    %v5109 = vunpack.c.h.b16 %v3688
    %v5110 = vunpack.c.l.b16 %v3689
    %v5111 = vunpack.c.l.b16 %v3690
    %v5112 = vunpack.c.h.b16 %v3690
    %v5113 = vunpack.c.l.b16 %v3691
    %v5114 = vunpack.c.h.b16 %v3691
    %v5115 = vunpack.c.l.b16 %v3692
    %v5116 = vunpack.c.h.b16 %v3692
    %v5117 = vunpack.c.l.b16 %v3693
    %v5118 = vpack.c.b16 %v4229, %v4222
    %v5119 = vpack.c.b16 %v4230, %v4223
    %v5120 = vpack.c.b16 %v4231, %v4224
    %v5121 = vpack.c.b16 %v4232, %v4225
    %v5122 = vpack.c.b16 %v4233, %v4226
    %v5123 = vpack.c.b16 %v4234, %v4227
    %v5124 = vpack.c.b16 %v4235, %v4228
    %v5125 = vpack.c.b16 %v4243, %v4236
    %v5126 = vpack.c.b16 %v4244, %v4237
    %v5127 = vpack.c.b16 %v4245, %v4238
    %v5128 = vpack.c.b16 %v4246, %v4239
    %v5129 = vpack.c.b16 %v4247, %v4240
    %v5130 = vpack.c.b16 %v4248, %v4241
    %v5131 = vpack.c.b16 %v4249, %v4242
    %v5132 = vpack.c.b16 %v4257, %v4250
    %v5133 = vpack.c.b16 %v4258, %v4251
    %v5134 = vpack.c.b16 %v4259, %v4252
    %v5135 = vpack.c.b16 %v4260, %v4253
    %v5136 = vpack.c.b16 %v4261, %v4254
    %v5137 = vpack.c.b16 %v4262, %v4255
    %v5138 = vpack.c.b16 %v4263, %v4256
    %v5139 = vpack.c.b16 %v4271, %v4264
    %v5140 = vpack.c.b16 %v4272, %v4265
    %v5141 = vpack.c.b16 %v4273, %v4266
    %v5142 = vpack.c.b16 %v4274, %v4267
    %v5143 = vpack.c.b16 %v4275, %v4268
    %v5144 = vpack.c.b16 %v4276, %v4269
    %v5145 = vpack.c.b16 %v4277, %v4270
    %v5146 = vpack.c.b16 %v4285, %v4278
    %v5147 = vpack.c.b16 %v4286, %v4279
    %v5148 = vpack.c.b16 %v4287, %v4280
    %v5149 = vpack.c.b16 %v4288, %v4281
    %v5150 = vpack.c.b16 %v4289, %v4282
    %v5151 = vpack.c.b16 %v4290, %v4283
    %v5152 = vpack.c.b16 %v4291, %v4284
    %v5153 = vpack.c.b16 %v4299, %v4292
    %v5154 = vpack.c.b16 %v4300, %v4293
    %v5155 = vpack.c.b16 %v4301, %v4294
    %v5156 = vpack.c.b16 %v4302, %v4295
    %v5157 = vpack.c.b16 %v4303, %v4296
    %v5158 = vpack.c.b16 %v4304, %v4297
    %v5159 = vpack.c.b16 %v4305, %v4298
    %v5160 = vpack.c.b16 %v4313, %v4306
    %v5161 = vpack.c.b16 %v4314, %v4307
    %v5162 = vpack.c.b16 %v4315, %v4308
    %v5163 = vpack.c.b16 %v4316, %v4309
    %v5164 = vpack.c.b16 %v4317, %v4310
    %v5165 = vpack.c.b16 %v4318, %v4311
    %v5166 = vpack.c.b16 %v4319, %v4312
    %v5167 = vpack.c.b16 %v4327, %v4320
    %v5168 = vpack.c.b16 %v4328, %v4321
    %v5169 = vpack.c.b16 %v4329, %v4322
    %v5170 = vpack.c.b16 %v4330, %v4323
    %v5171 = vpack.c.b16 %v4331, %v4324
    %v5172 = vpack.c.b16 %v4332, %v4325
    %v5173 = vpack.c.b16 %v4333, %v4326
    %v5174 = vpack.c.b16 %v4341, %v4334
    %v5175 = vpack.c.b16 %v4342, %v4335
    %v5176 = vpack.c.b16 %v4343, %v4336
    %v5177 = vpack.c.b16 %v4344, %v4337
    %v5178 = vpack.c.b16 %v4345, %v4338
    %v5179 = vpack.c.b16 %v4346, %v4339
    %v5180 = vpack.c.b16 %v4347, %v4340
    %v5181 = vpack.c.b16 %v4355, %v4348
    %v5182 = vpack.c.b16 %v4356, %v4349
    %v5183 = vpack.c.b16 %v4357, %v4350
    %v5184 = vpack.c.b16 %v4358, %v4351
    %v5185 = vpack.c.b16 %v4359, %v4352
    %v5186 = vpack.c.b16 %v4360, %v4353
    %v5187 = vpack.c.b16 %v4361, %v4354
    %v5188 = vpack.c.b16 %v4369, %v4362
    %v5189 = vpack.c.b16 %v4370, %v4363
    %v5190 = vpack.c.b16 %v4371, %v4364
    %v5191 = vpack.c.b16 %v4372, %v4365
    %v5192 = vpack.c.b16 %v4373, %v4366
    %v5193 = vpack.c.b16 %v4374, %v4367
    %v5194 = vpack.c.b16 %v4375, %v4368
    %v5195 = vpack.c.b16 %v4383, %v4376
    %v5196 = vpack.c.b16 %v4384, %v4377
    %v5197 = vpack.c.b16 %v4385, %v4378
    %v5198 = vpack.c.b16 %v4386, %v4379
    %v5199 = vpack.c.b16 %v4387, %v4380
    %v5200 = vpack.c.b16 %v4388, %v4381
    %v5201 = vpack.c.b16 %v4389, %v4382
    %v5202 = vpack.c.b16 %v4397, %v4390
    %v5203 = vpack.c.b16 %v4398, %v4391
    %v5204 = vpack.c.b16 %v4399, %v4392
    %v5205 = vpack.c.b16 %v4400, %v4393
    %v5206 = vpack.c.b16 %v4401, %v4394
    %v5207 = vpack.c.b16 %v4402, %v4395
    %v5208 = vpack.c.b16 %v4403, %v4396
    %v5209 = vpack.c.b16 %v4411, %v4404
    %v5210 = vpack.c.b16 %v4412, %v4405
    %v5211 = vpack.c.b16 %v4413, %v4406
    %v5212 = vpack.c.b16 %v4414, %v4407
    %v5213 = vpack.c.b16 %v4415, %v4408
    %v5214 = vpack.c.b16 %v4416, %v4409
    %v5215 = vpack.c.b16 %v4417, %v4410
    %v5216 = vpack.c.b16 %v4425, %v4418
    %v5217 = vpack.c.b16 %v4426, %v4419
    %v5218 = vpack.c.b16 %v4427, %v4420
    %v5219 = vpack.c.b16 %v4428, %v4421
    %v5220 = vpack.c.b16 %v4429, %v4422
    %v5221 = vpack.c.b16 %v4430, %v4423
    %v5222 = vpack.c.b16 %v4431, %v4424
    %v5223 = vpack.c.b16 %v4439, %v4432
    %v5224 = vpack.c.b16 %v4440, %v4433
    %v5225 = vpack.c.b16 %v4441, %v4434
    %v5226 = vpack.c.b16 %v4442, %v4435
    %v5227 = vpack.c.b16 %v4443, %v4436
    %v5228 = vpack.c.b16 %v4444, %v4437
    %v5229 = vpack.c.b16 %v4445, %v4438
    %v5230 = vpack.c.b16 %v4453, %v4446
    %v5231 = vpack.c.b16 %v4454, %v4447
    %v5232 = vpack.c.b16 %v4455, %v4448
    %v5233 = vpack.c.b16 %v4456, %v4449
    %v5234 = vpack.c.b16 %v4457, %v4450
    %v5235 = vpack.c.b16 %v4458, %v4451
    %v5236 = vpack.c.b16 %v4459, %v4452
    %v5237 = vpack.c.b16 %v4467, %v4460
    %v5238 = vpack.c.b16 %v4468, %v4461
    %v5239 = vpack.c.b16 %v4469, %v4462
    %v5240 = vpack.c.b16 %v4470, %v4463
    %v5241 = vpack.c.b16 %v4471, %v4464
    %v5242 = vpack.c.b16 %v4472, %v4465
    %v5243 = vpack.c.b16 %v4473, %v4466
    %v5244 = vpack.c.b16 %v4481, %v4474
    %v5245 = vpack.c.b16 %v4482, %v4475
    %v5246 = vpack.c.b16 %v4483, %v4476
    %v5247 = vpack.c.b16 %v4484, %v4477
    %v5248 = vpack.c.b16 %v4485, %v4478
    %v5249 = vpack.c.b16 %v4486, %v4479
    %v5250 = vpack.c.b16 %v4487, %v4480
    %v5251 = vpack.c.b16 %v4495, %v4488
    %v5252 = vpack.c.b16 %v4496, %v4489
    %v5253 = vpack.c.b16 %v4497, %v4490
    %v5254 = vpack.c.b16 %v4498, %v4491
    %v5255 = vpack.c.b16 %v4499, %v4492
    %v5256 = vpack.c.b16 %v4500, %v4493
    %v5257 = vpack.c.b16 %v4501, %v4494
    %v5258 = vpack.c.b16 %v4509, %v4502
    %v5259 = vpack.c.b16 %v4510, %v4503
    %v5260 = vpack.c.b16 %v4511, %v4504
    %v5261 = vpack.c.b16 %v4512, %v4505
    %v5262 = vpack.c.b16 %v4513, %v4506
    %v5263 = vpack.c.b16 %v4514, %v4507
    %v5264 = vpack.c.b16 %v4515, %v4508
    %v5265 = vpack.c.b16 %v4523, %v4516
    %v5266 = vpack.c.b16 %v4524, %v4517
    %v5267 = vpack.c.b16 %v4525, %v4518
    %v5268 = vpack.c.b16 %v4526, %v4519
    %v5269 = vpack.c.b16 %v4527, %v4520
    %v5270 = vpack.c.b16 %v4528, %v4521
    %v5271 = vpack.c.b16 %v4529, %v4522
    %v5272 = vpack.c.b16 %v4537, %v4530
    %v5273 = vpack.c.b16 %v4538, %v4531
    %v5274 = vpack.c.b16 %v4539, %v4532
    %v5275 = vpack.c.b16 %v4540, %v4533
    %v5276 = vpack.c.b16 %v4541, %v4534
    %v5277 = vpack.c.b16 %v4542, %v4535
    %v5278 = vpack.c.b16 %v4543, %v4536
    %v5279 = vpack.c.b16 %v4551, %v4544
    %v5280 = vpack.c.b16 %v4552, %v4545
    %v5281 = vpack.c.b16 %v4553, %v4546
    %v5282 = vpack.c.b16 %v4554, %v4547
    %v5283 = vpack.c.b16 %v4555, %v4548
    %v5284 = vpack.c.b16 %v4556, %v4549
    %v5285 = vpack.c.b16 %v4557, %v4550
    %v5286 = vpack.c.b16 %v4565, %v4558
    %v5287 = vpack.c.b16 %v4566, %v4559
    %v5288 = vpack.c.b16 %v4567, %v4560
    %v5289 = vpack.c.b16 %v4568, %v4561
    %v5290 = vpack.c.b16 %v4569, %v4562
    %v5291 = vpack.c.b16 %v4570, %v4563
    %v5292 = vpack.c.b16 %v4571, %v4564
    %v5293 = vpack.c.b16 %v4579, %v4572
    %v5294 = vpack.c.b16 %v4580, %v4573
    %v5295 = vpack.c.b16 %v4581, %v4574
    %v5296 = vpack.c.b16 %v4582, %v4575
    %v5297 = vpack.c.b16 %v4583, %v4576
    %v5298 = vpack.c.b16 %v4584, %v4577
    %v5299 = vpack.c.b16 %v4585, %v4578
    %v5300 = vpack.c.b16 %v4593, %v4586
    %v5301 = vpack.c.b16 %v4594, %v4587
    %v5302 = vpack.c.b16 %v4595, %v4588
    %v5303 = vpack.c.b16 %v4596, %v4589
    %v5304 = vpack.c.b16 %v4597, %v4590
    %v5305 = vpack.c.b16 %v4598, %v4591
    %v5306 = vpack.c.b16 %v4599, %v4592
    %v5307 = vpack.c.b16 %v4607, %v4600
    %v5308 = vpack.c.b16 %v4608, %v4601
    %v5309 = vpack.c.b16 %v4609, %v4602
    %v5310 = vpack.c.b16 %v4610, %v4603
    %v5311 = vpack.c.b16 %v4611, %v4604
    %v5312 = vpack.c.b16 %v4612, %v4605
    %v5313 = vpack.c.b16 %v4613, %v4606
    %v5314 = vpack.c.b16 %v4621, %v4614
    %v5315 = vpack.c.b16 %v4622, %v4615
    %v5316 = vpack.c.b16 %v4623, %v4616
    %v5317 = vpack.c.b16 %v4624, %v4617
    %v5318 = vpack.c.b16 %v4625, %v4618
    %v5319 = vpack.c.b16 %v4626, %v4619
    %v5320 = vpack.c.b16 %v4627, %v4620
    %v5321 = vpack.c.b16 %v4635, %v4628
    %v5322 = vpack.c.b16 %v4636, %v4629
    %v5323 = vpack.c.b16 %v4637, %v4630
    %v5324 = vpack.c.b16 %v4638, %v4631
    %v5325 = vpack.c.b16 %v4639, %v4632
    %v5326 = vpack.c.b16 %v4640, %v4633
    %v5327 = vpack.c.b16 %v4641, %v4634
    %v5328 = vpack.c.b16 %v4649, %v4642
    %v5329 = vpack.c.b16 %v4650, %v4643
    %v5330 = vpack.c.b16 %v4651, %v4644
    %v5331 = vpack.c.b16 %v4652, %v4645
    %v5332 = vpack.c.b16 %v4653, %v4646
    %v5333 = vpack.c.b16 %v4654, %v4647
    %v5334 = vpack.c.b16 %v4655, %v4648
    %v5335 = vpack.c.b16 %v4663, %v4656
    %v5336 = vpack.c.b16 %v4664, %v4657
    %v5337 = vpack.c.b16 %v4665, %v4658
    %v5338 = vpack.c.b16 %v4666, %v4659
    %v5339 = vpack.c.b16 %v4667, %v4660
    %v5340 = vpack.c.b16 %v4668, %v4661
    %v5341 = vpack.c.b16 %v4669, %v4662
    %v5342 = vpack.c.b16 %v4677, %v4670
    %v5343 = vpack.c.b16 %v4678, %v4671
    %v5344 = vpack.c.b16 %v4679, %v4672
    %v5345 = vpack.c.b16 %v4680, %v4673
    %v5346 = vpack.c.b16 %v4681, %v4674
    %v5347 = vpack.c.b16 %v4682, %v4675
    %v5348 = vpack.c.b16 %v4683, %v4676
    %v5349 = vpack.c.b16 %v4691, %v4684
    %v5350 = vpack.c.b16 %v4692, %v4685
    %v5351 = vpack.c.b16 %v4693, %v4686
    %v5352 = vpack.c.b16 %v4694, %v4687
    %v5353 = vpack.c.b16 %v4695, %v4688
    %v5354 = vpack.c.b16 %v4696, %v4689
    %v5355 = vpack.c.b16 %v4697, %v4690
    %v5356 = vpack.c.b16 %v4705, %v4698
    %v5357 = vpack.c.b16 %v4706, %v4699
    %v5358 = vpack.c.b16 %v4707, %v4700
    %v5359 = vpack.c.b16 %v4708, %v4701
    %v5360 = vpack.c.b16 %v4709, %v4702
    %v5361 = vpack.c.b16 %v4710, %v4703
    %v5362 = vpack.c.b16 %v4711, %v4704
    %v5363 = vpack.c.b16 %v4719, %v4712
    %v5364 = vpack.c.b16 %v4720, %v4713
    %v5365 = vpack.c.b16 %v4721, %v4714
    %v5366 = vpack.c.b16 %v4722, %v4715
    %v5367 = vpack.c.b16 %v4723, %v4716
    %v5368 = vpack.c.b16 %v4724, %v4717
    %v5369 = vpack.c.b16 %v4725, %v4718
    %v5370 = vpack.c.b16 %v4733, %v4726
    %v5371 = vpack.c.b16 %v4734, %v4727
    %v5372 = vpack.c.b16 %v4735, %v4728
    %v5373 = vpack.c.b16 %v4736, %v4729
    %v5374 = vpack.c.b16 %v4737, %v4730
    %v5375 = vpack.c.b16 %v4738, %v4731
    %v5376 = vpack.c.b16 %v4739, %v4732
    %v5377 = vpack.c.b16 %v4747, %v4740
    %v5378 = vpack.c.b16 %v4748, %v4741
    %v5379 = vpack.c.b16 %v4749, %v4742
    %v5380 = vpack.c.b16 %v4750, %v4743
    %v5381 = vpack.c.b16 %v4751, %v4744
    %v5382 = vpack.c.b16 %v4752, %v4745
    %v5383 = vpack.c.b16 %v4753, %v4746
    %v5384 = vpack.c.b16 %v4761, %v4754
    %v5385 = vpack.c.b16 %v4762, %v4755
    %v5386 = vpack.c.b16 %v4763, %v4756
    %v5387 = vpack.c.b16 %v4764, %v4757
    %v5388 = vpack.c.b16 %v4765, %v4758
    %v5389 = vpack.c.b16 %v4766, %v4759
    %v5390 = vpack.c.b16 %v4767, %v4760
    %v5391 = vpack.c.b16 %v4775, %v4768
    %v5392 = vpack.c.b16 %v4776, %v4769
    %v5393 = vpack.c.b16 %v4777, %v4770
    %v5394 = vpack.c.b16 %v4778, %v4771
    %v5395 = vpack.c.b16 %v4779, %v4772
    %v5396 = vpack.c.b16 %v4780, %v4773
    %v5397 = vpack.c.b16 %v4781, %v4774
    %v5398 = vpack.c.b16 %v4789, %v4782
    %v5399 = vpack.c.b16 %v4790, %v4783
    %v5400 = vpack.c.b16 %v4791, %v4784
    %v5401 = vpack.c.b16 %v4792, %v4785
    %v5402 = vpack.c.b16 %v4793, %v4786
    %v5403 = vpack.c.b16 %v4794, %v4787
    %v5404 = vpack.c.b16 %v4795, %v4788
    %v5405 = vpack.c.b16 %v4803, %v4796
    %v5406 = vpack.c.b16 %v4804, %v4797
    %v5407 = vpack.c.b16 %v4805, %v4798
    %v5408 = vpack.c.b16 %v4806, %v4799
    %v5409 = vpack.c.b16 %v4807, %v4800
    %v5410 = vpack.c.b16 %v4808, %v4801
    %v5411 = vpack.c.b16 %v4809, %v4802
    %v5412 = vpack.c.b16 %v4817, %v4810
    %v5413 = vpack.c.b16 %v4818, %v4811
    %v5414 = vpack.c.b16 %v4819, %v4812
    %v5415 = vpack.c.b16 %v4820, %v4813
    %v5416 = vpack.c.b16 %v4821, %v4814
    %v5417 = vpack.c.b16 %v4822, %v4815
    %v5418 = vpack.c.b16 %v4823, %v4816
    %v5419 = vpack.c.b16 %v4831, %v4824
    %v5420 = vpack.c.b16 %v4832, %v4825
    %v5421 = vpack.c.b16 %v4833, %v4826
    %v5422 = vpack.c.b16 %v4834, %v4827
    %v5423 = vpack.c.b16 %v4835, %v4828
    %v5424 = vpack.c.b16 %v4836, %v4829
    %v5425 = vpack.c.b16 %v4837, %v4830
    %v5426 = vpack.c.b16 %v4845, %v4838
    %v5427 = vpack.c.b16 %v4846, %v4839
    %v5428 = vpack.c.b16 %v4847, %v4840
    %v5429 = vpack.c.b16 %v4848, %v4841
    %v5430 = vpack.c.b16 %v4849, %v4842
    %v5431 = vpack.c.b16 %v4850, %v4843
    %v5432 = vpack.c.b16 %v4851, %v4844
    %v5433 = vpack.c.b16 %v4859, %v4852
    %v5434 = vpack.c.b16 %v4860, %v4853
    %v5435 = vpack.c.b16 %v4861, %v4854
    %v5436 = vpack.c.b16 %v4862, %v4855
    %v5437 = vpack.c.b16 %v4863, %v4856
    %v5438 = vpack.c.b16 %v4864, %v4857
    %v5439 = vpack.c.b16 %v4865, %v4858
    %v5440 = vpack.c.b16 %v4873, %v4866
    %v5441 = vpack.c.b16 %v4874, %v4867
    %v5442 = vpack.c.b16 %v4875, %v4868
    %v5443 = vpack.c.b16 %v4876, %v4869
    %v5444 = vpack.c.b16 %v4877, %v4870
    %v5445 = vpack.c.b16 %v4878, %v4871
    %v5446 = vpack.c.b16 %v4879, %v4872
    %v5447 = vpack.c.b16 %v4887, %v4880
    %v5448 = vpack.c.b16 %v4888, %v4881
    %v5449 = vpack.c.b16 %v4889, %v4882
    %v5450 = vpack.c.b16 %v4890, %v4883
    %v5451 = vpack.c.b16 %v4891, %v4884
    %v5452 = vpack.c.b16 %v4892, %v4885
    %v5453 = vpack.c.b16 %v4893, %v4886
    %v5454 = vpack.c.b16 %v4901, %v4894
    %v5455 = vpack.c.b16 %v4902, %v4895
    %v5456 = vpack.c.b16 %v4903, %v4896
    %v5457 = vpack.c.b16 %v4904, %v4897
    %v5458 = vpack.c.b16 %v4905, %v4898
    %v5459 = vpack.c.b16 %v4906, %v4899
    %v5460 = vpack.c.b16 %v4907, %v4900
    %v5461 = vpack.c.b16 %v4915, %v4908
    %v5462 = vpack.c.b16 %v4916, %v4909
    %v5463 = vpack.c.b16 %v4917, %v4910
    %v5464 = vpack.c.b16 %v4918, %v4911
    %v5465 = vpack.c.b16 %v4919, %v4912
    %v5466 = vpack.c.b16 %v4920, %v4913
    %v5467 = vpack.c.b16 %v4921, %v4914
    %v5468 = vpack.c.b16 %v4929, %v4922
    %v5469 = vpack.c.b16 %v4930, %v4923
    %v5470 = vpack.c.b16 %v4931, %v4924
    %v5471 = vpack.c.b16 %v4932, %v4925
    %v5472 = vpack.c.b16 %v4933, %v4926
    %v5473 = vpack.c.b16 %v4934, %v4927
    %v5474 = vpack.c.b16 %v4935, %v4928
    %v5475 = vpack.c.b16 %v4943, %v4936
    %v5476 = vpack.c.b16 %v4944, %v4937
    %v5477 = vpack.c.b16 %v4945, %v4938
    %v5478 = vpack.c.b16 %v4946, %v4939
    %v5479 = vpack.c.b16 %v4947, %v4940
    %v5480 = vpack.c.b16 %v4948, %v4941
    %v5481 = vpack.c.b16 %v4949, %v4942
    %v5482 = vpack.c.b16 %v4957, %v4950
    %v5483 = vpack.c.b16 %v4958, %v4951
    %v5484 = vpack.c.b16 %v4959, %v4952
    %v5485 = vpack.c.b16 %v4960, %v4953
    %v5486 = vpack.c.b16 %v4961, %v4954
    %v5487 = vpack.c.b16 %v4962, %v4955
    %v5488 = vpack.c.b16 %v4963, %v4956
    %v5489 = vpack.c.b16 %v4971, %v4964
    %v5490 = vpack.c.b16 %v4972, %v4965
    %v5491 = vpack.c.b16 %v4973, %v4966
    %v5492 = vpack.c.b16 %v4974, %v4967
    %v5493 = vpack.c.b16 %v4975, %v4968
    %v5494 = vpack.c.b16 %v4976, %v4969
    %v5495 = vpack.c.b16 %v4977, %v4970
    %v5496 = vpack.c.b16 %v4985, %v4978
    %v5497 = vpack.c.b16 %v4986, %v4979
    %v5498 = vpack.c.b16 %v4987, %v4980
    %v5499 = vpack.c.b16 %v4988, %v4981
    %v5500 = vpack.c.b16 %v4989, %v4982
    %v5501 = vpack.c.b16 %v4990, %v4983
    %v5502 = vpack.c.b16 %v4991, %v4984
    %v5503 = vpack.c.b16 %v4999, %v4992
    %v5504 = vpack.c.b16 %v5000, %v4993
    %v5505 = vpack.c.b16 %v5001, %v4994
    %v5506 = vpack.c.b16 %v5002, %v4995
    %v5507 = vpack.c.b16 %v5003, %v4996
    %v5508 = vpack.c.b16 %v5004, %v4997
    %v5509 = vpack.c.b16 %v5005, %v4998
    %v5510 = vpack.c.b16 %v5013, %v5006
    %v5511 = vpack.c.b16 %v5014, %v5007
    %v5512 = vpack.c.b16 %v5015, %v5008
    %v5513 = vpack.c.b16 %v5016, %v5009
    %v5514 = vpack.c.b16 %v5017, %v5010
    %v5515 = vpack.c.b16 %v5018, %v5011
    %v5516 = vpack.c.b16 %v5019, %v5012
    %v5517 = vpack.c.b16 %v5027, %v5020
    %v5518 = vpack.c.b16 %v5028, %v5021
    %v5519 = vpack.c.b16 %v5029, %v5022
    %v5520 = vpack.c.b16 %v5030, %v5023
    %v5521 = vpack.c.b16 %v5031, %v5024
    %v5522 = vpack.c.b16 %v5032, %v5025
    %v5523 = vpack.c.b16 %v5033, %v5026
    %v5524 = vpack.c.b16 %v5041, %v5034
    %v5525 = vpack.c.b16 %v5042, %v5035
    %v5526 = vpack.c.b16 %v5043, %v5036
    %v5527 = vpack.c.b16 %v5044, %v5037
    %v5528 = vpack.c.b16 %v5045, %v5038
    %v5529 = vpack.c.b16 %v5046, %v5039
    %v5530 = vpack.c.b16 %v5047, %v5040
    %v5531 = vpack.c.b16 %v5055, %v5048
    %v5532 = vpack.c.b16 %v5056, %v5049
    %v5533 = vpack.c.b16 %v5057, %v5050
    %v5534 = vpack.c.b16 %v5058, %v5051
    %v5535 = vpack.c.b16 %v5059, %v5052
    %v5536 = vpack.c.b16 %v5060, %v5053
    %v5537 = vpack.c.b16 %v5061, %v5054
    %v5538 = vpack.c.b16 %v5069, %v5062
    %v5539 = vpack.c.b16 %v5070, %v5063
    %v5540 = vpack.c.b16 %v5071, %v5064
    %v5541 = vpack.c.b16 %v5072, %v5065
    %v5542 = vpack.c.b16 %v5073, %v5066
    %v5543 = vpack.c.b16 %v5074, %v5067
    %v5544 = vpack.c.b16 %v5075, %v5068
    %v5545 = vpack.c.b16 %v5083, %v5076
    %v5546 = vpack.c.b16 %v5084, %v5077
    %v5547 = vpack.c.b16 %v5085, %v5078
    %v5548 = vpack.c.b16 %v5086, %v5079
    %v5549 = vpack.c.b16 %v5087, %v5080
    %v5550 = vpack.c.b16 %v5088, %v5081
    %v5551 = vpack.c.b16 %v5089, %v5082
    %v5552 = vpack.c.b16 %v5097, %v5090
    %v5553 = vpack.c.b16 %v5098, %v5091
    %v5554 = vpack.c.b16 %v5099, %v5092
    %v5555 = vpack.c.b16 %v5100, %v5093
    %v5556 = vpack.c.b16 %v5101, %v5094
    %v5557 = vpack.c.b16 %v5102, %v5095
    %v5558 = vpack.c.b16 %v5103, %v5096
    %v5559 = vpack.c.b16 %v5111, %v5104
    %v5560 = vpack.c.b16 %v5112, %v5105
    %v5561 = vpack.c.b16 %v5113, %v5106
    %v5562 = vpack.c.b16 %v5114, %v5107
    %v5563 = vpack.c.b16 %v5115, %v5108
    %v5564 = vpack.c.b16 %v5116, %v5109
    %v5565 = vpack.c.b16 %v5117, %v5110
    %6014 = vmatpush.bf16.msra.mxu0 %v5167
    %6015 = vmatpush.bf16.msra.mxu0 %v5160
    %6016 = vmatpush.bf16.msra.mxu0 %v5153
    %6017 = vmatpush.bf16.msra.mxu0 %v5146
    %6018 = vmatpush.bf16.msra.mxu0 %v5139
    %6019 = vmatpush.bf16.msra.mxu0 %v5132
    %6020 = vmatpush.bf16.msra.mxu0 %v5125
    %6021 = vmatpush.bf16.msra.mxu0 %v5118
    %6022 = vmatmul.bf16.gmra.mxu0 %v3174
    %v6023 = vpop.f32.mrf.mxu0
    %v6024 = vadd.f32 %v3696, %v6023
    %v6025 = vpop.f32.mrf.mxu0
    %v6026 = vadd.f32 %v3696, %v6025
    %6027 = vdwg.mxu0
    %6028 = vmatpush.bf16.msra.mxu0 %v5223
    %6029 = vmatpush.bf16.msra.mxu0 %v5216
    %6030 = vmatpush.bf16.msra.mxu0 %v5209
    %6031 = vmatpush.bf16.msra.mxu0 %v5202
    %6032 = vmatpush.bf16.msra.mxu0 %v5195
    %6033 = vmatpush.bf16.msra.mxu0 %v5188
    %6034 = vmatpush.bf16.msra.mxu0 %v5181
    %6035 = vmatpush.bf16.msra.mxu0 %v5174
    %6036 = vmatmul.bf16.gmra.mxu0 %v3175
    %v6037 = vpop.f32.mrf.mxu0
    %v6038 = vadd.f32 %v6024, %v6037
    %v6039 = vpop.f32.mrf.mxu0
    %v6040 = vadd.f32 %v6026, %v6039
    %6041 = vdwg.mxu0
    %6042 = vmatpush.bf16.msra.mxu0 %v5279
    %6043 = vmatpush.bf16.msra.mxu0 %v5272
    %6044 = vmatpush.bf16.msra.mxu0 %v5265
    %6045 = vmatpush.bf16.msra.mxu0 %v5258
    %6046 = vmatpush.bf16.msra.mxu0 %v5251
    %6047 = vmatpush.bf16.msra.mxu0 %v5244
    %6048 = vmatpush.bf16.msra.mxu0 %v5237
    %6049 = vmatpush.bf16.msra.mxu0 %v5230
    %6050 = vmatmul.bf16.gmra.mxu0 %v3176
    %v6051 = vpop.f32.mrf.mxu0
    %v6052 = vadd.f32 %v6038, %v6051
    %v6053 = vpop.f32.mrf.mxu0
    %v6054 = vadd.f32 %v6040, %v6053
    %6055 = vdwg.mxu0
    %6056 = vmatpush.bf16.msra.mxu0 %v5335
    %6057 = vmatpush.bf16.msra.mxu0 %v5328
    %6058 = vmatpush.bf16.msra.mxu0 %v5321
    %6059 = vmatpush.bf16.msra.mxu0 %v5314
    %6060 = vmatpush.bf16.msra.mxu0 %v5307
    %6061 = vmatpush.bf16.msra.mxu0 %v5300
    %6062 = vmatpush.bf16.msra.mxu0 %v5293
    %6063 = vmatpush.bf16.msra.mxu0 %v5286
    %6064 = vmatmul.bf16.gmra.mxu0 %v3177
    %v6065 = vpop.f32.mrf.mxu0
    %v6066 = vadd.f32 %v6052, %v6065
    %v6067 = vpop.f32.mrf.mxu0
    %v6068 = vadd.f32 %v6054, %v6067
    %6069 = vdwg.mxu0
    %6070 = vmatpush.bf16.msra.mxu0 %v5391
    %6071 = vmatpush.bf16.msra.mxu0 %v5384
    %6072 = vmatpush.bf16.msra.mxu0 %v5377
    %6073 = vmatpush.bf16.msra.mxu0 %v5370
    %6074 = vmatpush.bf16.msra.mxu0 %v5363
    %6075 = vmatpush.bf16.msra.mxu0 %v5356
    %6076 = vmatpush.bf16.msra.mxu0 %v5349
    %6077 = vmatpush.bf16.msra.mxu0 %v5342
    %6078 = vmatmul.bf16.gmra.mxu0 %v3178
    %v6079 = vpop.f32.mrf.mxu0
    %v6080 = vadd.f32 %v6066, %v6079
    %v6081 = vpop.f32.mrf.mxu0
    %v6082 = vadd.f32 %v6068, %v6081
    %6083 = vdwg.mxu0
    %6084 = vmatpush.bf16.msra.mxu0 %v5447
    %6085 = vmatpush.bf16.msra.mxu0 %v5440
    %6086 = vmatpush.bf16.msra.mxu0 %v5433
    %6087 = vmatpush.bf16.msra.mxu0 %v5426
    %6088 = vmatpush.bf16.msra.mxu0 %v5419
    %6089 = vmatpush.bf16.msra.mxu0 %v5412
    %6090 = vmatpush.bf16.msra.mxu0 %v5405
    %6091 = vmatpush.bf16.msra.mxu0 %v5398
    %6092 = vmatmul.bf16.gmra.mxu0 %v3179
    %v6093 = vpop.f32.mrf.mxu0
    %v6094 = vadd.f32 %v6080, %v6093
    %v6095 = vpop.f32.mrf.mxu0
    %v6096 = vadd.f32 %v6082, %v6095
    %6097 = vdwg.mxu0
    %6098 = vmatpush.bf16.msra.mxu0 %v5503
    %6099 = vmatpush.bf16.msra.mxu0 %v5496
    %6100 = vmatpush.bf16.msra.mxu0 %v5489
    %6101 = vmatpush.bf16.msra.mxu0 %v5482
    %6102 = vmatpush.bf16.msra.mxu0 %v5475
    %6103 = vmatpush.bf16.msra.mxu0 %v5468
    %6104 = vmatpush.bf16.msra.mxu0 %v5461
    %6105 = vmatpush.bf16.msra.mxu0 %v5454
    %6106 = vmatmul.bf16.gmra.mxu0 %v3180
    %v6107 = vpop.f32.mrf.mxu0
    %v6108 = vadd.f32 %v6094, %v6107
    %v6109 = vpop.f32.mrf.mxu0
    %v6110 = vadd.f32 %v6096, %v6109
    %6111 = vdwg.mxu0
    %6112 = vmatpush.bf16.msra.mxu0 %v5559
    %6113 = vmatpush.bf16.msra.mxu0 %v5552
    %6114 = vmatpush.bf16.msra.mxu0 %v5545
    %6115 = vmatpush.bf16.msra.mxu0 %v5538
    %6116 = vmatpush.bf16.msra.mxu0 %v5531
    %6117 = vmatpush.bf16.msra.mxu0 %v5524
    %6118 = vmatpush.bf16.msra.mxu0 %v5517
    %6119 = vmatpush.bf16.msra.mxu0 %v5510
    %6120 = vmatmul.bf16.gmra.mxu0 %v3181
    %v6121 = vpop.f32.mrf.mxu0
    %v6122 = vadd.f32 %v6108, %v6121
    %v6123 = vpop.f32.mrf.mxu0
    %v6124 = vadd.f32 %v6110, %v6123
    %6125 = vdwg.mxu0
    %6126 = vmatpush.bf16.msra.mxu0 %v5168
    %6127 = vmatpush.bf16.msra.mxu0 %v5161
    %6128 = vmatpush.bf16.msra.mxu0 %v5154
    %6129 = vmatpush.bf16.msra.mxu0 %v5147
    %6130 = vmatpush.bf16.msra.mxu0 %v5140
    %6131 = vmatpush.bf16.msra.mxu0 %v5133
    %6132 = vmatpush.bf16.msra.mxu0 %v5126
    %6133 = vmatpush.bf16.msra.mxu0 %v5119
    %6134 = vmatmul.bf16.gmra.mxu0 %v3174
    %v6135 = vpop.f32.mrf.mxu0
    %v6136 = vadd.f32 %v3697, %v6135
    %v6137 = vpop.f32.mrf.mxu0
    %v6138 = vadd.f32 %v3697, %v6137
    %6139 = vdwg.mxu0
    %6140 = vmatpush.bf16.msra.mxu0 %v5224
    %6141 = vmatpush.bf16.msra.mxu0 %v5217
    %6142 = vmatpush.bf16.msra.mxu0 %v5210
    %6143 = vmatpush.bf16.msra.mxu0 %v5203
    %6144 = vmatpush.bf16.msra.mxu0 %v5196
    %6145 = vmatpush.bf16.msra.mxu0 %v5189
    %6146 = vmatpush.bf16.msra.mxu0 %v5182
    %6147 = vmatpush.bf16.msra.mxu0 %v5175
    %6148 = vmatmul.bf16.gmra.mxu0 %v3175
    %v6149 = vpop.f32.mrf.mxu0
    %v6150 = vadd.f32 %v6136, %v6149
    %v6151 = vpop.f32.mrf.mxu0
    %v6152 = vadd.f32 %v6138, %v6151
    %6153 = vdwg.mxu0
    %6154 = vmatpush.bf16.msra.mxu0 %v5280
    %6155 = vmatpush.bf16.msra.mxu0 %v5273
    %6156 = vmatpush.bf16.msra.mxu0 %v5266
    %6157 = vmatpush.bf16.msra.mxu0 %v5259
    %6158 = vmatpush.bf16.msra.mxu0 %v5252
    %6159 = vmatpush.bf16.msra.mxu0 %v5245
    %6160 = vmatpush.bf16.msra.mxu0 %v5238
    %6161 = vmatpush.bf16.msra.mxu0 %v5231
    %6162 = vmatmul.bf16.gmra.mxu0 %v3176
    %v6163 = vpop.f32.mrf.mxu0
    %v6164 = vadd.f32 %v6150, %v6163
    %v6165 = vpop.f32.mrf.mxu0
    %v6166 = vadd.f32 %v6152, %v6165
    %6167 = vdwg.mxu0
    %6168 = vmatpush.bf16.msra.mxu0 %v5336
    %6169 = vmatpush.bf16.msra.mxu0 %v5329
    %6170 = vmatpush.bf16.msra.mxu0 %v5322
    %6171 = vmatpush.bf16.msra.mxu0 %v5315
    %6172 = vmatpush.bf16.msra.mxu0 %v5308
    %6173 = vmatpush.bf16.msra.mxu0 %v5301
    %6174 = vmatpush.bf16.msra.mxu0 %v5294
    %6175 = vmatpush.bf16.msra.mxu0 %v5287
    %6176 = vmatmul.bf16.gmra.mxu0 %v3177
    %v6177 = vpop.f32.mrf.mxu0
    %v6178 = vadd.f32 %v6164, %v6177
    %v6179 = vpop.f32.mrf.mxu0
    %v6180 = vadd.f32 %v6166, %v6179
    %6181 = vdwg.mxu0
    %6182 = vmatpush.bf16.msra.mxu0 %v5392
    %6183 = vmatpush.bf16.msra.mxu0 %v5385
    %6184 = vmatpush.bf16.msra.mxu0 %v5378
    %6185 = vmatpush.bf16.msra.mxu0 %v5371
    %6186 = vmatpush.bf16.msra.mxu0 %v5364
    %6187 = vmatpush.bf16.msra.mxu0 %v5357
    %6188 = vmatpush.bf16.msra.mxu0 %v5350
    %6189 = vmatpush.bf16.msra.mxu0 %v5343
    %6190 = vmatmul.bf16.gmra.mxu0 %v3178
    %v6191 = vpop.f32.mrf.mxu0
    %v6192 = vadd.f32 %v6178, %v6191
    %v6193 = vpop.f32.mrf.mxu0
    %v6194 = vadd.f32 %v6180, %v6193
    %6195 = vdwg.mxu0
    %6196 = vmatpush.bf16.msra.mxu0 %v5448
    %6197 = vmatpush.bf16.msra.mxu0 %v5441
    %6198 = vmatpush.bf16.msra.mxu0 %v5434
    %6199 = vmatpush.bf16.msra.mxu0 %v5427
    %6200 = vmatpush.bf16.msra.mxu0 %v5420
    %6201 = vmatpush.bf16.msra.mxu0 %v5413
    %6202 = vmatpush.bf16.msra.mxu0 %v5406
    %6203 = vmatpush.bf16.msra.mxu0 %v5399
    %6204 = vmatmul.bf16.gmra.mxu0 %v3179
    %v6205 = vpop.f32.mrf.mxu0
    %v6206 = vadd.f32 %v6192, %v6205
    %v6207 = vpop.f32.mrf.mxu0
    %v6208 = vadd.f32 %v6194, %v6207
    %6209 = vdwg.mxu0
    %6210 = vmatpush.bf16.msra.mxu0 %v5504
    %6211 = vmatpush.bf16.msra.mxu0 %v5497
    %6212 = vmatpush.bf16.msra.mxu0 %v5490
    %6213 = vmatpush.bf16.msra.mxu0 %v5483
    %6214 = vmatpush.bf16.msra.mxu0 %v5476
    %6215 = vmatpush.bf16.msra.mxu0 %v5469
    %6216 = vmatpush.bf16.msra.mxu0 %v5462
    %6217 = vmatpush.bf16.msra.mxu0 %v5455
    %6218 = vmatmul.bf16.gmra.mxu0 %v3180
    %v6219 = vpop.f32.mrf.mxu0
    %v6220 = vadd.f32 %v6206, %v6219
    %v6221 = vpop.f32.mrf.mxu0
    %v6222 = vadd.f32 %v6208, %v6221
    %6223 = vdwg.mxu0
    %6224 = vmatpush.bf16.msra.mxu0 %v5560
    %6225 = vmatpush.bf16.msra.mxu0 %v5553
    %6226 = vmatpush.bf16.msra.mxu0 %v5546
    %6227 = vmatpush.bf16.msra.mxu0 %v5539
    %6228 = vmatpush.bf16.msra.mxu0 %v5532
    %6229 = vmatpush.bf16.msra.mxu0 %v5525
    %6230 = vmatpush.bf16.msra.mxu0 %v5518
    %6231 = vmatpush.bf16.msra.mxu0 %v5511
    %6232 = vmatmul.bf16.gmra.mxu0 %v3181
    %v6233 = vpop.f32.mrf.mxu0
    %v6234 = vadd.f32 %v6220, %v6233
    %v6235 = vpop.f32.mrf.mxu0
    %v6236 = vadd.f32 %v6222, %v6235
    %6237 = vdwg.mxu0
    %6238 = vmatpush.bf16.msra.mxu0 %v5169
    %6239 = vmatpush.bf16.msra.mxu0 %v5162
    %6240 = vmatpush.bf16.msra.mxu0 %v5155
    %6241 = vmatpush.bf16.msra.mxu0 %v5148
    %6242 = vmatpush.bf16.msra.mxu0 %v5141
    %6243 = vmatpush.bf16.msra.mxu0 %v5134
    %6244 = vmatpush.bf16.msra.mxu0 %v5127
    %6245 = vmatpush.bf16.msra.mxu0 %v5120
    %6246 = vmatmul.bf16.gmra.mxu0 %v3174
    %v6247 = vpop.f32.mrf.mxu0
    %v6248 = vadd.f32 %v3698, %v6247
    %v6249 = vpop.f32.mrf.mxu0
    %v6250 = vadd.f32 %v3698, %v6249
    %6251 = vdwg.mxu0
    %6252 = vmatpush.bf16.msra.mxu0 %v5225
    %6253 = vmatpush.bf16.msra.mxu0 %v5218
    %6254 = vmatpush.bf16.msra.mxu0 %v5211
    %6255 = vmatpush.bf16.msra.mxu0 %v5204
    %6256 = vmatpush.bf16.msra.mxu0 %v5197
    %6257 = vmatpush.bf16.msra.mxu0 %v5190
    %6258 = vmatpush.bf16.msra.mxu0 %v5183
    %6259 = vmatpush.bf16.msra.mxu0 %v5176
    %6260 = vmatmul.bf16.gmra.mxu0 %v3175
    %v6261 = vpop.f32.mrf.mxu0
    %v6262 = vadd.f32 %v6248, %v6261
    %v6263 = vpop.f32.mrf.mxu0
    %v6264 = vadd.f32 %v6250, %v6263
    %6265 = vdwg.mxu0
    %6266 = vmatpush.bf16.msra.mxu0 %v5281
    %6267 = vmatpush.bf16.msra.mxu0 %v5274
    %6268 = vmatpush.bf16.msra.mxu0 %v5267
    %6269 = vmatpush.bf16.msra.mxu0 %v5260
    %6270 = vmatpush.bf16.msra.mxu0 %v5253
    %6271 = vmatpush.bf16.msra.mxu0 %v5246
    %6272 = vmatpush.bf16.msra.mxu0 %v5239
    %6273 = vmatpush.bf16.msra.mxu0 %v5232
    %6274 = vmatmul.bf16.gmra.mxu0 %v3176
    %v6275 = vpop.f32.mrf.mxu0
    %v6276 = vadd.f32 %v6262, %v6275
    %v6277 = vpop.f32.mrf.mxu0
    %v6278 = vadd.f32 %v6264, %v6277
    %6279 = vdwg.mxu0
    %6280 = vmatpush.bf16.msra.mxu0 %v5337
    %6281 = vmatpush.bf16.msra.mxu0 %v5330
    %6282 = vmatpush.bf16.msra.mxu0 %v5323
    %6283 = vmatpush.bf16.msra.mxu0 %v5316
    %6284 = vmatpush.bf16.msra.mxu0 %v5309
    %6285 = vmatpush.bf16.msra.mxu0 %v5302
    %6286 = vmatpush.bf16.msra.mxu0 %v5295
    %6287 = vmatpush.bf16.msra.mxu0 %v5288
    %6288 = vmatmul.bf16.gmra.mxu0 %v3177
    %v6289 = vpop.f32.mrf.mxu0
    %v6290 = vadd.f32 %v6276, %v6289
    %v6291 = vpop.f32.mrf.mxu0
    %v6292 = vadd.f32 %v6278, %v6291
    %6293 = vdwg.mxu0
    %6294 = vmatpush.bf16.msra.mxu0 %v5393
    %6295 = vmatpush.bf16.msra.mxu0 %v5386
    %6296 = vmatpush.bf16.msra.mxu0 %v5379
    %6297 = vmatpush.bf16.msra.mxu0 %v5372
    %6298 = vmatpush.bf16.msra.mxu0 %v5365
    %6299 = vmatpush.bf16.msra.mxu0 %v5358
    %6300 = vmatpush.bf16.msra.mxu0 %v5351
    %6301 = vmatpush.bf16.msra.mxu0 %v5344
    %6302 = vmatmul.bf16.gmra.mxu0 %v3178
    %v6303 = vpop.f32.mrf.mxu0
    %v6304 = vadd.f32 %v6290, %v6303
    %v6305 = vpop.f32.mrf.mxu0
    %v6306 = vadd.f32 %v6292, %v6305
    %6307 = vdwg.mxu0
    %6308 = vmatpush.bf16.msra.mxu0 %v5449
    %6309 = vmatpush.bf16.msra.mxu0 %v5442
    %6310 = vmatpush.bf16.msra.mxu0 %v5435
    %6311 = vmatpush.bf16.msra.mxu0 %v5428
    %6312 = vmatpush.bf16.msra.mxu0 %v5421
    %6313 = vmatpush.bf16.msra.mxu0 %v5414
    %6314 = vmatpush.bf16.msra.mxu0 %v5407
    %6315 = vmatpush.bf16.msra.mxu0 %v5400
    %6316 = vmatmul.bf16.gmra.mxu0 %v3179
    %v6317 = vpop.f32.mrf.mxu0
    %v6318 = vadd.f32 %v6304, %v6317
    %v6319 = vpop.f32.mrf.mxu0
    %v6320 = vadd.f32 %v6306, %v6319
    %6321 = vdwg.mxu0
    %6322 = vmatpush.bf16.msra.mxu0 %v5505
    %6323 = vmatpush.bf16.msra.mxu0 %v5498
    %6324 = vmatpush.bf16.msra.mxu0 %v5491
    %6325 = vmatpush.bf16.msra.mxu0 %v5484
    %6326 = vmatpush.bf16.msra.mxu0 %v5477
    %6327 = vmatpush.bf16.msra.mxu0 %v5470
    %6328 = vmatpush.bf16.msra.mxu0 %v5463
    %6329 = vmatpush.bf16.msra.mxu0 %v5456
    %6330 = vmatmul.bf16.gmra.mxu0 %v3180
    %v6331 = vpop.f32.mrf.mxu0
    %v6332 = vadd.f32 %v6318, %v6331
    %v6333 = vpop.f32.mrf.mxu0
    %v6334 = vadd.f32 %v6320, %v6333
    %6335 = vdwg.mxu0
    %6336 = vmatpush.bf16.msra.mxu0 %v5561
    %6337 = vmatpush.bf16.msra.mxu0 %v5554
    %6338 = vmatpush.bf16.msra.mxu0 %v5547
    %6339 = vmatpush.bf16.msra.mxu0 %v5540
    %6340 = vmatpush.bf16.msra.mxu0 %v5533
    %6341 = vmatpush.bf16.msra.mxu0 %v5526
    %6342 = vmatpush.bf16.msra.mxu0 %v5519
    %6343 = vmatpush.bf16.msra.mxu0 %v5512
    %6344 = vmatmul.bf16.gmra.mxu0 %v3181
    %v6345 = vpop.f32.mrf.mxu0
    %v6346 = vadd.f32 %v6332, %v6345
    %v6347 = vpop.f32.mrf.mxu0
    %v6348 = vadd.f32 %v6334, %v6347
    %6349 = vdwg.mxu0
    %6350 = vmatpush.bf16.msra.mxu0 %v5170
    %6351 = vmatpush.bf16.msra.mxu0 %v5163
    %6352 = vmatpush.bf16.msra.mxu0 %v5156
    %6353 = vmatpush.bf16.msra.mxu0 %v5149
    %6354 = vmatpush.bf16.msra.mxu0 %v5142
    %6355 = vmatpush.bf16.msra.mxu0 %v5135
    %6356 = vmatpush.bf16.msra.mxu0 %v5128
    %6357 = vmatpush.bf16.msra.mxu0 %v5121
    %6358 = vmatmul.bf16.gmra.mxu0 %v3174
    %v6359 = vpop.f32.mrf.mxu0
    %v6360 = vadd.f32 %v3699, %v6359
    %v6361 = vpop.f32.mrf.mxu0
    %v6362 = vadd.f32 %v3699, %v6361
    %6363 = vdwg.mxu0
    %6364 = vmatpush.bf16.msra.mxu0 %v5226
    %6365 = vmatpush.bf16.msra.mxu0 %v5219
    %6366 = vmatpush.bf16.msra.mxu0 %v5212
    %6367 = vmatpush.bf16.msra.mxu0 %v5205
    %6368 = vmatpush.bf16.msra.mxu0 %v5198
    %6369 = vmatpush.bf16.msra.mxu0 %v5191
    %6370 = vmatpush.bf16.msra.mxu0 %v5184
    %6371 = vmatpush.bf16.msra.mxu0 %v5177
    %6372 = vmatmul.bf16.gmra.mxu0 %v3175
    %v6373 = vpop.f32.mrf.mxu0
    %v6374 = vadd.f32 %v6360, %v6373
    %v6375 = vpop.f32.mrf.mxu0
    %v6376 = vadd.f32 %v6362, %v6375
    %6377 = vdwg.mxu0
    %6378 = vmatpush.bf16.msra.mxu0 %v5282
    %6379 = vmatpush.bf16.msra.mxu0 %v5275
    %6380 = vmatpush.bf16.msra.mxu0 %v5268
    %6381 = vmatpush.bf16.msra.mxu0 %v5261
    %6382 = vmatpush.bf16.msra.mxu0 %v5254
    %6383 = vmatpush.bf16.msra.mxu0 %v5247
    %6384 = vmatpush.bf16.msra.mxu0 %v5240
    %6385 = vmatpush.bf16.msra.mxu0 %v5233
    %6386 = vmatmul.bf16.gmra.mxu0 %v3176
    %v6387 = vpop.f32.mrf.mxu0
    %v6388 = vadd.f32 %v6374, %v6387
    %v6389 = vpop.f32.mrf.mxu0
    %v6390 = vadd.f32 %v6376, %v6389
    %6391 = vdwg.mxu0
    %6392 = vmatpush.bf16.msra.mxu0 %v5338
    %6393 = vmatpush.bf16.msra.mxu0 %v5331
    %6394 = vmatpush.bf16.msra.mxu0 %v5324
    %6395 = vmatpush.bf16.msra.mxu0 %v5317
    %6396 = vmatpush.bf16.msra.mxu0 %v5310
    %6397 = vmatpush.bf16.msra.mxu0 %v5303
    %6398 = vmatpush.bf16.msra.mxu0 %v5296
    %6399 = vmatpush.bf16.msra.mxu0 %v5289
    %6400 = vmatmul.bf16.gmra.mxu0 %v3177
    %v6401 = vpop.f32.mrf.mxu0
    %v6402 = vadd.f32 %v6388, %v6401
    %v6403 = vpop.f32.mrf.mxu0
    %v6404 = vadd.f32 %v6390, %v6403
    %6405 = vdwg.mxu0
    %6406 = vmatpush.bf16.msra.mxu0 %v5394
    %6407 = vmatpush.bf16.msra.mxu0 %v5387
    %6408 = vmatpush.bf16.msra.mxu0 %v5380
    %6409 = vmatpush.bf16.msra.mxu0 %v5373
    %6410 = vmatpush.bf16.msra.mxu0 %v5366
    %6411 = vmatpush.bf16.msra.mxu0 %v5359
    %6412 = vmatpush.bf16.msra.mxu0 %v5352
    %6413 = vmatpush.bf16.msra.mxu0 %v5345
    %6414 = vmatmul.bf16.gmra.mxu0 %v3178
    %v6415 = vpop.f32.mrf.mxu0
    %v6416 = vadd.f32 %v6402, %v6415
    %v6417 = vpop.f32.mrf.mxu0
    %v6418 = vadd.f32 %v6404, %v6417
    %6419 = vdwg.mxu0
    %6420 = vmatpush.bf16.msra.mxu0 %v5450
    %6421 = vmatpush.bf16.msra.mxu0 %v5443
    %6422 = vmatpush.bf16.msra.mxu0 %v5436
    %6423 = vmatpush.bf16.msra.mxu0 %v5429
    %6424 = vmatpush.bf16.msra.mxu0 %v5422
    %6425 = vmatpush.bf16.msra.mxu0 %v5415
    %6426 = vmatpush.bf16.msra.mxu0 %v5408
    %6427 = vmatpush.bf16.msra.mxu0 %v5401
    %6428 = vmatmul.bf16.gmra.mxu0 %v3179
    %v6429 = vpop.f32.mrf.mxu0
    %v6430 = vadd.f32 %v6416, %v6429
    %v6431 = vpop.f32.mrf.mxu0
    %v6432 = vadd.f32 %v6418, %v6431
    %6433 = vdwg.mxu0
    %6434 = vmatpush.bf16.msra.mxu0 %v5506
    %6435 = vmatpush.bf16.msra.mxu0 %v5499
    %6436 = vmatpush.bf16.msra.mxu0 %v5492
    %6437 = vmatpush.bf16.msra.mxu0 %v5485
    %6438 = vmatpush.bf16.msra.mxu0 %v5478
    %6439 = vmatpush.bf16.msra.mxu0 %v5471
    %6440 = vmatpush.bf16.msra.mxu0 %v5464
    %6441 = vmatpush.bf16.msra.mxu0 %v5457
    %6442 = vmatmul.bf16.gmra.mxu0 %v3180
    %v6443 = vpop.f32.mrf.mxu0
    %v6444 = vadd.f32 %v6430, %v6443
    %v6445 = vpop.f32.mrf.mxu0
    %v6446 = vadd.f32 %v6432, %v6445
    %6447 = vdwg.mxu0
    %6448 = vmatpush.bf16.msra.mxu0 %v5562
    %6449 = vmatpush.bf16.msra.mxu0 %v5555
    %6450 = vmatpush.bf16.msra.mxu0 %v5548
    %6451 = vmatpush.bf16.msra.mxu0 %v5541
    %6452 = vmatpush.bf16.msra.mxu0 %v5534
    %6453 = vmatpush.bf16.msra.mxu0 %v5527
    %6454 = vmatpush.bf16.msra.mxu0 %v5520
    %6455 = vmatpush.bf16.msra.mxu0 %v5513
    %6456 = vmatmul.bf16.gmra.mxu0 %v3181
    %v6457 = vpop.f32.mrf.mxu0
    %v6458 = vadd.f32 %v6444, %v6457
    %v6459 = vpop.f32.mrf.mxu0
    %v6460 = vadd.f32 %v6446, %v6459
    %6461 = vdwg.mxu0
    %6462 = vmatpush.bf16.msra.mxu0 %v5171
    %6463 = vmatpush.bf16.msra.mxu0 %v5164
    %6464 = vmatpush.bf16.msra.mxu0 %v5157
    %6465 = vmatpush.bf16.msra.mxu0 %v5150
    %6466 = vmatpush.bf16.msra.mxu0 %v5143
    %6467 = vmatpush.bf16.msra.mxu0 %v5136
    %6468 = vmatpush.bf16.msra.mxu0 %v5129
    %6469 = vmatpush.bf16.msra.mxu0 %v5122
    %6470 = vmatmul.bf16.gmra.mxu0 %v3174
    %v6471 = vpop.f32.mrf.mxu0
    %v6472 = vadd.f32 %v3700, %v6471
    %v6473 = vpop.f32.mrf.mxu0
    %v6474 = vadd.f32 %v3700, %v6473
    %6475 = vdwg.mxu0
    %6476 = vmatpush.bf16.msra.mxu0 %v5227
    %6477 = vmatpush.bf16.msra.mxu0 %v5220
    %6478 = vmatpush.bf16.msra.mxu0 %v5213
    %6479 = vmatpush.bf16.msra.mxu0 %v5206
    %6480 = vmatpush.bf16.msra.mxu0 %v5199
    %6481 = vmatpush.bf16.msra.mxu0 %v5192
    %6482 = vmatpush.bf16.msra.mxu0 %v5185
    %6483 = vmatpush.bf16.msra.mxu0 %v5178
    %6484 = vmatmul.bf16.gmra.mxu0 %v3175
    %v6485 = vpop.f32.mrf.mxu0
    %v6486 = vadd.f32 %v6472, %v6485
    %v6487 = vpop.f32.mrf.mxu0
    %v6488 = vadd.f32 %v6474, %v6487
    %6489 = vdwg.mxu0
    %6490 = vmatpush.bf16.msra.mxu0 %v5283
    %6491 = vmatpush.bf16.msra.mxu0 %v5276
    %6492 = vmatpush.bf16.msra.mxu0 %v5269
    %6493 = vmatpush.bf16.msra.mxu0 %v5262
    %6494 = vmatpush.bf16.msra.mxu0 %v5255
    %6495 = vmatpush.bf16.msra.mxu0 %v5248
    %6496 = vmatpush.bf16.msra.mxu0 %v5241
    %6497 = vmatpush.bf16.msra.mxu0 %v5234
    %6498 = vmatmul.bf16.gmra.mxu0 %v3176
    %v6499 = vpop.f32.mrf.mxu0
    %v6500 = vadd.f32 %v6486, %v6499
    %v6501 = vpop.f32.mrf.mxu0
    %v6502 = vadd.f32 %v6488, %v6501
    %6503 = vdwg.mxu0
    %6504 = vmatpush.bf16.msra.mxu0 %v5339
    %6505 = vmatpush.bf16.msra.mxu0 %v5332
    %6506 = vmatpush.bf16.msra.mxu0 %v5325
    %6507 = vmatpush.bf16.msra.mxu0 %v5318
    %6508 = vmatpush.bf16.msra.mxu0 %v5311
    %6509 = vmatpush.bf16.msra.mxu0 %v5304
    %6510 = vmatpush.bf16.msra.mxu0 %v5297
    %6511 = vmatpush.bf16.msra.mxu0 %v5290
    %6512 = vmatmul.bf16.gmra.mxu0 %v3177
    %v6513 = vpop.f32.mrf.mxu0
    %v6514 = vadd.f32 %v6500, %v6513
    %v6515 = vpop.f32.mrf.mxu0
    %v6516 = vadd.f32 %v6502, %v6515
    %6517 = vdwg.mxu0
    %6518 = vmatpush.bf16.msra.mxu0 %v5395
    %6519 = vmatpush.bf16.msra.mxu0 %v5388
    %6520 = vmatpush.bf16.msra.mxu0 %v5381
    %6521 = vmatpush.bf16.msra.mxu0 %v5374
    %6522 = vmatpush.bf16.msra.mxu0 %v5367
    %6523 = vmatpush.bf16.msra.mxu0 %v5360
    %6524 = vmatpush.bf16.msra.mxu0 %v5353
    %6525 = vmatpush.bf16.msra.mxu0 %v5346
    %6526 = vmatmul.bf16.gmra.mxu0 %v3178
    %v6527 = vpop.f32.mrf.mxu0
    %v6528 = vadd.f32 %v6514, %v6527
    %v6529 = vpop.f32.mrf.mxu0
    %v6530 = vadd.f32 %v6516, %v6529
    %6531 = vdwg.mxu0
    %6532 = vmatpush.bf16.msra.mxu0 %v5451
    %6533 = vmatpush.bf16.msra.mxu0 %v5444
    %6534 = vmatpush.bf16.msra.mxu0 %v5437
    %6535 = vmatpush.bf16.msra.mxu0 %v5430
    %6536 = vmatpush.bf16.msra.mxu0 %v5423
    %6537 = vmatpush.bf16.msra.mxu0 %v5416
    %6538 = vmatpush.bf16.msra.mxu0 %v5409
    %6539 = vmatpush.bf16.msra.mxu0 %v5402
    %6540 = vmatmul.bf16.gmra.mxu0 %v3179
    %v6541 = vpop.f32.mrf.mxu0
    %v6542 = vadd.f32 %v6528, %v6541
    %v6543 = vpop.f32.mrf.mxu0
    %v6544 = vadd.f32 %v6530, %v6543
    %6545 = vdwg.mxu0
    %6546 = vmatpush.bf16.msra.mxu0 %v5507
    %6547 = vmatpush.bf16.msra.mxu0 %v5500
    %6548 = vmatpush.bf16.msra.mxu0 %v5493
    %6549 = vmatpush.bf16.msra.mxu0 %v5486
    %6550 = vmatpush.bf16.msra.mxu0 %v5479
    %6551 = vmatpush.bf16.msra.mxu0 %v5472
    %6552 = vmatpush.bf16.msra.mxu0 %v5465
    %6553 = vmatpush.bf16.msra.mxu0 %v5458
    %6554 = vmatmul.bf16.gmra.mxu0 %v3180
    %v6555 = vpop.f32.mrf.mxu0
    %v6556 = vadd.f32 %v6542, %v6555
    %v6557 = vpop.f32.mrf.mxu0
    %v6558 = vadd.f32 %v6544, %v6557
    %6559 = vdwg.mxu0
    %6560 = vmatpush.bf16.msra.mxu0 %v5563
    %6561 = vmatpush.bf16.msra.mxu0 %v5556
    %6562 = vmatpush.bf16.msra.mxu0 %v5549
    %6563 = vmatpush.bf16.msra.mxu0 %v5542
    %6564 = vmatpush.bf16.msra.mxu0 %v5535
    %6565 = vmatpush.bf16.msra.mxu0 %v5528
    %6566 = vmatpush.bf16.msra.mxu0 %v5521
    %6567 = vmatpush.bf16.msra.mxu0 %v5514
    %6568 = vmatmul.bf16.gmra.mxu0 %v3181
    %v6569 = vpop.f32.mrf.mxu0
    %v6570 = vadd.f32 %v6556, %v6569
    %v6571 = vpop.f32.mrf.mxu0
    %v6572 = vadd.f32 %v6558, %v6571
    %6573 = vdwg.mxu0
    %6574 = vmatpush.bf16.msra.mxu0 %v5172
    %6575 = vmatpush.bf16.msra.mxu0 %v5165
    %6576 = vmatpush.bf16.msra.mxu0 %v5158
    %6577 = vmatpush.bf16.msra.mxu0 %v5151
    %6578 = vmatpush.bf16.msra.mxu0 %v5144
    %6579 = vmatpush.bf16.msra.mxu0 %v5137
    %6580 = vmatpush.bf16.msra.mxu0 %v5130
    %6581 = vmatpush.bf16.msra.mxu0 %v5123
    %6582 = vmatmul.bf16.gmra.mxu0 %v3174
    %v6583 = vpop.f32.mrf.mxu0
    %v6584 = vadd.f32 %v3701, %v6583
    %v6585 = vpop.f32.mrf.mxu0
    %v6586 = vadd.f32 %v3701, %v6585
    %6587 = vdwg.mxu0
    %6588 = vmatpush.bf16.msra.mxu0 %v5228
    %6589 = vmatpush.bf16.msra.mxu0 %v5221
    %6590 = vmatpush.bf16.msra.mxu0 %v5214
    %6591 = vmatpush.bf16.msra.mxu0 %v5207
    %6592 = vmatpush.bf16.msra.mxu0 %v5200
    %6593 = vmatpush.bf16.msra.mxu0 %v5193
    %6594 = vmatpush.bf16.msra.mxu0 %v5186
    %6595 = vmatpush.bf16.msra.mxu0 %v5179
    %6596 = vmatmul.bf16.gmra.mxu0 %v3175
    %v6597 = vpop.f32.mrf.mxu0
    %v6598 = vadd.f32 %v6584, %v6597
    %v6599 = vpop.f32.mrf.mxu0
    %v6600 = vadd.f32 %v6586, %v6599
    %6601 = vdwg.mxu0
    %6602 = vmatpush.bf16.msra.mxu0 %v5284
    %6603 = vmatpush.bf16.msra.mxu0 %v5277
    %6604 = vmatpush.bf16.msra.mxu0 %v5270
    %6605 = vmatpush.bf16.msra.mxu0 %v5263
    %6606 = vmatpush.bf16.msra.mxu0 %v5256
    %6607 = vmatpush.bf16.msra.mxu0 %v5249
    %6608 = vmatpush.bf16.msra.mxu0 %v5242
    %6609 = vmatpush.bf16.msra.mxu0 %v5235
    %6610 = vmatmul.bf16.gmra.mxu0 %v3176
    %v6611 = vpop.f32.mrf.mxu0
    %v6612 = vadd.f32 %v6598, %v6611
    %v6613 = vpop.f32.mrf.mxu0
    %v6614 = vadd.f32 %v6600, %v6613
    %6615 = vdwg.mxu0
    %6616 = vmatpush.bf16.msra.mxu0 %v5340
    %6617 = vmatpush.bf16.msra.mxu0 %v5333
    %6618 = vmatpush.bf16.msra.mxu0 %v5326
    %6619 = vmatpush.bf16.msra.mxu0 %v5319
    %6620 = vmatpush.bf16.msra.mxu0 %v5312
    %6621 = vmatpush.bf16.msra.mxu0 %v5305
    %6622 = vmatpush.bf16.msra.mxu0 %v5298
    %6623 = vmatpush.bf16.msra.mxu0 %v5291
    %6624 = vmatmul.bf16.gmra.mxu0 %v3177
    %v6625 = vpop.f32.mrf.mxu0
    %v6626 = vadd.f32 %v6612, %v6625
    %v6627 = vpop.f32.mrf.mxu0
    %v6628 = vadd.f32 %v6614, %v6627
    %6629 = vdwg.mxu0
    %6630 = vmatpush.bf16.msra.mxu0 %v5396
    %6631 = vmatpush.bf16.msra.mxu0 %v5389
    %6632 = vmatpush.bf16.msra.mxu0 %v5382
    %6633 = vmatpush.bf16.msra.mxu0 %v5375
    %6634 = vmatpush.bf16.msra.mxu0 %v5368
    %6635 = vmatpush.bf16.msra.mxu0 %v5361
    %6636 = vmatpush.bf16.msra.mxu0 %v5354
    %6637 = vmatpush.bf16.msra.mxu0 %v5347
    %6638 = vmatmul.bf16.gmra.mxu0 %v3178
    %v6639 = vpop.f32.mrf.mxu0
    %v6640 = vadd.f32 %v6626, %v6639
    %v6641 = vpop.f32.mrf.mxu0
    %v6642 = vadd.f32 %v6628, %v6641
    %6643 = vdwg.mxu0
    %6644 = vmatpush.bf16.msra.mxu0 %v5452
    %6645 = vmatpush.bf16.msra.mxu0 %v5445
    %6646 = vmatpush.bf16.msra.mxu0 %v5438
    %6647 = vmatpush.bf16.msra.mxu0 %v5431
    %6648 = vmatpush.bf16.msra.mxu0 %v5424
    %6649 = vmatpush.bf16.msra.mxu0 %v5417
    %6650 = vmatpush.bf16.msra.mxu0 %v5410
    %6651 = vmatpush.bf16.msra.mxu0 %v5403
    %6652 = vmatmul.bf16.gmra.mxu0 %v3179
    %v6653 = vpop.f32.mrf.mxu0
    %v6654 = vadd.f32 %v6640, %v6653
    %v6655 = vpop.f32.mrf.mxu0
    %v6656 = vadd.f32 %v6642, %v6655
    %6657 = vdwg.mxu0
    %6658 = vmatpush.bf16.msra.mxu0 %v5508
    %6659 = vmatpush.bf16.msra.mxu0 %v5501
    %6660 = vmatpush.bf16.msra.mxu0 %v5494
    %6661 = vmatpush.bf16.msra.mxu0 %v5487
    %6662 = vmatpush.bf16.msra.mxu0 %v5480
    %6663 = vmatpush.bf16.msra.mxu0 %v5473
    %6664 = vmatpush.bf16.msra.mxu0 %v5466
    %6665 = vmatpush.bf16.msra.mxu0 %v5459
    %6666 = vmatmul.bf16.gmra.mxu0 %v3180
    %v6667 = vpop.f32.mrf.mxu0
    %v6668 = vadd.f32 %v6654, %v6667
    %v6669 = vpop.f32.mrf.mxu0
    %v6670 = vadd.f32 %v6656, %v6669
    %6671 = vdwg.mxu0
    %6672 = vmatpush.bf16.msra.mxu0 %v5564
    %6673 = vmatpush.bf16.msra.mxu0 %v5557
    %6674 = vmatpush.bf16.msra.mxu0 %v5550
    %6675 = vmatpush.bf16.msra.mxu0 %v5543
    %6676 = vmatpush.bf16.msra.mxu0 %v5536
    %6677 = vmatpush.bf16.msra.mxu0 %v5529
    %6678 = vmatpush.bf16.msra.mxu0 %v5522
    %6679 = vmatpush.bf16.msra.mxu0 %v5515
    %6680 = vmatmul.bf16.gmra.mxu0 %v3181
    %v6681 = vpop.f32.mrf.mxu0
    %v6682 = vadd.f32 %v6668, %v6681
    %v6683 = vpop.f32.mrf.mxu0
    %v6684 = vadd.f32 %v6670, %v6683
    %6685 = vdwg.mxu0
    %6686 = vmatpush.bf16.msra.mxu0 %v5173
    %6687 = vmatpush.bf16.msra.mxu0 %v5166
    %6688 = vmatpush.bf16.msra.mxu0 %v5159
    %6689 = vmatpush.bf16.msra.mxu0 %v5152
    %6690 = vmatpush.bf16.msra.mxu0 %v5145
    %6691 = vmatpush.bf16.msra.mxu0 %v5138
    %6692 = vmatpush.bf16.msra.mxu0 %v5131
    %6693 = vmatpush.bf16.msra.mxu0 %v5124
    %6694 = vmatmul.bf16.gmra.mxu0 %v3174
    %v6695 = vpop.f32.mrf.mxu0
    %v6696 = vadd.f32 %v3702, %v6695
    %v6697 = vpop.f32.mrf.mxu0
    %v6698 = vadd.f32 %v3702, %v6697
    %6699 = vdwg.mxu0
    %6700 = vmatpush.bf16.msra.mxu0 %v5229
    %6701 = vmatpush.bf16.msra.mxu0 %v5222
    %6702 = vmatpush.bf16.msra.mxu0 %v5215
    %6703 = vmatpush.bf16.msra.mxu0 %v5208
    %6704 = vmatpush.bf16.msra.mxu0 %v5201
    %6705 = vmatpush.bf16.msra.mxu0 %v5194
    %6706 = vmatpush.bf16.msra.mxu0 %v5187
    %6707 = vmatpush.bf16.msra.mxu0 %v5180
    %6708 = vmatmul.bf16.gmra.mxu0 %v3175
    %v6709 = vpop.f32.mrf.mxu0
    %v6710 = vadd.f32 %v6696, %v6709
    %v6711 = vpop.f32.mrf.mxu0
    %v6712 = vadd.f32 %v6698, %v6711
    %6713 = vdwg.mxu0
    %6714 = vmatpush.bf16.msra.mxu0 %v5285
    %6715 = vmatpush.bf16.msra.mxu0 %v5278
    %6716 = vmatpush.bf16.msra.mxu0 %v5271
    %6717 = vmatpush.bf16.msra.mxu0 %v5264
    %6718 = vmatpush.bf16.msra.mxu0 %v5257
    %6719 = vmatpush.bf16.msra.mxu0 %v5250
    %6720 = vmatpush.bf16.msra.mxu0 %v5243
    %6721 = vmatpush.bf16.msra.mxu0 %v5236
    %6722 = vmatmul.bf16.gmra.mxu0 %v3176
    %v6723 = vpop.f32.mrf.mxu0
    %v6724 = vadd.f32 %v6710, %v6723
    %v6725 = vpop.f32.mrf.mxu0
    %v6726 = vadd.f32 %v6712, %v6725
    %6727 = vdwg.mxu0
    %6728 = vmatpush.bf16.msra.mxu0 %v5341
    %6729 = vmatpush.bf16.msra.mxu0 %v5334
    %6730 = vmatpush.bf16.msra.mxu0 %v5327
    %6731 = vmatpush.bf16.msra.mxu0 %v5320
    %6732 = vmatpush.bf16.msra.mxu0 %v5313
    %6733 = vmatpush.bf16.msra.mxu0 %v5306
    %6734 = vmatpush.bf16.msra.mxu0 %v5299
    %6735 = vmatpush.bf16.msra.mxu0 %v5292
    %6736 = vmatmul.bf16.gmra.mxu0 %v3177
    %v6737 = vpop.f32.mrf.mxu0
    %v6738 = vadd.f32 %v6724, %v6737
    %v6739 = vpop.f32.mrf.mxu0
    %v6740 = vadd.f32 %v6726, %v6739
    %6741 = vdwg.mxu0
    %6742 = vmatpush.bf16.msra.mxu0 %v5397
    %6743 = vmatpush.bf16.msra.mxu0 %v5390
    %6744 = vmatpush.bf16.msra.mxu0 %v5383
    %6745 = vmatpush.bf16.msra.mxu0 %v5376
    %6746 = vmatpush.bf16.msra.mxu0 %v5369
    %6747 = vmatpush.bf16.msra.mxu0 %v5362
    %6748 = vmatpush.bf16.msra.mxu0 %v5355
    %6749 = vmatpush.bf16.msra.mxu0 %v5348
    %6750 = vmatmul.bf16.gmra.mxu0 %v3178
    %v6751 = vpop.f32.mrf.mxu0
    %v6752 = vadd.f32 %v6738, %v6751
    %v6753 = vpop.f32.mrf.mxu0
    %v6754 = vadd.f32 %v6740, %v6753
    %6755 = vdwg.mxu0
    %6756 = vmatpush.bf16.msra.mxu0 %v5453
    %6757 = vmatpush.bf16.msra.mxu0 %v5446
    %6758 = vmatpush.bf16.msra.mxu0 %v5439
    %6759 = vmatpush.bf16.msra.mxu0 %v5432
    %6760 = vmatpush.bf16.msra.mxu0 %v5425
    %6761 = vmatpush.bf16.msra.mxu0 %v5418
    %6762 = vmatpush.bf16.msra.mxu0 %v5411
    %6763 = vmatpush.bf16.msra.mxu0 %v5404
    %6764 = vmatmul.bf16.gmra.mxu0 %v3179
    %v6765 = vpop.f32.mrf.mxu0
    %v6766 = vadd.f32 %v6752, %v6765
    %v6767 = vpop.f32.mrf.mxu0
    %v6768 = vadd.f32 %v6754, %v6767
    %6769 = vdwg.mxu0
    %6770 = vmatpush.bf16.msra.mxu0 %v5509
    %6771 = vmatpush.bf16.msra.mxu0 %v5502
    %6772 = vmatpush.bf16.msra.mxu0 %v5495
    %6773 = vmatpush.bf16.msra.mxu0 %v5488
    %6774 = vmatpush.bf16.msra.mxu0 %v5481
    %6775 = vmatpush.bf16.msra.mxu0 %v5474
    %6776 = vmatpush.bf16.msra.mxu0 %v5467
    %6777 = vmatpush.bf16.msra.mxu0 %v5460
    %6778 = vmatmul.bf16.gmra.mxu0 %v3180
    %v6779 = vpop.f32.mrf.mxu0
    %v6780 = vadd.f32 %v6766, %v6779
    %v6781 = vpop.f32.mrf.mxu0
    %v6782 = vadd.f32 %v6768, %v6781
    %6783 = vdwg.mxu0
    %6784 = vmatpush.bf16.msra.mxu0 %v5565
    %6785 = vmatpush.bf16.msra.mxu0 %v5558
    %6786 = vmatpush.bf16.msra.mxu0 %v5551
    %6787 = vmatpush.bf16.msra.mxu0 %v5544
    %6788 = vmatpush.bf16.msra.mxu0 %v5537
    %6789 = vmatpush.bf16.msra.mxu0 %v5530
    %6790 = vmatpush.bf16.msra.mxu0 %v5523
    %6791 = vmatpush.bf16.msra.mxu0 %v5516
    %6792 = vmatmul.bf16.gmra.mxu0 %v3181
    %v6793 = vpop.f32.mrf.mxu0
    %v6794 = vadd.f32 %v6780, %v6793
    %v6795 = vpop.f32.mrf.mxu0
    %v6796 = vadd.f32 %v6782, %v6795
    %6797 = vdwg.mxu0
    %v6798 = vsub.f32 0.0, %v6122
    %v6799 = vsub.f32 0.0, %v6234
    %v6800 = vsub.f32 0.0, %v6346
    %v6801 = vsub.f32 0.0, %v6458
    %v6802 = vsub.f32 0.0, %v6570
    %v6803 = vsub.f32 0.0, %v6682
    %v6804 = vsub.f32 0.0, %v6794
    %v6805 = vsub.f32 0.0, %v6124
    %v6806 = vsub.f32 0.0, %v6236
    %v6807 = vsub.f32 0.0, %v6348
    %v6808 = vsub.f32 0.0, %v6460
    %v6809 = vsub.f32 0.0, %v6572
    %v6810 = vsub.f32 0.0, %v6684
    %v6811 = vsub.f32 0.0, %v6796
    %v6812 = vmul.f32 %v6798, 1.442695
    %v6813 = vpow.pop %v6812
    %v6814 = vmul.f32 %v6799, 1.442695
    %v6815 = vpow.pop %v6814
    %v6816 = vmul.f32 %v6800, 1.442695
    %v6817 = vpow.pop %v6816
    %v6818 = vmul.f32 %v6801, 1.442695
    %v6819 = vpow.pop %v6818
    %v6820 = vmul.f32 %v6802, 1.442695
    %v6821 = vpow.pop %v6820
    %v6822 = vmul.f32 %v6803, 1.442695
    %v6823 = vpow.pop %v6822
    %v6824 = vmul.f32 %v6804, 1.442695
    %v6825 = vpow.pop %v6824
    %v6826 = vmul.f32 %v6805, 1.442695
    %v6827 = vpow.pop %v6826
    %v6828 = vmul.f32 %v6806, 1.442695
    %v6829 = vpow.pop %v6828
    %v6830 = vmul.f32 %v6807, 1.442695
    %v6831 = vpow.pop %v6830
    %v6832 = vmul.f32 %v6808, 1.442695
    %v6833 = vpow.pop %v6832
    %v6834 = vmul.f32 %v6809, 1.442695
    %v6835 = vpow.pop %v6834
    %v6836 = vmul.f32 %v6810, 1.442695
    %v6837 = vpow.pop %v6836
    %v6838 = vmul.f32 %v6811, 1.442695
    %v6839 = vpow.pop %v6838
    %v6840 = vadd.f32 %v6813, 1.0
    %v6841 = vadd.f32 %v6815, 1.0
    %v6842 = vadd.f32 %v6817, 1.0
    %v6843 = vadd.f32 %v6819, 1.0
    %v6844 = vadd.f32 %v6821, 1.0
    %v6845 = vadd.f32 %v6823, 1.0
    %v6846 = vadd.f32 %v6825, 1.0
    %v6847 = vadd.f32 %v6827, 1.0
    %v6848 = vadd.f32 %v6829, 1.0
    %v6849 = vadd.f32 %v6831, 1.0
    %v6850 = vadd.f32 %v6833, 1.0
    %v6851 = vadd.f32 %v6835, 1.0
    %v6852 = vadd.f32 %v6837, 1.0
    %v6853 = vadd.f32 %v6839, 1.0
    %v6854 = vrcp.pop %v6840
    %v6855 = vrcp.pop %v6841
    %v6856 = vrcp.pop %v6842
    %v6857 = vrcp.pop %v6843
    %v6858 = vrcp.pop %v6844
    %v6859 = vrcp.pop %v6845
    %v6860 = vrcp.pop %v6846
    %v6861 = vrcp.pop %v6847
    %v6862 = vrcp.pop %v6848
    %v6863 = vrcp.pop %v6849
    %v6864 = vrcp.pop %v6850
    %v6865 = vrcp.pop %v6851
    %v6866 = vrcp.pop %v6852
    %v6867 = vrcp.pop %v6853
    %6868 = vst [vmem:[#allocation14] sm:$0xff] %v6854
    %6869 = vst [vmem:[#allocation14 + $0x8] sm:$0xff] %v6855
    %6870 = vst [vmem:[#allocation14 + $0x10] sm:$0xff] %v6856
    %6871 = vst [vmem:[#allocation14 + $0x18] sm:$0xff] %v6857
    %6872 = vst [vmem:[#allocation14 + $0x20] sm:$0xff] %v6858
    %6873 = vst [vmem:[#allocation14 + $0x28] sm:$0xff] %v6859
    %6874 = vst [vmem:[#allocation14 + $0x30] sm:$0xff] %v6860
    %6875 = vst [vmem:[#allocation14 + $0x38] sm:$0xff] %v6861
    %6876 = vst [vmem:[#allocation14 + $0x40] sm:$0xff] %v6862
    %6877 = vst [vmem:[#allocation14 + $0x48] sm:$0xff] %v6863
    %6878 = vst [vmem:[#allocation14 + $0x50] sm:$0xff] %v6864
    %6879 = vst [vmem:[#allocation14 + $0x58] sm:$0xff] %v6865
    %6880 = vst [vmem:[#allocation14 + $0x60] sm:$0xff] %v6866
    %6881 = vst [vmem:[#allocation14 + $0x68] sm:$0xff] %v6867
    // Predicated region
    $region58: #{tpu_custom_call.1} parent=1 // pred_check
      _
    $region59: #{tpu_custom_call.1} parent=1 // pred_check_branch
      %6883 = sbr.rel (0) target = $region61
    $region60: #{tpu_custom_call.1} parent=1 // pred_region
      %6885 = vsyncadd [#allocation4], 0
      %s6886 = sshll.u32 [#allocation14], 4
      %s6887 = int_to_ptr.vmem [resolvable:$true] %s6886
      %s6888 = sshll.u32 %s7, 4
      %s6889 = int_to_ptr.hbm [resolvable:$true] %s6888
      %6894 = dma.vmem_to_hbm [thread:$0]  %s6887, 1792, %s6889, [#allocation4], 896, 896, 56
    $region61: #{tpu_custom_call.1} parent=1 // pred_fallthru
      _
    // Predicated region
    $region62: #{tpu_custom_call.1} parent=1 // pred_check
      _
    $region63: #{tpu_custom_call.1} parent=1 // pred_check_branch
      %6896 = sbr.rel (0) target = $region65
    $region64: #{tpu_custom_call.1} parent=1 // pred_region
      %6898 = dma.done [#allocation4], 1792
    $region65: #{tpu_custom_call.1} parent=1 // pred_fallthru
      _
    %6899 = vsyncpa [#allocation3], 1
    %6900 = vsyncpa [#allocation6], 1
    %6901 = vsyncpa [#allocation9], 1
    %6902 = vsyncpa [#allocation12], 1
    %6903 = vsyncpa [#allocation4], 1

// kernel: tpu_custom_call.1
$region0: #{tpu_custom_call.1}
  #allocation0 [shape = 'u32[]', space=smem, size = 0x4, offset = 0x4, fixed_abs, tag = 'smem constant byte address 0x4 - core index']
  #allocation1 [shape = 'u32[72,128]{1,0:T(1,128)}', space=vmem, size = 0x9000, scoped, tag = 'internal scratch']
  %s0 = inlined_call_operand.hbm [shape: f32[16,512], index: 0, kind: input, shape index: {}]
  %s1 = inlined_call_operand.hbm [shape: bf16[512,512], index: 1, kind: input, shape index: {}]
  %s2 = inlined_call_operand.hbm [shape: f32[1,512], index: 2, kind: input, shape index: {}]
  %s3 = inlined_call_operand.hbm [shape: bf16[512,1024], index: 3, kind: input, shape index: {}]
  %s4 = inlined_call_operand.hbm [shape: f32[1,1024], index: 4, kind: input, shape index: {}]
  %s5 = inlined_call_operand.hbm [shape: bf16[1024,896], index: 5, kind: input, shape index: {}]
  %s6 = inlined_call_operand.hbm [shape: f32[1,896], index: 6, kind: input, shape index: {}]
  %s7 = inlined_call_operand.hbm [shape: f32[16,896], index: 7, kind: output, shape index: {}]
  %s8 = sld [smem:[#allocation0]]
  $region66: #{tpu_custom_call.1} parent=0
    _
  %s10 = ssub.s32 1, %s8
  %s11 = scalar_select 0, %s10, %s8
  $region1: #{tpu_custom_call.1} parent=0
    #allocation2 [shape = 'u8[32768]{0}', space=vmem, size = 0x8000, scoped, tag = 'input window, operand 0, single buffered']
    #allocation3 [shape = 's32[1]{0}', space=sflag, size = 0x4, scoped, tag = 'scoped memory for tpu_custom_call.1']
    #allocation4 [shape = 's32[1]{0}', space=sflag, size = 0x4, scoped, tag = 'scoped memory for tpu_custom_call.1']
    #allocation5 [shape = 'u8[524288]{0}', space=vmem, size = 0x80000, scoped, tag = 'input window, operand 1, single buffered']
    #allocation6 [shape = 's32[1]{0}', space=sflag, size = 0x4, scoped, tag = 'scoped memory for tpu_custom_call.1']
    #allocation7 [shape = 'u8[2048]{0}', space=vmem, size = 0x800, scoped, tag = 'input window, operand 2, single buffered']
    #allocation8 [shape = 'u8[1048576]{0}', space=vmem, size = 0x100000, scoped, tag = 'input window, operand 3, single buffered']
    #allocation9 [shape = 's32[1]{0}', space=sflag, size = 0x4, scoped, tag = 'scoped memory for tpu_custom_call.1']
    #allocation10 [shape = 'u8[4096]{0}', space=vmem, size = 0x1000, scoped, tag = 'input window, operand 4, single buffered']
    #allocation11 [shape = 'u8[1835008]{0}', space=vmem, size = 0x1c0000, scoped, tag = 'input window, operand 5, single buffered']
    #allocation12 [shape = 's32[1]{0}', space=sflag, size = 0x4, scoped, tag = 'scoped memory for tpu_custom_call.1']
    #allocation13 [shape = 'u8[3584]{0}', space=vmem, size = 0x1000, scoped, tag = 'input window, operand 6, single buffered']
    #allocation14 [shape = 'u8[57344]{0}', space=vmem, size = 0xe000, scoped, tag = 'output window, operand 0, single buffered']
    %12 = vsyncpa [#allocation3], 0
    %13 = vsyncpa [#allocation6], 0
    %14 = vsyncpa [#allocation9], 0
    %15 = vsyncpa [#allocation12], 0
    %16 = vsyncpa [#allocation4], 0
    // Predicated region
    $region2: #{tpu_custom_call.1} parent=1 // pred_check
      _
    $region3: #{tpu_custom_call.1} parent=1 // pred_check_branch
      %18 = sbr.rel (0) target = $region5
    $region4: #{tpu_custom_call.1} parent=1 // pred_region
      %20 = vsyncadd [#allocation3], 0
      %s21 = sshll.u32 %s0, 4
      %s22 = int_to_ptr.hbm [resolvable:$true] %s21
      %s23 = sshll.u32 [#allocation2], 4
      %s24 = int_to_ptr.vmem [resolvable:$true] %s23
      %29 = dma.hbm_to_vmem [thread:$0]  %s22, 1024, %s24, [#allocation3], 512, 512, 32
    $region5: #{tpu_custom_call.1} parent=1 // pred_fallthru
      _
    // Predicated region
    $region6: #{tpu_custom_call.1} parent=1 // pred_check
      _
    $region7: #{tpu_custom_call.1} parent=1 // pred_check_branch
      %31 = sbr.rel (0) target = $region9
    $region8: #{tpu_custom_call.1} parent=1 // pred_region
      %33 = vsyncadd [#allocation6], 0
      %s34 = sshll.u32 %s1, 4
      %s35 = int_to_ptr.hbm [resolvable:$true] %s34
      %s36 = sshll.u32 [#allocation5], 4
      %s37 = int_to_ptr.vmem [resolvable:$true] %s36
      %42 = dma.hbm_to_vmem [thread:$0]  %s35, 16384, %s37, [#allocation6], 256, 256, 16
    $region9: #{tpu_custom_call.1} parent=1 // pred_fallthru
      _
    // Predicated region
    $region10: #{tpu_custom_call.1} parent=1 // pred_check
      _
    $region11: #{tpu_custom_call.1} parent=1 // pred_check_branch
      %44 = sbr.rel (0) target = $region13
    $region12: #{tpu_custom_call.1} parent=1 // pred_region
      %46 = vsyncadd [#allocation6], 0
      %s48 = sshll.u32 %s2, 4
      %s49 = int_to_ptr.hbm [resolvable:$true] %s48
      %s50 = sshll.u32 [#allocation7], 4
      %s51 = int_to_ptr.vmem [resolvable:$true] %s50
      %53 = dma.hbm_to_vmem [thread:$0]  %s49, 64, %s51, [#allocation6]
    $region13: #{tpu_custom_call.1} parent=1 // pred_fallthru
      _
    // Predicated region
    $region14: #{tpu_custom_call.1} parent=1 // pred_check
      _
    $region15: #{tpu_custom_call.1} parent=1 // pred_check_branch
      %55 = sbr.rel (0) target = $region17
    $region16: #{tpu_custom_call.1} parent=1 // pred_region
      %57 = vsyncadd [#allocation9], 0
      %s58 = sshll.u32 %s3, 4
      %s59 = int_to_ptr.hbm [resolvable:$true] %s58
      %s60 = sshll.u32 [#allocation8], 4
      %s61 = int_to_ptr.vmem [resolvable:$true] %s60
      %66 = dma.hbm_to_vmem [thread:$0]  %s59, 32768, %s61, [#allocation9], 512, 512, 32
    $region17: #{tpu_custom_call.1} parent=1 // pred_fallthru
      _
    // Predicated region
    $region18: #{tpu_custom_call.1} parent=1 // pred_check
      _
    $region19: #{tpu_custom_call.1} parent=1 // pred_check_branch
      %68 = sbr.rel (0) target = $region21
    $region20: #{tpu_custom_call.1} parent=1 // pred_region
      %70 = vsyncadd [#allocation9], 0
      %s72 = sshll.u32 %s4, 4
      %s73 = int_to_ptr.hbm [resolvable:$true] %s72
      %s74 = sshll.u32 [#allocation10], 4
      %s75 = int_to_ptr.vmem [resolvable:$true] %s74
      %77 = dma.hbm_to_vmem [thread:$0]  %s73, 128, %s75, [#allocation9]
    $region21: #{tpu_custom_call.1} parent=1 // pred_fallthru
      _
    // Predicated region
    $region22: #{tpu_custom_call.1} parent=1 // pred_check
      _
    $region23: #{tpu_custom_call.1} parent=1 // pred_check_branch
      %79 = sbr.rel (0) target = $region25
    $region24: #{tpu_custom_call.1} parent=1 // pred_region
      %81 = vsyncadd [#allocation12], 0
      %s82 = sshll.u32 %s5, 4
      %s83 = int_to_ptr.hbm [resolvable:$true] %s82
      %s84 = sshll.u32 [#allocation11], 4
      %s85 = int_to_ptr.vmem [resolvable:$true] %s84
      %90 = dma.hbm_to_vmem [thread:$0]  %s83, 57344, %s85, [#allocation12], 448, 448, 28
    $region25: #{tpu_custom_call.1} parent=1 // pred_fallthru
      _
    // Predicated region
    $region26: #{tpu_custom_call.1} parent=1 // pred_check
      _
    $region27: #{tpu_custom_call.1} parent=1 // pred_check_branch
      %92 = sbr.rel (0) target = $region29
    $region28: #{tpu_custom_call.1} parent=1 // pred_region
      %94 = vsyncadd [#allocation12], 0
      %s96 = sshll.u32 %s6, 4
      %s97 = int_to_ptr.hbm [resolvable:$true] %s96
      %s98 = sshll.u32 [#allocation13], 4
      %s99 = int_to_ptr.vmem [resolvable:$true] %s98
      %101 = dma.hbm_to_vmem [thread:$0]  %s97, 112, %s99, [#allocation12]
    $region29: #{tpu_custom_call.1} parent=1 // pred_fallthru
      _
    // Predicated region
    $region30: #{tpu_custom_call.1} parent=1 // pred_check
      _
    $region31: #{tpu_custom_call.1} parent=1 // pred_check_branch
      %103 = sbr.rel (0) target = $region33
    $region32: #{tpu_custom_call.1} parent=1 // pred_region
      %105 = dma.done [#allocation3], 1024
    $region33: #{tpu_custom_call.1} parent=1 // pred_fallthru
      _
    // Predicated region
    $region34: #{tpu_custom_call.1} parent=1 // pred_check
      _
    $region35: #{tpu_custom_call.1} parent=1 // pred_check_branch
      %107 = sbr.rel (0) target = $region37
    $region36: #{tpu_custom_call.1} parent=1 // pred_region
      %109 = dma.done [#allocation6], 16384
    $region37: #{tpu_custom_call.1} parent=1 // pred_fallthru
      _
    // Predicated region
    $region38: #{tpu_custom_call.1} parent=1 // pred_check
      _
    $region39: #{tpu_custom_call.1} parent=1 // pred_check_branch
      %111 = sbr.rel (0) target = $region41
    $region40: #{tpu_custom_call.1} parent=1 // pred_region
      %113 = dma.done [#allocation6], 64
    $region41: #{tpu_custom_call.1} parent=1 // pred_fallthru
      _
    // Predicated region
    $region42: #{tpu_custom_call.1} parent=1 // pred_check
      _
    $region43: #{tpu_custom_call.1} parent=1 // pred_check_branch
      %115 = sbr.rel (0) target = $region45
    $region44: #{tpu_custom_call.1} parent=1 // pred_region
      %117 = dma.done [#allocation9], 32768
    $region45: #{tpu_custom_call.1} parent=1 // pred_fallthru
      _
    // Predicated region
    $region46: #{tpu_custom_call.1} parent=1 // pred_check
      _
    $region47: #{tpu_custom_call.1} parent=1 // pred_check_branch
      %119 = sbr.rel (0) target = $region49
    $region48: #{tpu_custom_call.1} parent=1 // pred_region
      %121 = dma.done [#allocation9], 128
    $region49: #{tpu_custom_call.1} parent=1 // pred_fallthru
      _
    // Predicated region
    $region50: #{tpu_custom_call.1} parent=1 // pred_check
      _
    $region51: #{tpu_custom_call.1} parent=1 // pred_check_branch
      %123 = sbr.rel (0) target = $region53
    $region52: #{tpu_custom_call.1} parent=1 // pred_region
      %125 = dma.done [#allocation12], 57344
    $region53: #{tpu_custom_call.1} parent=1 // pred_fallthru
      _
    // Predicated region
    $region54: #{tpu_custom_call.1} parent=1 // pred_check
      _
    $region55: #{tpu_custom_call.1} parent=1 // pred_check_branch
      %127 = sbr.rel (0) target = $region57
    $region56: #{tpu_custom_call.1} parent=1 // pred_region
      %129 = dma.done [#allocation12], 112
    $region57: #{tpu_custom_call.1} parent=1 // pred_fallthru
      _
    %v130 = vld [vmem:[#allocation2] sm:$0xff]
    %v131 = vld [vmem:[#allocation2 + $0x8] sm:$0xff]
    %v132 = vld [vmem:[#allocation2 + $0x10] sm:$0xff]
    %v133 = vld [vmem:[#allocation2 + $0x18] sm:$0xff]
    %v134 = vld [vmem:[#allocation2 + $0x20] sm:$0xff]
    %v135 = vld [vmem:[#allocation2 + $0x28] sm:$0xff]
    %v136 = vld [vmem:[#allocation2 + $0x30] sm:$0xff]
    %v137 = vld [vmem:[#allocation2 + $0x38] sm:$0xff]
    %v138 = vpack.c.bf16 %v134, %v130
    %v139 = vpack.c.bf16 %v135, %v131
    %v140 = vpack.c.bf16 %v136, %v132
    %v141 = vpack.c.bf16 %v137, %v133
    %v142 = vld [vmem:[#allocation5] sm:$0xff]
    %v143 = vld [vmem:[#allocation5 + $0x8] sm:$0xff]
    %v144 = vld [vmem:[#allocation5 + $0x10] sm:$0xff]
    %v145 = vld [vmem:[#allocation5 + $0x18] sm:$0xff]
    %v146 = vld [vmem:[#allocation5 + $0x20] sm:$0xff]
    %v147 = vld [vmem:[#allocation5 + $0x28] sm:$0xff]
    %v148 = vld [vmem:[#allocation5 + $0x30] sm:$0xff]
    %v149 = vld [vmem:[#allocation5 + $0x38] sm:$0xff]
    %v150 = vld [vmem:[#allocation5 + $0x40] sm:$0xff]
    %v151 = vld [vmem:[#allocation5 + $0x48] sm:$0xff]
    %v152 = vld [vmem:[#allocation5 + $0x50] sm:$0xff]
    %v153 = vld [vmem:[#allocation5 + $0x58] sm:$0xff]
    %v154 = vld [vmem:[#allocation5 + $0x60] sm:$0xff]
    %v155 = vld [vmem:[#allocation5 + $0x68] sm:$0xff]
    %v156 = vld [vmem:[#allocation5 + $0x70] sm:$0xff]
    %v157 = vld [vmem:[#allocation5 + $0x78] sm:$0xff]
    %v158 = vld [vmem:[#allocation5 + $0x80] sm:$0xff]
    %v159 = vld [vmem:[#allocation5 + $0x88] sm:$0xff]
    %v160 = vld [vmem:[#allocation5 + $0x90] sm:$0xff]
    %v161 = vld [vmem:[#allocation5 + $0x98] sm:$0xff]
    %v162 = vld [vmem:[#allocation5 + $0xa0] sm:$0xff]
    %v163 = vld [vmem:[#allocation5 + $0xa8] sm:$0xff]
    %v164 = vld [vmem:[#allocation5 + $0xb0] sm:$0xff]
    %v165 = vld [vmem:[#allocation5 + $0xb8] sm:$0xff]
    %v166 = vld [vmem:[#allocation5 + $0xc0] sm:$0xff]
    %v167 = vld [vmem:[#allocation5 + $0xc8] sm:$0xff]
    %v168 = vld [vmem:[#allocation5 + $0xd0] sm:$0xff]
    %v169 = vld [vmem:[#allocation5 + $0xd8] sm:$0xff]
    %v170 = vld [vmem:[#allocation5 + $0xe0] sm:$0xff]
    %v171 = vld [vmem:[#allocation5 + $0xe8] sm:$0xff]
    %v172 = vld [vmem:[#allocation5 + $0xf0] sm:$0xff]
    %v173 = vld [vmem:[#allocation5 + $0xf8] sm:$0xff]
    %v174 = vld [vmem:[#allocation5 + $0x100] sm:$0xff]
    %v175 = vld [vmem:[#allocation5 + $0x108] sm:$0xff]
    %v176 = vld [vmem:[#allocation5 + $0x110] sm:$0xff]
    %v177 = vld [vmem:[#allocation5 + $0x118] sm:$0xff]
    %v178 = vld [vmem:[#allocation5 + $0x120] sm:$0xff]
    %v179 = vld [vmem:[#allocation5 + $0x128] sm:$0xff]
    %v180 = vld [vmem:[#allocation5 + $0x130] sm:$0xff]
    %v181 = vld [vmem:[#allocation5 + $0x138] sm:$0xff]
    %v182 = vld [vmem:[#allocation5 + $0x140] sm:$0xff]
    %v183 = vld [vmem:[#allocation5 + $0x148] sm:$0xff]
    %v184 = vld [vmem:[#allocation5 + $0x150] sm:$0xff]
    %v185 = vld [vmem:[#allocation5 + $0x158] sm:$0xff]
    %v186 = vld [vmem:[#allocation5 + $0x160] sm:$0xff]
    %v187 = vld [vmem:[#allocation5 + $0x168] sm:$0xff]
    %v188 = vld [vmem:[#allocation5 + $0x170] sm:$0xff]
    %v189 = vld [vmem:[#allocation5 + $0x178] sm:$0xff]
    %v190 = vld [vmem:[#allocation5 + $0x180] sm:$0xff]
    %v191 = vld [vmem:[#allocation5 + $0x188] sm:$0xff]
    %v192 = vld [vmem:[#allocation5 + $0x190] sm:$0xff]
    %v193 = vld [vmem:[#allocation5 + $0x198] sm:$0xff]
    %v194 = vld [vmem:[#allocation5 + $0x1a0] sm:$0xff]
    %v195 = vld [vmem:[#allocation5 + $0x1a8] sm:$0xff]
    %v196 = vld [vmem:[#allocation5 + $0x1b0] sm:$0xff]
    %v197 = vld [vmem:[#allocation5 + $0x1b8] sm:$0xff]
    %v198 = vld [vmem:[#allocation5 + $0x1c0] sm:$0xff]
    %v199 = vld [vmem:[#allocation5 + $0x1c8] sm:$0xff]
    %v200 = vld [vmem:[#allocation5 + $0x1d0] sm:$0xff]
    %v201 = vld [vmem:[#allocation5 + $0x1d8] sm:$0xff]
    %v202 = vld [vmem:[#allocation5 + $0x1e0] sm:$0xff]
    %v203 = vld [vmem:[#allocation5 + $0x1e8] sm:$0xff]
    %v204 = vld [vmem:[#allocation5 + $0x1f0] sm:$0xff]
    %v205 = vld [vmem:[#allocation5 + $0x1f8] sm:$0xff]
    %v206 = vld [vmem:[#allocation5 + $0x200] sm:$0xff]
    %v207 = vld [vmem:[#allocation5 + $0x208] sm:$0xff]
    %v208 = vld [vmem:[#allocation5 + $0x210] sm:$0xff]
    %v209 = vld [vmem:[#allocation5 + $0x218] sm:$0xff]
    %v210 = vld [vmem:[#allocation5 + $0x220] sm:$0xff]
    %v211 = vld [vmem:[#allocation5 + $0x228] sm:$0xff]
    %v212 = vld [vmem:[#allocation5 + $0x230] sm:$0xff]
    %v213 = vld [vmem:[#allocation5 + $0x238] sm:$0xff]
    %v214 = vld [vmem:[#allocation5 + $0x240] sm:$0xff]
    %v215 = vld [vmem:[#allocation5 + $0x248] sm:$0xff]
    %v216 = vld [vmem:[#allocation5 + $0x250] sm:$0xff]
    %v217 = vld [vmem:[#allocation5 + $0x258] sm:$0xff]
    %v218 = vld [vmem:[#allocation5 + $0x260] sm:$0xff]
    %v219 = vld [vmem:[#allocation5 + $0x268] sm:$0xff]
    %v220 = vld [vmem:[#allocation5 + $0x270] sm:$0xff]
    %v221 = vld [vmem:[#allocation5 + $0x278] sm:$0xff]
    %v222 = vld [vmem:[#allocation5 + $0x280] sm:$0xff]
    %v223 = vld [vmem:[#allocation5 + $0x288] sm:$0xff]
    %v224 = vld [vmem:[#allocation5 + $0x290] sm:$0xff]
    %v225 = vld [vmem:[#allocation5 + $0x298] sm:$0xff]
    %v226 = vld [vmem:[#allocation5 + $0x2a0] sm:$0xff]
    %v227 = vld [vmem:[#allocation5 + $0x2a8] sm:$0xff]
    %v228 = vld [vmem:[#allocation5 + $0x2b0] sm:$0xff]
    %v229 = vld [vmem:[#allocation5 + $0x2b8] sm:$0xff]
    %v230 = vld [vmem:[#allocation5 + $0x2c0] sm:$0xff]
    %v231 = vld [vmem:[#allocation5 + $0x2c8] sm:$0xff]
    %v232 = vld [vmem:[#allocation5 + $0x2d0] sm:$0xff]
    %v233 = vld [vmem:[#allocation5 + $0x2d8] sm:$0xff]
    %v234 = vld [vmem:[#allocation5 + $0x2e0] sm:$0xff]
    %v235 = vld [vmem:[#allocation5 + $0x2e8] sm:$0xff]
    %v236 = vld [vmem:[#allocation5 + $0x2f0] sm:$0xff]
    %v237 = vld [vmem:[#allocation5 + $0x2f8] sm:$0xff]
    %v238 = vld [vmem:[#allocation5 + $0x300] sm:$0xff]
    %v239 = vld [vmem:[#allocation5 + $0x308] sm:$0xff]
    %v240 = vld [vmem:[#allocation5 + $0x310] sm:$0xff]
    %v241 = vld [vmem:[#allocation5 + $0x318] sm:$0xff]
    %v242 = vld [vmem:[#allocation5 + $0x320] sm:$0xff]
    %v243 = vld [vmem:[#allocation5 + $0x328] sm:$0xff]
    %v244 = vld [vmem:[#allocation5 + $0x330] sm:$0xff]
    %v245 = vld [vmem:[#allocation5 + $0x338] sm:$0xff]
    %v246 = vld [vmem:[#allocation5 + $0x340] sm:$0xff]
    %v247 = vld [vmem:[#allocation5 + $0x348] sm:$0xff]
    %v248 = vld [vmem:[#allocation5 + $0x350] sm:$0xff]
    %v249 = vld [vmem:[#allocation5 + $0x358] sm:$0xff]
    %v250 = vld [vmem:[#allocation5 + $0x360] sm:$0xff]
    %v251 = vld [vmem:[#allocation5 + $0x368] sm:$0xff]
    %v252 = vld [vmem:[#allocation5 + $0x370] sm:$0xff]
    %v253 = vld [vmem:[#allocation5 + $0x378] sm:$0xff]
    %v254 = vld [vmem:[#allocation5 + $0x380] sm:$0xff]
    %v255 = vld [vmem:[#allocation5 + $0x388] sm:$0xff]
    %v256 = vld [vmem:[#allocation5 + $0x390] sm:$0xff]
    %v257 = vld [vmem:[#allocation5 + $0x398] sm:$0xff]
    %v258 = vld [vmem:[#allocation5 + $0x3a0] sm:$0xff]
    %v259 = vld [vmem:[#allocation5 + $0x3a8] sm:$0xff]
    %v260 = vld [vmem:[#allocation5 + $0x3b0] sm:$0xff]
    %v261 = vld [vmem:[#allocation5 + $0x3b8] sm:$0xff]
    %v262 = vld [vmem:[#allocation5 + $0x3c0] sm:$0xff]
    %v263 = vld [vmem:[#allocation5 + $0x3c8] sm:$0xff]
    %v264 = vld [vmem:[#allocation5 + $0x3d0] sm:$0xff]
    %v265 = vld [vmem:[#allocation5 + $0x3d8] sm:$0xff]
    %v266 = vld [vmem:[#allocation5 + $0x3e0] sm:$0xff]
    %v267 = vld [vmem:[#allocation5 + $0x3e8] sm:$0xff]
    %v268 = vld [vmem:[#allocation5 + $0x3f0] sm:$0xff]
    %v269 = vld [vmem:[#allocation5 + $0x3f8] sm:$0xff]
    %v270 = vld [vmem:[#allocation7] sm:$0xf]
    %v272 = vperm.slane %v270, 0
    %v273 = vperm.slane %v270, 1
    %v274 = vperm.slane %v270, 2
    %v275 = vperm.slane %v270, 3
    %v408 = vunpack.c.l.b16 %v142
    %v409 = vunpack.c.h.b16 %v142
    %v410 = vunpack.c.l.b16 %v143
    %v411 = vunpack.c.h.b16 %v143
    %v412 = vunpack.c.l.b16 %v144
    %v413 = vunpack.c.h.b16 %v144
    %v414 = vunpack.c.l.b16 %v145
    %v415 = vunpack.c.h.b16 %v145
    %v416 = vunpack.c.l.b16 %v146
    %v417 = vunpack.c.h.b16 %v146
    %v418 = vunpack.c.l.b16 %v147
    %v419 = vunpack.c.h.b16 %v147
    %v420 = vunpack.c.l.b16 %v148
    %v421 = vunpack.c.h.b16 %v148
    %v422 = vunpack.c.l.b16 %v149
    %v423 = vunpack.c.h.b16 %v149
    %v424 = vunpack.c.l.b16 %v150
    %v425 = vunpack.c.h.b16 %v150
    %v426 = vunpack.c.l.b16 %v151
    %v427 = vunpack.c.h.b16 %v151
    %v428 = vunpack.c.l.b16 %v152
    %v429 = vunpack.c.h.b16 %v152
    %v430 = vunpack.c.l.b16 %v153
    %v431 = vunpack.c.h.b16 %v153
    %v432 = vunpack.c.l.b16 %v154
    %v433 = vunpack.c.h.b16 %v154
    %v434 = vunpack.c.l.b16 %v155
    %v435 = vunpack.c.h.b16 %v155
    %v436 = vunpack.c.l.b16 %v156
    %v437 = vunpack.c.h.b16 %v156
    %v438 = vunpack.c.l.b16 %v157
    %v439 = vunpack.c.h.b16 %v157
    %v440 = vunpack.c.l.b16 %v158
    %v441 = vunpack.c.h.b16 %v158
    %v442 = vunpack.c.l.b16 %v159
    %v443 = vunpack.c.h.b16 %v159
    %v444 = vunpack.c.l.b16 %v160
    %v445 = vunpack.c.h.b16 %v160
    %v446 = vunpack.c.l.b16 %v161
    %v447 = vunpack.c.h.b16 %v161
    %v448 = vunpack.c.l.b16 %v162
    %v449 = vunpack.c.h.b16 %v162
    %v450 = vunpack.c.l.b16 %v163
    %v451 = vunpack.c.h.b16 %v163
    %v452 = vunpack.c.l.b16 %v164
    %v453 = vunpack.c.h.b16 %v164
    %v454 = vunpack.c.l.b16 %v165
    %v455 = vunpack.c.h.b16 %v165
    %v456 = vunpack.c.l.b16 %v166
    %v457 = vunpack.c.h.b16 %v166
    %v458 = vunpack.c.l.b16 %v167
    %v459 = vunpack.c.h.b16 %v167
    %v460 = vunpack.c.l.b16 %v168
    %v461 = vunpack.c.h.b16 %v168
    %v462 = vunpack.c.l.b16 %v169
    %v463 = vunpack.c.h.b16 %v169
    %v464 = vunpack.c.l.b16 %v170
    %v465 = vunpack.c.h.b16 %v170
    %v466 = vunpack.c.l.b16 %v171
    %v467 = vunpack.c.h.b16 %v171
    %v468 = vunpack.c.l.b16 %v172
    %v469 = vunpack.c.h.b16 %v172
    %v470 = vunpack.c.l.b16 %v173
    %v471 = vunpack.c.h.b16 %v173
    %v472 = vunpack.c.l.b16 %v174
    %v473 = vunpack.c.h.b16 %v174
    %v474 = vunpack.c.l.b16 %v175
    %v475 = vunpack.c.h.b16 %v175
    %v476 = vunpack.c.l.b16 %v176
    %v477 = vunpack.c.h.b16 %v176
    %v478 = vunpack.c.l.b16 %v177
    %v479 = vunpack.c.h.b16 %v177
    %v480 = vunpack.c.l.b16 %v178
    %v481 = vunpack.c.h.b16 %v178
    %v482 = vunpack.c.l.b16 %v179
    %v483 = vunpack.c.h.b16 %v179
    %v484 = vunpack.c.l.b16 %v180
    %v485 = vunpack.c.h.b16 %v180
    %v486 = vunpack.c.l.b16 %v181
    %v487 = vunpack.c.h.b16 %v181
    %v488 = vunpack.c.l.b16 %v182
    %v489 = vunpack.c.h.b16 %v182
    %v490 = vunpack.c.l.b16 %v183
    %v491 = vunpack.c.h.b16 %v183
    %v492 = vunpack.c.l.b16 %v184
    %v493 = vunpack.c.h.b16 %v184
    %v494 = vunpack.c.l.b16 %v185
    %v495 = vunpack.c.h.b16 %v185
    %v496 = vunpack.c.l.b16 %v186
    %v497 = vunpack.c.h.b16 %v186
    %v498 = vunpack.c.l.b16 %v187
    %v499 = vunpack.c.h.b16 %v187
    %v500 = vunpack.c.l.b16 %v188
    %v501 = vunpack.c.h.b16 %v188
    %v502 = vunpack.c.l.b16 %v189
    %v503 = vunpack.c.h.b16 %v189
    %v504 = vunpack.c.l.b16 %v190
    %v505 = vunpack.c.h.b16 %v190
    %v506 = vunpack.c.l.b16 %v191
    %v507 = vunpack.c.h.b16 %v191
    %v508 = vunpack.c.l.b16 %v192
    %v509 = vunpack.c.h.b16 %v192
    %v510 = vunpack.c.l.b16 %v193
    %v511 = vunpack.c.h.b16 %v193
    %v512 = vunpack.c.l.b16 %v194
    %v513 = vunpack.c.h.b16 %v194
    %v514 = vunpack.c.l.b16 %v195
    %v515 = vunpack.c.h.b16 %v195
    %v516 = vunpack.c.l.b16 %v196
    %v517 = vunpack.c.h.b16 %v196
    %v518 = vunpack.c.l.b16 %v197
    %v519 = vunpack.c.h.b16 %v197
    %v520 = vunpack.c.l.b16 %v198
    %v521 = vunpack.c.h.b16 %v198
    %v522 = vunpack.c.l.b16 %v199
    %v523 = vunpack.c.h.b16 %v199
    %v524 = vunpack.c.l.b16 %v200
    %v525 = vunpack.c.h.b16 %v200
    %v526 = vunpack.c.l.b16 %v201
    %v527 = vunpack.c.h.b16 %v201
    %v528 = vunpack.c.l.b16 %v202
    %v529 = vunpack.c.h.b16 %v202
    %v530 = vunpack.c.l.b16 %v203
    %v531 = vunpack.c.h.b16 %v203
    %v532 = vunpack.c.l.b16 %v204
    %v533 = vunpack.c.h.b16 %v204
    %v534 = vunpack.c.l.b16 %v205
    %v535 = vunpack.c.h.b16 %v205
    %v536 = vunpack.c.l.b16 %v206
    %v537 = vunpack.c.h.b16 %v206
    %v538 = vunpack.c.l.b16 %v207
    %v539 = vunpack.c.h.b16 %v207
    %v540 = vunpack.c.l.b16 %v208
    %v541 = vunpack.c.h.b16 %v208
    %v542 = vunpack.c.l.b16 %v209
    %v543 = vunpack.c.h.b16 %v209
    %v544 = vunpack.c.l.b16 %v210
    %v545 = vunpack.c.h.b16 %v210
    %v546 = vunpack.c.l.b16 %v211
    %v547 = vunpack.c.h.b16 %v211
    %v548 = vunpack.c.l.b16 %v212
    %v549 = vunpack.c.h.b16 %v212
    %v550 = vunpack.c.l.b16 %v213
    %v551 = vunpack.c.h.b16 %v213
    %v552 = vunpack.c.l.b16 %v214
    %v553 = vunpack.c.h.b16 %v214
    %v554 = vunpack.c.l.b16 %v215
    %v555 = vunpack.c.h.b16 %v215
    %v556 = vunpack.c.l.b16 %v216
    %v557 = vunpack.c.h.b16 %v216
    %v558 = vunpack.c.l.b16 %v217
    %v559 = vunpack.c.h.b16 %v217
    %v560 = vunpack.c.l.b16 %v218
    %v561 = vunpack.c.h.b16 %v218
    %v562 = vunpack.c.l.b16 %v219
    %v563 = vunpack.c.h.b16 %v219
    %v564 = vunpack.c.l.b16 %v220
    %v565 = vunpack.c.h.b16 %v220
    %v566 = vunpack.c.l.b16 %v221
    %v567 = vunpack.c.h.b16 %v221
    %v568 = vunpack.c.l.b16 %v222
    %v569 = vunpack.c.h.b16 %v222
    %v570 = vunpack.c.l.b16 %v223
    %v571 = vunpack.c.h.b16 %v223
    %v572 = vunpack.c.l.b16 %v224
    %v573 = vunpack.c.h.b16 %v224
    %v574 = vunpack.c.l.b16 %v225
    %v575 = vunpack.c.h.b16 %v225
    %v576 = vunpack.c.l.b16 %v226
    %v577 = vunpack.c.h.b16 %v226
    %v578 = vunpack.c.l.b16 %v227
    %v579 = vunpack.c.h.b16 %v227
    %v580 = vunpack.c.l.b16 %v228
    %v581 = vunpack.c.h.b16 %v228
    %v582 = vunpack.c.l.b16 %v229
    %v583 = vunpack.c.h.b16 %v229
    %v584 = vunpack.c.l.b16 %v230
    %v585 = vunpack.c.h.b16 %v230
    %v586 = vunpack.c.l.b16 %v231
    %v587 = vunpack.c.h.b16 %v231
    %v588 = vunpack.c.l.b16 %v232
    %v589 = vunpack.c.h.b16 %v232
    %v590 = vunpack.c.l.b16 %v233
    %v591 = vunpack.c.h.b16 %v233
    %v592 = vunpack.c.l.b16 %v234
    %v593 = vunpack.c.h.b16 %v234
    %v594 = vunpack.c.l.b16 %v235
    %v595 = vunpack.c.h.b16 %v235
    %v596 = vunpack.c.l.b16 %v236
    %v597 = vunpack.c.h.b16 %v236
    %v598 = vunpack.c.l.b16 %v237
    %v599 = vunpack.c.h.b16 %v237
    %v600 = vunpack.c.l.b16 %v238
    %v601 = vunpack.c.h.b16 %v238
    %v602 = vunpack.c.l.b16 %v239
    %v603 = vunpack.c.h.b16 %v239
    %v604 = vunpack.c.l.b16 %v240
    %v605 = vunpack.c.h.b16 %v240
    %v606 = vunpack.c.l.b16 %v241
    %v607 = vunpack.c.h.b16 %v241
    %v608 = vunpack.c.l.b16 %v242
    %v609 = vunpack.c.h.b16 %v242
    %v610 = vunpack.c.l.b16 %v243
    %v611 = vunpack.c.h.b16 %v243
    %v612 = vunpack.c.l.b16 %v244
    %v613 = vunpack.c.h.b16 %v244
    %v614 = vunpack.c.l.b16 %v245
    %v615 = vunpack.c.h.b16 %v245
    %v616 = vunpack.c.l.b16 %v246
    %v617 = vunpack.c.h.b16 %v246
    %v618 = vunpack.c.l.b16 %v247
    %v619 = vunpack.c.h.b16 %v247
    %v620 = vunpack.c.l.b16 %v248
    %v621 = vunpack.c.h.b16 %v248
    %v622 = vunpack.c.l.b16 %v249
    %v623 = vunpack.c.h.b16 %v249
    %v624 = vunpack.c.l.b16 %v250
    %v625 = vunpack.c.h.b16 %v250
    %v626 = vunpack.c.l.b16 %v251
    %v627 = vunpack.c.h.b16 %v251
    %v628 = vunpack.c.l.b16 %v252
    %v629 = vunpack.c.h.b16 %v252
    %v630 = vunpack.c.l.b16 %v253
    %v631 = vunpack.c.h.b16 %v253
    %v632 = vunpack.c.l.b16 %v254
    %v633 = vunpack.c.h.b16 %v254
    %v634 = vunpack.c.l.b16 %v255
    %v635 = vunpack.c.h.b16 %v255
    %v636 = vunpack.c.l.b16 %v256
    %v637 = vunpack.c.h.b16 %v256
    %v638 = vunpack.c.l.b16 %v257
    %v639 = vunpack.c.h.b16 %v257
    %v640 = vunpack.c.l.b16 %v258
    %v641 = vunpack.c.h.b16 %v258
    %v642 = vunpack.c.l.b16 %v259
    %v643 = vunpack.c.h.b16 %v259
    %v644 = vunpack.c.l.b16 %v260
    %v645 = vunpack.c.h.b16 %v260
    %v646 = vunpack.c.l.b16 %v261
    %v647 = vunpack.c.h.b16 %v261
    %v648 = vunpack.c.l.b16 %v262
    %v649 = vunpack.c.h.b16 %v262
    %v650 = vunpack.c.l.b16 %v263
    %v651 = vunpack.c.h.b16 %v263
    %v652 = vunpack.c.l.b16 %v264
    %v653 = vunpack.c.h.b16 %v264
    %v654 = vunpack.c.l.b16 %v265
    %v655 = vunpack.c.h.b16 %v265
    %v656 = vunpack.c.l.b16 %v266
    %v657 = vunpack.c.h.b16 %v266
    %v658 = vunpack.c.l.b16 %v267
    %v659 = vunpack.c.h.b16 %v267
    %v660 = vunpack.c.l.b16 %v268
    %v661 = vunpack.c.h.b16 %v268
    %v662 = vunpack.c.l.b16 %v269
    %v663 = vunpack.c.h.b16 %v269
    %v664 = vpack.c.b16 %v412, %v408
    %v665 = vpack.c.b16 %v413, %v409
    %v666 = vpack.c.b16 %v414, %v410
    %v667 = vpack.c.b16 %v415, %v411
    %v668 = vpack.c.b16 %v420, %v416
    %v669 = vpack.c.b16 %v421, %v417
    %v670 = vpack.c.b16 %v422, %v418
    %v671 = vpack.c.b16 %v423, %v419
    %v672 = vpack.c.b16 %v428, %v424
    %v673 = vpack.c.b16 %v429, %v425
    %v674 = vpack.c.b16 %v430, %v426
    %v675 = vpack.c.b16 %v431, %v427
    %v676 = vpack.c.b16 %v436, %v432
    %v677 = vpack.c.b16 %v437, %v433
    %v678 = vpack.c.b16 %v438, %v434
    %v679 = vpack.c.b16 %v439, %v435
    %v680 = vpack.c.b16 %v444, %v440
    %v681 = vpack.c.b16 %v445, %v441
    %v682 = vpack.c.b16 %v446, %v442
    %v683 = vpack.c.b16 %v447, %v443
    %v684 = vpack.c.b16 %v452, %v448
    %v685 = vpack.c.b16 %v453, %v449
    %v686 = vpack.c.b16 %v454, %v450
    %v687 = vpack.c.b16 %v455, %v451
    %v688 = vpack.c.b16 %v460, %v456
    %v689 = vpack.c.b16 %v461, %v457
    %v690 = vpack.c.b16 %v462, %v458
    %v691 = vpack.c.b16 %v463, %v459
    %v692 = vpack.c.b16 %v468, %v464
    %v693 = vpack.c.b16 %v469, %v465
    %v694 = vpack.c.b16 %v470, %v466
    %v695 = vpack.c.b16 %v471, %v467
    %v696 = vpack.c.b16 %v476, %v472
    %v697 = vpack.c.b16 %v477, %v473
    %v698 = vpack.c.b16 %v478, %v474
    %v699 = vpack.c.b16 %v479, %v475
    %v700 = vpack.c.b16 %v484, %v480
    %v701 = vpack.c.b16 %v485, %v481
    %v702 = vpack.c.b16 %v486, %v482
    %v703 = vpack.c.b16 %v487, %v483
    %v704 = vpack.c.b16 %v492, %v488
    %v705 = vpack.c.b16 %v493, %v489
    %v706 = vpack.c.b16 %v494, %v490
    %v707 = vpack.c.b16 %v495, %v491
    %v708 = vpack.c.b16 %v500, %v496
    %v709 = vpack.c.b16 %v501, %v497
    %v710 = vpack.c.b16 %v502, %v498
    %v711 = vpack.c.b16 %v503, %v499
    %v712 = vpack.c.b16 %v508, %v504
    %v713 = vpack.c.b16 %v509, %v505
    %v714 = vpack.c.b16 %v510, %v506
    %v715 = vpack.c.b16 %v511, %v507
    %v716 = vpack.c.b16 %v516, %v512
    %v717 = vpack.c.b16 %v517, %v513
    %v718 = vpack.c.b16 %v518, %v514
    %v719 = vpack.c.b16 %v519, %v515
    %v720 = vpack.c.b16 %v524, %v520
    %v721 = vpack.c.b16 %v525, %v521
    %v722 = vpack.c.b16 %v526, %v522
    %v723 = vpack.c.b16 %v527, %v523
    %v724 = vpack.c.b16 %v532, %v528
    %v725 = vpack.c.b16 %v533, %v529
    %v726 = vpack.c.b16 %v534, %v530
    %v727 = vpack.c.b16 %v535, %v531
    %v728 = vpack.c.b16 %v540, %v536
    %v729 = vpack.c.b16 %v541, %v537
    %v730 = vpack.c.b16 %v542, %v538
    %v731 = vpack.c.b16 %v543, %v539
    %v732 = vpack.c.b16 %v548, %v544
    %v733 = vpack.c.b16 %v549, %v545
    %v734 = vpack.c.b16 %v550, %v546
    %v735 = vpack.c.b16 %v551, %v547
    %v736 = vpack.c.b16 %v556, %v552
    %v737 = vpack.c.b16 %v557, %v553
    %v738 = vpack.c.b16 %v558, %v554
    %v739 = vpack.c.b16 %v559, %v555
    %v740 = vpack.c.b16 %v564, %v560
    %v741 = vpack.c.b16 %v565, %v561
    %v742 = vpack.c.b16 %v566, %v562
    %v743 = vpack.c.b16 %v567, %v563
    %v744 = vpack.c.b16 %v572, %v568
    %v745 = vpack.c.b16 %v573, %v569
    %v746 = vpack.c.b16 %v574, %v570
    %v747 = vpack.c.b16 %v575, %v571
    %v748 = vpack.c.b16 %v580, %v576
    %v749 = vpack.c.b16 %v581, %v577
    %v750 = vpack.c.b16 %v582, %v578
    %v751 = vpack.c.b16 %v583, %v579
    %v752 = vpack.c.b16 %v588, %v584
    %v753 = vpack.c.b16 %v589, %v585
    %v754 = vpack.c.b16 %v590, %v586
    %v755 = vpack.c.b16 %v591, %v587
    %v756 = vpack.c.b16 %v596, %v592
    %v757 = vpack.c.b16 %v597, %v593
    %v758 = vpack.c.b16 %v598, %v594
    %v759 = vpack.c.b16 %v599, %v595
    %v760 = vpack.c.b16 %v604, %v600
    %v761 = vpack.c.b16 %v605, %v601
    %v762 = vpack.c.b16 %v606, %v602
    %v763 = vpack.c.b16 %v607, %v603
    %v764 = vpack.c.b16 %v612, %v608
    %v765 = vpack.c.b16 %v613, %v609
    %v766 = vpack.c.b16 %v614, %v610
    %v767 = vpack.c.b16 %v615, %v611
    %v768 = vpack.c.b16 %v620, %v616
    %v769 = vpack.c.b16 %v621, %v617
    %v770 = vpack.c.b16 %v622, %v618
    %v771 = vpack.c.b16 %v623, %v619
    %v772 = vpack.c.b16 %v628, %v624
    %v773 = vpack.c.b16 %v629, %v625
    %v774 = vpack.c.b16 %v630, %v626
    %v775 = vpack.c.b16 %v631, %v627
    %v776 = vpack.c.b16 %v636, %v632
    %v777 = vpack.c.b16 %v637, %v633
    %v778 = vpack.c.b16 %v638, %v634
    %v779 = vpack.c.b16 %v639, %v635
    %v780 = vpack.c.b16 %v644, %v640
    %v781 = vpack.c.b16 %v645, %v641
    %v782 = vpack.c.b16 %v646, %v642
    %v783 = vpack.c.b16 %v647, %v643
    %v784 = vpack.c.b16 %v652, %v648
    %v785 = vpack.c.b16 %v653, %v649
    %v786 = vpack.c.b16 %v654, %v650
    %v787 = vpack.c.b16 %v655, %v651
    %v788 = vpack.c.b16 %v660, %v656
    %v789 = vpack.c.b16 %v661, %v657
    %v790 = vpack.c.b16 %v662, %v658
    %v791 = vpack.c.b16 %v663, %v659
    %920 = vmatpush.bf16.msra.mxu0 %v692
    %921 = vmatpush.bf16.msra.mxu0 %v688
    %922 = vmatpush.bf16.msra.mxu0 %v684
    %923 = vmatpush.bf16.msra.mxu0 %v680
    %924 = vmatpush.bf16.msra.mxu0 %v676
    %925 = vmatpush.bf16.msra.mxu0 %v672
    %926 = vmatpush.bf16.msra.mxu0 %v668
    %927 = vmatpush.bf16.msra.mxu0 %v664
    %928 = vmatmul.bf16.gmra.mxu0 %v138
    %v929 = vpop.f32.mrf.mxu0
    %v930 = vadd.f32 %v272, %v929
    %v931 = vpop.f32.mrf.mxu0
    %v932 = vadd.f32 %v272, %v931
    %933 = vdwg.mxu0
    %934 = vmatpush.bf16.msra.mxu0 %v724
    %935 = vmatpush.bf16.msra.mxu0 %v720
    %936 = vmatpush.bf16.msra.mxu0 %v716
    %937 = vmatpush.bf16.msra.mxu0 %v712
    %938 = vmatpush.bf16.msra.mxu0 %v708
    %939 = vmatpush.bf16.msra.mxu0 %v704
    %940 = vmatpush.bf16.msra.mxu0 %v700
    %941 = vmatpush.bf16.msra.mxu0 %v696
    %942 = vmatmul.bf16.gmra.mxu0 %v139
    %v943 = vpop.f32.mrf.mxu0
    %v944 = vadd.f32 %v930, %v943
    %v945 = vpop.f32.mrf.mxu0
    %v946 = vadd.f32 %v932, %v945
    %947 = vdwg.mxu0
    %948 = vmatpush.bf16.msra.mxu0 %v756
    %949 = vmatpush.bf16.msra.mxu0 %v752
    %950 = vmatpush.bf16.msra.mxu0 %v748
    %951 = vmatpush.bf16.msra.mxu0 %v744
    %952 = vmatpush.bf16.msra.mxu0 %v740
    %953 = vmatpush.bf16.msra.mxu0 %v736
    %954 = vmatpush.bf16.msra.mxu0 %v732
    %955 = vmatpush.bf16.msra.mxu0 %v728
    %956 = vmatmul.bf16.gmra.mxu0 %v140
    %v957 = vpop.f32.mrf.mxu0
    %v958 = vadd.f32 %v944, %v957
    %v959 = vpop.f32.mrf.mxu0
    %v960 = vadd.f32 %v946, %v959
    %961 = vdwg.mxu0
    %962 = vmatpush.bf16.msra.mxu0 %v788
    %963 = vmatpush.bf16.msra.mxu0 %v784
    %964 = vmatpush.bf16.msra.mxu0 %v780
    %965 = vmatpush.bf16.msra.mxu0 %v776
    %966 = vmatpush.bf16.msra.mxu0 %v772
    %967 = vmatpush.bf16.msra.mxu0 %v768
    %968 = vmatpush.bf16.msra.mxu0 %v764
    %969 = vmatpush.bf16.msra.mxu0 %v760
    %970 = vmatmul.bf16.gmra.mxu0 %v141
    %v971 = vpop.f32.mrf.mxu0
    %v972 = vadd.f32 %v958, %v971
    %v973 = vpop.f32.mrf.mxu0
    %v974 = vadd.f32 %v960, %v973
    %975 = vdwg.mxu0
    %976 = vmatpush.bf16.msra.mxu0 %v693
    %977 = vmatpush.bf16.msra.mxu0 %v689
    %978 = vmatpush.bf16.msra.mxu0 %v685
    %979 = vmatpush.bf16.msra.mxu0 %v681
    %980 = vmatpush.bf16.msra.mxu0 %v677
    %981 = vmatpush.bf16.msra.mxu0 %v673
    %982 = vmatpush.bf16.msra.mxu0 %v669
    %983 = vmatpush.bf16.msra.mxu0 %v665
    %984 = vmatmul.bf16.gmra.mxu0 %v138
    %v985 = vpop.f32.mrf.mxu0
    %v986 = vadd.f32 %v273, %v985
    %v987 = vpop.f32.mrf.mxu0
    %v988 = vadd.f32 %v273, %v987
    %989 = vdwg.mxu0
    %990 = vmatpush.bf16.msra.mxu0 %v725
    %991 = vmatpush.bf16.msra.mxu0 %v721
    %992 = vmatpush.bf16.msra.mxu0 %v717
    %993 = vmatpush.bf16.msra.mxu0 %v713
    %994 = vmatpush.bf16.msra.mxu0 %v709
    %995 = vmatpush.bf16.msra.mxu0 %v705
    %996 = vmatpush.bf16.msra.mxu0 %v701
    %997 = vmatpush.bf16.msra.mxu0 %v697
    %998 = vmatmul.bf16.gmra.mxu0 %v139
    %v999 = vpop.f32.mrf.mxu0
    %v1000 = vadd.f32 %v986, %v999
    %v1001 = vpop.f32.mrf.mxu0
    %v1002 = vadd.f32 %v988, %v1001
    %1003 = vdwg.mxu0
    %1004 = vmatpush.bf16.msra.mxu0 %v757
    %1005 = vmatpush.bf16.msra.mxu0 %v753
    %1006 = vmatpush.bf16.msra.mxu0 %v749
    %1007 = vmatpush.bf16.msra.mxu0 %v745
    %1008 = vmatpush.bf16.msra.mxu0 %v741
    %1009 = vmatpush.bf16.msra.mxu0 %v737
    %1010 = vmatpush.bf16.msra.mxu0 %v733
    %1011 = vmatpush.bf16.msra.mxu0 %v729
    %1012 = vmatmul.bf16.gmra.mxu0 %v140
    %v1013 = vpop.f32.mrf.mxu0
    %v1014 = vadd.f32 %v1000, %v1013
    %v1015 = vpop.f32.mrf.mxu0
    %v1016 = vadd.f32 %v1002, %v1015
    %1017 = vdwg.mxu0
    %1018 = vmatpush.bf16.msra.mxu0 %v789
    %1019 = vmatpush.bf16.msra.mxu0 %v785
    %1020 = vmatpush.bf16.msra.mxu0 %v781
    %1021 = vmatpush.bf16.msra.mxu0 %v777
    %1022 = vmatpush.bf16.msra.mxu0 %v773
    %1023 = vmatpush.bf16.msra.mxu0 %v769
    %1024 = vmatpush.bf16.msra.mxu0 %v765
    %1025 = vmatpush.bf16.msra.mxu0 %v761
    %1026 = vmatmul.bf16.gmra.mxu0 %v141
    %v1027 = vpop.f32.mrf.mxu0
    %v1028 = vadd.f32 %v1014, %v1027
    %v1029 = vpop.f32.mrf.mxu0
    %v1030 = vadd.f32 %v1016, %v1029
    %1031 = vdwg.mxu0
    %1032 = vmatpush.bf16.msra.mxu0 %v694
    %1033 = vmatpush.bf16.msra.mxu0 %v690
    %1034 = vmatpush.bf16.msra.mxu0 %v686
    %1035 = vmatpush.bf16.msra.mxu0 %v682
    %1036 = vmatpush.bf16.msra.mxu0 %v678
    %1037 = vmatpush.bf16.msra.mxu0 %v674
    %1038 = vmatpush.bf16.msra.mxu0 %v670
    %1039 = vmatpush.bf16.msra.mxu0 %v666
    %1040 = vmatmul.bf16.gmra.mxu0 %v138
    %v1041 = vpop.f32.mrf.mxu0
    %v1042 = vadd.f32 %v274, %v1041
    %v1043 = vpop.f32.mrf.mxu0
    %v1044 = vadd.f32 %v274, %v1043
    %1045 = vdwg.mxu0
    %1046 = vmatpush.bf16.msra.mxu0 %v726
    %1047 = vmatpush.bf16.msra.mxu0 %v722
    %1048 = vmatpush.bf16.msra.mxu0 %v718
    %1049 = vmatpush.bf16.msra.mxu0 %v714
    %1050 = vmatpush.bf16.msra.mxu0 %v710
    %1051 = vmatpush.bf16.msra.mxu0 %v706
    %1052 = vmatpush.bf16.msra.mxu0 %v702
    %1053 = vmatpush.bf16.msra.mxu0 %v698
    %1054 = vmatmul.bf16.gmra.mxu0 %v139
    %v1055 = vpop.f32.mrf.mxu0
    %v1056 = vadd.f32 %v1042, %v1055
    %v1057 = vpop.f32.mrf.mxu0
    %v1058 = vadd.f32 %v1044, %v1057
    %1059 = vdwg.mxu0
    %1060 = vmatpush.bf16.msra.mxu0 %v758
    %1061 = vmatpush.bf16.msra.mxu0 %v754
    %1062 = vmatpush.bf16.msra.mxu0 %v750
    %1063 = vmatpush.bf16.msra.mxu0 %v746
    %1064 = vmatpush.bf16.msra.mxu0 %v742
    %1065 = vmatpush.bf16.msra.mxu0 %v738
    %1066 = vmatpush.bf16.msra.mxu0 %v734
    %1067 = vmatpush.bf16.msra.mxu0 %v730
    %1068 = vmatmul.bf16.gmra.mxu0 %v140
    %v1069 = vpop.f32.mrf.mxu0
    %v1070 = vadd.f32 %v1056, %v1069
    %v1071 = vpop.f32.mrf.mxu0
    %v1072 = vadd.f32 %v1058, %v1071
    %1073 = vdwg.mxu0
    %1074 = vmatpush.bf16.msra.mxu0 %v790
    %1075 = vmatpush.bf16.msra.mxu0 %v786
    %1076 = vmatpush.bf16.msra.mxu0 %v782
    %1077 = vmatpush.bf16.msra.mxu0 %v778
    %1078 = vmatpush.bf16.msra.mxu0 %v774
    %1079 = vmatpush.bf16.msra.mxu0 %v770
    %1080 = vmatpush.bf16.msra.mxu0 %v766
    %1081 = vmatpush.bf16.msra.mxu0 %v762
    %1082 = vmatmul.bf16.gmra.mxu0 %v141
    %v1083 = vpop.f32.mrf.mxu0
    %v1084 = vadd.f32 %v1070, %v1083
    %v1085 = vpop.f32.mrf.mxu0
    %v1086 = vadd.f32 %v1072, %v1085
    %1087 = vdwg.mxu0
    %1088 = vmatpush.bf16.msra.mxu0 %v695
    %1089 = vmatpush.bf16.msra.mxu0 %v691
    %1090 = vmatpush.bf16.msra.mxu0 %v687
    %1091 = vmatpush.bf16.msra.mxu0 %v683
    %1092 = vmatpush.bf16.msra.mxu0 %v679
    %1093 = vmatpush.bf16.msra.mxu0 %v675
    %1094 = vmatpush.bf16.msra.mxu0 %v671
    %1095 = vmatpush.bf16.msra.mxu0 %v667
    %1096 = vmatmul.bf16.gmra.mxu0 %v138
    %v1097 = vpop.f32.mrf.mxu0
    %v1098 = vadd.f32 %v275, %v1097
    %v1099 = vpop.f32.mrf.mxu0
    %v1100 = vadd.f32 %v275, %v1099
    %1101 = vdwg.mxu0
    %1102 = vmatpush.bf16.msra.mxu0 %v727
    %1103 = vmatpush.bf16.msra.mxu0 %v723
    %1104 = vmatpush.bf16.msra.mxu0 %v719
    %1105 = vmatpush.bf16.msra.mxu0 %v715
    %1106 = vmatpush.bf16.msra.mxu0 %v711
    %1107 = vmatpush.bf16.msra.mxu0 %v707
    %1108 = vmatpush.bf16.msra.mxu0 %v703
    %1109 = vmatpush.bf16.msra.mxu0 %v699
    %1110 = vmatmul.bf16.gmra.mxu0 %v139
    %v1111 = vpop.f32.mrf.mxu0
    %v1112 = vadd.f32 %v1098, %v1111
    %v1113 = vpop.f32.mrf.mxu0
    %v1114 = vadd.f32 %v1100, %v1113
    %1115 = vdwg.mxu0
    %1116 = vmatpush.bf16.msra.mxu0 %v759
    %1117 = vmatpush.bf16.msra.mxu0 %v755
    %1118 = vmatpush.bf16.msra.mxu0 %v751
    %1119 = vmatpush.bf16.msra.mxu0 %v747
    %1120 = vmatpush.bf16.msra.mxu0 %v743
    %1121 = vmatpush.bf16.msra.mxu0 %v739
    %1122 = vmatpush.bf16.msra.mxu0 %v735
    %1123 = vmatpush.bf16.msra.mxu0 %v731
    %1124 = vmatmul.bf16.gmra.mxu0 %v140
    %v1125 = vpop.f32.mrf.mxu0
    %v1126 = vadd.f32 %v1112, %v1125
    %v1127 = vpop.f32.mrf.mxu0
    %v1128 = vadd.f32 %v1114, %v1127
    %1129 = vdwg.mxu0
    %1130 = vmatpush.bf16.msra.mxu0 %v791
    %1131 = vmatpush.bf16.msra.mxu0 %v787
    %1132 = vmatpush.bf16.msra.mxu0 %v783
    %1133 = vmatpush.bf16.msra.mxu0 %v779
    %1134 = vmatpush.bf16.msra.mxu0 %v775
    %1135 = vmatpush.bf16.msra.mxu0 %v771
    %1136 = vmatpush.bf16.msra.mxu0 %v767
    %1137 = vmatpush.bf16.msra.mxu0 %v763
    %1138 = vmatmul.bf16.gmra.mxu0 %v141
    %v1139 = vpop.f32.mrf.mxu0
    %v1140 = vadd.f32 %v1126, %v1139
    %v1141 = vpop.f32.mrf.mxu0
    %v1142 = vadd.f32 %v1128, %v1141
    %1143 = vdwg.mxu0
    %v1144 = vmax.f32 %v972, 0.0
    %v1145 = vmax.f32 %v1028, 0.0
    %v1146 = vmax.f32 %v1084, 0.0
    %v1147 = vmax.f32 %v1140, 0.0
    %v1148 = vmax.f32 %v974, 0.0
    %v1149 = vmax.f32 %v1030, 0.0
    %v1150 = vmax.f32 %v1086, 0.0
    %v1151 = vmax.f32 %v1142, 0.0
    %v1152 = vpack.c.bf16 %v1148, %v1144
    %v1153 = vpack.c.bf16 %v1149, %v1145
    %v1154 = vpack.c.bf16 %v1150, %v1146
    %v1155 = vpack.c.bf16 %v1151, %v1147
    %v1156 = vld [vmem:[#allocation8] sm:$0xff]
    %v1157 = vld [vmem:[#allocation8 + $0x8] sm:$0xff]
    %v1158 = vld [vmem:[#allocation8 + $0x10] sm:$0xff]
    %v1159 = vld [vmem:[#allocation8 + $0x18] sm:$0xff]
    %v1160 = vld [vmem:[#allocation8 + $0x20] sm:$0xff]
    %v1161 = vld [vmem:[#allocation8 + $0x28] sm:$0xff]
    %v1162 = vld [vmem:[#allocation8 + $0x30] sm:$0xff]
    %v1163 = vld [vmem:[#allocation8 + $0x38] sm:$0xff]
    %v1164 = vld [vmem:[#allocation8 + $0x40] sm:$0xff]
    %v1165 = vld [vmem:[#allocation8 + $0x48] sm:$0xff]
    %v1166 = vld [vmem:[#allocation8 + $0x50] sm:$0xff]
    %v1167 = vld [vmem:[#allocation8 + $0x58] sm:$0xff]
    %v1168 = vld [vmem:[#allocation8 + $0x60] sm:$0xff]
    %v1169 = vld [vmem:[#allocation8 + $0x68] sm:$0xff]
    %v1170 = vld [vmem:[#allocation8 + $0x70] sm:$0xff]
    %v1171 = vld [vmem:[#allocation8 + $0x78] sm:$0xff]
    %v1172 = vld [vmem:[#allocation8 + $0x80] sm:$0xff]
    %v1173 = vld [vmem:[#allocation8 + $0x88] sm:$0xff]
    %v1174 = vld [vmem:[#allocation8 + $0x90] sm:$0xff]
    %v1175 = vld [vmem:[#allocation8 + $0x98] sm:$0xff]
    %v1176 = vld [vmem:[#allocation8 + $0xa0] sm:$0xff]
    %v1177 = vld [vmem:[#allocation8 + $0xa8] sm:$0xff]
    %v1178 = vld [vmem:[#allocation8 + $0xb0] sm:$0xff]
    %v1179 = vld [vmem:[#allocation8 + $0xb8] sm:$0xff]
    %v1180 = vld [vmem:[#allocation8 + $0xc0] sm:$0xff]
    %v1181 = vld [vmem:[#allocation8 + $0xc8] sm:$0xff]
    %v1182 = vld [vmem:[#allocation8 + $0xd0] sm:$0xff]
    %v1183 = vld [vmem:[#allocation8 + $0xd8] sm:$0xff]
    %v1184 = vld [vmem:[#allocation8 + $0xe0] sm:$0xff]
    %v1185 = vld [vmem:[#allocation8 + $0xe8] sm:$0xff]
    %v1186 = vld [vmem:[#allocation8 + $0xf0] sm:$0xff]
    %v1187 = vld [vmem:[#allocation8 + $0xf8] sm:$0xff]
    %v1188 = vld [vmem:[#allocation8 + $0x100] sm:$0xff]
    %v1189 = vld [vmem:[#allocation8 + $0x108] sm:$0xff]
    %v1190 = vld [vmem:[#allocation8 + $0x110] sm:$0xff]
    %v1191 = vld [vmem:[#allocation8 + $0x118] sm:$0xff]
    %v1192 = vld [vmem:[#allocation8 + $0x120] sm:$0xff]
    %v1193 = vld [vmem:[#allocation8 + $0x128] sm:$0xff]
    %v1194 = vld [vmem:[#allocation8 + $0x130] sm:$0xff]
    %v1195 = vld [vmem:[#allocation8 + $0x138] sm:$0xff]
    %v1196 = vld [vmem:[#allocation8 + $0x140] sm:$0xff]
    %v1197 = vld [vmem:[#allocation8 + $0x148] sm:$0xff]
    %v1198 = vld [vmem:[#allocation8 + $0x150] sm:$0xff]
    %v1199 = vld [vmem:[#allocation8 + $0x158] sm:$0xff]
    %v1200 = vld [vmem:[#allocation8 + $0x160] sm:$0xff]
    %v1201 = vld [vmem:[#allocation8 + $0x168] sm:$0xff]
    %v1202 = vld [vmem:[#allocation8 + $0x170] sm:$0xff]
    %v1203 = vld [vmem:[#allocation8 + $0x178] sm:$0xff]
    %v1204 = vld [vmem:[#allocation8 + $0x180] sm:$0xff]
    %v1205 = vld [vmem:[#allocation8 + $0x188] sm:$0xff]
    %v1206 = vld [vmem:[#allocation8 + $0x190] sm:$0xff]
    %v1207 = vld [vmem:[#allocation8 + $0x198] sm:$0xff]
    %v1208 = vld [vmem:[#allocation8 + $0x1a0] sm:$0xff]
    %v1209 = vld [vmem:[#allocation8 + $0x1a8] sm:$0xff]
    %v1210 = vld [vmem:[#allocation8 + $0x1b0] sm:$0xff]
    %v1211 = vld [vmem:[#allocation8 + $0x1b8] sm:$0xff]
    %v1212 = vld [vmem:[#allocation8 + $0x1c0] sm:$0xff]
    %v1213 = vld [vmem:[#allocation8 + $0x1c8] sm:$0xff]
    %v1214 = vld [vmem:[#allocation8 + $0x1d0] sm:$0xff]
    %v1215 = vld [vmem:[#allocation8 + $0x1d8] sm:$0xff]
    %v1216 = vld [vmem:[#allocation8 + $0x1e0] sm:$0xff]
    %v1217 = vld [vmem:[#allocation8 + $0x1e8] sm:$0xff]
    %v1218 = vld [vmem:[#allocation8 + $0x1f0] sm:$0xff]
    %v1219 = vld [vmem:[#allocation8 + $0x1f8] sm:$0xff]
    %v1220 = vld [vmem:[#allocation8 + $0x200] sm:$0xff]
    %v1221 = vld [vmem:[#allocation8 + $0x208] sm:$0xff]
    %v1222 = vld [vmem:[#allocation8 + $0x210] sm:$0xff]
    %v1223 = vld [vmem:[#allocation8 + $0x218] sm:$0xff]
    %v1224 = vld [vmem:[#allocation8 + $0x220] sm:$0xff]
    %v1225 = vld [vmem:[#allocation8 + $0x228] sm:$0xff]
    %v1226 = vld [vmem:[#allocation8 + $0x230] sm:$0xff]
    %v1227 = vld [vmem:[#allocation8 + $0x238] sm:$0xff]
    %v1228 = vld [vmem:[#allocation8 + $0x240] sm:$0xff]
    %v1229 = vld [vmem:[#allocation8 + $0x248] sm:$0xff]
    %v1230 = vld [vmem:[#allocation8 + $0x250] sm:$0xff]
    %v1231 = vld [vmem:[#allocation8 + $0x258] sm:$0xff]
    %v1232 = vld [vmem:[#allocation8 + $0x260] sm:$0xff]
    %v1233 = vld [vmem:[#allocation8 + $0x268] sm:$0xff]
    %v1234 = vld [vmem:[#allocation8 + $0x270] sm:$0xff]
    %v1235 = vld [vmem:[#allocation8 + $0x278] sm:$0xff]
    %v1236 = vld [vmem:[#allocation8 + $0x280] sm:$0xff]
    %v1237 = vld [vmem:[#allocation8 + $0x288] sm:$0xff]
    %v1238 = vld [vmem:[#allocation8 + $0x290] sm:$0xff]
    %v1239 = vld [vmem:[#allocation8 + $0x298] sm:$0xff]
    %v1240 = vld [vmem:[#allocation8 + $0x2a0] sm:$0xff]
    %v1241 = vld [vmem:[#allocation8 + $0x2a8] sm:$0xff]
    %v1242 = vld [vmem:[#allocation8 + $0x2b0] sm:$0xff]
    %v1243 = vld [vmem:[#allocation8 + $0x2b8] sm:$0xff]
    %v1244 = vld [vmem:[#allocation8 + $0x2c0] sm:$0xff]
    %v1245 = vld [vmem:[#allocation8 + $0x2c8] sm:$0xff]
    %v1246 = vld [vmem:[#allocation8 + $0x2d0] sm:$0xff]
    %v1247 = vld [vmem:[#allocation8 + $0x2d8] sm:$0xff]
    %v1248 = vld [vmem:[#allocation8 + $0x2e0] sm:$0xff]
    %v1249 = vld [vmem:[#allocation8 + $0x2e8] sm:$0xff]
    %v1250 = vld [vmem:[#allocation8 + $0x2f0] sm:$0xff]
    %v1251 = vld [vmem:[#allocation8 + $0x2f8] sm:$0xff]
    %v1252 = vld [vmem:[#allocation8 + $0x300] sm:$0xff]
    %v1253 = vld [vmem:[#allocation8 + $0x308] sm:$0xff]
    %v1254 = vld [vmem:[#allocation8 + $0x310] sm:$0xff]
    %v1255 = vld [vmem:[#allocation8 + $0x318] sm:$0xff]
    %v1256 = vld [vmem:[#allocation8 + $0x320] sm:$0xff]
    %v1257 = vld [vmem:[#allocation8 + $0x328] sm:$0xff]
    %v1258 = vld [vmem:[#allocation8 + $0x330] sm:$0xff]
    %v1259 = vld [vmem:[#allocation8 + $0x338] sm:$0xff]
    %v1260 = vld [vmem:[#allocation8 + $0x340] sm:$0xff]
    %v1261 = vld [vmem:[#allocation8 + $0x348] sm:$0xff]
    %v1262 = vld [vmem:[#allocation8 + $0x350] sm:$0xff]
    %v1263 = vld [vmem:[#allocation8 + $0x358] sm:$0xff]
    %v1264 = vld [vmem:[#allocation8 + $0x360] sm:$0xff]
    %v1265 = vld [vmem:[#allocation8 + $0x368] sm:$0xff]
    %v1266 = vld [vmem:[#allocation8 + $0x370] sm:$0xff]
    %v1267 = vld [vmem:[#allocation8 + $0x378] sm:$0xff]
    %v1268 = vld [vmem:[#allocation8 + $0x380] sm:$0xff]
    %v1269 = vld [vmem:[#allocation8 + $0x388] sm:$0xff]
    %v1270 = vld [vmem:[#allocation8 + $0x390] sm:$0xff]
    %v1271 = vld [vmem:[#allocation8 + $0x398] sm:$0xff]
    %v1272 = vld [vmem:[#allocation8 + $0x3a0] sm:$0xff]
    %v1273 = vld [vmem:[#allocation8 + $0x3a8] sm:$0xff]
    %v1274 = vld [vmem:[#allocation8 + $0x3b0] sm:$0xff]
    %v1275 = vld [vmem:[#allocation8 + $0x3b8] sm:$0xff]
    %v1276 = vld [vmem:[#allocation8 + $0x3c0] sm:$0xff]
    %v1277 = vld [vmem:[#allocation8 + $0x3c8] sm:$0xff]
    %v1278 = vld [vmem:[#allocation8 + $0x3d0] sm:$0xff]
    %v1279 = vld [vmem:[#allocation8 + $0x3d8] sm:$0xff]
    %v1280 = vld [vmem:[#allocation8 + $0x3e0] sm:$0xff]
    %v1281 = vld [vmem:[#allocation8 + $0x3e8] sm:$0xff]
    %v1282 = vld [vmem:[#allocation8 + $0x3f0] sm:$0xff]
    %v1283 = vld [vmem:[#allocation8 + $0x3f8] sm:$0xff]
    %v1284 = vld [vmem:[#allocation8 + $0x400] sm:$0xff]
    %v1285 = vld [vmem:[#allocation8 + $0x408] sm:$0xff]
    %v1286 = vld [vmem:[#allocation8 + $0x410] sm:$0xff]
    %v1287 = vld [vmem:[#allocation8 + $0x418] sm:$0xff]
    %v1288 = vld [vmem:[#allocation8 + $0x420] sm:$0xff]
    %v1289 = vld [vmem:[#allocation8 + $0x428] sm:$0xff]
    %v1290 = vld [vmem:[#allocation8 + $0x430] sm:$0xff]
    %v1291 = vld [vmem:[#allocation8 + $0x438] sm:$0xff]
    %v1292 = vld [vmem:[#allocation8 + $0x440] sm:$0xff]
    %v1293 = vld [vmem:[#allocation8 + $0x448] sm:$0xff]
    %v1294 = vld [vmem:[#allocation8 + $0x450] sm:$0xff]
    %v1295 = vld [vmem:[#allocation8 + $0x458] sm:$0xff]
    %v1296 = vld [vmem:[#allocation8 + $0x460] sm:$0xff]
    %v1297 = vld [vmem:[#allocation8 + $0x468] sm:$0xff]
    %v1298 = vld [vmem:[#allocation8 + $0x470] sm:$0xff]
    %v1299 = vld [vmem:[#allocation8 + $0x478] sm:$0xff]
    %v1300 = vld [vmem:[#allocation8 + $0x480] sm:$0xff]
    %v1301 = vld [vmem:[#allocation8 + $0x488] sm:$0xff]
    %v1302 = vld [vmem:[#allocation8 + $0x490] sm:$0xff]
    %v1303 = vld [vmem:[#allocation8 + $0x498] sm:$0xff]
    %v1304 = vld [vmem:[#allocation8 + $0x4a0] sm:$0xff]
    %v1305 = vld [vmem:[#allocation8 + $0x4a8] sm:$0xff]
    %v1306 = vld [vmem:[#allocation8 + $0x4b0] sm:$0xff]
    %v1307 = vld [vmem:[#allocation8 + $0x4b8] sm:$0xff]
    %v1308 = vld [vmem:[#allocation8 + $0x4c0] sm:$0xff]
    %v1309 = vld [vmem:[#allocation8 + $0x4c8] sm:$0xff]
    %v1310 = vld [vmem:[#allocation8 + $0x4d0] sm:$0xff]
    %v1311 = vld [vmem:[#allocation8 + $0x4d8] sm:$0xff]
    %v1312 = vld [vmem:[#allocation8 + $0x4e0] sm:$0xff]
    %v1313 = vld [vmem:[#allocation8 + $0x4e8] sm:$0xff]
    %v1314 = vld [vmem:[#allocation8 + $0x4f0] sm:$0xff]
    %v1315 = vld [vmem:[#allocation8 + $0x4f8] sm:$0xff]
    %v1316 = vld [vmem:[#allocation8 + $0x500] sm:$0xff]
    %v1317 = vld [vmem:[#allocation8 + $0x508] sm:$0xff]
    %v1318 = vld [vmem:[#allocation8 + $0x510] sm:$0xff]
    %v1319 = vld [vmem:[#allocation8 + $0x518] sm:$0xff]
    %v1320 = vld [vmem:[#allocation8 + $0x520] sm:$0xff]
    %v1321 = vld [vmem:[#allocation8 + $0x528] sm:$0xff]
    %v1322 = vld [vmem:[#allocation8 + $0x530] sm:$0xff]
    %v1323 = vld [vmem:[#allocation8 + $0x538] sm:$0xff]
    %v1324 = vld [vmem:[#allocation8 + $0x540] sm:$0xff]
    %v1325 = vld [vmem:[#allocation8 + $0x548] sm:$0xff]
    %v1326 = vld [vmem:[#allocation8 + $0x550] sm:$0xff]
    %v1327 = vld [vmem:[#allocation8 + $0x558] sm:$0xff]
    %v1328 = vld [vmem:[#allocation8 + $0x560] sm:$0xff]
    %v1329 = vld [vmem:[#allocation8 + $0x568] sm:$0xff]
    %v1330 = vld [vmem:[#allocation8 + $0x570] sm:$0xff]
    %v1331 = vld [vmem:[#allocation8 + $0x578] sm:$0xff]
    %v1332 = vld [vmem:[#allocation8 + $0x580] sm:$0xff]
    %v1333 = vld [vmem:[#allocation8 + $0x588] sm:$0xff]
    %v1334 = vld [vmem:[#allocation8 + $0x590] sm:$0xff]
    %v1335 = vld [vmem:[#allocation8 + $0x598] sm:$0xff]
    %v1336 = vld [vmem:[#allocation8 + $0x5a0] sm:$0xff]
    %v1337 = vld [vmem:[#allocation8 + $0x5a8] sm:$0xff]
    %v1338 = vld [vmem:[#allocation8 + $0x5b0] sm:$0xff]
    %v1339 = vld [vmem:[#allocation8 + $0x5b8] sm:$0xff]
    %v1340 = vld [vmem:[#allocation8 + $0x5c0] sm:$0xff]
    %v1341 = vld [vmem:[#allocation8 + $0x5c8] sm:$0xff]
    %v1342 = vld [vmem:[#allocation8 + $0x5d0] sm:$0xff]
    %v1343 = vld [vmem:[#allocation8 + $0x5d8] sm:$0xff]
    %v1344 = vld [vmem:[#allocation8 + $0x5e0] sm:$0xff]
    %v1345 = vld [vmem:[#allocation8 + $0x5e8] sm:$0xff]
    %v1346 = vld [vmem:[#allocation8 + $0x5f0] sm:$0xff]
    %v1347 = vld [vmem:[#allocation8 + $0x5f8] sm:$0xff]
    %v1348 = vld [vmem:[#allocation8 + $0x600] sm:$0xff]
    %v1349 = vld [vmem:[#allocation8 + $0x608] sm:$0xff]
    %v1350 = vld [vmem:[#allocation8 + $0x610] sm:$0xff]
    %v1351 = vld [vmem:[#allocation8 + $0x618] sm:$0xff]
    %v1352 = vld [vmem:[#allocation8 + $0x620] sm:$0xff]
    %v1353 = vld [vmem:[#allocation8 + $0x628] sm:$0xff]
    %v1354 = vld [vmem:[#allocation8 + $0x630] sm:$0xff]
    %v1355 = vld [vmem:[#allocation8 + $0x638] sm:$0xff]
    %v1356 = vld [vmem:[#allocation8 + $0x640] sm:$0xff]
    %v1357 = vld [vmem:[#allocation8 + $0x648] sm:$0xff]
    %v1358 = vld [vmem:[#allocation8 + $0x650] sm:$0xff]
    %v1359 = vld [vmem:[#allocation8 + $0x658] sm:$0xff]
    %v1360 = vld [vmem:[#allocation8 + $0x660] sm:$0xff]
    %v1361 = vld [vmem:[#allocation8 + $0x668] sm:$0xff]
    %v1362 = vld [vmem:[#allocation8 + $0x670] sm:$0xff]
    %v1363 = vld [vmem:[#allocation8 + $0x678] sm:$0xff]
    %v1364 = vld [vmem:[#allocation8 + $0x680] sm:$0xff]
    %v1365 = vld [vmem:[#allocation8 + $0x688] sm:$0xff]
    %v1366 = vld [vmem:[#allocation8 + $0x690] sm:$0xff]
    %v1367 = vld [vmem:[#allocation8 + $0x698] sm:$0xff]
    %v1368 = vld [vmem:[#allocation8 + $0x6a0] sm:$0xff]
    %v1369 = vld [vmem:[#allocation8 + $0x6a8] sm:$0xff]
    %v1370 = vld [vmem:[#allocation8 + $0x6b0] sm:$0xff]
    %v1371 = vld [vmem:[#allocation8 + $0x6b8] sm:$0xff]
    %v1372 = vld [vmem:[#allocation8 + $0x6c0] sm:$0xff]
    %v1373 = vld [vmem:[#allocation8 + $0x6c8] sm:$0xff]
    %v1374 = vld [vmem:[#allocation8 + $0x6d0] sm:$0xff]
    %v1375 = vld [vmem:[#allocation8 + $0x6d8] sm:$0xff]
    %v1376 = vld [vmem:[#allocation8 + $0x6e0] sm:$0xff]
    %v1377 = vld [vmem:[#allocation8 + $0x6e8] sm:$0xff]
    %v1378 = vld [vmem:[#allocation8 + $0x6f0] sm:$0xff]
    %v1379 = vld [vmem:[#allocation8 + $0x6f8] sm:$0xff]
    %v1380 = vld [vmem:[#allocation8 + $0x700] sm:$0xff]
    %v1381 = vld [vmem:[#allocation8 + $0x708] sm:$0xff]
    %v1382 = vld [vmem:[#allocation8 + $0x710] sm:$0xff]
    %v1383 = vld [vmem:[#allocation8 + $0x718] sm:$0xff]
    %v1384 = vld [vmem:[#allocation8 + $0x720] sm:$0xff]
    %v1385 = vld [vmem:[#allocation8 + $0x728] sm:$0xff]
    %v1386 = vld [vmem:[#allocation8 + $0x730] sm:$0xff]
    %v1387 = vld [vmem:[#allocation8 + $0x738] sm:$0xff]
    %v1388 = vld [vmem:[#allocation8 + $0x740] sm:$0xff]
    %v1389 = vld [vmem:[#allocation8 + $0x748] sm:$0xff]
    %v1390 = vld [vmem:[#allocation8 + $0x750] sm:$0xff]
    %v1391 = vld [vmem:[#allocation8 + $0x758] sm:$0xff]
    %v1392 = vld [vmem:[#allocation8 + $0x760] sm:$0xff]
    %v1393 = vld [vmem:[#allocation8 + $0x768] sm:$0xff]
    %v1394 = vld [vmem:[#allocation8 + $0x770] sm:$0xff]
    %v1395 = vld [vmem:[#allocation8 + $0x778] sm:$0xff]
    %v1396 = vld [vmem:[#allocation8 + $0x780] sm:$0xff]
    %v1397 = vld [vmem:[#allocation8 + $0x788] sm:$0xff]
    %v1398 = vld [vmem:[#allocation8 + $0x790] sm:$0xff]
    %v1399 = vld [vmem:[#allocation8 + $0x798] sm:$0xff]
    %v1400 = vld [vmem:[#allocation8 + $0x7a0] sm:$0xff]
    %v1401 = vld [vmem:[#allocation8 + $0x7a8] sm:$0xff]
    %v1402 = vld [vmem:[#allocation8 + $0x7b0] sm:$0xff]
    %v1403 = vld [vmem:[#allocation8 + $0x7b8] sm:$0xff]
    %v1404 = vld [vmem:[#allocation8 + $0x7c0] sm:$0xff]
    %v1405 = vld [vmem:[#allocation8 + $0x7c8] sm:$0xff]
    %v1406 = vld [vmem:[#allocation8 + $0x7d0] sm:$0xff]
    %v1407 = vld [vmem:[#allocation8 + $0x7d8] sm:$0xff]
    %v1408 = vld [vmem:[#allocation8 + $0x7e0] sm:$0xff]
    %v1409 = vld [vmem:[#allocation8 + $0x7e8] sm:$0xff]
    %v1410 = vld [vmem:[#allocation8 + $0x7f0] sm:$0xff]
    %v1411 = vld [vmem:[#allocation8 + $0x7f8] sm:$0xff]
    %v1412 = vld [vmem:[#allocation10] sm:$0xff]
    %v1414 = vperm.slane %v1412, 0
    %v1415 = vperm.slane %v1412, 1
    %v1416 = vperm.slane %v1412, 2
    %v1417 = vperm.slane %v1412, 3
    %v1418 = vperm.slane %v1412, 4
    %v1419 = vperm.slane %v1412, 5
    %v1420 = vperm.slane %v1412, 6
    %v1421 = vperm.slane %v1412, 7
    %v1686 = vunpack.c.l.b16 %v1156
    %v1687 = vunpack.c.h.b16 %v1156
    %v1688 = vunpack.c.l.b16 %v1157
    %v1689 = vunpack.c.h.b16 %v1157
    %v1690 = vunpack.c.l.b16 %v1158
    %v1691 = vunpack.c.h.b16 %v1158
    %v1692 = vunpack.c.l.b16 %v1159
    %v1693 = vunpack.c.h.b16 %v1159
    %v1694 = vunpack.c.l.b16 %v1160
    %v1695 = vunpack.c.h.b16 %v1160
    %v1696 = vunpack.c.l.b16 %v1161
    %v1697 = vunpack.c.h.b16 %v1161
    %v1698 = vunpack.c.l.b16 %v1162
    %v1699 = vunpack.c.h.b16 %v1162
    %v1700 = vunpack.c.l.b16 %v1163
    %v1701 = vunpack.c.h.b16 %v1163
    %v1702 = vunpack.c.l.b16 %v1164
    %v1703 = vunpack.c.h.b16 %v1164
    %v1704 = vunpack.c.l.b16 %v1165
    %v1705 = vunpack.c.h.b16 %v1165
    %v1706 = vunpack.c.l.b16 %v1166
    %v1707 = vunpack.c.h.b16 %v1166
    %v1708 = vunpack.c.l.b16 %v1167
    %v1709 = vunpack.c.h.b16 %v1167
    %v1710 = vunpack.c.l.b16 %v1168
    %v1711 = vunpack.c.h.b16 %v1168
    %v1712 = vunpack.c.l.b16 %v1169
    %v1713 = vunpack.c.h.b16 %v1169
    %v1714 = vunpack.c.l.b16 %v1170
    %v1715 = vunpack.c.h.b16 %v1170
    %v1716 = vunpack.c.l.b16 %v1171
    %v1717 = vunpack.c.h.b16 %v1171
    %v1718 = vunpack.c.l.b16 %v1172
    %v1719 = vunpack.c.h.b16 %v1172
    %v1720 = vunpack.c.l.b16 %v1173
    %v1721 = vunpack.c.h.b16 %v1173
    %v1722 = vunpack.c.l.b16 %v1174
    %v1723 = vunpack.c.h.b16 %v1174
    %v1724 = vunpack.c.l.b16 %v1175
    %v1725 = vunpack.c.h.b16 %v1175
    %v1726 = vunpack.c.l.b16 %v1176
    %v1727 = vunpack.c.h.b16 %v1176
    %v1728 = vunpack.c.l.b16 %v1177
    %v1729 = vunpack.c.h.b16 %v1177
    %v1730 = vunpack.c.l.b16 %v1178
    %v1731 = vunpack.c.h.b16 %v1178
    %v1732 = vunpack.c.l.b16 %v1179
    %v1733 = vunpack.c.h.b16 %v1179
    %v1734 = vunpack.c.l.b16 %v1180
    %v1735 = vunpack.c.h.b16 %v1180
    %v1736 = vunpack.c.l.b16 %v1181
    %v1737 = vunpack.c.h.b16 %v1181
    %v1738 = vunpack.c.l.b16 %v1182
    %v1739 = vunpack.c.h.b16 %v1182
    %v1740 = vunpack.c.l.b16 %v1183
    %v1741 = vunpack.c.h.b16 %v1183
    %v1742 = vunpack.c.l.b16 %v1184
    %v1743 = vunpack.c.h.b16 %v1184
    %v1744 = vunpack.c.l.b16 %v1185
    %v1745 = vunpack.c.h.b16 %v1185
    %v1746 = vunpack.c.l.b16 %v1186
    %v1747 = vunpack.c.h.b16 %v1186
    %v1748 = vunpack.c.l.b16 %v1187
    %v1749 = vunpack.c.h.b16 %v1187
    %v1750 = vunpack.c.l.b16 %v1188
    %v1751 = vunpack.c.h.b16 %v1188
    %v1752 = vunpack.c.l.b16 %v1189
    %v1753 = vunpack.c.h.b16 %v1189
    %v1754 = vunpack.c.l.b16 %v1190
    %v1755 = vunpack.c.h.b16 %v1190
    %v1756 = vunpack.c.l.b16 %v1191
    %v1757 = vunpack.c.h.b16 %v1191
    %v1758 = vunpack.c.l.b16 %v1192
    %v1759 = vunpack.c.h.b16 %v1192
    %v1760 = vunpack.c.l.b16 %v1193
    %v1761 = vunpack.c.h.b16 %v1193
    %v1762 = vunpack.c.l.b16 %v1194
    %v1763 = vunpack.c.h.b16 %v1194
    %v1764 = vunpack.c.l.b16 %v1195
    %v1765 = vunpack.c.h.b16 %v1195
    %v1766 = vunpack.c.l.b16 %v1196
    %v1767 = vunpack.c.h.b16 %v1196
    %v1768 = vunpack.c.l.b16 %v1197
    %v1769 = vunpack.c.h.b16 %v1197
    %v1770 = vunpack.c.l.b16 %v1198
    %v1771 = vunpack.c.h.b16 %v1198
    %v1772 = vunpack.c.l.b16 %v1199
    %v1773 = vunpack.c.h.b16 %v1199
    %v1774 = vunpack.c.l.b16 %v1200
    %v1775 = vunpack.c.h.b16 %v1200
    %v1776 = vunpack.c.l.b16 %v1201
    %v1777 = vunpack.c.h.b16 %v1201
    %v1778 = vunpack.c.l.b16 %v1202
    %v1779 = vunpack.c.h.b16 %v1202
    %v1780 = vunpack.c.l.b16 %v1203
    %v1781 = vunpack.c.h.b16 %v1203
    %v1782 = vunpack.c.l.b16 %v1204
    %v1783 = vunpack.c.h.b16 %v1204
    %v1784 = vunpack.c.l.b16 %v1205
    %v1785 = vunpack.c.h.b16 %v1205
    %v1786 = vunpack.c.l.b16 %v1206
    %v1787 = vunpack.c.h.b16 %v1206
    %v1788 = vunpack.c.l.b16 %v1207
    %v1789 = vunpack.c.h.b16 %v1207
    %v1790 = vunpack.c.l.b16 %v1208
    %v1791 = vunpack.c.h.b16 %v1208
    %v1792 = vunpack.c.l.b16 %v1209
    %v1793 = vunpack.c.h.b16 %v1209
    %v1794 = vunpack.c.l.b16 %v1210
    %v1795 = vunpack.c.h.b16 %v1210
    %v1796 = vunpack.c.l.b16 %v1211
    %v1797 = vunpack.c.h.b16 %v1211
    %v1798 = vunpack.c.l.b16 %v1212
    %v1799 = vunpack.c.h.b16 %v1212
    %v1800 = vunpack.c.l.b16 %v1213
    %v1801 = vunpack.c.h.b16 %v1213
    %v1802 = vunpack.c.l.b16 %v1214
    %v1803 = vunpack.c.h.b16 %v1214
    %v1804 = vunpack.c.l.b16 %v1215
    %v1805 = vunpack.c.h.b16 %v1215
    %v1806 = vunpack.c.l.b16 %v1216
    %v1807 = vunpack.c.h.b16 %v1216
    %v1808 = vunpack.c.l.b16 %v1217
    %v1809 = vunpack.c.h.b16 %v1217
    %v1810 = vunpack.c.l.b16 %v1218
    %v1811 = vunpack.c.h.b16 %v1218
    %v1812 = vunpack.c.l.b16 %v1219
    %v1813 = vunpack.c.h.b16 %v1219
    %v1814 = vunpack.c.l.b16 %v1220
    %v1815 = vunpack.c.h.b16 %v1220
    %v1816 = vunpack.c.l.b16 %v1221
    %v1817 = vunpack.c.h.b16 %v1221
    %v1818 = vunpack.c.l.b16 %v1222
    %v1819 = vunpack.c.h.b16 %v1222
    %v1820 = vunpack.c.l.b16 %v1223
    %v1821 = vunpack.c.h.b16 %v1223
    %v1822 = vunpack.c.l.b16 %v1224
    %v1823 = vunpack.c.h.b16 %v1224
    %v1824 = vunpack.c.l.b16 %v1225
    %v1825 = vunpack.c.h.b16 %v1225
    %v1826 = vunpack.c.l.b16 %v1226
    %v1827 = vunpack.c.h.b16 %v1226
    %v1828 = vunpack.c.l.b16 %v1227
    %v1829 = vunpack.c.h.b16 %v1227
    %v1830 = vunpack.c.l.b16 %v1228
    %v1831 = vunpack.c.h.b16 %v1228
    %v1832 = vunpack.c.l.b16 %v1229
    %v1833 = vunpack.c.h.b16 %v1229
    %v1834 = vunpack.c.l.b16 %v1230
    %v1835 = vunpack.c.h.b16 %v1230
    %v1836 = vunpack.c.l.b16 %v1231
    %v1837 = vunpack.c.h.b16 %v1231
    %v1838 = vunpack.c.l.b16 %v1232
    %v1839 = vunpack.c.h.b16 %v1232
    %v1840 = vunpack.c.l.b16 %v1233
    %v1841 = vunpack.c.h.b16 %v1233
    %v1842 = vunpack.c.l.b16 %v1234
    %v1843 = vunpack.c.h.b16 %v1234
    %v1844 = vunpack.c.l.b16 %v1235
    %v1845 = vunpack.c.h.b16 %v1235
    %v1846 = vunpack.c.l.b16 %v1236
    %v1847 = vunpack.c.h.b16 %v1236
    %v1848 = vunpack.c.l.b16 %v1237
    %v1849 = vunpack.c.h.b16 %v1237
    %v1850 = vunpack.c.l.b16 %v1238
    %v1851 = vunpack.c.h.b16 %v1238
    %v1852 = vunpack.c.l.b16 %v1239
    %v1853 = vunpack.c.h.b16 %v1239
    %v1854 = vunpack.c.l.b16 %v1240
    %v1855 = vunpack.c.h.b16 %v1240
    %v1856 = vunpack.c.l.b16 %v1241
    %v1857 = vunpack.c.h.b16 %v1241
    %v1858 = vunpack.c.l.b16 %v1242
    %v1859 = vunpack.c.h.b16 %v1242
    %v1860 = vunpack.c.l.b16 %v1243
    %v1861 = vunpack.c.h.b16 %v1243
    %v1862 = vunpack.c.l.b16 %v1244
    %v1863 = vunpack.c.h.b16 %v1244
    %v1864 = vunpack.c.l.b16 %v1245
    %v1865 = vunpack.c.h.b16 %v1245
    %v1866 = vunpack.c.l.b16 %v1246
    %v1867 = vunpack.c.h.b16 %v1246
    %v1868 = vunpack.c.l.b16 %v1247
    %v1869 = vunpack.c.h.b16 %v1247
    %v1870 = vunpack.c.l.b16 %v1248
    %v1871 = vunpack.c.h.b16 %v1248
    %v1872 = vunpack.c.l.b16 %v1249
    %v1873 = vunpack.c.h.b16 %v1249
    %v1874 = vunpack.c.l.b16 %v1250
    %v1875 = vunpack.c.h.b16 %v1250
    %v1876 = vunpack.c.l.b16 %v1251
    %v1877 = vunpack.c.h.b16 %v1251
    %v1878 = vunpack.c.l.b16 %v1252
    %v1879 = vunpack.c.h.b16 %v1252
    %v1880 = vunpack.c.l.b16 %v1253
    %v1881 = vunpack.c.h.b16 %v1253
    %v1882 = vunpack.c.l.b16 %v1254
    %v1883 = vunpack.c.h.b16 %v1254
    %v1884 = vunpack.c.l.b16 %v1255
    %v1885 = vunpack.c.h.b16 %v1255
    %v1886 = vunpack.c.l.b16 %v1256
    %v1887 = vunpack.c.h.b16 %v1256
    %v1888 = vunpack.c.l.b16 %v1257
    %v1889 = vunpack.c.h.b16 %v1257
    %v1890 = vunpack.c.l.b16 %v1258
    %v1891 = vunpack.c.h.b16 %v1258
    %v1892 = vunpack.c.l.b16 %v1259
    %v1893 = vunpack.c.h.b16 %v1259
    %v1894 = vunpack.c.l.b16 %v1260
    %v1895 = vunpack.c.h.b16 %v1260
    %v1896 = vunpack.c.l.b16 %v1261
    %v1897 = vunpack.c.h.b16 %v1261
    %v1898 = vunpack.c.l.b16 %v1262
    %v1899 = vunpack.c.h.b16 %v1262
    %v1900 = vunpack.c.l.b16 %v1263
    %v1901 = vunpack.c.h.b16 %v1263
    %v1902 = vunpack.c.l.b16 %v1264
    %v1903 = vunpack.c.h.b16 %v1264
    %v1904 = vunpack.c.l.b16 %v1265
    %v1905 = vunpack.c.h.b16 %v1265
    %v1906 = vunpack.c.l.b16 %v1266
    %v1907 = vunpack.c.h.b16 %v1266
    %v1908 = vunpack.c.l.b16 %v1267
    %v1909 = vunpack.c.h.b16 %v1267
    %v1910 = vunpack.c.l.b16 %v1268
    %v1911 = vunpack.c.h.b16 %v1268
    %v1912 = vunpack.c.l.b16 %v1269
    %v1913 = vunpack.c.h.b16 %v1269
    %v1914 = vunpack.c.l.b16 %v1270
    %v1915 = vunpack.c.h.b16 %v1270
    %v1916 = vunpack.c.l.b16 %v1271
    %v1917 = vunpack.c.h.b16 %v1271
    %v1918 = vunpack.c.l.b16 %v1272
    %v1919 = vunpack.c.h.b16 %v1272
    %v1920 = vunpack.c.l.b16 %v1273
    %v1921 = vunpack.c.h.b16 %v1273
    %v1922 = vunpack.c.l.b16 %v1274
    %v1923 = vunpack.c.h.b16 %v1274
    %v1924 = vunpack.c.l.b16 %v1275
    %v1925 = vunpack.c.h.b16 %v1275
    %v1926 = vunpack.c.l.b16 %v1276
    %v1927 = vunpack.c.h.b16 %v1276
    %v1928 = vunpack.c.l.b16 %v1277
    %v1929 = vunpack.c.h.b16 %v1277
    %v1930 = vunpack.c.l.b16 %v1278
    %v1931 = vunpack.c.h.b16 %v1278
    %v1932 = vunpack.c.l.b16 %v1279
    %v1933 = vunpack.c.h.b16 %v1279
    %v1934 = vunpack.c.l.b16 %v1280
    %v1935 = vunpack.c.h.b16 %v1280
    %v1936 = vunpack.c.l.b16 %v1281
    %v1937 = vunpack.c.h.b16 %v1281
    %v1938 = vunpack.c.l.b16 %v1282
    %v1939 = vunpack.c.h.b16 %v1282
    %v1940 = vunpack.c.l.b16 %v1283
    %v1941 = vunpack.c.h.b16 %v1283
    %v1942 = vunpack.c.l.b16 %v1284
    %v1943 = vunpack.c.h.b16 %v1284
    %v1944 = vunpack.c.l.b16 %v1285
    %v1945 = vunpack.c.h.b16 %v1285
    %v1946 = vunpack.c.l.b16 %v1286
    %v1947 = vunpack.c.h.b16 %v1286
    %v1948 = vunpack.c.l.b16 %v1287
    %v1949 = vunpack.c.h.b16 %v1287
    %v1950 = vunpack.c.l.b16 %v1288
    %v1951 = vunpack.c.h.b16 %v1288
    %v1952 = vunpack.c.l.b16 %v1289
    %v1953 = vunpack.c.h.b16 %v1289
    %v1954 = vunpack.c.l.b16 %v1290
    %v1955 = vunpack.c.h.b16 %v1290
    %v1956 = vunpack.c.l.b16 %v1291
    %v1957 = vunpack.c.h.b16 %v1291
    %v1958 = vunpack.c.l.b16 %v1292
    %v1959 = vunpack.c.h.b16 %v1292
    %v1960 = vunpack.c.l.b16 %v1293
    %v1961 = vunpack.c.h.b16 %v1293
    %v1962 = vunpack.c.l.b16 %v1294
    %v1963 = vunpack.c.h.b16 %v1294
    %v1964 = vunpack.c.l.b16 %v1295
    %v1965 = vunpack.c.h.b16 %v1295
    %v1966 = vunpack.c.l.b16 %v1296
    %v1967 = vunpack.c.h.b16 %v1296
    %v1968 = vunpack.c.l.b16 %v1297
    %v1969 = vunpack.c.h.b16 %v1297
    %v1970 = vunpack.c.l.b16 %v1298
    %v1971 = vunpack.c.h.b16 %v1298
    %v1972 = vunpack.c.l.b16 %v1299
    %v1973 = vunpack.c.h.b16 %v1299
    %v1974 = vunpack.c.l.b16 %v1300
    %v1975 = vunpack.c.h.b16 %v1300
    %v1976 = vunpack.c.l.b16 %v1301
    %v1977 = vunpack.c.h.b16 %v1301
    %v1978 = vunpack.c.l.b16 %v1302
    %v1979 = vunpack.c.h.b16 %v1302
    %v1980 = vunpack.c.l.b16 %v1303
    %v1981 = vunpack.c.h.b16 %v1303
    %v1982 = vunpack.c.l.b16 %v1304
    %v1983 = vunpack.c.h.b16 %v1304
    %v1984 = vunpack.c.l.b16 %v1305
    %v1985 = vunpack.c.h.b16 %v1305
    %v1986 = vunpack.c.l.b16 %v1306
    %v1987 = vunpack.c.h.b16 %v1306
    %v1988 = vunpack.c.l.b16 %v1307
    %v1989 = vunpack.c.h.b16 %v1307
    %v1990 = vunpack.c.l.b16 %v1308
    %v1991 = vunpack.c.h.b16 %v1308
    %v1992 = vunpack.c.l.b16 %v1309
    %v1993 = vunpack.c.h.b16 %v1309
    %v1994 = vunpack.c.l.b16 %v1310
    %v1995 = vunpack.c.h.b16 %v1310
    %v1996 = vunpack.c.l.b16 %v1311
    %v1997 = vunpack.c.h.b16 %v1311
    %v1998 = vunpack.c.l.b16 %v1312
    %v1999 = vunpack.c.h.b16 %v1312
    %v2000 = vunpack.c.l.b16 %v1313
    %v2001 = vunpack.c.h.b16 %v1313
    %v2002 = vunpack.c.l.b16 %v1314
    %v2003 = vunpack.c.h.b16 %v1314
    %v2004 = vunpack.c.l.b16 %v1315
    %v2005 = vunpack.c.h.b16 %v1315
    %v2006 = vunpack.c.l.b16 %v1316
    %v2007 = vunpack.c.h.b16 %v1316
    %v2008 = vunpack.c.l.b16 %v1317
    %v2009 = vunpack.c.h.b16 %v1317
    %v2010 = vunpack.c.l.b16 %v1318
    %v2011 = vunpack.c.h.b16 %v1318
    %v2012 = vunpack.c.l.b16 %v1319
    %v2013 = vunpack.c.h.b16 %v1319
    %v2014 = vunpack.c.l.b16 %v1320
    %v2015 = vunpack.c.h.b16 %v1320
    %v2016 = vunpack.c.l.b16 %v1321
    %v2017 = vunpack.c.h.b16 %v1321
    %v2018 = vunpack.c.l.b16 %v1322
    %v2019 = vunpack.c.h.b16 %v1322
    %v2020 = vunpack.c.l.b16 %v1323
    %v2021 = vunpack.c.h.b16 %v1323
    %v2022 = vunpack.c.l.b16 %v1324
    %v2023 = vunpack.c.h.b16 %v1324
    %v2024 = vunpack.c.l.b16 %v1325
    %v2025 = vunpack.c.h.b16 %v1325
    %v2026 = vunpack.c.l.b16 %v1326
    %v2027 = vunpack.c.h.b16 %v1326
    %v2028 = vunpack.c.l.b16 %v1327
    %v2029 = vunpack.c.h.b16 %v1327
    %v2030 = vunpack.c.l.b16 %v1328
    %v2031 = vunpack.c.h.b16 %v1328
    %v2032 = vunpack.c.l.b16 %v1329
    %v2033 = vunpack.c.h.b16 %v1329
    %v2034 = vunpack.c.l.b16 %v1330
    %v2035 = vunpack.c.h.b16 %v1330
    %v2036 = vunpack.c.l.b16 %v1331
    %v2037 = vunpack.c.h.b16 %v1331
    %v2038 = vunpack.c.l.b16 %v1332
    %v2039 = vunpack.c.h.b16 %v1332
    %v2040 = vunpack.c.l.b16 %v1333
    %v2041 = vunpack.c.h.b16 %v1333
    %v2042 = vunpack.c.l.b16 %v1334
    %v2043 = vunpack.c.h.b16 %v1334
    %v2044 = vunpack.c.l.b16 %v1335
    %v2045 = vunpack.c.h.b16 %v1335
    %v2046 = vunpack.c.l.b16 %v1336
    %v2047 = vunpack.c.h.b16 %v1336
    %v2048 = vunpack.c.l.b16 %v1337
    %v2049 = vunpack.c.h.b16 %v1337
    %v2050 = vunpack.c.l.b16 %v1338
    %v2051 = vunpack.c.h.b16 %v1338
    %v2052 = vunpack.c.l.b16 %v1339
    %v2053 = vunpack.c.h.b16 %v1339
    %v2054 = vunpack.c.l.b16 %v1340
    %v2055 = vunpack.c.h.b16 %v1340
    %v2056 = vunpack.c.l.b16 %v1341
    %v2057 = vunpack.c.h.b16 %v1341
    %v2058 = vunpack.c.l.b16 %v1342
    %v2059 = vunpack.c.h.b16 %v1342
    %v2060 = vunpack.c.l.b16 %v1343
    %v2061 = vunpack.c.h.b16 %v1343
    %v2062 = vunpack.c.l.b16 %v1344
    %v2063 = vunpack.c.h.b16 %v1344
    %v2064 = vunpack.c.l.b16 %v1345
    %v2065 = vunpack.c.h.b16 %v1345
    %v2066 = vunpack.c.l.b16 %v1346
    %v2067 = vunpack.c.h.b16 %v1346
    %v2068 = vunpack.c.l.b16 %v1347
    %v2069 = vunpack.c.h.b16 %v1347
    %v2070 = vunpack.c.l.b16 %v1348
    %v2071 = vunpack.c.h.b16 %v1348
    %v2072 = vunpack.c.l.b16 %v1349
    %v2073 = vunpack.c.h.b16 %v1349
    %v2074 = vunpack.c.l.b16 %v1350
    %v2075 = vunpack.c.h.b16 %v1350
    %v2076 = vunpack.c.l.b16 %v1351
    %v2077 = vunpack.c.h.b16 %v1351
    %v2078 = vunpack.c.l.b16 %v1352
    %v2079 = vunpack.c.h.b16 %v1352
    %v2080 = vunpack.c.l.b16 %v1353
    %v2081 = vunpack.c.h.b16 %v1353
    %v2082 = vunpack.c.l.b16 %v1354
    %v2083 = vunpack.c.h.b16 %v1354
    %v2084 = vunpack.c.l.b16 %v1355
    %v2085 = vunpack.c.h.b16 %v1355
    %v2086 = vunpack.c.l.b16 %v1356
    %v2087 = vunpack.c.h.b16 %v1356
    %v2088 = vunpack.c.l.b16 %v1357
    %v2089 = vunpack.c.h.b16 %v1357
    %v2090 = vunpack.c.l.b16 %v1358
    %v2091 = vunpack.c.h.b16 %v1358
    %v2092 = vunpack.c.l.b16 %v1359
    %v2093 = vunpack.c.h.b16 %v1359
    %v2094 = vunpack.c.l.b16 %v1360
    %v2095 = vunpack.c.h.b16 %v1360
    %v2096 = vunpack.c.l.b16 %v1361
    %v2097 = vunpack.c.h.b16 %v1361
    %v2098 = vunpack.c.l.b16 %v1362
    %v2099 = vunpack.c.h.b16 %v1362
    %v2100 = vunpack.c.l.b16 %v1363
    %v2101 = vunpack.c.h.b16 %v1363
    %v2102 = vunpack.c.l.b16 %v1364
    %v2103 = vunpack.c.h.b16 %v1364
    %v2104 = vunpack.c.l.b16 %v1365
    %v2105 = vunpack.c.h.b16 %v1365
    %v2106 = vunpack.c.l.b16 %v1366
    %v2107 = vunpack.c.h.b16 %v1366
    %v2108 = vunpack.c.l.b16 %v1367
    %v2109 = vunpack.c.h.b16 %v1367
    %v2110 = vunpack.c.l.b16 %v1368
    %v2111 = vunpack.c.h.b16 %v1368
    %v2112 = vunpack.c.l.b16 %v1369
    %v2113 = vunpack.c.h.b16 %v1369
    %v2114 = vunpack.c.l.b16 %v1370
    %v2115 = vunpack.c.h.b16 %v1370
    %v2116 = vunpack.c.l.b16 %v1371
    %v2117 = vunpack.c.h.b16 %v1371
    %v2118 = vunpack.c.l.b16 %v1372
    %v2119 = vunpack.c.h.b16 %v1372
    %v2120 = vunpack.c.l.b16 %v1373
    %v2121 = vunpack.c.h.b16 %v1373
    %v2122 = vunpack.c.l.b16 %v1374
    %v2123 = vunpack.c.h.b16 %v1374
    %v2124 = vunpack.c.l.b16 %v1375
    %v2125 = vunpack.c.h.b16 %v1375
    %v2126 = vunpack.c.l.b16 %v1376
    %v2127 = vunpack.c.h.b16 %v1376
    %v2128 = vunpack.c.l.b16 %v1377
    %v2129 = vunpack.c.h.b16 %v1377
    %v2130 = vunpack.c.l.b16 %v1378
    %v2131 = vunpack.c.h.b16 %v1378
    %v2132 = vunpack.c.l.b16 %v1379
    %v2133 = vunpack.c.h.b16 %v1379
    %v2134 = vunpack.c.l.b16 %v1380
    %v2135 = vunpack.c.h.b16 %v1380
    %v2136 = vunpack.c.l.b16 %v1381
    %v2137 = vunpack.c.h.b16 %v1381
    %v2138 = vunpack.c.l.b16 %v1382
    %v2139 = vunpack.c.h.b16 %v1382
    %v2140 = vunpack.c.l.b16 %v1383
    %v2141 = vunpack.c.h.b16 %v1383
    %v2142 = vunpack.c.l.b16 %v1384
    %v2143 = vunpack.c.h.b16 %v1384
    %v2144 = vunpack.c.l.b16 %v1385
    %v2145 = vunpack.c.h.b16 %v1385
    %v2146 = vunpack.c.l.b16 %v1386
    %v2147 = vunpack.c.h.b16 %v1386
    %v2148 = vunpack.c.l.b16 %v1387
    %v2149 = vunpack.c.h.b16 %v1387
    %v2150 = vunpack.c.l.b16 %v1388
    %v2151 = vunpack.c.h.b16 %v1388
    %v2152 = vunpack.c.l.b16 %v1389
    %v2153 = vunpack.c.h.b16 %v1389
    %v2154 = vunpack.c.l.b16 %v1390
    %v2155 = vunpack.c.h.b16 %v1390
    %v2156 = vunpack.c.l.b16 %v1391
    %v2157 = vunpack.c.h.b16 %v1391
    %v2158 = vunpack.c.l.b16 %v1392
    %v2159 = vunpack.c.h.b16 %v1392
    %v2160 = vunpack.c.l.b16 %v1393
    %v2161 = vunpack.c.h.b16 %v1393
    %v2162 = vunpack.c.l.b16 %v1394
    %v2163 = vunpack.c.h.b16 %v1394
    %v2164 = vunpack.c.l.b16 %v1395
    %v2165 = vunpack.c.h.b16 %v1395
    %v2166 = vunpack.c.l.b16 %v1396
    %v2167 = vunpack.c.h.b16 %v1396
    %v2168 = vunpack.c.l.b16 %v1397
    %v2169 = vunpack.c.h.b16 %v1397
    %v2170 = vunpack.c.l.b16 %v1398
    %v2171 = vunpack.c.h.b16 %v1398
    %v2172 = vunpack.c.l.b16 %v1399
    %v2173 = vunpack.c.h.b16 %v1399
    %v2174 = vunpack.c.l.b16 %v1400
    %v2175 = vunpack.c.h.b16 %v1400
    %v2176 = vunpack.c.l.b16 %v1401
    %v2177 = vunpack.c.h.b16 %v1401
    %v2178 = vunpack.c.l.b16 %v1402
    %v2179 = vunpack.c.h.b16 %v1402
    %v2180 = vunpack.c.l.b16 %v1403
    %v2181 = vunpack.c.h.b16 %v1403
    %v2182 = vunpack.c.l.b16 %v1404
    %v2183 = vunpack.c.h.b16 %v1404
    %v2184 = vunpack.c.l.b16 %v1405
    %v2185 = vunpack.c.h.b16 %v1405
    %v2186 = vunpack.c.l.b16 %v1406
    %v2187 = vunpack.c.h.b16 %v1406
    %v2188 = vunpack.c.l.b16 %v1407
    %v2189 = vunpack.c.h.b16 %v1407
    %v2190 = vunpack.c.l.b16 %v1408
    %v2191 = vunpack.c.h.b16 %v1408
    %v2192 = vunpack.c.l.b16 %v1409
    %v2193 = vunpack.c.h.b16 %v1409
    %v2194 = vunpack.c.l.b16 %v1410
    %v2195 = vunpack.c.h.b16 %v1410
    %v2196 = vunpack.c.l.b16 %v1411
    %v2197 = vunpack.c.h.b16 %v1411
    %v2198 = vpack.c.b16 %v1694, %v1686
    %v2199 = vpack.c.b16 %v1695, %v1687
    %v2200 = vpack.c.b16 %v1696, %v1688
    %v2201 = vpack.c.b16 %v1697, %v1689
    %v2202 = vpack.c.b16 %v1698, %v1690
    %v2203 = vpack.c.b16 %v1699, %v1691
    %v2204 = vpack.c.b16 %v1700, %v1692
    %v2205 = vpack.c.b16 %v1701, %v1693
    %v2206 = vpack.c.b16 %v1710, %v1702
    %v2207 = vpack.c.b16 %v1711, %v1703
    %v2208 = vpack.c.b16 %v1712, %v1704
    %v2209 = vpack.c.b16 %v1713, %v1705
    %v2210 = vpack.c.b16 %v1714, %v1706
    %v2211 = vpack.c.b16 %v1715, %v1707
    %v2212 = vpack.c.b16 %v1716, %v1708
    %v2213 = vpack.c.b16 %v1717, %v1709
    %v2214 = vpack.c.b16 %v1726, %v1718
    %v2215 = vpack.c.b16 %v1727, %v1719
    %v2216 = vpack.c.b16 %v1728, %v1720
    %v2217 = vpack.c.b16 %v1729, %v1721
    %v2218 = vpack.c.b16 %v1730, %v1722
    %v2219 = vpack.c.b16 %v1731, %v1723
    %v2220 = vpack.c.b16 %v1732, %v1724
    %v2221 = vpack.c.b16 %v1733, %v1725
    %v2222 = vpack.c.b16 %v1742, %v1734
    %v2223 = vpack.c.b16 %v1743, %v1735
    %v2224 = vpack.c.b16 %v1744, %v1736
    %v2225 = vpack.c.b16 %v1745, %v1737
    %v2226 = vpack.c.b16 %v1746, %v1738
    %v2227 = vpack.c.b16 %v1747, %v1739
    %v2228 = vpack.c.b16 %v1748, %v1740
    %v2229 = vpack.c.b16 %v1749, %v1741
    %v2230 = vpack.c.b16 %v1758, %v1750
    %v2231 = vpack.c.b16 %v1759, %v1751
    %v2232 = vpack.c.b16 %v1760, %v1752
    %v2233 = vpack.c.b16 %v1761, %v1753
    %v2234 = vpack.c.b16 %v1762, %v1754
    %v2235 = vpack.c.b16 %v1763, %v1755
    %v2236 = vpack.c.b16 %v1764, %v1756
    %v2237 = vpack.c.b16 %v1765, %v1757
    %v2238 = vpack.c.b16 %v1774, %v1766
    %v2239 = vpack.c.b16 %v1775, %v1767
    %v2240 = vpack.c.b16 %v1776, %v1768
    %v2241 = vpack.c.b16 %v1777, %v1769
    %v2242 = vpack.c.b16 %v1778, %v1770
    %v2243 = vpack.c.b16 %v1779, %v1771
    %v2244 = vpack.c.b16 %v1780, %v1772
    %v2245 = vpack.c.b16 %v1781, %v1773
    %v2246 = vpack.c.b16 %v1790, %v1782
    %v2247 = vpack.c.b16 %v1791, %v1783
    %v2248 = vpack.c.b16 %v1792, %v1784
    %v2249 = vpack.c.b16 %v1793, %v1785
    %v2250 = vpack.c.b16 %v1794, %v1786
    %v2251 = vpack.c.b16 %v1795, %v1787
    %v2252 = vpack.c.b16 %v1796, %v1788
    %v2253 = vpack.c.b16 %v1797, %v1789
    %v2254 = vpack.c.b16 %v1806, %v1798
    %v2255 = vpack.c.b16 %v1807, %v1799
    %v2256 = vpack.c.b16 %v1808, %v1800
    %v2257 = vpack.c.b16 %v1809, %v1801
    %v2258 = vpack.c.b16 %v1810, %v1802
    %v2259 = vpack.c.b16 %v1811, %v1803
    %v2260 = vpack.c.b16 %v1812, %v1804
    %v2261 = vpack.c.b16 %v1813, %v1805
    %v2262 = vpack.c.b16 %v1822, %v1814
    %v2263 = vpack.c.b16 %v1823, %v1815
    %v2264 = vpack.c.b16 %v1824, %v1816
    %v2265 = vpack.c.b16 %v1825, %v1817
    %v2266 = vpack.c.b16 %v1826, %v1818
    %v2267 = vpack.c.b16 %v1827, %v1819
    %v2268 = vpack.c.b16 %v1828, %v1820
    %v2269 = vpack.c.b16 %v1829, %v1821
    %v2270 = vpack.c.b16 %v1838, %v1830
    %v2271 = vpack.c.b16 %v1839, %v1831
    %v2272 = vpack.c.b16 %v1840, %v1832
    %v2273 = vpack.c.b16 %v1841, %v1833
    %v2274 = vpack.c.b16 %v1842, %v1834
    %v2275 = vpack.c.b16 %v1843, %v1835
    %v2276 = vpack.c.b16 %v1844, %v1836
    %v2277 = vpack.c.b16 %v1845, %v1837
    %v2278 = vpack.c.b16 %v1854, %v1846
    %v2279 = vpack.c.b16 %v1855, %v1847
    %v2280 = vpack.c.b16 %v1856, %v1848
    %v2281 = vpack.c.b16 %v1857, %v1849
    %v2282 = vpack.c.b16 %v1858, %v1850
    %v2283 = vpack.c.b16 %v1859, %v1851
    %v2284 = vpack.c.b16 %v1860, %v1852
    %v2285 = vpack.c.b16 %v1861, %v1853
    %v2286 = vpack.c.b16 %v1870, %v1862
    %v2287 = vpack.c.b16 %v1871, %v1863
    %v2288 = vpack.c.b16 %v1872, %v1864
    %v2289 = vpack.c.b16 %v1873, %v1865
    %v2290 = vpack.c.b16 %v1874, %v1866
    %v2291 = vpack.c.b16 %v1875, %v1867
    %v2292 = vpack.c.b16 %v1876, %v1868
    %v2293 = vpack.c.b16 %v1877, %v1869
    %v2294 = vpack.c.b16 %v1886, %v1878
    %v2295 = vpack.c.b16 %v1887, %v1879
    %v2296 = vpack.c.b16 %v1888, %v1880
    %v2297 = vpack.c.b16 %v1889, %v1881
    %v2298 = vpack.c.b16 %v1890, %v1882
    %v2299 = vpack.c.b16 %v1891, %v1883
    %v2300 = vpack.c.b16 %v1892, %v1884
    %v2301 = vpack.c.b16 %v1893, %v1885
    %v2302 = vpack.c.b16 %v1902, %v1894
    %v2303 = vpack.c.b16 %v1903, %v1895
    %v2304 = vpack.c.b16 %v1904, %v1896
    %v2305 = vpack.c.b16 %v1905, %v1897
    %v2306 = vpack.c.b16 %v1906, %v1898
    %v2307 = vpack.c.b16 %v1907, %v1899
    %v2308 = vpack.c.b16 %v1908, %v1900
    %v2309 = vpack.c.b16 %v1909, %v1901
    %v2310 = vpack.c.b16 %v1918, %v1910
    %v2311 = vpack.c.b16 %v1919, %v1911
    %v2312 = vpack.c.b16 %v1920, %v1912
    %v2313 = vpack.c.b16 %v1921, %v1913
    %v2314 = vpack.c.b16 %v1922, %v1914
    %v2315 = vpack.c.b16 %v1923, %v1915
    %v2316 = vpack.c.b16 %v1924, %v1916
    %v2317 = vpack.c.b16 %v1925, %v1917
    %v2318 = vpack.c.b16 %v1934, %v1926
    %v2319 = vpack.c.b16 %v1935, %v1927
    %v2320 = vpack.c.b16 %v1936, %v1928
    %v2321 = vpack.c.b16 %v1937, %v1929
    %v2322 = vpack.c.b16 %v1938, %v1930
    %v2323 = vpack.c.b16 %v1939, %v1931
    %v2324 = vpack.c.b16 %v1940, %v1932
    %v2325 = vpack.c.b16 %v1941, %v1933
    %v2326 = vpack.c.b16 %v1950, %v1942
    %v2327 = vpack.c.b16 %v1951, %v1943
    %v2328 = vpack.c.b16 %v1952, %v1944
    %v2329 = vpack.c.b16 %v1953, %v1945
    %v2330 = vpack.c.b16 %v1954, %v1946
    %v2331 = vpack.c.b16 %v1955, %v1947
    %v2332 = vpack.c.b16 %v1956, %v1948
    %v2333 = vpack.c.b16 %v1957, %v1949
    %v2334 = vpack.c.b16 %v1966, %v1958
    %v2335 = vpack.c.b16 %v1967, %v1959
    %v2336 = vpack.c.b16 %v1968, %v1960
    %v2337 = vpack.c.b16 %v1969, %v1961
    %v2338 = vpack.c.b16 %v1970, %v1962
    %v2339 = vpack.c.b16 %v1971, %v1963
    %v2340 = vpack.c.b16 %v1972, %v1964
    %v2341 = vpack.c.b16 %v1973, %v1965
    %v2342 = vpack.c.b16 %v1982, %v1974
    %v2343 = vpack.c.b16 %v1983, %v1975
    %v2344 = vpack.c.b16 %v1984, %v1976
    %v2345 = vpack.c.b16 %v1985, %v1977
    %v2346 = vpack.c.b16 %v1986, %v1978
    %v2347 = vpack.c.b16 %v1987, %v1979
    %v2348 = vpack.c.b16 %v1988, %v1980
    %v2349 = vpack.c.b16 %v1989, %v1981
    %v2350 = vpack.c.b16 %v1998, %v1990
    %v2351 = vpack.c.b16 %v1999, %v1991
    %v2352 = vpack.c.b16 %v2000, %v1992
    %v2353 = vpack.c.b16 %v2001, %v1993
    %v2354 = vpack.c.b16 %v2002, %v1994
    %v2355 = vpack.c.b16 %v2003, %v1995
    %v2356 = vpack.c.b16 %v2004, %v1996
    %v2357 = vpack.c.b16 %v2005, %v1997
    %v2358 = vpack.c.b16 %v2014, %v2006
    %v2359 = vpack.c.b16 %v2015, %v2007
    %v2360 = vpack.c.b16 %v2016, %v2008
    %v2361 = vpack.c.b16 %v2017, %v2009
    %v2362 = vpack.c.b16 %v2018, %v2010
    %v2363 = vpack.c.b16 %v2019, %v2011
    %v2364 = vpack.c.b16 %v2020, %v2012
    %v2365 = vpack.c.b16 %v2021, %v2013
    %v2366 = vpack.c.b16 %v2030, %v2022
    %v2367 = vpack.c.b16 %v2031, %v2023
    %v2368 = vpack.c.b16 %v2032, %v2024
    %v2369 = vpack.c.b16 %v2033, %v2025
    %v2370 = vpack.c.b16 %v2034, %v2026
    %v2371 = vpack.c.b16 %v2035, %v2027
    %v2372 = vpack.c.b16 %v2036, %v2028
    %v2373 = vpack.c.b16 %v2037, %v2029
    %v2374 = vpack.c.b16 %v2046, %v2038
    %v2375 = vpack.c.b16 %v2047, %v2039
    %v2376 = vpack.c.b16 %v2048, %v2040
    %v2377 = vpack.c.b16 %v2049, %v2041
    %v2378 = vpack.c.b16 %v2050, %v2042
    %v2379 = vpack.c.b16 %v2051, %v2043
    %v2380 = vpack.c.b16 %v2052, %v2044
    %v2381 = vpack.c.b16 %v2053, %v2045
    %v2382 = vpack.c.b16 %v2062, %v2054
    %v2383 = vpack.c.b16 %v2063, %v2055
    %v2384 = vpack.c.b16 %v2064, %v2056
    %v2385 = vpack.c.b16 %v2065, %v2057
    %v2386 = vpack.c.b16 %v2066, %v2058
    %v2387 = vpack.c.b16 %v2067, %v2059
    %v2388 = vpack.c.b16 %v2068, %v2060
    %v2389 = vpack.c.b16 %v2069, %v2061
    %v2390 = vpack.c.b16 %v2078, %v2070
    %v2391 = vpack.c.b16 %v2079, %v2071
    %v2392 = vpack.c.b16 %v2080, %v2072
    %v2393 = vpack.c.b16 %v2081, %v2073
    %v2394 = vpack.c.b16 %v2082, %v2074
    %v2395 = vpack.c.b16 %v2083, %v2075
    %v2396 = vpack.c.b16 %v2084, %v2076
    %v2397 = vpack.c.b16 %v2085, %v2077
    %v2398 = vpack.c.b16 %v2094, %v2086
    %v2399 = vpack.c.b16 %v2095, %v2087
    %v2400 = vpack.c.b16 %v2096, %v2088
    %v2401 = vpack.c.b16 %v2097, %v2089
    %v2402 = vpack.c.b16 %v2098, %v2090
    %v2403 = vpack.c.b16 %v2099, %v2091
    %v2404 = vpack.c.b16 %v2100, %v2092
    %v2405 = vpack.c.b16 %v2101, %v2093
    %v2406 = vpack.c.b16 %v2110, %v2102
    %v2407 = vpack.c.b16 %v2111, %v2103
    %v2408 = vpack.c.b16 %v2112, %v2104
    %v2409 = vpack.c.b16 %v2113, %v2105
    %v2410 = vpack.c.b16 %v2114, %v2106
    %v2411 = vpack.c.b16 %v2115, %v2107
    %v2412 = vpack.c.b16 %v2116, %v2108
    %v2413 = vpack.c.b16 %v2117, %v2109
    %v2414 = vpack.c.b16 %v2126, %v2118
    %v2415 = vpack.c.b16 %v2127, %v2119
    %v2416 = vpack.c.b16 %v2128, %v2120
    %v2417 = vpack.c.b16 %v2129, %v2121
    %v2418 = vpack.c.b16 %v2130, %v2122
    %v2419 = vpack.c.b16 %v2131, %v2123
    %v2420 = vpack.c.b16 %v2132, %v2124
    %v2421 = vpack.c.b16 %v2133, %v2125
    %v2422 = vpack.c.b16 %v2142, %v2134
    %v2423 = vpack.c.b16 %v2143, %v2135
    %v2424 = vpack.c.b16 %v2144, %v2136
    %v2425 = vpack.c.b16 %v2145, %v2137
    %v2426 = vpack.c.b16 %v2146, %v2138
    %v2427 = vpack.c.b16 %v2147, %v2139
    %v2428 = vpack.c.b16 %v2148, %v2140
    %v2429 = vpack.c.b16 %v2149, %v2141
    %v2430 = vpack.c.b16 %v2158, %v2150
    %v2431 = vpack.c.b16 %v2159, %v2151
    %v2432 = vpack.c.b16 %v2160, %v2152
    %v2433 = vpack.c.b16 %v2161, %v2153
    %v2434 = vpack.c.b16 %v2162, %v2154
    %v2435 = vpack.c.b16 %v2163, %v2155
    %v2436 = vpack.c.b16 %v2164, %v2156
    %v2437 = vpack.c.b16 %v2165, %v2157
    %v2438 = vpack.c.b16 %v2174, %v2166
    %v2439 = vpack.c.b16 %v2175, %v2167
    %v2440 = vpack.c.b16 %v2176, %v2168
    %v2441 = vpack.c.b16 %v2177, %v2169
    %v2442 = vpack.c.b16 %v2178, %v2170
    %v2443 = vpack.c.b16 %v2179, %v2171
    %v2444 = vpack.c.b16 %v2180, %v2172
    %v2445 = vpack.c.b16 %v2181, %v2173
    %v2446 = vpack.c.b16 %v2190, %v2182
    %v2447 = vpack.c.b16 %v2191, %v2183
    %v2448 = vpack.c.b16 %v2192, %v2184
    %v2449 = vpack.c.b16 %v2193, %v2185
    %v2450 = vpack.c.b16 %v2194, %v2186
    %v2451 = vpack.c.b16 %v2195, %v2187
    %v2452 = vpack.c.b16 %v2196, %v2188
    %v2453 = vpack.c.b16 %v2197, %v2189
    %2710 = vmatpush.bf16.msra.mxu0 %v2254
    %2711 = vmatpush.bf16.msra.mxu0 %v2246
    %2712 = vmatpush.bf16.msra.mxu0 %v2238
    %2713 = vmatpush.bf16.msra.mxu0 %v2230
    %2714 = vmatpush.bf16.msra.mxu0 %v2222
    %2715 = vmatpush.bf16.msra.mxu0 %v2214
    %2716 = vmatpush.bf16.msra.mxu0 %v2206
    %2717 = vmatpush.bf16.msra.mxu0 %v2198
    %2718 = vmatmul.bf16.gmra.mxu0 %v1152
    %v2719 = vpop.f32.mrf.mxu0
    %v2720 = vadd.f32 %v1414, %v2719
    %v2721 = vpop.f32.mrf.mxu0
    %v2722 = vadd.f32 %v1414, %v2721
    %2723 = vdwg.mxu0
    %2724 = vmatpush.bf16.msra.mxu0 %v2318
    %2725 = vmatpush.bf16.msra.mxu0 %v2310
    %2726 = vmatpush.bf16.msra.mxu0 %v2302
    %2727 = vmatpush.bf16.msra.mxu0 %v2294
    %2728 = vmatpush.bf16.msra.mxu0 %v2286
    %2729 = vmatpush.bf16.msra.mxu0 %v2278
    %2730 = vmatpush.bf16.msra.mxu0 %v2270
    %2731 = vmatpush.bf16.msra.mxu0 %v2262
    %2732 = vmatmul.bf16.gmra.mxu0 %v1153
    %v2733 = vpop.f32.mrf.mxu0
    %v2734 = vadd.f32 %v2720, %v2733
    %v2735 = vpop.f32.mrf.mxu0
    %v2736 = vadd.f32 %v2722, %v2735
    %2737 = vdwg.mxu0
    %2738 = vmatpush.bf16.msra.mxu0 %v2382
    %2739 = vmatpush.bf16.msra.mxu0 %v2374
    %2740 = vmatpush.bf16.msra.mxu0 %v2366
    %2741 = vmatpush.bf16.msra.mxu0 %v2358
    %2742 = vmatpush.bf16.msra.mxu0 %v2350
    %2743 = vmatpush.bf16.msra.mxu0 %v2342
    %2744 = vmatpush.bf16.msra.mxu0 %v2334
    %2745 = vmatpush.bf16.msra.mxu0 %v2326
    %2746 = vmatmul.bf16.gmra.mxu0 %v1154
    %v2747 = vpop.f32.mrf.mxu0
    %v2748 = vadd.f32 %v2734, %v2747
    %v2749 = vpop.f32.mrf.mxu0
    %v2750 = vadd.f32 %v2736, %v2749
    %2751 = vdwg.mxu0
    %2752 = vmatpush.bf16.msra.mxu0 %v2446
    %2753 = vmatpush.bf16.msra.mxu0 %v2438
    %2754 = vmatpush.bf16.msra.mxu0 %v2430
    %2755 = vmatpush.bf16.msra.mxu0 %v2422
    %2756 = vmatpush.bf16.msra.mxu0 %v2414
    %2757 = vmatpush.bf16.msra.mxu0 %v2406
    %2758 = vmatpush.bf16.msra.mxu0 %v2398
    %2759 = vmatpush.bf16.msra.mxu0 %v2390
    %2760 = vmatmul.bf16.gmra.mxu0 %v1155
    %v2761 = vpop.f32.mrf.mxu0
    %v2762 = vadd.f32 %v2748, %v2761
    %v2763 = vpop.f32.mrf.mxu0
    %v2764 = vadd.f32 %v2750, %v2763
    %2765 = vdwg.mxu0
    %2766 = vmatpush.bf16.msra.mxu0 %v2255
    %2767 = vmatpush.bf16.msra.mxu0 %v2247
    %2768 = vmatpush.bf16.msra.mxu0 %v2239
    %2769 = vmatpush.bf16.msra.mxu0 %v2231
    %2770 = vmatpush.bf16.msra.mxu0 %v2223
    %2771 = vmatpush.bf16.msra.mxu0 %v2215
    %2772 = vmatpush.bf16.msra.mxu0 %v2207
    %2773 = vmatpush.bf16.msra.mxu0 %v2199
    %2774 = vmatmul.bf16.gmra.mxu0 %v1152
    %v2775 = vpop.f32.mrf.mxu0
    %v2776 = vadd.f32 %v1415, %v2775
    %v2777 = vpop.f32.mrf.mxu0
    %v2778 = vadd.f32 %v1415, %v2777
    %2779 = vdwg.mxu0
    %2780 = vmatpush.bf16.msra.mxu0 %v2319
    %2781 = vmatpush.bf16.msra.mxu0 %v2311
    %2782 = vmatpush.bf16.msra.mxu0 %v2303
    %2783 = vmatpush.bf16.msra.mxu0 %v2295
    %2784 = vmatpush.bf16.msra.mxu0 %v2287
    %2785 = vmatpush.bf16.msra.mxu0 %v2279
    %2786 = vmatpush.bf16.msra.mxu0 %v2271
    %2787 = vmatpush.bf16.msra.mxu0 %v2263
    %2788 = vmatmul.bf16.gmra.mxu0 %v1153
    %v2789 = vpop.f32.mrf.mxu0
    %v2790 = vadd.f32 %v2776, %v2789
    %v2791 = vpop.f32.mrf.mxu0
    %v2792 = vadd.f32 %v2778, %v2791
    %2793 = vdwg.mxu0
    %2794 = vmatpush.bf16.msra.mxu0 %v2383
    %2795 = vmatpush.bf16.msra.mxu0 %v2375
    %2796 = vmatpush.bf16.msra.mxu0 %v2367
    %2797 = vmatpush.bf16.msra.mxu0 %v2359
    %2798 = vmatpush.bf16.msra.mxu0 %v2351
    %2799 = vmatpush.bf16.msra.mxu0 %v2343
    %2800 = vmatpush.bf16.msra.mxu0 %v2335
    %2801 = vmatpush.bf16.msra.mxu0 %v2327
    %2802 = vmatmul.bf16.gmra.mxu0 %v1154
    %v2803 = vpop.f32.mrf.mxu0
    %v2804 = vadd.f32 %v2790, %v2803
    %v2805 = vpop.f32.mrf.mxu0
    %v2806 = vadd.f32 %v2792, %v2805
    %2807 = vdwg.mxu0
    %2808 = vmatpush.bf16.msra.mxu0 %v2447
    %2809 = vmatpush.bf16.msra.mxu0 %v2439
    %2810 = vmatpush.bf16.msra.mxu0 %v2431
    %2811 = vmatpush.bf16.msra.mxu0 %v2423
    %2812 = vmatpush.bf16.msra.mxu0 %v2415
    %2813 = vmatpush.bf16.msra.mxu0 %v2407
    %2814 = vmatpush.bf16.msra.mxu0 %v2399
    %2815 = vmatpush.bf16.msra.mxu0 %v2391
    %2816 = vmatmul.bf16.gmra.mxu0 %v1155
    %v2817 = vpop.f32.mrf.mxu0
    %v2818 = vadd.f32 %v2804, %v2817
    %v2819 = vpop.f32.mrf.mxu0
    %v2820 = vadd.f32 %v2806, %v2819
    %2821 = vdwg.mxu0
    %2822 = vmatpush.bf16.msra.mxu0 %v2256
    %2823 = vmatpush.bf16.msra.mxu0 %v2248
    %2824 = vmatpush.bf16.msra.mxu0 %v2240
    %2825 = vmatpush.bf16.msra.mxu0 %v2232
    %2826 = vmatpush.bf16.msra.mxu0 %v2224
    %2827 = vmatpush.bf16.msra.mxu0 %v2216
    %2828 = vmatpush.bf16.msra.mxu0 %v2208
    %2829 = vmatpush.bf16.msra.mxu0 %v2200
    %2830 = vmatmul.bf16.gmra.mxu0 %v1152
    %v2831 = vpop.f32.mrf.mxu0
    %v2832 = vadd.f32 %v1416, %v2831
    %v2833 = vpop.f32.mrf.mxu0
    %v2834 = vadd.f32 %v1416, %v2833
    %2835 = vdwg.mxu0
    %2836 = vmatpush.bf16.msra.mxu0 %v2320
    %2837 = vmatpush.bf16.msra.mxu0 %v2312
    %2838 = vmatpush.bf16.msra.mxu0 %v2304
    %2839 = vmatpush.bf16.msra.mxu0 %v2296
    %2840 = vmatpush.bf16.msra.mxu0 %v2288
    %2841 = vmatpush.bf16.msra.mxu0 %v2280
    %2842 = vmatpush.bf16.msra.mxu0 %v2272
    %2843 = vmatpush.bf16.msra.mxu0 %v2264
    %2844 = vmatmul.bf16.gmra.mxu0 %v1153
    %v2845 = vpop.f32.mrf.mxu0
    %v2846 = vadd.f32 %v2832, %v2845
    %v2847 = vpop.f32.mrf.mxu0
    %v2848 = vadd.f32 %v2834, %v2847
    %2849 = vdwg.mxu0
    %2850 = vmatpush.bf16.msra.mxu0 %v2384
    %2851 = vmatpush.bf16.msra.mxu0 %v2376
    %2852 = vmatpush.bf16.msra.mxu0 %v2368
    %2853 = vmatpush.bf16.msra.mxu0 %v2360
    %2854 = vmatpush.bf16.msra.mxu0 %v2352
    %2855 = vmatpush.bf16.msra.mxu0 %v2344
    %2856 = vmatpush.bf16.msra.mxu0 %v2336
    %2857 = vmatpush.bf16.msra.mxu0 %v2328
    %2858 = vmatmul.bf16.gmra.mxu0 %v1154
    %v2859 = vpop.f32.mrf.mxu0
    %v2860 = vadd.f32 %v2846, %v2859
    %v2861 = vpop.f32.mrf.mxu0
    %v2862 = vadd.f32 %v2848, %v2861
    %2863 = vdwg.mxu0
    %2864 = vmatpush.bf16.msra.mxu0 %v2448
    %2865 = vmatpush.bf16.msra.mxu0 %v2440
    %2866 = vmatpush.bf16.msra.mxu0 %v2432
    %2867 = vmatpush.bf16.msra.mxu0 %v2424
    %2868 = vmatpush.bf16.msra.mxu0 %v2416
    %2869 = vmatpush.bf16.msra.mxu0 %v2408
    %2870 = vmatpush.bf16.msra.mxu0 %v2400
    %2871 = vmatpush.bf16.msra.mxu0 %v2392
    %2872 = vmatmul.bf16.gmra.mxu0 %v1155
    %v2873 = vpop.f32.mrf.mxu0
    %v2874 = vadd.f32 %v2860, %v2873
    %v2875 = vpop.f32.mrf.mxu0
    %v2876 = vadd.f32 %v2862, %v2875
    %2877 = vdwg.mxu0
    %2878 = vmatpush.bf16.msra.mxu0 %v2257
    %2879 = vmatpush.bf16.msra.mxu0 %v2249
    %2880 = vmatpush.bf16.msra.mxu0 %v2241
    %2881 = vmatpush.bf16.msra.mxu0 %v2233
    %2882 = vmatpush.bf16.msra.mxu0 %v2225
    %2883 = vmatpush.bf16.msra.mxu0 %v2217
    %2884 = vmatpush.bf16.msra.mxu0 %v2209
    %2885 = vmatpush.bf16.msra.mxu0 %v2201
    %2886 = vmatmul.bf16.gmra.mxu0 %v1152
    %v2887 = vpop.f32.mrf.mxu0
    %v2888 = vadd.f32 %v1417, %v2887
    %v2889 = vpop.f32.mrf.mxu0
    %v2890 = vadd.f32 %v1417, %v2889
    %2891 = vdwg.mxu0
    %2892 = vmatpush.bf16.msra.mxu0 %v2321
    %2893 = vmatpush.bf16.msra.mxu0 %v2313
    %2894 = vmatpush.bf16.msra.mxu0 %v2305
    %2895 = vmatpush.bf16.msra.mxu0 %v2297
    %2896 = vmatpush.bf16.msra.mxu0 %v2289
    %2897 = vmatpush.bf16.msra.mxu0 %v2281
    %2898 = vmatpush.bf16.msra.mxu0 %v2273
    %2899 = vmatpush.bf16.msra.mxu0 %v2265
    %2900 = vmatmul.bf16.gmra.mxu0 %v1153
    %v2901 = vpop.f32.mrf.mxu0
    %v2902 = vadd.f32 %v2888, %v2901
    %v2903 = vpop.f32.mrf.mxu0
    %v2904 = vadd.f32 %v2890, %v2903
    %2905 = vdwg.mxu0
    %2906 = vmatpush.bf16.msra.mxu0 %v2385
    %2907 = vmatpush.bf16.msra.mxu0 %v2377
    %2908 = vmatpush.bf16.msra.mxu0 %v2369
    %2909 = vmatpush.bf16.msra.mxu0 %v2361
    %2910 = vmatpush.bf16.msra.mxu0 %v2353
    %2911 = vmatpush.bf16.msra.mxu0 %v2345
    %2912 = vmatpush.bf16.msra.mxu0 %v2337
    %2913 = vmatpush.bf16.msra.mxu0 %v2329
    %2914 = vmatmul.bf16.gmra.mxu0 %v1154
    %v2915 = vpop.f32.mrf.mxu0
    %v2916 = vadd.f32 %v2902, %v2915
    %v2917 = vpop.f32.mrf.mxu0
    %v2918 = vadd.f32 %v2904, %v2917
    %2919 = vdwg.mxu0
    %2920 = vmatpush.bf16.msra.mxu0 %v2449
    %2921 = vmatpush.bf16.msra.mxu0 %v2441
    %2922 = vmatpush.bf16.msra.mxu0 %v2433
    %2923 = vmatpush.bf16.msra.mxu0 %v2425
    %2924 = vmatpush.bf16.msra.mxu0 %v2417
    %2925 = vmatpush.bf16.msra.mxu0 %v2409
    %2926 = vmatpush.bf16.msra.mxu0 %v2401
    %2927 = vmatpush.bf16.msra.mxu0 %v2393
    %2928 = vmatmul.bf16.gmra.mxu0 %v1155
    %v2929 = vpop.f32.mrf.mxu0
    %v2930 = vadd.f32 %v2916, %v2929
    %v2931 = vpop.f32.mrf.mxu0
    %v2932 = vadd.f32 %v2918, %v2931
    %2933 = vdwg.mxu0
    %2934 = vmatpush.bf16.msra.mxu0 %v2258
    %2935 = vmatpush.bf16.msra.mxu0 %v2250
    %2936 = vmatpush.bf16.msra.mxu0 %v2242
    %2937 = vmatpush.bf16.msra.mxu0 %v2234
    %2938 = vmatpush.bf16.msra.mxu0 %v2226
    %2939 = vmatpush.bf16.msra.mxu0 %v2218
    %2940 = vmatpush.bf16.msra.mxu0 %v2210
    %2941 = vmatpush.bf16.msra.mxu0 %v2202
    %2942 = vmatmul.bf16.gmra.mxu0 %v1152
    %v2943 = vpop.f32.mrf.mxu0
    %v2944 = vadd.f32 %v1418, %v2943
    %v2945 = vpop.f32.mrf.mxu0
    %v2946 = vadd.f32 %v1418, %v2945
    %2947 = vdwg.mxu0
    %2948 = vmatpush.bf16.msra.mxu0 %v2322
    %2949 = vmatpush.bf16.msra.mxu0 %v2314
    %2950 = vmatpush.bf16.msra.mxu0 %v2306
    %2951 = vmatpush.bf16.msra.mxu0 %v2298
    %2952 = vmatpush.bf16.msra.mxu0 %v2290
    %2953 = vmatpush.bf16.msra.mxu0 %v2282
    %2954 = vmatpush.bf16.msra.mxu0 %v2274
    %2955 = vmatpush.bf16.msra.mxu0 %v2266
    %2956 = vmatmul.bf16.gmra.mxu0 %v1153
    %v2957 = vpop.f32.mrf.mxu0
    %v2958 = vadd.f32 %v2944, %v2957
    %v2959 = vpop.f32.mrf.mxu0
    %v2960 = vadd.f32 %v2946, %v2959
    %2961 = vdwg.mxu0
    %2962 = vmatpush.bf16.msra.mxu0 %v2386
    %2963 = vmatpush.bf16.msra.mxu0 %v2378
    %2964 = vmatpush.bf16.msra.mxu0 %v2370
    %2965 = vmatpush.bf16.msra.mxu0 %v2362
    %2966 = vmatpush.bf16.msra.mxu0 %v2354
    %2967 = vmatpush.bf16.msra.mxu0 %v2346
    %2968 = vmatpush.bf16.msra.mxu0 %v2338
    %2969 = vmatpush.bf16.msra.mxu0 %v2330
    %2970 = vmatmul.bf16.gmra.mxu0 %v1154
    %v2971 = vpop.f32.mrf.mxu0
    %v2972 = vadd.f32 %v2958, %v2971
    %v2973 = vpop.f32.mrf.mxu0
    %v2974 = vadd.f32 %v2960, %v2973
    %2975 = vdwg.mxu0
    %2976 = vmatpush.bf16.msra.mxu0 %v2450
    %2977 = vmatpush.bf16.msra.mxu0 %v2442
    %2978 = vmatpush.bf16.msra.mxu0 %v2434
    %2979 = vmatpush.bf16.msra.mxu0 %v2426
    %2980 = vmatpush.bf16.msra.mxu0 %v2418
    %2981 = vmatpush.bf16.msra.mxu0 %v2410
    %2982 = vmatpush.bf16.msra.mxu0 %v2402
    %2983 = vmatpush.bf16.msra.mxu0 %v2394
    %2984 = vmatmul.bf16.gmra.mxu0 %v1155
    %v2985 = vpop.f32.mrf.mxu0
    %v2986 = vadd.f32 %v2972, %v2985
    %v2987 = vpop.f32.mrf.mxu0
    %v2988 = vadd.f32 %v2974, %v2987
    %2989 = vdwg.mxu0
    %2990 = vmatpush.bf16.msra.mxu0 %v2259
    %2991 = vmatpush.bf16.msra.mxu0 %v2251
    %2992 = vmatpush.bf16.msra.mxu0 %v2243
    %2993 = vmatpush.bf16.msra.mxu0 %v2235
    %2994 = vmatpush.bf16.msra.mxu0 %v2227
    %2995 = vmatpush.bf16.msra.mxu0 %v2219
    %2996 = vmatpush.bf16.msra.mxu0 %v2211
    %2997 = vmatpush.bf16.msra.mxu0 %v2203
    %2998 = vmatmul.bf16.gmra.mxu0 %v1152
    %v2999 = vpop.f32.mrf.mxu0
    %v3000 = vadd.f32 %v1419, %v2999
    %v3001 = vpop.f32.mrf.mxu0
    %v3002 = vadd.f32 %v1419, %v3001
    %3003 = vdwg.mxu0
    %3004 = vmatpush.bf16.msra.mxu0 %v2323
    %3005 = vmatpush.bf16.msra.mxu0 %v2315
    %3006 = vmatpush.bf16.msra.mxu0 %v2307
    %3007 = vmatpush.bf16.msra.mxu0 %v2299
    %3008 = vmatpush.bf16.msra.mxu0 %v2291
    %3009 = vmatpush.bf16.msra.mxu0 %v2283
    %3010 = vmatpush.bf16.msra.mxu0 %v2275
    %3011 = vmatpush.bf16.msra.mxu0 %v2267
    %3012 = vmatmul.bf16.gmra.mxu0 %v1153
    %v3013 = vpop.f32.mrf.mxu0
    %v3014 = vadd.f32 %v3000, %v3013
    %v3015 = vpop.f32.mrf.mxu0
    %v3016 = vadd.f32 %v3002, %v3015
    %3017 = vdwg.mxu0
    %3018 = vmatpush.bf16.msra.mxu0 %v2387
    %3019 = vmatpush.bf16.msra.mxu0 %v2379
    %3020 = vmatpush.bf16.msra.mxu0 %v2371
    %3021 = vmatpush.bf16.msra.mxu0 %v2363
    %3022 = vmatpush.bf16.msra.mxu0 %v2355
    %3023 = vmatpush.bf16.msra.mxu0 %v2347
    %3024 = vmatpush.bf16.msra.mxu0 %v2339
    %3025 = vmatpush.bf16.msra.mxu0 %v2331
    %3026 = vmatmul.bf16.gmra.mxu0 %v1154
    %v3027 = vpop.f32.mrf.mxu0
    %v3028 = vadd.f32 %v3014, %v3027
    %v3029 = vpop.f32.mrf.mxu0
    %v3030 = vadd.f32 %v3016, %v3029
    %3031 = vdwg.mxu0
    %3032 = vmatpush.bf16.msra.mxu0 %v2451
    %3033 = vmatpush.bf16.msra.mxu0 %v2443
    %3034 = vmatpush.bf16.msra.mxu0 %v2435
    %3035 = vmatpush.bf16.msra.mxu0 %v2427
    %3036 = vmatpush.bf16.msra.mxu0 %v2419
    %3037 = vmatpush.bf16.msra.mxu0 %v2411
    %3038 = vmatpush.bf16.msra.mxu0 %v2403
    %3039 = vmatpush.bf16.msra.mxu0 %v2395
    %3040 = vmatmul.bf16.gmra.mxu0 %v1155
    %v3041 = vpop.f32.mrf.mxu0
    %v3042 = vadd.f32 %v3028, %v3041
    %v3043 = vpop.f32.mrf.mxu0
    %v3044 = vadd.f32 %v3030, %v3043
    %3045 = vdwg.mxu0
    %3046 = vmatpush.bf16.msra.mxu0 %v2260
    %3047 = vmatpush.bf16.msra.mxu0 %v2252
    %3048 = vmatpush.bf16.msra.mxu0 %v2244
    %3049 = vmatpush.bf16.msra.mxu0 %v2236
    %3050 = vmatpush.bf16.msra.mxu0 %v2228
    %3051 = vmatpush.bf16.msra.mxu0 %v2220
    %3052 = vmatpush.bf16.msra.mxu0 %v2212
    %3053 = vmatpush.bf16.msra.mxu0 %v2204
    %3054 = vmatmul.bf16.gmra.mxu0 %v1152
    %v3055 = vpop.f32.mrf.mxu0
    %v3056 = vadd.f32 %v1420, %v3055
    %v3057 = vpop.f32.mrf.mxu0
    %v3058 = vadd.f32 %v1420, %v3057
    %3059 = vdwg.mxu0
    %3060 = vmatpush.bf16.msra.mxu0 %v2324
    %3061 = vmatpush.bf16.msra.mxu0 %v2316
    %3062 = vmatpush.bf16.msra.mxu0 %v2308
    %3063 = vmatpush.bf16.msra.mxu0 %v2300
    %3064 = vmatpush.bf16.msra.mxu0 %v2292
    %3065 = vmatpush.bf16.msra.mxu0 %v2284
    %3066 = vmatpush.bf16.msra.mxu0 %v2276
    %3067 = vmatpush.bf16.msra.mxu0 %v2268
    %3068 = vmatmul.bf16.gmra.mxu0 %v1153
    %v3069 = vpop.f32.mrf.mxu0
    %v3070 = vadd.f32 %v3056, %v3069
    %v3071 = vpop.f32.mrf.mxu0
    %v3072 = vadd.f32 %v3058, %v3071
    %3073 = vdwg.mxu0
    %3074 = vmatpush.bf16.msra.mxu0 %v2388
    %3075 = vmatpush.bf16.msra.mxu0 %v2380
    %3076 = vmatpush.bf16.msra.mxu0 %v2372
    %3077 = vmatpush.bf16.msra.mxu0 %v2364
    %3078 = vmatpush.bf16.msra.mxu0 %v2356
    %3079 = vmatpush.bf16.msra.mxu0 %v2348
    %3080 = vmatpush.bf16.msra.mxu0 %v2340
    %3081 = vmatpush.bf16.msra.mxu0 %v2332
    %3082 = vmatmul.bf16.gmra.mxu0 %v1154
    %v3083 = vpop.f32.mrf.mxu0
    %v3084 = vadd.f32 %v3070, %v3083
    %v3085 = vpop.f32.mrf.mxu0
    %v3086 = vadd.f32 %v3072, %v3085
    %3087 = vdwg.mxu0
    %3088 = vmatpush.bf16.msra.mxu0 %v2452
    %3089 = vmatpush.bf16.msra.mxu0 %v2444
    %3090 = vmatpush.bf16.msra.mxu0 %v2436
    %3091 = vmatpush.bf16.msra.mxu0 %v2428
    %3092 = vmatpush.bf16.msra.mxu0 %v2420
    %3093 = vmatpush.bf16.msra.mxu0 %v2412
    %3094 = vmatpush.bf16.msra.mxu0 %v2404
    %3095 = vmatpush.bf16.msra.mxu0 %v2396
    %3096 = vmatmul.bf16.gmra.mxu0 %v1155
    %v3097 = vpop.f32.mrf.mxu0
    %v3098 = vadd.f32 %v3084, %v3097
    %v3099 = vpop.f32.mrf.mxu0
    %v3100 = vadd.f32 %v3086, %v3099
    %3101 = vdwg.mxu0
    %3102 = vmatpush.bf16.msra.mxu0 %v2261
    %3103 = vmatpush.bf16.msra.mxu0 %v2253
    %3104 = vmatpush.bf16.msra.mxu0 %v2245
    %3105 = vmatpush.bf16.msra.mxu0 %v2237
    %3106 = vmatpush.bf16.msra.mxu0 %v2229
    %3107 = vmatpush.bf16.msra.mxu0 %v2221
    %3108 = vmatpush.bf16.msra.mxu0 %v2213
    %3109 = vmatpush.bf16.msra.mxu0 %v2205
    %3110 = vmatmul.bf16.gmra.mxu0 %v1152
    %v3111 = vpop.f32.mrf.mxu0
    %v3112 = vadd.f32 %v1421, %v3111
    %v3113 = vpop.f32.mrf.mxu0
    %v3114 = vadd.f32 %v1421, %v3113
    %3115 = vdwg.mxu0
    %3116 = vmatpush.bf16.msra.mxu0 %v2325
    %3117 = vmatpush.bf16.msra.mxu0 %v2317
    %3118 = vmatpush.bf16.msra.mxu0 %v2309
    %3119 = vmatpush.bf16.msra.mxu0 %v2301
    %3120 = vmatpush.bf16.msra.mxu0 %v2293
    %3121 = vmatpush.bf16.msra.mxu0 %v2285
    %3122 = vmatpush.bf16.msra.mxu0 %v2277
    %3123 = vmatpush.bf16.msra.mxu0 %v2269
    %3124 = vmatmul.bf16.gmra.mxu0 %v1153
    %v3125 = vpop.f32.mrf.mxu0
    %v3126 = vadd.f32 %v3112, %v3125
    %v3127 = vpop.f32.mrf.mxu0
    %v3128 = vadd.f32 %v3114, %v3127
    %3129 = vdwg.mxu0
    %3130 = vmatpush.bf16.msra.mxu0 %v2389
    %3131 = vmatpush.bf16.msra.mxu0 %v2381
    %3132 = vmatpush.bf16.msra.mxu0 %v2373
    %3133 = vmatpush.bf16.msra.mxu0 %v2365
    %3134 = vmatpush.bf16.msra.mxu0 %v2357
    %3135 = vmatpush.bf16.msra.mxu0 %v2349
    %3136 = vmatpush.bf16.msra.mxu0 %v2341
    %3137 = vmatpush.bf16.msra.mxu0 %v2333
    %3138 = vmatmul.bf16.gmra.mxu0 %v1154
    %v3139 = vpop.f32.mrf.mxu0
    %v3140 = vadd.f32 %v3126, %v3139
    %v3141 = vpop.f32.mrf.mxu0
    %v3142 = vadd.f32 %v3128, %v3141
    %3143 = vdwg.mxu0
    %3144 = vmatpush.bf16.msra.mxu0 %v2453
    %3145 = vmatpush.bf16.msra.mxu0 %v2445
    %3146 = vmatpush.bf16.msra.mxu0 %v2437
    %3147 = vmatpush.bf16.msra.mxu0 %v2429
    %3148 = vmatpush.bf16.msra.mxu0 %v2421
    %3149 = vmatpush.bf16.msra.mxu0 %v2413
    %3150 = vmatpush.bf16.msra.mxu0 %v2405
    %3151 = vmatpush.bf16.msra.mxu0 %v2397
    %3152 = vmatmul.bf16.gmra.mxu0 %v1155
    %v3153 = vpop.f32.mrf.mxu0
    %v3154 = vadd.f32 %v3140, %v3153
    %v3155 = vpop.f32.mrf.mxu0
    %v3156 = vadd.f32 %v3142, %v3155
    %3157 = vdwg.mxu0
    %v3158 = vmax.f32 %v2762, 0.0
    %v3159 = vmax.f32 %v2818, 0.0
    %v3160 = vmax.f32 %v2874, 0.0
    %v3161 = vmax.f32 %v2930, 0.0
    %v3162 = vmax.f32 %v2986, 0.0
    %v3163 = vmax.f32 %v3042, 0.0
    %v3164 = vmax.f32 %v3098, 0.0
    %v3165 = vmax.f32 %v3154, 0.0
    %v3166 = vmax.f32 %v2764, 0.0
    %v3167 = vmax.f32 %v2820, 0.0
    %v3168 = vmax.f32 %v2876, 0.0
    %v3169 = vmax.f32 %v2932, 0.0
    %v3170 = vmax.f32 %v2988, 0.0
    %v3171 = vmax.f32 %v3044, 0.0
    %v3172 = vmax.f32 %v3100, 0.0
    %v3173 = vmax.f32 %v3156, 0.0
    %v3174 = vpack.c.bf16 %v3166, %v3158
    %v3175 = vpack.c.bf16 %v3167, %v3159
    %v3176 = vpack.c.bf16 %v3168, %v3160
    %v3177 = vpack.c.bf16 %v3169, %v3161
    %v3178 = vpack.c.bf16 %v3170, %v3162
    %v3179 = vpack.c.bf16 %v3171, %v3163
    %v3180 = vpack.c.bf16 %v3172, %v3164
    %v3181 = vpack.c.bf16 %v3173, %v3165
    %v3182 = vld [vmem:[#allocation11] sm:$0xff]
    %v3183 = vld [vmem:[#allocation11 + $0x8] sm:$0xff]
    %v3184 = vld [vmem:[#allocation11 + $0x10] sm:$0xff]
    %v3185 = vld [vmem:[#allocation11 + $0x18] sm:$0xf]
    %v3186 = vld [vmem:[#allocation11 + $0x1c] sm:$0xff]
    %v3187 = vld [vmem:[#allocation11 + $0x24] sm:$0xff]
    %v3188 = vld [vmem:[#allocation11 + $0x2c] sm:$0xff]
    %v3189 = vld [vmem:[#allocation11 + $0x34] sm:$0xf]
    %v3190 = vld [vmem:[#allocation11 + $0x38] sm:$0xff]
    %v3191 = vld [vmem:[#allocation11 + $0x40] sm:$0xff]
    %v3192 = vld [vmem:[#allocation11 + $0x48] sm:$0xff]
    %v3193 = vld [vmem:[#allocation11 + $0x50] sm:$0xf]
    %v3194 = vld [vmem:[#allocation11 + $0x54] sm:$0xff]
    %v3195 = vld [vmem:[#allocation11 + $0x5c] sm:$0xff]
    %v3196 = vld [vmem:[#allocation11 + $0x64] sm:$0xff]
    %v3197 = vld [vmem:[#allocation11 + $0x6c] sm:$0xf]
    %v3198 = vld [vmem:[#allocation11 + $0x70] sm:$0xff]
    %v3199 = vld [vmem:[#allocation11 + $0x78] sm:$0xff]
    %v3200 = vld [vmem:[#allocation11 + $0x80] sm:$0xff]
    %v3201 = vld [vmem:[#allocation11 + $0x88] sm:$0xf]
    %v3202 = vld [vmem:[#allocation11 + $0x8c] sm:$0xff]
    %v3203 = vld [vmem:[#allocation11 + $0x94] sm:$0xff]
    %v3204 = vld [vmem:[#allocation11 + $0x9c] sm:$0xff]
    %v3205 = vld [vmem:[#allocation11 + $0xa4] sm:$0xf]
    %v3206 = vld [vmem:[#allocation11 + $0xa8] sm:$0xff]
    %v3207 = vld [vmem:[#allocation11 + $0xb0] sm:$0xff]
    %v3208 = vld [vmem:[#allocation11 + $0xb8] sm:$0xff]
    %v3209 = vld [vmem:[#allocation11 + $0xc0] sm:$0xf]
    %v3210 = vld [vmem:[#allocation11 + $0xc4] sm:$0xff]
    %v3211 = vld [vmem:[#allocation11 + $0xcc] sm:$0xff]
    %v3212 = vld [vmem:[#allocation11 + $0xd4] sm:$0xff]
    %v3213 = vld [vmem:[#allocation11 + $0xdc] sm:$0xf]
    %v3214 = vld [vmem:[#allocation11 + $0xe0] sm:$0xff]
    %v3215 = vld [vmem:[#allocation11 + $0xe8] sm:$0xff]
    %v3216 = vld [vmem:[#allocation11 + $0xf0] sm:$0xff]
    %v3217 = vld [vmem:[#allocation11 + $0xf8] sm:$0xf]
    %v3218 = vld [vmem:[#allocation11 + $0xfc] sm:$0xff]
    %v3219 = vld [vmem:[#allocation11 + $0x104] sm:$0xff]
    %v3220 = vld [vmem:[#allocation11 + $0x10c] sm:$0xff]
    %v3221 = vld [vmem:[#allocation11 + $0x114] sm:$0xf]
    %v3222 = vld [vmem:[#allocation11 + $0x118] sm:$0xff]
    %v3223 = vld [vmem:[#allocation11 + $0x120] sm:$0xff]
    %v3224 = vld [vmem:[#allocation11 + $0x128] sm:$0xff]
    %v3225 = vld [vmem:[#allocation11 + $0x130] sm:$0xf]
    %v3226 = vld [vmem:[#allocation11 + $0x134] sm:$0xff]
    %v3227 = vld [vmem:[#allocation11 + $0x13c] sm:$0xff]
    %v3228 = vld [vmem:[#allocation11 + $0x144] sm:$0xff]
    %v3229 = vld [vmem:[#allocation11 + $0x14c] sm:$0xf]
    %v3230 = vld [vmem:[#allocation11 + $0x150] sm:$0xff]
    %v3231 = vld [vmem:[#allocation11 + $0x158] sm:$0xff]
    %v3232 = vld [vmem:[#allocation11 + $0x160] sm:$0xff]
    %v3233 = vld [vmem:[#allocation11 + $0x168] sm:$0xf]
    %v3234 = vld [vmem:[#allocation11 + $0x16c] sm:$0xff]
    %v3235 = vld [vmem:[#allocation11 + $0x174] sm:$0xff]
    %v3236 = vld [vmem:[#allocation11 + $0x17c] sm:$0xff]
    %v3237 = vld [vmem:[#allocation11 + $0x184] sm:$0xf]
    %v3238 = vld [vmem:[#allocation11 + $0x188] sm:$0xff]
    %v3239 = vld [vmem:[#allocation11 + $0x190] sm:$0xff]
    %v3240 = vld [vmem:[#allocation11 + $0x198] sm:$0xff]
    %v3241 = vld [vmem:[#allocation11 + $0x1a0] sm:$0xf]
    %v3242 = vld [vmem:[#allocation11 + $0x1a4] sm:$0xff]
    %v3243 = vld [vmem:[#allocation11 + $0x1ac] sm:$0xff]
    %v3244 = vld [vmem:[#allocation11 + $0x1b4] sm:$0xff]
    %v3245 = vld [vmem:[#allocation11 + $0x1bc] sm:$0xf]
    %v3246 = vld [vmem:[#allocation11 + $0x1c0] sm:$0xff]
    %v3247 = vld [vmem:[#allocation11 + $0x1c8] sm:$0xff]
    %v3248 = vld [vmem:[#allocation11 + $0x1d0] sm:$0xff]
    %v3249 = vld [vmem:[#allocation11 + $0x1d8] sm:$0xf]
    %v3250 = vld [vmem:[#allocation11 + $0x1dc] sm:$0xff]
    %v3251 = vld [vmem:[#allocation11 + $0x1e4] sm:$0xff]
    %v3252 = vld [vmem:[#allocation11 + $0x1ec] sm:$0xff]
    %v3253 = vld [vmem:[#allocation11 + $0x1f4] sm:$0xf]
    %v3254 = vld [vmem:[#allocation11 + $0x1f8] sm:$0xff]
    %v3255 = vld [vmem:[#allocation11 + $0x200] sm:$0xff]
    %v3256 = vld [vmem:[#allocation11 + $0x208] sm:$0xff]
    %v3257 = vld [vmem:[#allocation11 + $0x210] sm:$0xf]
    %v3258 = vld [vmem:[#allocation11 + $0x214] sm:$0xff]
    %v3259 = vld [vmem:[#allocation11 + $0x21c] sm:$0xff]
    %v3260 = vld [vmem:[#allocation11 + $0x224] sm:$0xff]
    %v3261 = vld [vmem:[#allocation11 + $0x22c] sm:$0xf]
    %v3262 = vld [vmem:[#allocation11 + $0x230] sm:$0xff]
    %v3263 = vld [vmem:[#allocation11 + $0x238] sm:$0xff]
    %v3264 = vld [vmem:[#allocation11 + $0x240] sm:$0xff]
    %v3265 = vld [vmem:[#allocation11 + $0x248] sm:$0xf]
    %v3266 = vld [vmem:[#allocation11 + $0x24c] sm:$0xff]
    %v3267 = vld [vmem:[#allocation11 + $0x254] sm:$0xff]
    %v3268 = vld [vmem:[#allocation11 + $0x25c] sm:$0xff]
    %v3269 = vld [vmem:[#allocation11 + $0x264] sm:$0xf]
    %v3270 = vld [vmem:[#allocation11 + $0x268] sm:$0xff]
    %v3271 = vld [vmem:[#allocation11 + $0x270] sm:$0xff]
    %v3272 = vld [vmem:[#allocation11 + $0x278] sm:$0xff]
    %v3273 = vld [vmem:[#allocation11 + $0x280] sm:$0xf]
    %v3274 = vld [vmem:[#allocation11 + $0x284] sm:$0xff]
    %v3275 = vld [vmem:[#allocation11 + $0x28c] sm:$0xff]
    %v3276 = vld [vmem:[#allocation11 + $0x294] sm:$0xff]
    %v3277 = vld [vmem:[#allocation11 + $0x29c] sm:$0xf]
    %v3278 = vld [vmem:[#allocation11 + $0x2a0] sm:$0xff]
    %v3279 = vld [vmem:[#allocation11 + $0x2a8] sm:$0xff]
    %v3280 = vld [vmem:[#allocation11 + $0x2b0] sm:$0xff]
    %v3281 = vld [vmem:[#allocation11 + $0x2b8] sm:$0xf]
    %v3282 = vld [vmem:[#allocation11 + $0x2bc] sm:$0xff]
    %v3283 = vld [vmem:[#allocation11 + $0x2c4] sm:$0xff]
    %v3284 = vld [vmem:[#allocation11 + $0x2cc] sm:$0xff]
    %v3285 = vld [vmem:[#allocation11 + $0x2d4] sm:$0xf]
    %v3286 = vld [vmem:[#allocation11 + $0x2d8] sm:$0xff]
    %v3287 = vld [vmem:[#allocation11 + $0x2e0] sm:$0xff]
    %v3288 = vld [vmem:[#allocation11 + $0x2e8] sm:$0xff]
    %v3289 = vld [vmem:[#allocation11 + $0x2f0] sm:$0xf]
    %v3290 = vld [vmem:[#allocation11 + $0x2f4] sm:$0xff]
    %v3291 = vld [vmem:[#allocation11 + $0x2fc] sm:$0xff]
    %v3292 = vld [vmem:[#allocation11 + $0x304] sm:$0xff]
    %v3293 = vld [vmem:[#allocation11 + $0x30c] sm:$0xf]
    %v3294 = vld [vmem:[#allocation11 + $0x310] sm:$0xff]
    %v3295 = vld [vmem:[#allocation11 + $0x318] sm:$0xff]
    %v3296 = vld [vmem:[#allocation11 + $0x320] sm:$0xff]
    %v3297 = vld [vmem:[#allocation11 + $0x328] sm:$0xf]
    %v3298 = vld [vmem:[#allocation11 + $0x32c] sm:$0xff]
    %v3299 = vld [vmem:[#allocation11 + $0x334] sm:$0xff]
    %v3300 = vld [vmem:[#allocation11 + $0x33c] sm:$0xff]
    %v3301 = vld [vmem:[#allocation11 + $0x344] sm:$0xf]
    %v3302 = vld [vmem:[#allocation11 + $0x348] sm:$0xff]
    %v3303 = vld [vmem:[#allocation11 + $0x350] sm:$0xff]
    %v3304 = vld [vmem:[#allocation11 + $0x358] sm:$0xff]
    %v3305 = vld [vmem:[#allocation11 + $0x360] sm:$0xf]
    %v3306 = vld [vmem:[#allocation11 + $0x364] sm:$0xff]
    %v3307 = vld [vmem:[#allocation11 + $0x36c] sm:$0xff]
    %v3308 = vld [vmem:[#allocation11 + $0x374] sm:$0xff]
    %v3309 = vld [vmem:[#allocation11 + $0x37c] sm:$0xf]
    %v3310 = vld [vmem:[#allocation11 + $0x380] sm:$0xff]
    %v3311 = vld [vmem:[#allocation11 + $0x388] sm:$0xff]
    %v3312 = vld [vmem:[#allocation11 + $0x390] sm:$0xff]
    %v3313 = vld [vmem:[#allocation11 + $0x398] sm:$0xf]
    %v3314 = vld [vmem:[#allocation11 + $0x39c] sm:$0xff]
    %v3315 = vld [vmem:[#allocation11 + $0x3a4] sm:$0xff]
    %v3316 = vld [vmem:[#allocation11 + $0x3ac] sm:$0xff]
    %v3317 = vld [vmem:[#allocation11 + $0x3b4] sm:$0xf]
    %v3318 = vld [vmem:[#allocation11 + $0x3b8] sm:$0xff]
    %v3319 = vld [vmem:[#allocation11 + $0x3c0] sm:$0xff]
    %v3320 = vld [vmem:[#allocation11 + $0x3c8] sm:$0xff]
    %v3321 = vld [vmem:[#allocation11 + $0x3d0] sm:$0xf]
    %v3322 = vld [vmem:[#allocation11 + $0x3d4] sm:$0xff]
    %v3323 = vld [vmem:[#allocation11 + $0x3dc] sm:$0xff]
    %v3324 = vld [vmem:[#allocation11 + $0x3e4] sm:$0xff]
    %v3325 = vld [vmem:[#allocation11 + $0x3ec] sm:$0xf]
    %v3326 = vld [vmem:[#allocation11 + $0x3f0] sm:$0xff]
    %v3327 = vld [vmem:[#allocation11 + $0x3f8] sm:$0xff]
    %v3328 = vld [vmem:[#allocation11 + $0x400] sm:$0xff]
    %v3329 = vld [vmem:[#allocation11 + $0x408] sm:$0xf]
    %v3330 = vld [vmem:[#allocation11 + $0x40c] sm:$0xff]
    %v3331 = vld [vmem:[#allocation11 + $0x414] sm:$0xff]
    %v3332 = vld [vmem:[#allocation11 + $0x41c] sm:$0xff]
    %v3333 = vld [vmem:[#allocation11 + $0x424] sm:$0xf]
    %v3334 = vld [vmem:[#allocation11 + $0x428] sm:$0xff]
    %v3335 = vld [vmem:[#allocation11 + $0x430] sm:$0xff]
    %v3336 = vld [vmem:[#allocation11 + $0x438] sm:$0xff]
    %v3337 = vld [vmem:[#allocation11 + $0x440] sm:$0xf]
    %v3338 = vld [vmem:[#allocation11 + $0x444] sm:$0xff]
    %v3339 = vld [vmem:[#allocation11 + $0x44c] sm:$0xff]
    %v3340 = vld [vmem:[#allocation11 + $0x454] sm:$0xff]
    %v3341 = vld [vmem:[#allocation11 + $0x45c] sm:$0xf]
    %v3342 = vld [vmem:[#allocation11 + $0x460] sm:$0xff]
    %v3343 = vld [vmem:[#allocation11 + $0x468] sm:$0xff]
    %v3344 = vld [vmem:[#allocation11 + $0x470] sm:$0xff]
    %v3345 = vld [vmem:[#allocation11 + $0x478] sm:$0xf]
    %v3346 = vld [vmem:[#allocation11 + $0x47c] sm:$0xff]
    %v3347 = vld [vmem:[#allocation11 + $0x484] sm:$0xff]
    %v3348 = vld [vmem:[#allocation11 + $0x48c] sm:$0xff]
    %v3349 = vld [vmem:[#allocation11 + $0x494] sm:$0xf]
    %v3350 = vld [vmem:[#allocation11 + $0x498] sm:$0xff]
    %v3351 = vld [vmem:[#allocation11 + $0x4a0] sm:$0xff]
    %v3352 = vld [vmem:[#allocation11 + $0x4a8] sm:$0xff]
    %v3353 = vld [vmem:[#allocation11 + $0x4b0] sm:$0xf]
    %v3354 = vld [vmem:[#allocation11 + $0x4b4] sm:$0xff]
    %v3355 = vld [vmem:[#allocation11 + $0x4bc] sm:$0xff]
    %v3356 = vld [vmem:[#allocation11 + $0x4c4] sm:$0xff]
    %v3357 = vld [vmem:[#allocation11 + $0x4cc] sm:$0xf]
    %v3358 = vld [vmem:[#allocation11 + $0x4d0] sm:$0xff]
    %v3359 = vld [vmem:[#allocation11 + $0x4d8] sm:$0xff]
    %v3360 = vld [vmem:[#allocation11 + $0x4e0] sm:$0xff]
    %v3361 = vld [vmem:[#allocation11 + $0x4e8] sm:$0xf]
    %v3362 = vld [vmem:[#allocation11 + $0x4ec] sm:$0xff]
    %v3363 = vld [vmem:[#allocation11 + $0x4f4] sm:$0xff]
    %v3364 = vld [vmem:[#allocation11 + $0x4fc] sm:$0xff]
    %v3365 = vld [vmem:[#allocation11 + $0x504] sm:$0xf]
    %v3366 = vld [vmem:[#allocation11 + $0x508] sm:$0xff]
    %v3367 = vld [vmem:[#allocation11 + $0x510] sm:$0xff]
    %v3368 = vld [vmem:[#allocation11 + $0x518] sm:$0xff]
    %v3369 = vld [vmem:[#allocation11 + $0x520] sm:$0xf]
    %v3370 = vld [vmem:[#allocation11 + $0x524] sm:$0xff]
    %v3371 = vld [vmem:[#allocation11 + $0x52c] sm:$0xff]
    %v3372 = vld [vmem:[#allocation11 + $0x534] sm:$0xff]
    %v3373 = vld [vmem:[#allocation11 + $0x53c] sm:$0xf]
    %v3374 = vld [vmem:[#allocation11 + $0x540] sm:$0xff]
    %v3375 = vld [vmem:[#allocation11 + $0x548] sm:$0xff]
    %v3376 = vld [vmem:[#allocation11 + $0x550] sm:$0xff]
    %v3377 = vld [vmem:[#allocation11 + $0x558] sm:$0xf]
    %v3378 = vld [vmem:[#allocation11 + $0x55c] sm:$0xff]
    %v3379 = vld [vmem:[#allocation11 + $0x564] sm:$0xff]
    %v3380 = vld [vmem:[#allocation11 + $0x56c] sm:$0xff]
    %v3381 = vld [vmem:[#allocation11 + $0x574] sm:$0xf]
    %v3382 = vld [vmem:[#allocation11 + $0x578] sm:$0xff]
    %v3383 = vld [vmem:[#allocation11 + $0x580] sm:$0xff]
    %v3384 = vld [vmem:[#allocation11 + $0x588] sm:$0xff]
    %v3385 = vld [vmem:[#allocation11 + $0x590] sm:$0xf]
    %v3386 = vld [vmem:[#allocation11 + $0x594] sm:$0xff]
    %v3387 = vld [vmem:[#allocation11 + $0x59c] sm:$0xff]
    %v3388 = vld [vmem:[#allocation11 + $0x5a4] sm:$0xff]
    %v3389 = vld [vmem:[#allocation11 + $0x5ac] sm:$0xf]
    %v3390 = vld [vmem:[#allocation11 + $0x5b0] sm:$0xff]
    %v3391 = vld [vmem:[#allocation11 + $0x5b8] sm:$0xff]
    %v3392 = vld [vmem:[#allocation11 + $0x5c0] sm:$0xff]
    %v3393 = vld [vmem:[#allocation11 + $0x5c8] sm:$0xf]
    %v3394 = vld [vmem:[#allocation11 + $0x5cc] sm:$0xff]
    %v3395 = vld [vmem:[#allocation11 + $0x5d4] sm:$0xff]
    %v3396 = vld [vmem:[#allocation11 + $0x5dc] sm:$0xff]
    %v3397 = vld [vmem:[#allocation11 + $0x5e4] sm:$0xf]
    %v3398 = vld [vmem:[#allocation11 + $0x5e8] sm:$0xff]
    %v3399 = vld [vmem:[#allocation11 + $0x5f0] sm:$0xff]
    %v3400 = vld [vmem:[#allocation11 + $0x5f8] sm:$0xff]
    %v3401 = vld [vmem:[#allocation11 + $0x600] sm:$0xf]
    %v3402 = vld [vmem:[#allocation11 + $0x604] sm:$0xff]
    %v3403 = vld [vmem:[#allocation11 + $0x60c] sm:$0xff]
    %v3404 = vld [vmem:[#allocation11 + $0x614] sm:$0xff]
    %v3405 = vld [vmem:[#allocation11 + $0x61c] sm:$0xf]
    %v3406 = vld [vmem:[#allocation11 + $0x620] sm:$0xff]
    %v3407 = vld [vmem:[#allocation11 + $0x628] sm:$0xff]
    %v3408 = vld [vmem:[#allocation11 + $0x630] sm:$0xff]
    %v3409 = vld [vmem:[#allocation11 + $0x638] sm:$0xf]
    %v3410 = vld [vmem:[#allocation11 + $0x63c] sm:$0xff]
    %v3411 = vld [vmem:[#allocation11 + $0x644] sm:$0xff]
    %v3412 = vld [vmem:[#allocation11 + $0x64c] sm:$0xff]
    %v3413 = vld [vmem:[#allocation11 + $0x654] sm:$0xf]
    %v3414 = vld [vmem:[#allocation11 + $0x658] sm:$0xff]
    %v3415 = vld [vmem:[#allocation11 + $0x660] sm:$0xff]
    %v3416 = vld [vmem:[#allocation11 + $0x668] sm:$0xff]
    %v3417 = vld [vmem:[#allocation11 + $0x670] sm:$0xf]
    %v3418 = vld [vmem:[#allocation11 + $0x674] sm:$0xff]
    %v3419 = vld [vmem:[#allocation11 + $0x67c] sm:$0xff]
    %v3420 = vld [vmem:[#allocation11 + $0x684] sm:$0xff]
    %v3421 = vld [vmem:[#allocation11 + $0x68c] sm:$0xf]
    %v3422 = vld [vmem:[#allocation11 + $0x690] sm:$0xff]
    %v3423 = vld [vmem:[#allocation11 + $0x698] sm:$0xff]
    %v3424 = vld [vmem:[#allocation11 + $0x6a0] sm:$0xff]
    %v3425 = vld [vmem:[#allocation11 + $0x6a8] sm:$0xf]
    %v3426 = vld [vmem:[#allocation11 + $0x6ac] sm:$0xff]
    %v3427 = vld [vmem:[#allocation11 + $0x6b4] sm:$0xff]
    %v3428 = vld [vmem:[#allocation11 + $0x6bc] sm:$0xff]
    %v3429 = vld [vmem:[#allocation11 + $0x6c4] sm:$0xf]
    %v3430 = vld [vmem:[#allocation11 + $0x6c8] sm:$0xff]
    %v3431 = vld [vmem:[#allocation11 + $0x6d0] sm:$0xff]
    %v3432 = vld [vmem:[#allocation11 + $0x6d8] sm:$0xff]
    %v3433 = vld [vmem:[#allocation11 + $0x6e0] sm:$0xf]
    %v3434 = vld [vmem:[#allocation11 + $0x6e4] sm:$0xff]
    %v3435 = vld [vmem:[#allocation11 + $0x6ec] sm:$0xff]
    %v3436 = vld [vmem:[#allocation11 + $0x6f4] sm:$0xff]
    %v3437 = vld [vmem:[#allocation11 + $0x6fc] sm:$0xf]
    %v3438 = vld [vmem:[#allocation11 + $0x700] sm:$0xff]
    %v3439 = vld [vmem:[#allocation11 + $0x708] sm:$0xff]
    %v3440 = vld [vmem:[#allocation11 + $0x710] sm:$0xff]
    %v3441 = vld [vmem:[#allocation11 + $0x718] sm:$0xf]
    %v3442 = vld [vmem:[#allocation11 + $0x71c] sm:$0xff]
    %v3443 = vld [vmem:[#allocation11 + $0x724] sm:$0xff]
    %v3444 = vld [vmem:[#allocation11 + $0x72c] sm:$0xff]
    %v3445 = vld [vmem:[#allocation11 + $0x734] sm:$0xf]
    %v3446 = vld [vmem:[#allocation11 + $0x738] sm:$0xff]
    %v3447 = vld [vmem:[#allocation11 + $0x740] sm:$0xff]
    %v3448 = vld [vmem:[#allocation11 + $0x748] sm:$0xff]
    %v3449 = vld [vmem:[#allocation11 + $0x750] sm:$0xf]
    %v3450 = vld [vmem:[#allocation11 + $0x754] sm:$0xff]
    %v3451 = vld [vmem:[#allocation11 + $0x75c] sm:$0xff]
    %v3452 = vld [vmem:[#allocation11 + $0x764] sm:$0xff]
    %v3453 = vld [vmem:[#allocation11 + $0x76c] sm:$0xf]
    %v3454 = vld [vmem:[#allocation11 + $0x770] sm:$0xff]
    %v3455 = vld [vmem:[#allocation11 + $0x778] sm:$0xff]
    %v3456 = vld [vmem:[#allocation11 + $0x780] sm:$0xff]
    %v3457 = vld [vmem:[#allocation11 + $0x788] sm:$0xf]
    %v3458 = vld [vmem:[#allocation11 + $0x78c] sm:$0xff]
    %v3459 = vld [vmem:[#allocation11 + $0x794] sm:$0xff]
    %v3460 = vld [vmem:[#allocation11 + $0x79c] sm:$0xff]
    %v3461 = vld [vmem:[#allocation11 + $0x7a4] sm:$0xf]
    %v3462 = vld [vmem:[#allocation11 + $0x7a8] sm:$0xff]
    %v3463 = vld [vmem:[#allocation11 + $0x7b0] sm:$0xff]
    %v3464 = vld [vmem:[#allocation11 + $0x7b8] sm:$0xff]
    %v3465 = vld [vmem:[#allocation11 + $0x7c0] sm:$0xf]
    %v3466 = vld [vmem:[#allocation11 + $0x7c4] sm:$0xff]
    %v3467 = vld [vmem:[#allocation11 + $0x7cc] sm:$0xff]
    %v3468 = vld [vmem:[#allocation11 + $0x7d4] sm:$0xff]
    %v3469 = vld [vmem:[#allocation11 + $0x7dc] sm:$0xf]
    %v3470 = vld [vmem:[#allocation11 + $0x7e0] sm:$0xff]
    %v3471 = vld [vmem:[#allocation11 + $0x7e8] sm:$0xff]
    %v3472 = vld [vmem:[#allocation11 + $0x7f0] sm:$0xff]
    %v3473 = vld [vmem:[#allocation11 + $0x7f8] sm:$0xf]
    %v3474 = vld [vmem:[#allocation11 + $0x7fc] sm:$0xff]
    %v3475 = vld [vmem:[#allocation11 + $0x804] sm:$0xff]
    %v3476 = vld [vmem:[#allocation11 + $0x80c] sm:$0xff]
    %v3477 = vld [vmem:[#allocation11 + $0x814] sm:$0xf]
    %v3478 = vld [vmem:[#allocation11 + $0x818] sm:$0xff]
    %v3479 = vld [vmem:[#allocation11 + $0x820] sm:$0xff]
    %v3480 = vld [vmem:[#allocation11 + $0x828] sm:$0xff]
    %v3481 = vld [vmem:[#allocation11 + $0x830] sm:$0xf]
    %v3482 = vld [vmem:[#allocation11 + $0x834] sm:$0xff]
    %v3483 = vld [vmem:[#allocation11 + $0x83c] sm:$0xff]
    %v3484 = vld [vmem:[#allocation11 + $0x844] sm:$0xff]
    %v3485 = vld [vmem:[#allocation11 + $0x84c] sm:$0xf]
    %v3486 = vld [vmem:[#allocation11 + $0x850] sm:$0xff]
    %v3487 = vld [vmem:[#allocation11 + $0x858] sm:$0xff]
    %v3488 = vld [vmem:[#allocation11 + $0x860] sm:$0xff]
    %v3489 = vld [vmem:[#allocation11 + $0x868] sm:$0xf]
    %v3490 = vld [vmem:[#allocation11 + $0x86c] sm:$0xff]
    %v3491 = vld [vmem:[#allocation11 + $0x874] sm:$0xff]
    %v3492 = vld [vmem:[#allocation11 + $0x87c] sm:$0xff]
    %v3493 = vld [vmem:[#allocation11 + $0x884] sm:$0xf]
    %v3494 = vld [vmem:[#allocation11 + $0x888] sm:$0xff]
    %v3495 = vld [vmem:[#allocation11 + $0x890] sm:$0xff]
    %v3496 = vld [vmem:[#allocation11 + $0x898] sm:$0xff]
    %v3497 = vld [vmem:[#allocation11 + $0x8a0] sm:$0xf]
    %v3498 = vld [vmem:[#allocation11 + $0x8a4] sm:$0xff]
    %v3499 = vld [vmem:[#allocation11 + $0x8ac] sm:$0xff]
    %v3500 = vld [vmem:[#allocation11 + $0x8b4] sm:$0xff]
    %v3501 = vld [vmem:[#allocation11 + $0x8bc] sm:$0xf]
    %v3502 = vld [vmem:[#allocation11 + $0x8c0] sm:$0xff]
    %v3503 = vld [vmem:[#allocation11 + $0x8c8] sm:$0xff]
    %v3504 = vld [vmem:[#allocation11 + $0x8d0] sm:$0xff]
    %v3505 = vld [vmem:[#allocation11 + $0x8d8] sm:$0xf]
    %v3506 = vld [vmem:[#allocation11 + $0x8dc] sm:$0xff]
    %v3507 = vld [vmem:[#allocation11 + $0x8e4] sm:$0xff]
    %v3508 = vld [vmem:[#allocation11 + $0x8ec] sm:$0xff]
    %v3509 = vld [vmem:[#allocation11 + $0x8f4] sm:$0xf]
    %v3510 = vld [vmem:[#allocation11 + $0x8f8] sm:$0xff]
    %v3511 = vld [vmem:[#allocation11 + $0x900] sm:$0xff]
    %v3512 = vld [vmem:[#allocation11 + $0x908] sm:$0xff]
    %v3513 = vld [vmem:[#allocation11 + $0x910] sm:$0xf]
    %v3514 = vld [vmem:[#allocation11 + $0x914] sm:$0xff]
    %v3515 = vld [vmem:[#allocation11 + $0x91c] sm:$0xff]
    %v3516 = vld [vmem:[#allocation11 + $0x924] sm:$0xff]
    %v3517 = vld [vmem:[#allocation11 + $0x92c] sm:$0xf]
    %v3518 = vld [vmem:[#allocation11 + $0x930] sm:$0xff]
    %v3519 = vld [vmem:[#allocation11 + $0x938] sm:$0xff]
    %v3520 = vld [vmem:[#allocation11 + $0x940] sm:$0xff]
    %v3521 = vld [vmem:[#allocation11 + $0x948] sm:$0xf]
    %v3522 = vld [vmem:[#allocation11 + $0x94c] sm:$0xff]
    %v3523 = vld [vmem:[#allocation11 + $0x954] sm:$0xff]
    %v3524 = vld [vmem:[#allocation11 + $0x95c] sm:$0xff]
    %v3525 = vld [vmem:[#allocation11 + $0x964] sm:$0xf]
    %v3526 = vld [vmem:[#allocation11 + $0x968] sm:$0xff]
    %v3527 = vld [vmem:[#allocation11 + $0x970] sm:$0xff]
    %v3528 = vld [vmem:[#allocation11 + $0x978] sm:$0xff]
    %v3529 = vld [vmem:[#allocation11 + $0x980] sm:$0xf]
    %v3530 = vld [vmem:[#allocation11 + $0x984] sm:$0xff]
    %v3531 = vld [vmem:[#allocation11 + $0x98c] sm:$0xff]
    %v3532 = vld [vmem:[#allocation11 + $0x994] sm:$0xff]
    %v3533 = vld [vmem:[#allocation11 + $0x99c] sm:$0xf]
    %v3534 = vld [vmem:[#allocation11 + $0x9a0] sm:$0xff]
    %v3535 = vld [vmem:[#allocation11 + $0x9a8] sm:$0xff]
    %v3536 = vld [vmem:[#allocation11 + $0x9b0] sm:$0xff]
    %v3537 = vld [vmem:[#allocation11 + $0x9b8] sm:$0xf]
    %v3538 = vld [vmem:[#allocation11 + $0x9bc] sm:$0xff]
    %v3539 = vld [vmem:[#allocation11 + $0x9c4] sm:$0xff]
    %v3540 = vld [vmem:[#allocation11 + $0x9cc] sm:$0xff]
    %v3541 = vld [vmem:[#allocation11 + $0x9d4] sm:$0xf]
    %v3542 = vld [vmem:[#allocation11 + $0x9d8] sm:$0xff]
    %v3543 = vld [vmem:[#allocation11 + $0x9e0] sm:$0xff]
    %v3544 = vld [vmem:[#allocation11 + $0x9e8] sm:$0xff]
    %v3545 = vld [vmem:[#allocation11 + $0x9f0] sm:$0xf]
    %v3546 = vld [vmem:[#allocation11 + $0x9f4] sm:$0xff]
    %v3547 = vld [vmem:[#allocation11 + $0x9fc] sm:$0xff]
    %v3548 = vld [vmem:[#allocation11 + $0xa04] sm:$0xff]
    %v3549 = vld [vmem:[#allocation11 + $0xa0c] sm:$0xf]
    %v3550 = vld [vmem:[#allocation11 + $0xa10] sm:$0xff]
    %v3551 = vld [vmem:[#allocation11 + $0xa18] sm:$0xff]
    %v3552 = vld [vmem:[#allocation11 + $0xa20] sm:$0xff]
    %v3553 = vld [vmem:[#allocation11 + $0xa28] sm:$0xf]
    %v3554 = vld [vmem:[#allocation11 + $0xa2c] sm:$0xff]
    %v3555 = vld [vmem:[#allocation11 + $0xa34] sm:$0xff]
    %v3556 = vld [vmem:[#allocation11 + $0xa3c] sm:$0xff]
    %v3557 = vld [vmem:[#allocation11 + $0xa44] sm:$0xf]
    %v3558 = vld [vmem:[#allocation11 + $0xa48] sm:$0xff]
    %v3559 = vld [vmem:[#allocation11 + $0xa50] sm:$0xff]
    %v3560 = vld [vmem:[#allocation11 + $0xa58] sm:$0xff]
    %v3561 = vld [vmem:[#allocation11 + $0xa60] sm:$0xf]
    %v3562 = vld [vmem:[#allocation11 + $0xa64] sm:$0xff]
    %v3563 = vld [vmem:[#allocation11 + $0xa6c] sm:$0xff]
    %v3564 = vld [vmem:[#allocation11 + $0xa74] sm:$0xff]
    %v3565 = vld [vmem:[#allocation11 + $0xa7c] sm:$0xf]
    %v3566 = vld [vmem:[#allocation11 + $0xa80] sm:$0xff]
    %v3567 = vld [vmem:[#allocation11 + $0xa88] sm:$0xff]
    %v3568 = vld [vmem:[#allocation11 + $0xa90] sm:$0xff]
    %v3569 = vld [vmem:[#allocation11 + $0xa98] sm:$0xf]
    %v3570 = vld [vmem:[#allocation11 + $0xa9c] sm:$0xff]
    %v3571 = vld [vmem:[#allocation11 + $0xaa4] sm:$0xff]
    %v3572 = vld [vmem:[#allocation11 + $0xaac] sm:$0xff]
    %v3573 = vld [vmem:[#allocation11 + $0xab4] sm:$0xf]
    %v3574 = vld [vmem:[#allocation11 + $0xab8] sm:$0xff]
    %v3575 = vld [vmem:[#allocation11 + $0xac0] sm:$0xff]
    %v3576 = vld [vmem:[#allocation11 + $0xac8] sm:$0xff]
    %v3577 = vld [vmem:[#allocation11 + $0xad0] sm:$0xf]
    %v3578 = vld [vmem:[#allocation11 + $0xad4] sm:$0xff]
    %v3579 = vld [vmem:[#allocation11 + $0xadc] sm:$0xff]
    %v3580 = vld [vmem:[#allocation11 + $0xae4] sm:$0xff]
    %v3581 = vld [vmem:[#allocation11 + $0xaec] sm:$0xf]
    %v3582 = vld [vmem:[#allocation11 + $0xaf0] sm:$0xff]
    %v3583 = vld [vmem:[#allocation11 + $0xaf8] sm:$0xff]
    %v3584 = vld [vmem:[#allocation11 + $0xb00] sm:$0xff]
    %v3585 = vld [vmem:[#allocation11 + $0xb08] sm:$0xf]
    %v3586 = vld [vmem:[#allocation11 + $0xb0c] sm:$0xff]
    %v3587 = vld [vmem:[#allocation11 + $0xb14] sm:$0xff]
    %v3588 = vld [vmem:[#allocation11 + $0xb1c] sm:$0xff]
    %v3589 = vld [vmem:[#allocation11 + $0xb24] sm:$0xf]
    %v3590 = vld [vmem:[#allocation11 + $0xb28] sm:$0xff]
    %v3591 = vld [vmem:[#allocation11 + $0xb30] sm:$0xff]
    %v3592 = vld [vmem:[#allocation11 + $0xb38] sm:$0xff]
    %v3593 = vld [vmem:[#allocation11 + $0xb40] sm:$0xf]
    %v3594 = vld [vmem:[#allocation11 + $0xb44] sm:$0xff]
    %v3595 = vld [vmem:[#allocation11 + $0xb4c] sm:$0xff]
    %v3596 = vld [vmem:[#allocation11 + $0xb54] sm:$0xff]
    %v3597 = vld [vmem:[#allocation11 + $0xb5c] sm:$0xf]
    %v3598 = vld [vmem:[#allocation11 + $0xb60] sm:$0xff]
    %v3599 = vld [vmem:[#allocation11 + $0xb68] sm:$0xff]
    %v3600 = vld [vmem:[#allocation11 + $0xb70] sm:$0xff]
    %v3601 = vld [vmem:[#allocation11 + $0xb78] sm:$0xf]
    %v3602 = vld [vmem:[#allocation11 + $0xb7c] sm:$0xff]
    %v3603 = vld [vmem:[#allocation11 + $0xb84] sm:$0xff]
    %v3604 = vld [vmem:[#allocation11 + $0xb8c] sm:$0xff]
    %v3605 = vld [vmem:[#allocation11 + $0xb94] sm:$0xf]
    %v3606 = vld [vmem:[#allocation11 + $0xb98] sm:$0xff]
    %v3607 = vld [vmem:[#allocation11 + $0xba0] sm:$0xff]
    %v3608 = vld [vmem:[#allocation11 + $0xba8] sm:$0xff]
    %v3609 = vld [vmem:[#allocation11 + $0xbb0] sm:$0xf]
    %v3610 = vld [vmem:[#allocation11 + $0xbb4] sm:$0xff]
    %v3611 = vld [vmem:[#allocation11 + $0xbbc] sm:$0xff]
    %v3612 = vld [vmem:[#allocation11 + $0xbc4] sm:$0xff]
    %v3613 = vld [vmem:[#allocation11 + $0xbcc] sm:$0xf]
    %v3614 = vld [vmem:[#allocation11 + $0xbd0] sm:$0xff]
    %v3615 = vld [vmem:[#allocation11 + $0xbd8] sm:$0xff]
    %v3616 = vld [vmem:[#allocation11 + $0xbe0] sm:$0xff]
    %v3617 = vld [vmem:[#allocation11 + $0xbe8] sm:$0xf]
    %v3618 = vld [vmem:[#allocation11 + $0xbec] sm:$0xff]
    %v3619 = vld [vmem:[#allocation11 + $0xbf4] sm:$0xff]
    %v3620 = vld [vmem:[#allocation11 + $0xbfc] sm:$0xff]
    %v3621 = vld [vmem:[#allocation11 + $0xc04] sm:$0xf]
    %v3622 = vld [vmem:[#allocation11 + $0xc08] sm:$0xff]
    %v3623 = vld [vmem:[#allocation11 + $0xc10] sm:$0xff]
    %v3624 = vld [vmem:[#allocation11 + $0xc18] sm:$0xff]
    %v3625 = vld [vmem:[#allocation11 + $0xc20] sm:$0xf]
    %v3626 = vld [vmem:[#allocation11 + $0xc24] sm:$0xff]
    %v3627 = vld [vmem:[#allocation11 + $0xc2c] sm:$0xff]
    %v3628 = vld [vmem:[#allocation11 + $0xc34] sm:$0xff]
    %v3629 = vld [vmem:[#allocation11 + $0xc3c] sm:$0xf]
    %v3630 = vld [vmem:[#allocation11 + $0xc40] sm:$0xff]
    %v3631 = vld [vmem:[#allocation11 + $0xc48] sm:$0xff]
    %v3632 = vld [vmem:[#allocation11 + $0xc50] sm:$0xff]
    %v3633 = vld [vmem:[#allocation11 + $0xc58] sm:$0xf]
    %v3634 = vld [vmem:[#allocation11 + $0xc5c] sm:$0xff]
    %v3635 = vld [vmem:[#allocation11 + $0xc64] sm:$0xff]
    %v3636 = vld [vmem:[#allocation11 + $0xc6c] sm:$0xff]
    %v3637 = vld [vmem:[#allocation11 + $0xc74] sm:$0xf]
    %v3638 = vld [vmem:[#allocation11 + $0xc78] sm:$0xff]
    %v3639 = vld [vmem:[#allocation11 + $0xc80] sm:$0xff]
    %v3640 = vld [vmem:[#allocation11 + $0xc88] sm:$0xff]
    %v3641 = vld [vmem:[#allocation11 + $0xc90] sm:$0xf]
    %v3642 = vld [vmem:[#allocation11 + $0xc94] sm:$0xff]
    %v3643 = vld [vmem:[#allocation11 + $0xc9c] sm:$0xff]
    %v3644 = vld [vmem:[#allocation11 + $0xca4] sm:$0xff]
    %v3645 = vld [vmem:[#allocation11 + $0xcac] sm:$0xf]
    %v3646 = vld [vmem:[#allocation11 + $0xcb0] sm:$0xff]
    %v3647 = vld [vmem:[#allocation11 + $0xcb8] sm:$0xff]
    %v3648 = vld [vmem:[#allocation11 + $0xcc0] sm:$0xff]
    %v3649 = vld [vmem:[#allocation11 + $0xcc8] sm:$0xf]
    %v3650 = vld [vmem:[#allocation11 + $0xccc] sm:$0xff]
    %v3651 = vld [vmem:[#allocation11 + $0xcd4] sm:$0xff]
    %v3652 = vld [vmem:[#allocation11 + $0xcdc] sm:$0xff]
    %v3653 = vld [vmem:[#allocation11 + $0xce4] sm:$0xf]
    %v3654 = vld [vmem:[#allocation11 + $0xce8] sm:$0xff]
    %v3655 = vld [vmem:[#allocation11 + $0xcf0] sm:$0xff]
    %v3656 = vld [vmem:[#allocation11 + $0xcf8] sm:$0xff]
    %v3657 = vld [vmem:[#allocation11 + $0xd00] sm:$0xf]
    %v3658 = vld [vmem:[#allocation11 + $0xd04] sm:$0xff]
    %v3659 = vld [vmem:[#allocation11 + $0xd0c] sm:$0xff]
    %v3660 = vld [vmem:[#allocation11 + $0xd14] sm:$0xff]
    %v3661 = vld [vmem:[#allocation11 + $0xd1c] sm:$0xf]
    %v3662 = vld [vmem:[#allocation11 + $0xd20] sm:$0xff]
    %v3663 = vld [vmem:[#allocation11 + $0xd28] sm:$0xff]
    %v3664 = vld [vmem:[#allocation11 + $0xd30] sm:$0xff]
    %v3665 = vld [vmem:[#allocation11 + $0xd38] sm:$0xf]
    %v3666 = vld [vmem:[#allocation11 + $0xd3c] sm:$0xff]
    %v3667 = vld [vmem:[#allocation11 + $0xd44] sm:$0xff]
    %v3668 = vld [vmem:[#allocation11 + $0xd4c] sm:$0xff]
    %v3669 = vld [vmem:[#allocation11 + $0xd54] sm:$0xf]
    %v3670 = vld [vmem:[#allocation11 + $0xd58] sm:$0xff]
    %v3671 = vld [vmem:[#allocation11 + $0xd60] sm:$0xff]
    %v3672 = vld [vmem:[#allocation11 + $0xd68] sm:$0xff]
    %v3673 = vld [vmem:[#allocation11 + $0xd70] sm:$0xf]
    %v3674 = vld [vmem:[#allocation11 + $0xd74] sm:$0xff]
    %v3675 = vld [vmem:[#allocation11 + $0xd7c] sm:$0xff]
    %v3676 = vld [vmem:[#allocation11 + $0xd84] sm:$0xff]
    %v3677 = vld [vmem:[#allocation11 + $0xd8c] sm:$0xf]
    %v3678 = vld [vmem:[#allocation11 + $0xd90] sm:$0xff]
    %v3679 = vld [vmem:[#allocation11 + $0xd98] sm:$0xff]
    %v3680 = vld [vmem:[#allocation11 + $0xda0] sm:$0xff]
    %v3681 = vld [vmem:[#allocation11 + $0xda8] sm:$0xf]
    %v3682 = vld [vmem:[#allocation11 + $0xdac] sm:$0xff]
    %v3683 = vld [vmem:[#allocation11 + $0xdb4] sm:$0xff]
    %v3684 = vld [vmem:[#allocation11 + $0xdbc] sm:$0xff]
    %v3685 = vld [vmem:[#allocation11 + $0xdc4] sm:$0xf]
    %v3686 = vld [vmem:[#allocation11 + $0xdc8] sm:$0xff]
    %v3687 = vld [vmem:[#allocation11 + $0xdd0] sm:$0xff]
    %v3688 = vld [vmem:[#allocation11 + $0xdd8] sm:$0xff]
    %v3689 = vld [vmem:[#allocation11 + $0xde0] sm:$0xf]
    %v3690 = vld [vmem:[#allocation11 + $0xde4] sm:$0xff]
    %v3691 = vld [vmem:[#allocation11 + $0xdec] sm:$0xff]
    %v3692 = vld [vmem:[#allocation11 + $0xdf4] sm:$0xff]
    %v3693 = vld [vmem:[#allocation11 + $0xdfc] sm:$0xf]
    %v3694 = vld [vmem:[#allocation13] sm:$0xff]
    %v3696 = vperm.slane %v3694, 0
    %v3697 = vperm.slane %v3694, 1
    %v3698 = vperm.slane %v3694, 2
    %v3699 = vperm.slane %v3694, 3
    %v3700 = vperm.slane %v3694, 4
    %v3701 = vperm.slane %v3694, 5
    %v3702 = vperm.slane %v3694, 6
    %v4222 = vunpack.c.l.b16 %v3182
    %v4223 = vunpack.c.h.b16 %v3182
    %v4224 = vunpack.c.l.b16 %v3183
    %v4225 = vunpack.c.h.b16 %v3183
    %v4226 = vunpack.c.l.b16 %v3184
    %v4227 = vunpack.c.h.b16 %v3184
    %v4228 = vunpack.c.l.b16 %v3185
    %v4229 = vunpack.c.l.b16 %v3186
    %v4230 = vunpack.c.h.b16 %v3186
    %v4231 = vunpack.c.l.b16 %v3187
    %v4232 = vunpack.c.h.b16 %v3187
    %v4233 = vunpack.c.l.b16 %v3188
    %v4234 = vunpack.c.h.b16 %v3188
    %v4235 = vunpack.c.l.b16 %v3189
    %v4236 = vunpack.c.l.b16 %v3190
    %v4237 = vunpack.c.h.b16 %v3190
    %v4238 = vunpack.c.l.b16 %v3191
    %v4239 = vunpack.c.h.b16 %v3191
    %v4240 = vunpack.c.l.b16 %v3192
    %v4241 = vunpack.c.h.b16 %v3192
    %v4242 = vunpack.c.l.b16 %v3193
    %v4243 = vunpack.c.l.b16 %v3194
    %v4244 = vunpack.c.h.b16 %v3194
    %v4245 = vunpack.c.l.b16 %v3195
    %v4246 = vunpack.c.h.b16 %v3195
    %v4247 = vunpack.c.l.b16 %v3196
    %v4248 = vunpack.c.h.b16 %v3196
    %v4249 = vunpack.c.l.b16 %v3197
    %v4250 = vunpack.c.l.b16 %v3198
    %v4251 = vunpack.c.h.b16 %v3198
    %v4252 = vunpack.c.l.b16 %v3199
    %v4253 = vunpack.c.h.b16 %v3199
    %v4254 = vunpack.c.l.b16 %v3200
    %v4255 = vunpack.c.h.b16 %v3200
    %v4256 = vunpack.c.l.b16 %v3201
    %v4257 = vunpack.c.l.b16 %v3202
    %v4258 = vunpack.c.h.b16 %v3202
    %v4259 = vunpack.c.l.b16 %v3203
    %v4260 = vunpack.c.h.b16 %v3203
    %v4261 = vunpack.c.l.b16 %v3204
    %v4262 = vunpack.c.h.b16 %v3204
    %v4263 = vunpack.c.l.b16 %v3205
    %v4264 = vunpack.c.l.b16 %v3206
    %v4265 = vunpack.c.h.b16 %v3206
    %v4266 = vunpack.c.l.b16 %v3207
    %v4267 = vunpack.c.h.b16 %v3207
    %v4268 = vunpack.c.l.b16 %v3208
    %v4269 = vunpack.c.h.b16 %v3208
    %v4270 = vunpack.c.l.b16 %v3209
    %v4271 = vunpack.c.l.b16 %v3210
    %v4272 = vunpack.c.h.b16 %v3210
    %v4273 = vunpack.c.l.b16 %v3211
    %v4274 = vunpack.c.h.b16 %v3211
    %v4275 = vunpack.c.l.b16 %v3212
    %v4276 = vunpack.c.h.b16 %v3212
    %v4277 = vunpack.c.l.b16 %v3213
    %v4278 = vunpack.c.l.b16 %v3214
    %v4279 = vunpack.c.h.b16 %v3214
    %v4280 = vunpack.c.l.b16 %v3215
    %v4281 = vunpack.c.h.b16 %v3215
    %v4282 = vunpack.c.l.b16 %v3216
    %v4283 = vunpack.c.h.b16 %v3216
    %v4284 = vunpack.c.l.b16 %v3217
    %v4285 = vunpack.c.l.b16 %v3218
    %v4286 = vunpack.c.h.b16 %v3218
    %v4287 = vunpack.c.l.b16 %v3219
    %v4288 = vunpack.c.h.b16 %v3219
    %v4289 = vunpack.c.l.b16 %v3220
    %v4290 = vunpack.c.h.b16 %v3220
    %v4291 = vunpack.c.l.b16 %v3221
    %v4292 = vunpack.c.l.b16 %v3222
    %v4293 = vunpack.c.h.b16 %v3222
    %v4294 = vunpack.c.l.b16 %v3223
    %v4295 = vunpack.c.h.b16 %v3223
    %v4296 = vunpack.c.l.b16 %v3224
    %v4297 = vunpack.c.h.b16 %v3224
    %v4298 = vunpack.c.l.b16 %v3225
    %v4299 = vunpack.c.l.b16 %v3226
    %v4300 = vunpack.c.h.b16 %v3226
    %v4301 = vunpack.c.l.b16 %v3227
    %v4302 = vunpack.c.h.b16 %v3227
    %v4303 = vunpack.c.l.b16 %v3228
    %v4304 = vunpack.c.h.b16 %v3228
    %v4305 = vunpack.c.l.b16 %v3229
    %v4306 = vunpack.c.l.b16 %v3230
    %v4307 = vunpack.c.h.b16 %v3230
    %v4308 = vunpack.c.l.b16 %v3231
    %v4309 = vunpack.c.h.b16 %v3231
    %v4310 = vunpack.c.l.b16 %v3232
    %v4311 = vunpack.c.h.b16 %v3232
    %v4312 = vunpack.c.l.b16 %v3233
    %v4313 = vunpack.c.l.b16 %v3234
    %v4314 = vunpack.c.h.b16 %v3234
    %v4315 = vunpack.c.l.b16 %v3235
    %v4316 = vunpack.c.h.b16 %v3235
    %v4317 = vunpack.c.l.b16 %v3236
    %v4318 = vunpack.c.h.b16 %v3236
    %v4319 = vunpack.c.l.b16 %v3237
    %v4320 = vunpack.c.l.b16 %v3238
    %v4321 = vunpack.c.h.b16 %v3238
    %v4322 = vunpack.c.l.b16 %v3239
    %v4323 = vunpack.c.h.b16 %v3239
    %v4324 = vunpack.c.l.b16 %v3240
    %v4325 = vunpack.c.h.b16 %v3240
    %v4326 = vunpack.c.l.b16 %v3241
    %v4327 = vunpack.c.l.b16 %v3242
    %v4328 = vunpack.c.h.b16 %v3242
    %v4329 = vunpack.c.l.b16 %v3243
    %v4330 = vunpack.c.h.b16 %v3243
    %v4331 = vunpack.c.l.b16 %v3244
    %v4332 = vunpack.c.h.b16 %v3244
    %v4333 = vunpack.c.l.b16 %v3245
    %v4334 = vunpack.c.l.b16 %v3246
    %v4335 = vunpack.c.h.b16 %v3246
    %v4336 = vunpack.c.l.b16 %v3247
    %v4337 = vunpack.c.h.b16 %v3247
    %v4338 = vunpack.c.l.b16 %v3248
    %v4339 = vunpack.c.h.b16 %v3248
    %v4340 = vunpack.c.l.b16 %v3249
    %v4341 = vunpack.c.l.b16 %v3250
    %v4342 = vunpack.c.h.b16 %v3250
    %v4343 = vunpack.c.l.b16 %v3251
    %v4344 = vunpack.c.h.b16 %v3251
    %v4345 = vunpack.c.l.b16 %v3252
    %v4346 = vunpack.c.h.b16 %v3252
    %v4347 = vunpack.c.l.b16 %v3253
    %v4348 = vunpack.c.l.b16 %v3254
    %v4349 = vunpack.c.h.b16 %v3254
    %v4350 = vunpack.c.l.b16 %v3255
    %v4351 = vunpack.c.h.b16 %v3255
    %v4352 = vunpack.c.l.b16 %v3256
    %v4353 = vunpack.c.h.b16 %v3256
    %v4354 = vunpack.c.l.b16 %v3257
    %v4355 = vunpack.c.l.b16 %v3258
    %v4356 = vunpack.c.h.b16 %v3258
    %v4357 = vunpack.c.l.b16 %v3259
    %v4358 = vunpack.c.h.b16 %v3259
    %v4359 = vunpack.c.l.b16 %v3260
    %v4360 = vunpack.c.h.b16 %v3260
    %v4361 = vunpack.c.l.b16 %v3261
    %v4362 = vunpack.c.l.b16 %v3262
    %v4363 = vunpack.c.h.b16 %v3262
    %v4364 = vunpack.c.l.b16 %v3263
    %v4365 = vunpack.c.h.b16 %v3263
    %v4366 = vunpack.c.l.b16 %v3264
    %v4367 = vunpack.c.h.b16 %v3264
    %v4368 = vunpack.c.l.b16 %v3265
    %v4369 = vunpack.c.l.b16 %v3266
    %v4370 = vunpack.c.h.b16 %v3266
    %v4371 = vunpack.c.l.b16 %v3267
    %v4372 = vunpack.c.h.b16 %v3267
    %v4373 = vunpack.c.l.b16 %v3268
    %v4374 = vunpack.c.h.b16 %v3268
    %v4375 = vunpack.c.l.b16 %v3269
    %v4376 = vunpack.c.l.b16 %v3270
    %v4377 = vunpack.c.h.b16 %v3270
    %v4378 = vunpack.c.l.b16 %v3271
    %v4379 = vunpack.c.h.b16 %v3271
    %v4380 = vunpack.c.l.b16 %v3272
    %v4381 = vunpack.c.h.b16 %v3272
    %v4382 = vunpack.c.l.b16 %v3273
    %v4383 = vunpack.c.l.b16 %v3274
    %v4384 = vunpack.c.h.b16 %v3274
    %v4385 = vunpack.c.l.b16 %v3275
    %v4386 = vunpack.c.h.b16 %v3275
    %v4387 = vunpack.c.l.b16 %v3276
    %v4388 = vunpack.c.h.b16 %v3276
    %v4389 = vunpack.c.l.b16 %v3277
    %v4390 = vunpack.c.l.b16 %v3278
    %v4391 = vunpack.c.h.b16 %v3278
    %v4392 = vunpack.c.l.b16 %v3279
    %v4393 = vunpack.c.h.b16 %v3279
    %v4394 = vunpack.c.l.b16 %v3280
    %v4395 = vunpack.c.h.b16 %v3280
    %v4396 = vunpack.c.l.b16 %v3281
    %v4397 = vunpack.c.l.b16 %v3282
    %v4398 = vunpack.c.h.b16 %v3282
    %v4399 = vunpack.c.l.b16 %v3283
    %v4400 = vunpack.c.h.b16 %v3283
    %v4401 = vunpack.c.l.b16 %v3284
    %v4402 = vunpack.c.h.b16 %v3284
    %v4403 = vunpack.c.l.b16 %v3285
    %v4404 = vunpack.c.l.b16 %v3286
    %v4405 = vunpack.c.h.b16 %v3286
    %v4406 = vunpack.c.l.b16 %v3287
    %v4407 = vunpack.c.h.b16 %v3287
    %v4408 = vunpack.c.l.b16 %v3288
    %v4409 = vunpack.c.h.b16 %v3288
    %v4410 = vunpack.c.l.b16 %v3289
    %v4411 = vunpack.c.l.b16 %v3290
    %v4412 = vunpack.c.h.b16 %v3290
    %v4413 = vunpack.c.l.b16 %v3291
    %v4414 = vunpack.c.h.b16 %v3291
    %v4415 = vunpack.c.l.b16 %v3292
    %v4416 = vunpack.c.h.b16 %v3292
    %v4417 = vunpack.c.l.b16 %v3293
    %v4418 = vunpack.c.l.b16 %v3294
    %v4419 = vunpack.c.h.b16 %v3294
    %v4420 = vunpack.c.l.b16 %v3295
    %v4421 = vunpack.c.h.b16 %v3295
    %v4422 = vunpack.c.l.b16 %v3296
    %v4423 = vunpack.c.h.b16 %v3296
    %v4424 = vunpack.c.l.b16 %v3297
    %v4425 = vunpack.c.l.b16 %v3298
    %v4426 = vunpack.c.h.b16 %v3298
    %v4427 = vunpack.c.l.b16 %v3299
    %v4428 = vunpack.c.h.b16 %v3299
    %v4429 = vunpack.c.l.b16 %v3300
    %v4430 = vunpack.c.h.b16 %v3300
    %v4431 = vunpack.c.l.b16 %v3301
    %v4432 = vunpack.c.l.b16 %v3302
    %v4433 = vunpack.c.h.b16 %v3302
    %v4434 = vunpack.c.l.b16 %v3303
    %v4435 = vunpack.c.h.b16 %v3303
    %v4436 = vunpack.c.l.b16 %v3304
    %v4437 = vunpack.c.h.b16 %v3304
    %v4438 = vunpack.c.l.b16 %v3305
    %v4439 = vunpack.c.l.b16 %v3306
    %v4440 = vunpack.c.h.b16 %v3306
    %v4441 = vunpack.c.l.b16 %v3307
    %v4442 = vunpack.c.h.b16 %v3307
    %v4443 = vunpack.c.l.b16 %v3308
    %v4444 = vunpack.c.h.b16 %v3308
    %v4445 = vunpack.c.l.b16 %v3309
    %v4446 = vunpack.c.l.b16 %v3310
    %v4447 = vunpack.c.h.b16 %v3310
    %v4448 = vunpack.c.l.b16 %v3311
    %v4449 = vunpack.c.h.b16 %v3311
    %v4450 = vunpack.c.l.b16 %v3312
    %v4451 = vunpack.c.h.b16 %v3312
    %v4452 = vunpack.c.l.b16 %v3313
    %v4453 = vunpack.c.l.b16 %v3314
    %v4454 = vunpack.c.h.b16 %v3314
    %v4455 = vunpack.c.l.b16 %v3315
    %v4456 = vunpack.c.h.b16 %v3315
    %v4457 = vunpack.c.l.b16 %v3316
    %v4458 = vunpack.c.h.b16 %v3316
    %v4459 = vunpack.c.l.b16 %v3317
    %v4460 = vunpack.c.l.b16 %v3318
    %v4461 = vunpack.c.h.b16 %v3318
    %v4462 = vunpack.c.l.b16 %v3319
    %v4463 = vunpack.c.h.b16 %v3319
    %v4464 = vunpack.c.l.b16 %v3320
    %v4465 = vunpack.c.h.b16 %v3320
    %v4466 = vunpack.c.l.b16 %v3321
    %v4467 = vunpack.c.l.b16 %v3322
    %v4468 = vunpack.c.h.b16 %v3322
    %v4469 = vunpack.c.l.b16 %v3323
    %v4470 = vunpack.c.h.b16 %v3323
    %v4471 = vunpack.c.l.b16 %v3324
    %v4472 = vunpack.c.h.b16 %v3324
    %v4473 = vunpack.c.l.b16 %v3325
    %v4474 = vunpack.c.l.b16 %v3326
    %v4475 = vunpack.c.h.b16 %v3326
    %v4476 = vunpack.c.l.b16 %v3327
    %v4477 = vunpack.c.h.b16 %v3327
    %v4478 = vunpack.c.l.b16 %v3328
    %v4479 = vunpack.c.h.b16 %v3328
    %v4480 = vunpack.c.l.b16 %v3329
    %v4481 = vunpack.c.l.b16 %v3330
    %v4482 = vunpack.c.h.b16 %v3330
    %v4483 = vunpack.c.l.b16 %v3331
    %v4484 = vunpack.c.h.b16 %v3331
    %v4485 = vunpack.c.l.b16 %v3332
    %v4486 = vunpack.c.h.b16 %v3332
    %v4487 = vunpack.c.l.b16 %v3333
    %v4488 = vunpack.c.l.b16 %v3334
    %v4489 = vunpack.c.h.b16 %v3334
    %v4490 = vunpack.c.l.b16 %v3335
    %v4491 = vunpack.c.h.b16 %v3335
    %v4492 = vunpack.c.l.b16 %v3336
    %v4493 = vunpack.c.h.b16 %v3336
    %v4494 = vunpack.c.l.b16 %v3337
    %v4495 = vunpack.c.l.b16 %v3338
    %v4496 = vunpack.c.h.b16 %v3338
    %v4497 = vunpack.c.l.b16 %v3339
    %v4498 = vunpack.c.h.b16 %v3339
    %v4499 = vunpack.c.l.b16 %v3340
    %v4500 = vunpack.c.h.b16 %v3340
    %v4501 = vunpack.c.l.b16 %v3341
    %v4502 = vunpack.c.l.b16 %v3342
    %v4503 = vunpack.c.h.b16 %v3342
    %v4504 = vunpack.c.l.b16 %v3343
    %v4505 = vunpack.c.h.b16 %v3343
    %v4506 = vunpack.c.l.b16 %v3344
    %v4507 = vunpack.c.h.b16 %v3344
    %v4508 = vunpack.c.l.b16 %v3345
    %v4509 = vunpack.c.l.b16 %v3346
    %v4510 = vunpack.c.h.b16 %v3346
    %v4511 = vunpack.c.l.b16 %v3347
    %v4512 = vunpack.c.h.b16 %v3347
    %v4513 = vunpack.c.l.b16 %v3348
    %v4514 = vunpack.c.h.b16 %v3348
    %v4515 = vunpack.c.l.b16 %v3349
    %v4516 = vunpack.c.l.b16 %v3350
    %v4517 = vunpack.c.h.b16 %v3350
    %v4518 = vunpack.c.l.b16 %v3351
    %v4519 = vunpack.c.h.b16 %v3351
    %v4520 = vunpack.c.l.b16 %v3352
    %v4521 = vunpack.c.h.b16 %v3352
    %v4522 = vunpack.c.l.b16 %v3353
    %v4523 = vunpack.c.l.b16 %v3354
    %v4524 = vunpack.c.h.b16 %v3354
    %v4525 = vunpack.c.l.b16 %v3355
    %v4526 = vunpack.c.h.b16 %v3355
    %v4527 = vunpack.c.l.b16 %v3356
    %v4528 = vunpack.c.h.b16 %v3356
    %v4529 = vunpack.c.l.b16 %v3357
    %v4530 = vunpack.c.l.b16 %v3358
    %v4531 = vunpack.c.h.b16 %v3358
    %v4532 = vunpack.c.l.b16 %v3359
    %v4533 = vunpack.c.h.b16 %v3359
    %v4534 = vunpack.c.l.b16 %v3360
    %v4535 = vunpack.c.h.b16 %v3360
    %v4536 = vunpack.c.l.b16 %v3361
    %v4537 = vunpack.c.l.b16 %v3362
    %v4538 = vunpack.c.h.b16 %v3362
    %v4539 = vunpack.c.l.b16 %v3363
    %v4540 = vunpack.c.h.b16 %v3363
    %v4541 = vunpack.c.l.b16 %v3364
    %v4542 = vunpack.c.h.b16 %v3364
    %v4543 = vunpack.c.l.b16 %v3365
    %v4544 = vunpack.c.l.b16 %v3366
    %v4545 = vunpack.c.h.b16 %v3366
    %v4546 = vunpack.c.l.b16 %v3367
    %v4547 = vunpack.c.h.b16 %v3367
    %v4548 = vunpack.c.l.b16 %v3368
    %v4549 = vunpack.c.h.b16 %v3368
    %v4550 = vunpack.c.l.b16 %v3369
    %v4551 = vunpack.c.l.b16 %v3370
    %v4552 = vunpack.c.h.b16 %v3370
    %v4553 = vunpack.c.l.b16 %v3371
    %v4554 = vunpack.c.h.b16 %v3371
    %v4555 = vunpack.c.l.b16 %v3372
    %v4556 = vunpack.c.h.b16 %v3372
    %v4557 = vunpack.c.l.b16 %v3373
    %v4558 = vunpack.c.l.b16 %v3374
    %v4559 = vunpack.c.h.b16 %v3374
    %v4560 = vunpack.c.l.b16 %v3375
    %v4561 = vunpack.c.h.b16 %v3375
    %v4562 = vunpack.c.l.b16 %v3376
    %v4563 = vunpack.c.h.b16 %v3376
    %v4564 = vunpack.c.l.b16 %v3377
    %v4565 = vunpack.c.l.b16 %v3378
    %v4566 = vunpack.c.h.b16 %v3378
    %v4567 = vunpack.c.l.b16 %v3379
    %v4568 = vunpack.c.h.b16 %v3379
    %v4569 = vunpack.c.l.b16 %v3380
    %v4570 = vunpack.c.h.b16 %v3380
    %v4571 = vunpack.c.l.b16 %v3381
    %v4572 = vunpack.c.l.b16 %v3382
    %v4573 = vunpack.c.h.b16 %v3382
    %v4574 = vunpack.c.l.b16 %v3383
    %v4575 = vunpack.c.h.b16 %v3383
    %v4576 = vunpack.c.l.b16 %v3384
    %v4577 = vunpack.c.h.b16 %v3384
    %v4578 = vunpack.c.l.b16 %v3385
    %v4579 = vunpack.c.l.b16 %v3386
    %v4580 = vunpack.c.h.b16 %v3386
    %v4581 = vunpack.c.l.b16 %v3387
    %v4582 = vunpack.c.h.b16 %v3387
    %v4583 = vunpack.c.l.b16 %v3388
    %v4584 = vunpack.c.h.b16 %v3388
    %v4585 = vunpack.c.l.b16 %v3389
    %v4586 = vunpack.c.l.b16 %v3390
    %v4587 = vunpack.c.h.b16 %v3390
    %v4588 = vunpack.c.l.b16 %v3391
    %v4589 = vunpack.c.h.b16 %v3391
    %v4590 = vunpack.c.l.b16 %v3392
    %v4591 = vunpack.c.h.b16 %v3392
    %v4592 = vunpack.c.l.b16 %v3393
    %v4593 = vunpack.c.l.b16 %v3394
    %v4594 = vunpack.c.h.b16 %v3394
    %v4595 = vunpack.c.l.b16 %v3395
    %v4596 = vunpack.c.h.b16 %v3395
    %v4597 = vunpack.c.l.b16 %v3396
    %v4598 = vunpack.c.h.b16 %v3396
    %v4599 = vunpack.c.l.b16 %v3397
    %v4600 = vunpack.c.l.b16 %v3398
    %v4601 = vunpack.c.h.b16 %v3398
    %v4602 = vunpack.c.l.b16 %v3399
    %v4603 = vunpack.c.h.b16 %v3399
    %v4604 = vunpack.c.l.b16 %v3400
    %v4605 = vunpack.c.h.b16 %v3400
    %v4606 = vunpack.c.l.b16 %v3401
    %v4607 = vunpack.c.l.b16 %v3402
    %v4608 = vunpack.c.h.b16 %v3402
    %v4609 = vunpack.c.l.b16 %v3403
    %v4610 = vunpack.c.h.b16 %v3403
    %v4611 = vunpack.c.l.b16 %v3404
    %v4612 = vunpack.c.h.b16 %v3404
    %v4613 = vunpack.c.l.b16 %v3405
    %v4614 = vunpack.c.l.b16 %v3406
    %v4615 = vunpack.c.h.b16 %v3406
    %v4616 = vunpack.c.l.b16 %v3407
    %v4617 = vunpack.c.h.b16 %v3407
    %v4618 = vunpack.c.l.b16 %v3408
    %v4619 = vunpack.c.h.b16 %v3408
    %v4620 = vunpack.c.l.b16 %v3409
    %v4621 = vunpack.c.l.b16 %v3410
    %v4622 = vunpack.c.h.b16 %v3410
    %v4623 = vunpack.c.l.b16 %v3411
    %v4624 = vunpack.c.h.b16 %v3411
    %v4625 = vunpack.c.l.b16 %v3412
    %v4626 = vunpack.c.h.b16 %v3412
    %v4627 = vunpack.c.l.b16 %v3413
    %v4628 = vunpack.c.l.b16 %v3414
    %v4629 = vunpack.c.h.b16 %v3414
    %v4630 = vunpack.c.l.b16 %v3415
    %v4631 = vunpack.c.h.b16 %v3415
    %v4632 = vunpack.c.l.b16 %v3416
    %v4633 = vunpack.c.h.b16 %v3416
    %v4634 = vunpack.c.l.b16 %v3417
    %v4635 = vunpack.c.l.b16 %v3418
    %v4636 = vunpack.c.h.b16 %v3418
    %v4637 = vunpack.c.l.b16 %v3419
    %v4638 = vunpack.c.h.b16 %v3419
    %v4639 = vunpack.c.l.b16 %v3420
    %v4640 = vunpack.c.h.b16 %v3420
    %v4641 = vunpack.c.l.b16 %v3421
    %v4642 = vunpack.c.l.b16 %v3422
    %v4643 = vunpack.c.h.b16 %v3422
    %v4644 = vunpack.c.l.b16 %v3423
    %v4645 = vunpack.c.h.b16 %v3423
    %v4646 = vunpack.c.l.b16 %v3424
    %v4647 = vunpack.c.h.b16 %v3424
    %v4648 = vunpack.c.l.b16 %v3425
    %v4649 = vunpack.c.l.b16 %v3426
    %v4650 = vunpack.c.h.b16 %v3426
    %v4651 = vunpack.c.l.b16 %v3427
    %v4652 = vunpack.c.h.b16 %v3427
    %v4653 = vunpack.c.l.b16 %v3428
    %v4654 = vunpack.c.h.b16 %v3428
    %v4655 = vunpack.c.l.b16 %v3429
    %v4656 = vunpack.c.l.b16 %v3430
    %v4657 = vunpack.c.h.b16 %v3430
    %v4658 = vunpack.c.l.b16 %v3431
    %v4659 = vunpack.c.h.b16 %v3431
    %v4660 = vunpack.c.l.b16 %v3432
    %v4661 = vunpack.c.h.b16 %v3432
    %v4662 = vunpack.c.l.b16 %v3433
    %v4663 = vunpack.c.l.b16 %v3434
    %v4664 = vunpack.c.h.b16 %v3434
    %v4665 = vunpack.c.l.b16 %v3435
    %v4666 = vunpack.c.h.b16 %v3435
    %v4667 = vunpack.c.l.b16 %v3436
    %v4668 = vunpack.c.h.b16 %v3436
    %v4669 = vunpack.c.l.b16 %v3437
    %v4670 = vunpack.c.l.b16 %v3438
    %v4671 = vunpack.c.h.b16 %v3438
    %v4672 = vunpack.c.l.b16 %v3439
    %v4673 = vunpack.c.h.b16 %v3439
    %v4674 = vunpack.c.l.b16 %v3440
    %v4675 = vunpack.c.h.b16 %v3440
    %v4676 = vunpack.c.l.b16 %v3441
    %v4677 = vunpack.c.l.b16 %v3442
    %v4678 = vunpack.c.h.b16 %v3442
    %v4679 = vunpack.c.l.b16 %v3443
    %v4680 = vunpack.c.h.b16 %v3443
    %v4681 = vunpack.c.l.b16 %v3444
    %v4682 = vunpack.c.h.b16 %v3444
    %v4683 = vunpack.c.l.b16 %v3445
    %v4684 = vunpack.c.l.b16 %v3446
    %v4685 = vunpack.c.h.b16 %v3446
    %v4686 = vunpack.c.l.b16 %v3447
    %v4687 = vunpack.c.h.b16 %v3447
    %v4688 = vunpack.c.l.b16 %v3448
    %v4689 = vunpack.c.h.b16 %v3448
    %v4690 = vunpack.c.l.b16 %v3449
    %v4691 = vunpack.c.l.b16 %v3450
    %v4692 = vunpack.c.h.b16 %v3450
    %v4693 = vunpack.c.l.b16 %v3451
    %v4694 = vunpack.c.h.b16 %v3451
    %v4695 = vunpack.c.l.b16 %v3452
    %v4696 = vunpack.c.h.b16 %v3452
    %v4697 = vunpack.c.l.b16 %v3453
    %v4698 = vunpack.c.l.b16 %v3454
    %v4699 = vunpack.c.h.b16 %v3454
    %v4700 = vunpack.c.l.b16 %v3455
    %v4701 = vunpack.c.h.b16 %v3455
    %v4702 = vunpack.c.l.b16 %v3456
    %v4703 = vunpack.c.h.b16 %v3456
    %v4704 = vunpack.c.l.b16 %v3457
    %v4705 = vunpack.c.l.b16 %v3458
    %v4706 = vunpack.c.h.b16 %v3458
    %v4707 = vunpack.c.l.b16 %v3459
    %v4708 = vunpack.c.h.b16 %v3459
    %v4709 = vunpack.c.l.b16 %v3460
    %v4710 = vunpack.c.h.b16 %v3460
    %v4711 = vunpack.c.l.b16 %v3461
    %v4712 = vunpack.c.l.b16 %v3462
    %v4713 = vunpack.c.h.b16 %v3462
    %v4714 = vunpack.c.l.b16 %v3463
    %v4715 = vunpack.c.h.b16 %v3463
    %v4716 = vunpack.c.l.b16 %v3464
    %v4717 = vunpack.c.h.b16 %v3464
    %v4718 = vunpack.c.l.b16 %v3465
    %v4719 = vunpack.c.l.b16 %v3466
    %v4720 = vunpack.c.h.b16 %v3466
    %v4721 = vunpack.c.l.b16 %v3467
    %v4722 = vunpack.c.h.b16 %v3467
    %v4723 = vunpack.c.l.b16 %v3468
    %v4724 = vunpack.c.h.b16 %v3468
    %v4725 = vunpack.c.l.b16 %v3469
    %v4726 = vunpack.c.l.b16 %v3470
    %v4727 = vunpack.c.h.b16 %v3470
    %v4728 = vunpack.c.l.b16 %v3471
    %v4729 = vunpack.c.h.b16 %v3471
    %v4730 = vunpack.c.l.b16 %v3472
    %v4731 = vunpack.c.h.b16 %v3472
    %v4732 = vunpack.c.l.b16 %v3473
    %v4733 = vunpack.c.l.b16 %v3474
    %v4734 = vunpack.c.h.b16 %v3474
    %v4735 = vunpack.c.l.b16 %v3475
    %v4736 = vunpack.c.h.b16 %v3475
    %v4737 = vunpack.c.l.b16 %v3476
    %v4738 = vunpack.c.h.b16 %v3476
    %v4739 = vunpack.c.l.b16 %v3477
    %v4740 = vunpack.c.l.b16 %v3478
    %v4741 = vunpack.c.h.b16 %v3478
    %v4742 = vunpack.c.l.b16 %v3479
    %v4743 = vunpack.c.h.b16 %v3479
    %v4744 = vunpack.c.l.b16 %v3480
    %v4745 = vunpack.c.h.b16 %v3480
    %v4746 = vunpack.c.l.b16 %v3481
    %v4747 = vunpack.c.l.b16 %v3482
    %v4748 = vunpack.c.h.b16 %v3482
    %v4749 = vunpack.c.l.b16 %v3483
    %v4750 = vunpack.c.h.b16 %v3483
    %v4751 = vunpack.c.l.b16 %v3484
    %v4752 = vunpack.c.h.b16 %v3484
    %v4753 = vunpack.c.l.b16 %v3485
    %v4754 = vunpack.c.l.b16 %v3486
    %v4755 = vunpack.c.h.b16 %v3486
    %v4756 = vunpack.c.l.b16 %v3487
    %v4757 = vunpack.c.h.b16 %v3487
    %v4758 = vunpack.c.l.b16 %v3488
    %v4759 = vunpack.c.h.b16 %v3488
    %v4760 = vunpack.c.l.b16 %v3489
    %v4761 = vunpack.c.l.b16 %v3490
    %v4762 = vunpack.c.h.b16 %v3490
    %v4763 = vunpack.c.l.b16 %v3491
    %v4764 = vunpack.c.h.b16 %v3491
    %v4765 = vunpack.c.l.b16 %v3492
    %v4766 = vunpack.c.h.b16 %v3492
    %v4767 = vunpack.c.l.b16 %v3493
    %v4768 = vunpack.c.l.b16 %v3494
    %v4769 = vunpack.c.h.b16 %v3494
    %v4770 = vunpack.c.l.b16 %v3495
    %v4771 = vunpack.c.h.b16 %v3495
    %v4772 = vunpack.c.l.b16 %v3496
    %v4773 = vunpack.c.h.b16 %v3496
    %v4774 = vunpack.c.l.b16 %v3497
    %v4775 = vunpack.c.l.b16 %v3498
    %v4776 = vunpack.c.h.b16 %v3498
    %v4777 = vunpack.c.l.b16 %v3499
    %v4778 = vunpack.c.h.b16 %v3499
    %v4779 = vunpack.c.l.b16 %v3500
    %v4780 = vunpack.c.h.b16 %v3500
    %v4781 = vunpack.c.l.b16 %v3501
    %v4782 = vunpack.c.l.b16 %v3502
    %v4783 = vunpack.c.h.b16 %v3502
    %v4784 = vunpack.c.l.b16 %v3503
    %v4785 = vunpack.c.h.b16 %v3503
    %v4786 = vunpack.c.l.b16 %v3504
    %v4787 = vunpack.c.h.b16 %v3504
    %v4788 = vunpack.c.l.b16 %v3505
    %v4789 = vunpack.c.l.b16 %v3506
    %v4790 = vunpack.c.h.b16 %v3506
    %v4791 = vunpack.c.l.b16 %v3507
    %v4792 = vunpack.c.h.b16 %v3507
    %v4793 = vunpack.c.l.b16 %v3508
    %v4794 = vunpack.c.h.b16 %v3508
    %v4795 = vunpack.c.l.b16 %v3509
    %v4796 = vunpack.c.l.b16 %v3510
    %v4797 = vunpack.c.h.b16 %v3510
    %v4798 = vunpack.c.l.b16 %v3511
    %v4799 = vunpack.c.h.b16 %v3511
    %v4800 = vunpack.c.l.b16 %v3512
    %v4801 = vunpack.c.h.b16 %v3512
    %v4802 = vunpack.c.l.b16 %v3513
    %v4803 = vunpack.c.l.b16 %v3514
    %v4804 = vunpack.c.h.b16 %v3514
    %v4805 = vunpack.c.l.b16 %v3515
    %v4806 = vunpack.c.h.b16 %v3515
    %v4807 = vunpack.c.l.b16 %v3516
    %v4808 = vunpack.c.h.b16 %v3516
    %v4809 = vunpack.c.l.b16 %v3517
    %v4810 = vunpack.c.l.b16 %v3518
    %v4811 = vunpack.c.h.b16 %v3518
    %v4812 = vunpack.c.l.b16 %v3519
    %v4813 = vunpack.c.h.b16 %v3519
    %v4814 = vunpack.c.l.b16 %v3520
    %v4815 = vunpack.c.h.b16 %v3520
    %v4816 = vunpack.c.l.b16 %v3521
    %v4817 = vunpack.c.l.b16 %v3522
    %v4818 = vunpack.c.h.b16 %v3522
    %v4819 = vunpack.c.l.b16 %v3523
    %v4820 = vunpack.c.h.b16 %v3523
    %v4821 = vunpack.c.l.b16 %v3524
    %v4822 = vunpack.c.h.b16 %v3524
    %v4823 = vunpack.c.l.b16 %v3525
    %v4824 = vunpack.c.l.b16 %v3526
    %v4825 = vunpack.c.h.b16 %v3526
    %v4826 = vunpack.c.l.b16 %v3527
    %v4827 = vunpack.c.h.b16 %v3527
    %v4828 = vunpack.c.l.b16 %v3528
    %v4829 = vunpack.c.h.b16 %v3528
    %v4830 = vunpack.c.l.b16 %v3529
    %v4831 = vunpack.c.l.b16 %v3530
    %v4832 = vunpack.c.h.b16 %v3530
    %v4833 = vunpack.c.l.b16 %v3531
    %v4834 = vunpack.c.h.b16 %v3531
    %v4835 = vunpack.c.l.b16 %v3532
    %v4836 = vunpack.c.h.b16 %v3532
    %v4837 = vunpack.c.l.b16 %v3533
    %v4838 = vunpack.c.l.b16 %v3534
    %v4839 = vunpack.c.h.b16 %v3534
    %v4840 = vunpack.c.l.b16 %v3535
    %v4841 = vunpack.c.h.b16 %v3535
    %v4842 = vunpack.c.l.b16 %v3536
    %v4843 = vunpack.c.h.b16 %v3536
    %v4844 = vunpack.c.l.b16 %v3537
    %v4845 = vunpack.c.l.b16 %v3538
    %v4846 = vunpack.c.h.b16 %v3538
    %v4847 = vunpack.c.l.b16 %v3539
    %v4848 = vunpack.c.h.b16 %v3539
    %v4849 = vunpack.c.l.b16 %v3540
    %v4850 = vunpack.c.h.b16 %v3540
    %v4851 = vunpack.c.l.b16 %v3541
    %v4852 = vunpack.c.l.b16 %v3542
    %v4853 = vunpack.c.h.b16 %v3542
    %v4854 = vunpack.c.l.b16 %v3543
    %v4855 = vunpack.c.h.b16 %v3543
    %v4856 = vunpack.c.l.b16 %v3544
    %v4857 = vunpack.c.h.b16 %v3544
    %v4858 = vunpack.c.l.b16 %v3545
    %v4859 = vunpack.c.l.b16 %v3546
    %v4860 = vunpack.c.h.b16 %v3546
    %v4861 = vunpack.c.l.b16 %v3547
    %v4862 = vunpack.c.h.b16 %v3547
    %v4863 = vunpack.c.l.b16 %v3548
    %v4864 = vunpack.c.h.b16 %v3548
    %v4865 = vunpack.c.l.b16 %v3549
    %v4866 = vunpack.c.l.b16 %v3550
    %v4867 = vunpack.c.h.b16 %v3550
    %v4868 = vunpack.c.l.b16 %v3551
    %v4869 = vunpack.c.h.b16 %v3551
    %v4870 = vunpack.c.l.b16 %v3552
    %v4871 = vunpack.c.h.b16 %v3552
    %v4872 = vunpack.c.l.b16 %v3553
    %v4873 = vunpack.c.l.b16 %v3554
    %v4874 = vunpack.c.h.b16 %v3554
    %v4875 = vunpack.c.l.b16 %v3555
    %v4876 = vunpack.c.h.b16 %v3555
    %v4877 = vunpack.c.l.b16 %v3556
    %v4878 = vunpack.c.h.b16 %v3556
    %v4879 = vunpack.c.l.b16 %v3557
    %v4880 = vunpack.c.l.b16 %v3558
    %v4881 = vunpack.c.h.b16 %v3558
    %v4882 = vunpack.c.l.b16 %v3559
    %v4883 = vunpack.c.h.b16 %v3559
    %v4884 = vunpack.c.l.b16 %v3560
    %v4885 = vunpack.c.h.b16 %v3560
    %v4886 = vunpack.c.l.b16 %v3561
    %v4887 = vunpack.c.l.b16 %v3562
    %v4888 = vunpack.c.h.b16 %v3562
    %v4889 = vunpack.c.l.b16 %v3563
    %v4890 = vunpack.c.h.b16 %v3563
    %v4891 = vunpack.c.l.b16 %v3564
    %v4892 = vunpack.c.h.b16 %v3564
    %v4893 = vunpack.c.l.b16 %v3565
    %v4894 = vunpack.c.l.b16 %v3566
    %v4895 = vunpack.c.h.b16 %v3566
    %v4896 = vunpack.c.l.b16 %v3567
    %v4897 = vunpack.c.h.b16 %v3567
    %v4898 = vunpack.c.l.b16 %v3568
    %v4899 = vunpack.c.h.b16 %v3568
    %v4900 = vunpack.c.l.b16 %v3569
    %v4901 = vunpack.c.l.b16 %v3570
    %v4902 = vunpack.c.h.b16 %v3570
    %v4903 = vunpack.c.l.b16 %v3571
    %v4904 = vunpack.c.h.b16 %v3571
    %v4905 = vunpack.c.l.b16 %v3572
    %v4906 = vunpack.c.h.b16 %v3572
    %v4907 = vunpack.c.l.b16 %v3573
    %v4908 = vunpack.c.l.b16 %v3574
    %v4909 = vunpack.c.h.b16 %v3574
    %v4910 = vunpack.c.l.b16 %v3575
    %v4911 = vunpack.c.h.b16 %v3575
    %v4912 = vunpack.c.l.b16 %v3576
    %v4913 = vunpack.c.h.b16 %v3576
    %v4914 = vunpack.c.l.b16 %v3577
    %v4915 = vunpack.c.l.b16 %v3578
    %v4916 = vunpack.c.h.b16 %v3578
    %v4917 = vunpack.c.l.b16 %v3579
    %v4918 = vunpack.c.h.b16 %v3579
    %v4919 = vunpack.c.l.b16 %v3580
    %v4920 = vunpack.c.h.b16 %v3580
    %v4921 = vunpack.c.l.b16 %v3581
    %v4922 = vunpack.c.l.b16 %v3582
    %v4923 = vunpack.c.h.b16 %v3582
    %v4924 = vunpack.c.l.b16 %v3583
    %v4925 = vunpack.c.h.b16 %v3583
    %v4926 = vunpack.c.l.b16 %v3584
    %v4927 = vunpack.c.h.b16 %v3584
    %v4928 = vunpack.c.l.b16 %v3585
    %v4929 = vunpack.c.l.b16 %v3586
    %v4930 = vunpack.c.h.b16 %v3586
    %v4931 = vunpack.c.l.b16 %v3587
    %v4932 = vunpack.c.h.b16 %v3587
    %v4933 = vunpack.c.l.b16 %v3588
    %v4934 = vunpack.c.h.b16 %v3588
    %v4935 = vunpack.c.l.b16 %v3589
    %v4936 = vunpack.c.l.b16 %v3590
    %v4937 = vunpack.c.h.b16 %v3590
    %v4938 = vunpack.c.l.b16 %v3591
    %v4939 = vunpack.c.h.b16 %v3591
    %v4940 = vunpack.c.l.b16 %v3592
    %v4941 = vunpack.c.h.b16 %v3592
    %v4942 = vunpack.c.l.b16 %v3593
    %v4943 = vunpack.c.l.b16 %v3594
    %v4944 = vunpack.c.h.b16 %v3594
    %v4945 = vunpack.c.l.b16 %v3595
    %v4946 = vunpack.c.h.b16 %v3595
    %v4947 = vunpack.c.l.b16 %v3596
    %v4948 = vunpack.c.h.b16 %v3596
    %v4949 = vunpack.c.l.b16 %v3597
    %v4950 = vunpack.c.l.b16 %v3598
    %v4951 = vunpack.c.h.b16 %v3598
    %v4952 = vunpack.c.l.b16 %v3599
    %v4953 = vunpack.c.h.b16 %v3599
    %v4954 = vunpack.c.l.b16 %v3600
    %v4955 = vunpack.c.h.b16 %v3600
    %v4956 = vunpack.c.l.b16 %v3601
    %v4957 = vunpack.c.l.b16 %v3602
    %v4958 = vunpack.c.h.b16 %v3602
    %v4959 = vunpack.c.l.b16 %v3603
    %v4960 = vunpack.c.h.b16 %v3603
    %v4961 = vunpack.c.l.b16 %v3604
    %v4962 = vunpack.c.h.b16 %v3604
    %v4963 = vunpack.c.l.b16 %v3605
    %v4964 = vunpack.c.l.b16 %v3606
    %v4965 = vunpack.c.h.b16 %v3606
    %v4966 = vunpack.c.l.b16 %v3607
    %v4967 = vunpack.c.h.b16 %v3607
    %v4968 = vunpack.c.l.b16 %v3608
    %v4969 = vunpack.c.h.b16 %v3608
    %v4970 = vunpack.c.l.b16 %v3609
    %v4971 = vunpack.c.l.b16 %v3610
    %v4972 = vunpack.c.h.b16 %v3610
    %v4973 = vunpack.c.l.b16 %v3611
    %v4974 = vunpack.c.h.b16 %v3611
    %v4975 = vunpack.c.l.b16 %v3612
    %v4976 = vunpack.c.h.b16 %v3612
    %v4977 = vunpack.c.l.b16 %v3613
    %v4978 = vunpack.c.l.b16 %v3614
    %v4979 = vunpack.c.h.b16 %v3614
    %v4980 = vunpack.c.l.b16 %v3615
    %v4981 = vunpack.c.h.b16 %v3615
    %v4982 = vunpack.c.l.b16 %v3616
    %v4983 = vunpack.c.h.b16 %v3616
    %v4984 = vunpack.c.l.b16 %v3617
    %v4985 = vunpack.c.l.b16 %v3618
    %v4986 = vunpack.c.h.b16 %v3618
    %v4987 = vunpack.c.l.b16 %v3619
    %v4988 = vunpack.c.h.b16 %v3619
    %v4989 = vunpack.c.l.b16 %v3620
    %v4990 = vunpack.c.h.b16 %v3620
    %v4991 = vunpack.c.l.b16 %v3621
    %v4992 = vunpack.c.l.b16 %v3622
    %v4993 = vunpack.c.h.b16 %v3622
    %v4994 = vunpack.c.l.b16 %v3623
    %v4995 = vunpack.c.h.b16 %v3623
    %v4996 = vunpack.c.l.b16 %v3624
    %v4997 = vunpack.c.h.b16 %v3624
    %v4998 = vunpack.c.l.b16 %v3625
    %v4999 = vunpack.c.l.b16 %v3626
    %v5000 = vunpack.c.h.b16 %v3626
    %v5001 = vunpack.c.l.b16 %v3627
    %v5002 = vunpack.c.h.b16 %v3627
    %v5003 = vunpack.c.l.b16 %v3628
    %v5004 = vunpack.c.h.b16 %v3628
    %v5005 = vunpack.c.l.b16 %v3629
    %v5006 = vunpack.c.l.b16 %v3630
    %v5007 = vunpack.c.h.b16 %v3630
    %v5008 = vunpack.c.l.b16 %v3631
    %v5009 = vunpack.c.h.b16 %v3631
    %v5010 = vunpack.c.l.b16 %v3632
    %v5011 = vunpack.c.h.b16 %v3632
    %v5012 = vunpack.c.l.b16 %v3633
    %v5013 = vunpack.c.l.b16 %v3634
    %v5014 = vunpack.c.h.b16 %v3634
    %v5015 = vunpack.c.l.b16 %v3635
    %v5016 = vunpack.c.h.b16 %v3635
    %v5017 = vunpack.c.l.b16 %v3636
    %v5018 = vunpack.c.h.b16 %v3636
    %v5019 = vunpack.c.l.b16 %v3637
    %v5020 = vunpack.c.l.b16 %v3638
    %v5021 = vunpack.c.h.b16 %v3638
    %v5022 = vunpack.c.l.b16 %v3639
    %v5023 = vunpack.c.h.b16 %v3639
    %v5024 = vunpack.c.l.b16 %v3640
    %v5025 = vunpack.c.h.b16 %v3640
    %v5026 = vunpack.c.l.b16 %v3641
    %v5027 = vunpack.c.l.b16 %v3642
    %v5028 = vunpack.c.h.b16 %v3642
    %v5029 = vunpack.c.l.b16 %v3643
    %v5030 = vunpack.c.h.b16 %v3643
    %v5031 = vunpack.c.l.b16 %v3644
    %v5032 = vunpack.c.h.b16 %v3644
    %v5033 = vunpack.c.l.b16 %v3645
    %v5034 = vunpack.c.l.b16 %v3646
    %v5035 = vunpack.c.h.b16 %v3646
    %v5036 = vunpack.c.l.b16 %v3647
    %v5037 = vunpack.c.h.b16 %v3647
    %v5038 = vunpack.c.l.b16 %v3648
    %v5039 = vunpack.c.h.b16 %v3648
    %v5040 = vunpack.c.l.b16 %v3649
    %v5041 = vunpack.c.l.b16 %v3650
    %v5042 = vunpack.c.h.b16 %v3650
    %v5043 = vunpack.c.l.b16 %v3651
    %v5044 = vunpack.c.h.b16 %v3651
    %v5045 = vunpack.c.l.b16 %v3652
    %v5046 = vunpack.c.h.b16 %v3652
    %v5047 = vunpack.c.l.b16 %v3653
    %v5048 = vunpack.c.l.b16 %v3654
    %v5049 = vunpack.c.h.b16 %v3654
    %v5050 = vunpack.c.l.b16 %v3655
    %v5051 = vunpack.c.h.b16 %v3655
    %v5052 = vunpack.c.l.b16 %v3656
    %v5053 = vunpack.c.h.b16 %v3656
    %v5054 = vunpack.c.l.b16 %v3657
    %v5055 = vunpack.c.l.b16 %v3658
    %v5056 = vunpack.c.h.b16 %v3658
    %v5057 = vunpack.c.l.b16 %v3659
    %v5058 = vunpack.c.h.b16 %v3659
    %v5059 = vunpack.c.l.b16 %v3660
    %v5060 = vunpack.c.h.b16 %v3660
    %v5061 = vunpack.c.l.b16 %v3661
    %v5062 = vunpack.c.l.b16 %v3662
    %v5063 = vunpack.c.h.b16 %v3662
    %v5064 = vunpack.c.l.b16 %v3663
    %v5065 = vunpack.c.h.b16 %v3663
    %v5066 = vunpack.c.l.b16 %v3664
    %v5067 = vunpack.c.h.b16 %v3664
    %v5068 = vunpack.c.l.b16 %v3665
    %v5069 = vunpack.c.l.b16 %v3666
    %v5070 = vunpack.c.h.b16 %v3666
    %v5071 = vunpack.c.l.b16 %v3667
    %v5072 = vunpack.c.h.b16 %v3667
    %v5073 = vunpack.c.l.b16 %v3668
    %v5074 = vunpack.c.h.b16 %v3668
    %v5075 = vunpack.c.l.b16 %v3669
    %v5076 = vunpack.c.l.b16 %v3670
    %v5077 = vunpack.c.h.b16 %v3670
    %v5078 = vunpack.c.l.b16 %v3671
    %v5079 = vunpack.c.h.b16 %v3671
    %v5080 = vunpack.c.l.b16 %v3672
    %v5081 = vunpack.c.h.b16 %v3672
    %v5082 = vunpack.c.l.b16 %v3673
    %v5083 = vunpack.c.l.b16 %v3674
    %v5084 = vunpack.c.h.b16 %v3674
    %v5085 = vunpack.c.l.b16 %v3675
    %v5086 = vunpack.c.h.b16 %v3675
    %v5087 = vunpack.c.l.b16 %v3676
    %v5088 = vunpack.c.h.b16 %v3676
    %v5089 = vunpack.c.l.b16 %v3677
    %v5090 = vunpack.c.l.b16 %v3678
    %v5091 = vunpack.c.h.b16 %v3678
    %v5092 = vunpack.c.l.b16 %v3679
    %v5093 = vunpack.c.h.b16 %v3679
    %v5094 = vunpack.c.l.b16 %v3680
    %v5095 = vunpack.c.h.b16 %v3680
    %v5096 = vunpack.c.l.b16 %v3681
    %v5097 = vunpack.c.l.b16 %v3682
    %v5098 = vunpack.c.h.b16 %v3682
    %v5099 = vunpack.c.l.b16 %v3683
    %v5100 = vunpack.c.h.b16 %v3683
    %v5101 = vunpack.c.l.b16 %v3684
    %v5102 = vunpack.c.h.b16 %v3684
    %v5103 = vunpack.c.l.b16 %v3685
    %v5104 = vunpack.c.l.b16 %v3686
    %v5105 = vunpack.c.h.b16 %v3686
    %v5106 = vunpack.c.l.b16 %v3687
    %v5107 = vunpack.c.h.b16 %v3687
    %v5108 = vunpack.c.l.b16 %v3688
    %v5109 = vunpack.c.h.b16 %v3688
    %v5110 = vunpack.c.l.b16 %v3689
    %v5111 = vunpack.c.l.b16 %v3690
    %v5112 = vunpack.c.h.b16 %v3690
    %v5113 = vunpack.c.l.b16 %v3691
    %v5114 = vunpack.c.h.b16 %v3691
    %v5115 = vunpack.c.l.b16 %v3692
    %v5116 = vunpack.c.h.b16 %v3692
    %v5117 = vunpack.c.l.b16 %v3693
    %v5118 = vpack.c.b16 %v4229, %v4222
    %v5119 = vpack.c.b16 %v4230, %v4223
    %v5120 = vpack.c.b16 %v4231, %v4224
    %v5121 = vpack.c.b16 %v4232, %v4225
    %v5122 = vpack.c.b16 %v4233, %v4226
    %v5123 = vpack.c.b16 %v4234, %v4227
    %v5124 = vpack.c.b16 %v4235, %v4228
    %v5125 = vpack.c.b16 %v4243, %v4236
    %v5126 = vpack.c.b16 %v4244, %v4237
    %v5127 = vpack.c.b16 %v4245, %v4238
    %v5128 = vpack.c.b16 %v4246, %v4239
    %v5129 = vpack.c.b16 %v4247, %v4240
    %v5130 = vpack.c.b16 %v4248, %v4241
    %v5131 = vpack.c.b16 %v4249, %v4242
    %v5132 = vpack.c.b16 %v4257, %v4250
    %v5133 = vpack.c.b16 %v4258, %v4251
    %v5134 = vpack.c.b16 %v4259, %v4252
    %v5135 = vpack.c.b16 %v4260, %v4253
    %v5136 = vpack.c.b16 %v4261, %v4254
    %v5137 = vpack.c.b16 %v4262, %v4255
    %v5138 = vpack.c.b16 %v4263, %v4256
    %v5139 = vpack.c.b16 %v4271, %v4264
    %v5140 = vpack.c.b16 %v4272, %v4265
    %v5141 = vpack.c.b16 %v4273, %v4266
    %v5142 = vpack.c.b16 %v4274, %v4267
    %v5143 = vpack.c.b16 %v4275, %v4268
    %v5144 = vpack.c.b16 %v4276, %v4269
    %v5145 = vpack.c.b16 %v4277, %v4270
    %v5146 = vpack.c.b16 %v4285, %v4278
    %v5147 = vpack.c.b16 %v4286, %v4279
    %v5148 = vpack.c.b16 %v4287, %v4280
    %v5149 = vpack.c.b16 %v4288, %v4281
    %v5150 = vpack.c.b16 %v4289, %v4282
    %v5151 = vpack.c.b16 %v4290, %v4283
    %v5152 = vpack.c.b16 %v4291, %v4284
    %v5153 = vpack.c.b16 %v4299, %v4292
    %v5154 = vpack.c.b16 %v4300, %v4293
    %v5155 = vpack.c.b16 %v4301, %v4294
    %v5156 = vpack.c.b16 %v4302, %v4295
    %v5157 = vpack.c.b16 %v4303, %v4296
    %v5158 = vpack.c.b16 %v4304, %v4297
    %v5159 = vpack.c.b16 %v4305, %v4298
    %v5160 = vpack.c.b16 %v4313, %v4306
    %v5161 = vpack.c.b16 %v4314, %v4307
    %v5162 = vpack.c.b16 %v4315, %v4308
    %v5163 = vpack.c.b16 %v4316, %v4309
    %v5164 = vpack.c.b16 %v4317, %v4310
    %v5165 = vpack.c.b16 %v4318, %v4311
    %v5166 = vpack.c.b16 %v4319, %v4312
    %v5167 = vpack.c.b16 %v4327, %v4320
    %v5168 = vpack.c.b16 %v4328, %v4321
    %v5169 = vpack.c.b16 %v4329, %v4322
    %v5170 = vpack.c.b16 %v4330, %v4323
    %v5171 = vpack.c.b16 %v4331, %v4324
    %v5172 = vpack.c.b16 %v4332, %v4325
    %v5173 = vpack.c.b16 %v4333, %v4326
    %v5174 = vpack.c.b16 %v4341, %v4334
    %v5175 = vpack.c.b16 %v4342, %v4335
    %v5176 = vpack.c.b16 %v4343, %v4336
    %v5177 = vpack.c.b16 %v4344, %v4337
    %v5178 = vpack.c.b16 %v4345, %v4338
    %v5179 = vpack.c.b16 %v4346, %v4339
    %v5180 = vpack.c.b16 %v4347, %v4340
    %v5181 = vpack.c.b16 %v4355, %v4348
    %v5182 = vpack.c.b16 %v4356, %v4349
    %v5183 = vpack.c.b16 %v4357, %v4350
    %v5184 = vpack.c.b16 %v4358, %v4351
    %v5185 = vpack.c.b16 %v4359, %v4352
    %v5186 = vpack.c.b16 %v4360, %v4353
    %v5187 = vpack.c.b16 %v4361, %v4354
    %v5188 = vpack.c.b16 %v4369, %v4362
    %v5189 = vpack.c.b16 %v4370, %v4363
    %v5190 = vpack.c.b16 %v4371, %v4364
    %v5191 = vpack.c.b16 %v4372, %v4365
    %v5192 = vpack.c.b16 %v4373, %v4366
    %v5193 = vpack.c.b16 %v4374, %v4367
    %v5194 = vpack.c.b16 %v4375, %v4368
    %v5195 = vpack.c.b16 %v4383, %v4376
    %v5196 = vpack.c.b16 %v4384, %v4377
    %v5197 = vpack.c.b16 %v4385, %v4378
    %v5198 = vpack.c.b16 %v4386, %v4379
    %v5199 = vpack.c.b16 %v4387, %v4380
    %v5200 = vpack.c.b16 %v4388, %v4381
    %v5201 = vpack.c.b16 %v4389, %v4382
    %v5202 = vpack.c.b16 %v4397, %v4390
    %v5203 = vpack.c.b16 %v4398, %v4391
    %v5204 = vpack.c.b16 %v4399, %v4392
    %v5205 = vpack.c.b16 %v4400, %v4393
    %v5206 = vpack.c.b16 %v4401, %v4394
    %v5207 = vpack.c.b16 %v4402, %v4395
    %v5208 = vpack.c.b16 %v4403, %v4396
    %v5209 = vpack.c.b16 %v4411, %v4404
    %v5210 = vpack.c.b16 %v4412, %v4405
    %v5211 = vpack.c.b16 %v4413, %v4406
    %v5212 = vpack.c.b16 %v4414, %v4407
    %v5213 = vpack.c.b16 %v4415, %v4408
    %v5214 = vpack.c.b16 %v4416, %v4409
    %v5215 = vpack.c.b16 %v4417, %v4410
    %v5216 = vpack.c.b16 %v4425, %v4418
    %v5217 = vpack.c.b16 %v4426, %v4419
    %v5218 = vpack.c.b16 %v4427, %v4420
    %v5219 = vpack.c.b16 %v4428, %v4421
    %v5220 = vpack.c.b16 %v4429, %v4422
    %v5221 = vpack.c.b16 %v4430, %v4423
    %v5222 = vpack.c.b16 %v4431, %v4424
    %v5223 = vpack.c.b16 %v4439, %v4432
    %v5224 = vpack.c.b16 %v4440, %v4433
    %v5225 = vpack.c.b16 %v4441, %v4434
    %v5226 = vpack.c.b16 %v4442, %v4435
    %v5227 = vpack.c.b16 %v4443, %v4436
    %v5228 = vpack.c.b16 %v4444, %v4437
    %v5229 = vpack.c.b16 %v4445, %v4438
    %v5230 = vpack.c.b16 %v4453, %v4446
    %v5231 = vpack.c.b16 %v4454, %v4447
    %v5232 = vpack.c.b16 %v4455, %v4448
    %v5233 = vpack.c.b16 %v4456, %v4449
    %v5234 = vpack.c.b16 %v4457, %v4450
    %v5235 = vpack.c.b16 %v4458, %v4451
    %v5236 = vpack.c.b16 %v4459, %v4452
    %v5237 = vpack.c.b16 %v4467, %v4460
    %v5238 = vpack.c.b16 %v4468, %v4461
    %v5239 = vpack.c.b16 %v4469, %v4462
    %v5240 = vpack.c.b16 %v4470, %v4463
    %v5241 = vpack.c.b16 %v4471, %v4464
    %v5242 = vpack.c.b16 %v4472, %v4465
    %v5243 = vpack.c.b16 %v4473, %v4466
    %v5244 = vpack.c.b16 %v4481, %v4474
    %v5245 = vpack.c.b16 %v4482, %v4475
    %v5246 = vpack.c.b16 %v4483, %v4476
    %v5247 = vpack.c.b16 %v4484, %v4477
    %v5248 = vpack.c.b16 %v4485, %v4478
    %v5249 = vpack.c.b16 %v4486, %v4479
    %v5250 = vpack.c.b16 %v4487, %v4480
    %v5251 = vpack.c.b16 %v4495, %v4488
    %v5252 = vpack.c.b16 %v4496, %v4489
    %v5253 = vpack.c.b16 %v4497, %v4490
    %v5254 = vpack.c.b16 %v4498, %v4491
    %v5255 = vpack.c.b16 %v4499, %v4492
    %v5256 = vpack.c.b16 %v4500, %v4493
    %v5257 = vpack.c.b16 %v4501, %v4494
    %v5258 = vpack.c.b16 %v4509, %v4502
    %v5259 = vpack.c.b16 %v4510, %v4503
    %v5260 = vpack.c.b16 %v4511, %v4504
    %v5261 = vpack.c.b16 %v4512, %v4505
    %v5262 = vpack.c.b16 %v4513, %v4506
    %v5263 = vpack.c.b16 %v4514, %v4507
    %v5264 = vpack.c.b16 %v4515, %v4508
    %v5265 = vpack.c.b16 %v4523, %v4516
    %v5266 = vpack.c.b16 %v4524, %v4517
    %v5267 = vpack.c.b16 %v4525, %v4518
    %v5268 = vpack.c.b16 %v4526, %v4519
    %v5269 = vpack.c.b16 %v4527, %v4520
    %v5270 = vpack.c.b16 %v4528, %v4521
    %v5271 = vpack.c.b16 %v4529, %v4522
    %v5272 = vpack.c.b16 %v4537, %v4530
    %v5273 = vpack.c.b16 %v4538, %v4531
    %v5274 = vpack.c.b16 %v4539, %v4532
    %v5275 = vpack.c.b16 %v4540, %v4533
    %v5276 = vpack.c.b16 %v4541, %v4534
    %v5277 = vpack.c.b16 %v4542, %v4535
    %v5278 = vpack.c.b16 %v4543, %v4536
    %v5279 = vpack.c.b16 %v4551, %v4544
    %v5280 = vpack.c.b16 %v4552, %v4545
    %v5281 = vpack.c.b16 %v4553, %v4546
    %v5282 = vpack.c.b16 %v4554, %v4547
    %v5283 = vpack.c.b16 %v4555, %v4548
    %v5284 = vpack.c.b16 %v4556, %v4549
    %v5285 = vpack.c.b16 %v4557, %v4550
    %v5286 = vpack.c.b16 %v4565, %v4558
    %v5287 = vpack.c.b16 %v4566, %v4559
    %v5288 = vpack.c.b16 %v4567, %v4560
    %v5289 = vpack.c.b16 %v4568, %v4561
    %v5290 = vpack.c.b16 %v4569, %v4562
    %v5291 = vpack.c.b16 %v4570, %v4563
    %v5292 = vpack.c.b16 %v4571, %v4564
    %v5293 = vpack.c.b16 %v4579, %v4572
    %v5294 = vpack.c.b16 %v4580, %v4573
    %v5295 = vpack.c.b16 %v4581, %v4574
    %v5296 = vpack.c.b16 %v4582, %v4575
    %v5297 = vpack.c.b16 %v4583, %v4576
    %v5298 = vpack.c.b16 %v4584, %v4577
    %v5299 = vpack.c.b16 %v4585, %v4578
    %v5300 = vpack.c.b16 %v4593, %v4586
    %v5301 = vpack.c.b16 %v4594, %v4587
    %v5302 = vpack.c.b16 %v4595, %v4588
    %v5303 = vpack.c.b16 %v4596, %v4589
    %v5304 = vpack.c.b16 %v4597, %v4590
    %v5305 = vpack.c.b16 %v4598, %v4591
    %v5306 = vpack.c.b16 %v4599, %v4592
    %v5307 = vpack.c.b16 %v4607, %v4600
    %v5308 = vpack.c.b16 %v4608, %v4601
    %v5309 = vpack.c.b16 %v4609, %v4602
    %v5310 = vpack.c.b16 %v4610, %v4603
    %v5311 = vpack.c.b16 %v4611, %v4604
    %v5312 = vpack.c.b16 %v4612, %v4605
    %v5313 = vpack.c.b16 %v4613, %v4606
    %v5314 = vpack.c.b16 %v4621, %v4614
    %v5315 = vpack.c.b16 %v4622, %v4615
    %v5316 = vpack.c.b16 %v4623, %v4616
    %v5317 = vpack.c.b16 %v4624, %v4617
    %v5318 = vpack.c.b16 %v4625, %v4618
    %v5319 = vpack.c.b16 %v4626, %v4619
    %v5320 = vpack.c.b16 %v4627, %v4620
    %v5321 = vpack.c.b16 %v4635, %v4628
    %v5322 = vpack.c.b16 %v4636, %v4629
    %v5323 = vpack.c.b16 %v4637, %v4630
    %v5324 = vpack.c.b16 %v4638, %v4631
    %v5325 = vpack.c.b16 %v4639, %v4632
    %v5326 = vpack.c.b16 %v4640, %v4633
    %v5327 = vpack.c.b16 %v4641, %v4634
    %v5328 = vpack.c.b16 %v4649, %v4642
    %v5329 = vpack.c.b16 %v4650, %v4643
    %v5330 = vpack.c.b16 %v4651, %v4644
    %v5331 = vpack.c.b16 %v4652, %v4645
    %v5332 = vpack.c.b16 %v4653, %v4646
    %v5333 = vpack.c.b16 %v4654, %v4647
    %v5334 = vpack.c.b16 %v4655, %v4648
    %v5335 = vpack.c.b16 %v4663, %v4656
    %v5336 = vpack.c.b16 %v4664, %v4657
    %v5337 = vpack.c.b16 %v4665, %v4658
    %v5338 = vpack.c.b16 %v4666, %v4659
    %v5339 = vpack.c.b16 %v4667, %v4660
    %v5340 = vpack.c.b16 %v4668, %v4661
    %v5341 = vpack.c.b16 %v4669, %v4662
    %v5342 = vpack.c.b16 %v4677, %v4670
    %v5343 = vpack.c.b16 %v4678, %v4671
    %v5344 = vpack.c.b16 %v4679, %v4672
    %v5345 = vpack.c.b16 %v4680, %v4673
    %v5346 = vpack.c.b16 %v4681, %v4674
    %v5347 = vpack.c.b16 %v4682, %v4675
    %v5348 = vpack.c.b16 %v4683, %v4676
    %v5349 = vpack.c.b16 %v4691, %v4684
    %v5350 = vpack.c.b16 %v4692, %v4685
    %v5351 = vpack.c.b16 %v4693, %v4686
    %v5352 = vpack.c.b16 %v4694, %v4687
    %v5353 = vpack.c.b16 %v4695, %v4688
    %v5354 = vpack.c.b16 %v4696, %v4689
    %v5355 = vpack.c.b16 %v4697, %v4690
    %v5356 = vpack.c.b16 %v4705, %v4698
    %v5357 = vpack.c.b16 %v4706, %v4699
    %v5358 = vpack.c.b16 %v4707, %v4700
    %v5359 = vpack.c.b16 %v4708, %v4701
    %v5360 = vpack.c.b16 %v4709, %v4702
    %v5361 = vpack.c.b16 %v4710, %v4703
    %v5362 = vpack.c.b16 %v4711, %v4704
    %v5363 = vpack.c.b16 %v4719, %v4712
    %v5364 = vpack.c.b16 %v4720, %v4713
    %v5365 = vpack.c.b16 %v4721, %v4714
    %v5366 = vpack.c.b16 %v4722, %v4715
    %v5367 = vpack.c.b16 %v4723, %v4716
    %v5368 = vpack.c.b16 %v4724, %v4717
    %v5369 = vpack.c.b16 %v4725, %v4718
    %v5370 = vpack.c.b16 %v4733, %v4726
    %v5371 = vpack.c.b16 %v4734, %v4727
    %v5372 = vpack.c.b16 %v4735, %v4728
    %v5373 = vpack.c.b16 %v4736, %v4729
    %v5374 = vpack.c.b16 %v4737, %v4730
    %v5375 = vpack.c.b16 %v4738, %v4731
    %v5376 = vpack.c.b16 %v4739, %v4732
    %v5377 = vpack.c.b16 %v4747, %v4740
    %v5378 = vpack.c.b16 %v4748, %v4741
    %v5379 = vpack.c.b16 %v4749, %v4742
    %v5380 = vpack.c.b16 %v4750, %v4743
    %v5381 = vpack.c.b16 %v4751, %v4744
    %v5382 = vpack.c.b16 %v4752, %v4745
    %v5383 = vpack.c.b16 %v4753, %v4746
    %v5384 = vpack.c.b16 %v4761, %v4754
    %v5385 = vpack.c.b16 %v4762, %v4755
    %v5386 = vpack.c.b16 %v4763, %v4756
    %v5387 = vpack.c.b16 %v4764, %v4757
    %v5388 = vpack.c.b16 %v4765, %v4758
    %v5389 = vpack.c.b16 %v4766, %v4759
    %v5390 = vpack.c.b16 %v4767, %v4760
    %v5391 = vpack.c.b16 %v4775, %v4768
    %v5392 = vpack.c.b16 %v4776, %v4769
    %v5393 = vpack.c.b16 %v4777, %v4770
    %v5394 = vpack.c.b16 %v4778, %v4771
    %v5395 = vpack.c.b16 %v4779, %v4772
    %v5396 = vpack.c.b16 %v4780, %v4773
    %v5397 = vpack.c.b16 %v4781, %v4774
    %v5398 = vpack.c.b16 %v4789, %v4782
    %v5399 = vpack.c.b16 %v4790, %v4783
    %v5400 = vpack.c.b16 %v4791, %v4784
    %v5401 = vpack.c.b16 %v4792, %v4785
    %v5402 = vpack.c.b16 %v4793, %v4786
    %v5403 = vpack.c.b16 %v4794, %v4787
    %v5404 = vpack.c.b16 %v4795, %v4788
    %v5405 = vpack.c.b16 %v4803, %v4796
    %v5406 = vpack.c.b16 %v4804, %v4797
    %v5407 = vpack.c.b16 %v4805, %v4798
    %v5408 = vpack.c.b16 %v4806, %v4799
    %v5409 = vpack.c.b16 %v4807, %v4800
    %v5410 = vpack.c.b16 %v4808, %v4801
    %v5411 = vpack.c.b16 %v4809, %v4802
    %v5412 = vpack.c.b16 %v4817, %v4810
    %v5413 = vpack.c.b16 %v4818, %v4811
    %v5414 = vpack.c.b16 %v4819, %v4812
    %v5415 = vpack.c.b16 %v4820, %v4813
    %v5416 = vpack.c.b16 %v4821, %v4814
    %v5417 = vpack.c.b16 %v4822, %v4815
    %v5418 = vpack.c.b16 %v4823, %v4816
    %v5419 = vpack.c.b16 %v4831, %v4824
    %v5420 = vpack.c.b16 %v4832, %v4825
    %v5421 = vpack.c.b16 %v4833, %v4826
    %v5422 = vpack.c.b16 %v4834, %v4827
    %v5423 = vpack.c.b16 %v4835, %v4828
    %v5424 = vpack.c.b16 %v4836, %v4829
    %v5425 = vpack.c.b16 %v4837, %v4830
    %v5426 = vpack.c.b16 %v4845, %v4838
    %v5427 = vpack.c.b16 %v4846, %v4839
    %v5428 = vpack.c.b16 %v4847, %v4840
    %v5429 = vpack.c.b16 %v4848, %v4841
    %v5430 = vpack.c.b16 %v4849, %v4842
    %v5431 = vpack.c.b16 %v4850, %v4843
    %v5432 = vpack.c.b16 %v4851, %v4844
    %v5433 = vpack.c.b16 %v4859, %v4852
    %v5434 = vpack.c.b16 %v4860, %v4853
    %v5435 = vpack.c.b16 %v4861, %v4854
    %v5436 = vpack.c.b16 %v4862, %v4855
    %v5437 = vpack.c.b16 %v4863, %v4856
    %v5438 = vpack.c.b16 %v4864, %v4857
    %v5439 = vpack.c.b16 %v4865, %v4858
    %v5440 = vpack.c.b16 %v4873, %v4866
    %v5441 = vpack.c.b16 %v4874, %v4867
    %v5442 = vpack.c.b16 %v4875, %v4868
    %v5443 = vpack.c.b16 %v4876, %v4869
    %v5444 = vpack.c.b16 %v4877, %v4870
    %v5445 = vpack.c.b16 %v4878, %v4871
    %v5446 = vpack.c.b16 %v4879, %v4872
    %v5447 = vpack.c.b16 %v4887, %v4880
    %v5448 = vpack.c.b16 %v4888, %v4881
    %v5449 = vpack.c.b16 %v4889, %v4882
    %v5450 = vpack.c.b16 %v4890, %v4883
    %v5451 = vpack.c.b16 %v4891, %v4884
    %v5452 = vpack.c.b16 %v4892, %v4885
    %v5453 = vpack.c.b16 %v4893, %v4886
    %v5454 = vpack.c.b16 %v4901, %v4894
    %v5455 = vpack.c.b16 %v4902, %v4895
    %v5456 = vpack.c.b16 %v4903, %v4896
    %v5457 = vpack.c.b16 %v4904, %v4897
    %v5458 = vpack.c.b16 %v4905, %v4898
    %v5459 = vpack.c.b16 %v4906, %v4899
    %v5460 = vpack.c.b16 %v4907, %v4900
    %v5461 = vpack.c.b16 %v4915, %v4908
    %v5462 = vpack.c.b16 %v4916, %v4909
    %v5463 = vpack.c.b16 %v4917, %v4910
    %v5464 = vpack.c.b16 %v4918, %v4911
    %v5465 = vpack.c.b16 %v4919, %v4912
    %v5466 = vpack.c.b16 %v4920, %v4913
    %v5467 = vpack.c.b16 %v4921, %v4914
    %v5468 = vpack.c.b16 %v4929, %v4922
    %v5469 = vpack.c.b16 %v4930, %v4923
    %v5470 = vpack.c.b16 %v4931, %v4924
    %v5471 = vpack.c.b16 %v4932, %v4925
    %v5472 = vpack.c.b16 %v4933, %v4926
    %v5473 = vpack.c.b16 %v4934, %v4927
    %v5474 = vpack.c.b16 %v4935, %v4928
    %v5475 = vpack.c.b16 %v4943, %v4936
    %v5476 = vpack.c.b16 %v4944, %v4937
    %v5477 = vpack.c.b16 %v4945, %v4938
    %v5478 = vpack.c.b16 %v4946, %v4939
    %v5479 = vpack.c.b16 %v4947, %v4940
    %v5480 = vpack.c.b16 %v4948, %v4941
    %v5481 = vpack.c.b16 %v4949, %v4942
    %v5482 = vpack.c.b16 %v4957, %v4950
    %v5483 = vpack.c.b16 %v4958, %v4951
    %v5484 = vpack.c.b16 %v4959, %v4952
    %v5485 = vpack.c.b16 %v4960, %v4953
    %v5486 = vpack.c.b16 %v4961, %v4954
    %v5487 = vpack.c.b16 %v4962, %v4955
    %v5488 = vpack.c.b16 %v4963, %v4956
    %v5489 = vpack.c.b16 %v4971, %v4964
    %v5490 = vpack.c.b16 %v4972, %v4965
    %v5491 = vpack.c.b16 %v4973, %v4966
    %v5492 = vpack.c.b16 %v4974, %v4967
    %v5493 = vpack.c.b16 %v4975, %v4968
    %v5494 = vpack.c.b16 %v4976, %v4969
    %v5495 = vpack.c.b16 %v4977, %v4970
    %v5496 = vpack.c.b16 %v4985, %v4978
    %v5497 = vpack.c.b16 %v4986, %v4979
    %v5498 = vpack.c.b16 %v4987, %v4980
    %v5499 = vpack.c.b16 %v4988, %v4981
    %v5500 = vpack.c.b16 %v4989, %v4982
    %v5501 = vpack.c.b16 %v4990, %v4983
    %v5502 = vpack.c.b16 %v4991, %v4984
    %v5503 = vpack.c.b16 %v4999, %v4992
    %v5504 = vpack.c.b16 %v5000, %v4993
    %v5505 = vpack.c.b16 %v5001, %v4994
    %v5506 = vpack.c.b16 %v5002, %v4995
    %v5507 = vpack.c.b16 %v5003, %v4996
    %v5508 = vpack.c.b16 %v5004, %v4997
    %v5509 = vpack.c.b16 %v5005, %v4998
    %v5510 = vpack.c.b16 %v5013, %v5006
    %v5511 = vpack.c.b16 %v5014, %v5007
    %v5512 = vpack.c.b16 %v5015, %v5008
    %v5513 = vpack.c.b16 %v5016, %v5009
    %v5514 = vpack.c.b16 %v5017, %v5010
    %v5515 = vpack.c.b16 %v5018, %v5011
    %v5516 = vpack.c.b16 %v5019, %v5012
    %v5517 = vpack.c.b16 %v5027, %v5020
    %v5518 = vpack.c.b16 %v5028, %v5021
    %v5519 = vpack.c.b16 %v5029, %v5022
    %v5520 = vpack.c.b16 %v5030, %v5023
    %v5521 = vpack.c.b16 %v5031, %v5024
    %v5522 = vpack.c.b16 %v5032, %v5025
    %v5523 = vpack.c.b16 %v5033, %v5026
    %v5524 = vpack.c.b16 %v5041, %v5034
    %v5525 = vpack.c.b16 %v5042, %v5035
    %v5526 = vpack.c.b16 %v5043, %v5036
    %v5527 = vpack.c.b16 %v5044, %v5037
    %v5528 = vpack.c.b16 %v5045, %v5038
    %v5529 = vpack.c.b16 %v5046, %v5039
    %v5530 = vpack.c.b16 %v5047, %v5040
    %v5531 = vpack.c.b16 %v5055, %v5048
    %v5532 = vpack.c.b16 %v5056, %v5049
    %v5533 = vpack.c.b16 %v5057, %v5050
    %v5534 = vpack.c.b16 %v5058, %v5051
    %v5535 = vpack.c.b16 %v5059, %v5052
    %v5536 = vpack.c.b16 %v5060, %v5053
    %v5537 = vpack.c.b16 %v5061, %v5054
    %v5538 = vpack.c.b16 %v5069, %v5062
    %v5539 = vpack.c.b16 %v5070, %v5063
    %v5540 = vpack.c.b16 %v5071, %v5064
    %v5541 = vpack.c.b16 %v5072, %v5065
    %v5542 = vpack.c.b16 %v5073, %v5066
    %v5543 = vpack.c.b16 %v5074, %v5067
    %v5544 = vpack.c.b16 %v5075, %v5068
    %v5545 = vpack.c.b16 %v5083, %v5076
    %v5546 = vpack.c.b16 %v5084, %v5077
    %v5547 = vpack.c.b16 %v5085, %v5078
    %v5548 = vpack.c.b16 %v5086, %v5079
    %v5549 = vpack.c.b16 %v5087, %v5080
    %v5550 = vpack.c.b16 %v5088, %v5081
    %v5551 = vpack.c.b16 %v5089, %v5082
    %v5552 = vpack.c.b16 %v5097, %v5090
    %v5553 = vpack.c.b16 %v5098, %v5091
    %v5554 = vpack.c.b16 %v5099, %v5092
    %v5555 = vpack.c.b16 %v5100, %v5093
    %v5556 = vpack.c.b16 %v5101, %v5094
    %v5557 = vpack.c.b16 %v5102, %v5095
    %v5558 = vpack.c.b16 %v5103, %v5096
    %v5559 = vpack.c.b16 %v5111, %v5104
    %v5560 = vpack.c.b16 %v5112, %v5105
    %v5561 = vpack.c.b16 %v5113, %v5106
    %v5562 = vpack.c.b16 %v5114, %v5107
    %v5563 = vpack.c.b16 %v5115, %v5108
    %v5564 = vpack.c.b16 %v5116, %v5109
    %v5565 = vpack.c.b16 %v5117, %v5110
    %6014 = vmatpush.bf16.msra.mxu0 %v5167
    %6015 = vmatpush.bf16.msra.mxu0 %v5160
    %6016 = vmatpush.bf16.msra.mxu0 %v5153
    %6017 = vmatpush.bf16.msra.mxu0 %v5146
    %6018 = vmatpush.bf16.msra.mxu0 %v5139
    %6019 = vmatpush.bf16.msra.mxu0 %v5132
    %6020 = vmatpush.bf16.msra.mxu0 %v5125
    %6021 = vmatpush.bf16.msra.mxu0 %v5118
    %6022 = vmatmul.bf16.gmra.mxu0 %v3174
    %v6023 = vpop.f32.mrf.mxu0
    %v6024 = vadd.f32 %v3696, %v6023
    %v6025 = vpop.f32.mrf.mxu0
    %v6026 = vadd.f32 %v3696, %v6025
    %6027 = vdwg.mxu0
    %6028 = vmatpush.bf16.msra.mxu0 %v5223
    %6029 = vmatpush.bf16.msra.mxu0 %v5216
    %6030 = vmatpush.bf16.msra.mxu0 %v5209
    %6031 = vmatpush.bf16.msra.mxu0 %v5202
    %6032 = vmatpush.bf16.msra.mxu0 %v5195
    %6033 = vmatpush.bf16.msra.mxu0 %v5188
    %6034 = vmatpush.bf16.msra.mxu0 %v5181
    %6035 = vmatpush.bf16.msra.mxu0 %v5174
    %6036 = vmatmul.bf16.gmra.mxu0 %v3175
    %v6037 = vpop.f32.mrf.mxu0
    %v6038 = vadd.f32 %v6024, %v6037
    %v6039 = vpop.f32.mrf.mxu0
    %v6040 = vadd.f32 %v6026, %v6039
    %6041 = vdwg.mxu0
    %6042 = vmatpush.bf16.msra.mxu0 %v5279
    %6043 = vmatpush.bf16.msra.mxu0 %v5272
    %6044 = vmatpush.bf16.msra.mxu0 %v5265
    %6045 = vmatpush.bf16.msra.mxu0 %v5258
    %6046 = vmatpush.bf16.msra.mxu0 %v5251
    %6047 = vmatpush.bf16.msra.mxu0 %v5244
    %6048 = vmatpush.bf16.msra.mxu0 %v5237
    %6049 = vmatpush.bf16.msra.mxu0 %v5230
    %6050 = vmatmul.bf16.gmra.mxu0 %v3176
    %v6051 = vpop.f32.mrf.mxu0
    %v6052 = vadd.f32 %v6038, %v6051
    %v6053 = vpop.f32.mrf.mxu0
    %v6054 = vadd.f32 %v6040, %v6053
    %6055 = vdwg.mxu0
    %6056 = vmatpush.bf16.msra.mxu0 %v5335
    %6057 = vmatpush.bf16.msra.mxu0 %v5328
    %6058 = vmatpush.bf16.msra.mxu0 %v5321
    %6059 = vmatpush.bf16.msra.mxu0 %v5314
    %6060 = vmatpush.bf16.msra.mxu0 %v5307
    %6061 = vmatpush.bf16.msra.mxu0 %v5300
    %6062 = vmatpush.bf16.msra.mxu0 %v5293
    %6063 = vmatpush.bf16.msra.mxu0 %v5286
    %6064 = vmatmul.bf16.gmra.mxu0 %v3177
    %v6065 = vpop.f32.mrf.mxu0
    %v6066 = vadd.f32 %v6052, %v6065
    %v6067 = vpop.f32.mrf.mxu0
    %v6068 = vadd.f32 %v6054, %v6067
    %6069 = vdwg.mxu0
    %6070 = vmatpush.bf16.msra.mxu0 %v5391
    %6071 = vmatpush.bf16.msra.mxu0 %v5384
    %6072 = vmatpush.bf16.msra.mxu0 %v5377
    %6073 = vmatpush.bf16.msra.mxu0 %v5370
    %6074 = vmatpush.bf16.msra.mxu0 %v5363
    %6075 = vmatpush.bf16.msra.mxu0 %v5356
    %6076 = vmatpush.bf16.msra.mxu0 %v5349
    %6077 = vmatpush.bf16.msra.mxu0 %v5342
    %6078 = vmatmul.bf16.gmra.mxu0 %v3178
    %v6079 = vpop.f32.mrf.mxu0
    %v6080 = vadd.f32 %v6066, %v6079
    %v6081 = vpop.f32.mrf.mxu0
    %v6082 = vadd.f32 %v6068, %v6081
    %6083 = vdwg.mxu0
    %6084 = vmatpush.bf16.msra.mxu0 %v5447
    %6085 = vmatpush.bf16.msra.mxu0 %v5440
    %6086 = vmatpush.bf16.msra.mxu0 %v5433
    %6087 = vmatpush.bf16.msra.mxu0 %v5426
    %6088 = vmatpush.bf16.msra.mxu0 %v5419
    %6089 = vmatpush.bf16.msra.mxu0 %v5412
    %6090 = vmatpush.bf16.msra.mxu0 %v5405
    %6091 = vmatpush.bf16.msra.mxu0 %v5398
    %6092 = vmatmul.bf16.gmra.mxu0 %v3179
    %v6093 = vpop.f32.mrf.mxu0
    %v6094 = vadd.f32 %v6080, %v6093
    %v6095 = vpop.f32.mrf.mxu0
    %v6096 = vadd.f32 %v6082, %v6095
    %6097 = vdwg.mxu0
    %6098 = vmatpush.bf16.msra.mxu0 %v5503
    %6099 = vmatpush.bf16.msra.mxu0 %v5496
    %6100 = vmatpush.bf16.msra.mxu0 %v5489
    %6101 = vmatpush.bf16.msra.mxu0 %v5482
    %6102 = vmatpush.bf16.msra.mxu0 %v5475
    %6103 = vmatpush.bf16.msra.mxu0 %v5468
    %6104 = vmatpush.bf16.msra.mxu0 %v5461
    %6105 = vmatpush.bf16.msra.mxu0 %v5454
    %6106 = vmatmul.bf16.gmra.mxu0 %v3180
    %v6107 = vpop.f32.mrf.mxu0
    %v6108 = vadd.f32 %v6094, %v6107
    %v6109 = vpop.f32.mrf.mxu0
    %v6110 = vadd.f32 %v6096, %v6109
    %6111 = vdwg.mxu0
    %6112 = vmatpush.bf16.msra.mxu0 %v5559
    %6113 = vmatpush.bf16.msra.mxu0 %v5552
    %6114 = vmatpush.bf16.msra.mxu0 %v5545
    %6115 = vmatpush.bf16.msra.mxu0 %v5538
    %6116 = vmatpush.bf16.msra.mxu0 %v5531
    %6117 = vmatpush.bf16.msra.mxu0 %v5524
    %6118 = vmatpush.bf16.msra.mxu0 %v5517
    %6119 = vmatpush.bf16.msra.mxu0 %v5510
    %6120 = vmatmul.bf16.gmra.mxu0 %v3181
    %v6121 = vpop.f32.mrf.mxu0
    %v6122 = vadd.f32 %v6108, %v6121
    %v6123 = vpop.f32.mrf.mxu0
    %v6124 = vadd.f32 %v6110, %v6123
    %6125 = vdwg.mxu0
    %6126 = vmatpush.bf16.msra.mxu0 %v5168
    %6127 = vmatpush.bf16.msra.mxu0 %v5161
    %6128 = vmatpush.bf16.msra.mxu0 %v5154
    %6129 = vmatpush.bf16.msra.mxu0 %v5147
    %6130 = vmatpush.bf16.msra.mxu0 %v5140
    %6131 = vmatpush.bf16.msra.mxu0 %v5133
    %6132 = vmatpush.bf16.msra.mxu0 %v5126
    %6133 = vmatpush.bf16.msra.mxu0 %v5119
    %6134 = vmatmul.bf16.gmra.mxu0 %v3174
    %v6135 = vpop.f32.mrf.mxu0
    %v6136 = vadd.f32 %v3697, %v6135
    %v6137 = vpop.f32.mrf.mxu0
    %v6138 = vadd.f32 %v3697, %v6137
    %6139 = vdwg.mxu0
    %6140 = vmatpush.bf16.msra.mxu0 %v5224
    %6141 = vmatpush.bf16.msra.mxu0 %v5217
    %6142 = vmatpush.bf16.msra.mxu0 %v5210
    %6143 = vmatpush.bf16.msra.mxu0 %v5203
    %6144 = vmatpush.bf16.msra.mxu0 %v5196
    %6145 = vmatpush.bf16.msra.mxu0 %v5189
    %6146 = vmatpush.bf16.msra.mxu0 %v5182
    %6147 = vmatpush.bf16.msra.mxu0 %v5175
    %6148 = vmatmul.bf16.gmra.mxu0 %v3175
    %v6149 = vpop.f32.mrf.mxu0
    %v6150 = vadd.f32 %v6136, %v6149
    %v6151 = vpop.f32.mrf.mxu0
    %v6152 = vadd.f32 %v6138, %v6151
    %6153 = vdwg.mxu0
    %6154 = vmatpush.bf16.msra.mxu0 %v5280
    %6155 = vmatpush.bf16.msra.mxu0 %v5273
    %6156 = vmatpush.bf16.msra.mxu0 %v5266
    %6157 = vmatpush.bf16.msra.mxu0 %v5259
    %6158 = vmatpush.bf16.msra.mxu0 %v5252
    %6159 = vmatpush.bf16.msra.mxu0 %v5245
    %6160 = vmatpush.bf16.msra.mxu0 %v5238
    %6161 = vmatpush.bf16.msra.mxu0 %v5231
    %6162 = vmatmul.bf16.gmra.mxu0 %v3176
    %v6163 = vpop.f32.mrf.mxu0
    %v6164 = vadd.f32 %v6150, %v6163
    %v6165 = vpop.f32.mrf.mxu0
    %v6166 = vadd.f32 %v6152, %v6165
    %6167 = vdwg.mxu0
    %6168 = vmatpush.bf16.msra.mxu0 %v5336
    %6169 = vmatpush.bf16.msra.mxu0 %v5329
    %6170 = vmatpush.bf16.msra.mxu0 %v5322
    %6171 = vmatpush.bf16.msra.mxu0 %v5315
    %6172 = vmatpush.bf16.msra.mxu0 %v5308
    %6173 = vmatpush.bf16.msra.mxu0 %v5301
    %6174 = vmatpush.bf16.msra.mxu0 %v5294
    %6175 = vmatpush.bf16.msra.mxu0 %v5287
    %6176 = vmatmul.bf16.gmra.mxu0 %v3177
    %v6177 = vpop.f32.mrf.mxu0
    %v6178 = vadd.f32 %v6164, %v6177
    %v6179 = vpop.f32.mrf.mxu0
    %v6180 = vadd.f32 %v6166, %v6179
    %6181 = vdwg.mxu0
    %6182 = vmatpush.bf16.msra.mxu0 %v5392
    %6183 = vmatpush.bf16.msra.mxu0 %v5385
    %6184 = vmatpush.bf16.msra.mxu0 %v5378
    %6185 = vmatpush.bf16.msra.mxu0 %v5371
    %6186 = vmatpush.bf16.msra.mxu0 %v5364
    %6187 = vmatpush.bf16.msra.mxu0 %v5357
    %6188 = vmatpush.bf16.msra.mxu0 %v5350
    %6189 = vmatpush.bf16.msra.mxu0 %v5343
    %6190 = vmatmul.bf16.gmra.mxu0 %v3178
    %v6191 = vpop.f32.mrf.mxu0
    %v6192 = vadd.f32 %v6178, %v6191
    %v6193 = vpop.f32.mrf.mxu0
    %v6194 = vadd.f32 %v6180, %v6193
    %6195 = vdwg.mxu0
    %6196 = vmatpush.bf16.msra.mxu0 %v5448
    %6197 = vmatpush.bf16.msra.mxu0 %v5441
    %6198 = vmatpush.bf16.msra.mxu0 %v5434
    %6199 = vmatpush.bf16.msra.mxu0 %v5427
    %6200 = vmatpush.bf16.msra.mxu0 %v5420
    %6201 = vmatpush.bf16.msra.mxu0 %v5413
    %6202 = vmatpush.bf16.msra.mxu0 %v5406
    %6203 = vmatpush.bf16.msra.mxu0 %v5399
    %6204 = vmatmul.bf16.gmra.mxu0 %v3179
    %v6205 = vpop.f32.mrf.mxu0
    %v6206 = vadd.f32 %v6192, %v6205
    %v6207 = vpop.f32.mrf.mxu0
    %v6208 = vadd.f32 %v6194, %v6207
    %6209 = vdwg.mxu0
    %6210 = vmatpush.bf16.msra.mxu0 %v5504
    %6211 = vmatpush.bf16.msra.mxu0 %v5497
    %6212 = vmatpush.bf16.msra.mxu0 %v5490
    %6213 = vmatpush.bf16.msra.mxu0 %v5483
    %6214 = vmatpush.bf16.msra.mxu0 %v5476
    %6215 = vmatpush.bf16.msra.mxu0 %v5469
    %6216 = vmatpush.bf16.msra.mxu0 %v5462
    %6217 = vmatpush.bf16.msra.mxu0 %v5455
    %6218 = vmatmul.bf16.gmra.mxu0 %v3180
    %v6219 = vpop.f32.mrf.mxu0
    %v6220 = vadd.f32 %v6206, %v6219
    %v6221 = vpop.f32.mrf.mxu0
    %v6222 = vadd.f32 %v6208, %v6221
    %6223 = vdwg.mxu0
    %6224 = vmatpush.bf16.msra.mxu0 %v5560
    %6225 = vmatpush.bf16.msra.mxu0 %v5553
    %6226 = vmatpush.bf16.msra.mxu0 %v5546
    %6227 = vmatpush.bf16.msra.mxu0 %v5539
    %6228 = vmatpush.bf16.msra.mxu0 %v5532
    %6229 = vmatpush.bf16.msra.mxu0 %v5525
    %6230 = vmatpush.bf16.msra.mxu0 %v5518
    %6231 = vmatpush.bf16.msra.mxu0 %v5511
    %6232 = vmatmul.bf16.gmra.mxu0 %v3181
    %v6233 = vpop.f32.mrf.mxu0
    %v6234 = vadd.f32 %v6220, %v6233
    %v6235 = vpop.f32.mrf.mxu0
    %v6236 = vadd.f32 %v6222, %v6235
    %6237 = vdwg.mxu0
    %6238 = vmatpush.bf16.msra.mxu0 %v5169
    %6239 = vmatpush.bf16.msra.mxu0 %v5162
    %6240 = vmatpush.bf16.msra.mxu0 %v5155
    %6241 = vmatpush.bf16.msra.mxu0 %v5148
    %6242 = vmatpush.bf16.msra.mxu0 %v5141
    %6243 = vmatpush.bf16.msra.mxu0 %v5134
    %6244 = vmatpush.bf16.msra.mxu0 %v5127
    %6245 = vmatpush.bf16.msra.mxu0 %v5120
    %6246 = vmatmul.bf16.gmra.mxu0 %v3174
    %v6247 = vpop.f32.mrf.mxu0
    %v6248 = vadd.f32 %v3698, %v6247
    %v6249 = vpop.f32.mrf.mxu0
    %v6250 = vadd.f32 %v3698, %v6249
    %6251 = vdwg.mxu0
    %6252 = vmatpush.bf16.msra.mxu0 %v5225
    %6253 = vmatpush.bf16.msra.mxu0 %v5218
    %6254 = vmatpush.bf16.msra.mxu0 %v5211
    %6255 = vmatpush.bf16.msra.mxu0 %v5204
    %6256 = vmatpush.bf16.msra.mxu0 %v5197
    %6257 = vmatpush.bf16.msra.mxu0 %v5190
    %6258 = vmatpush.bf16.msra.mxu0 %v5183
    %6259 = vmatpush.bf16.msra.mxu0 %v5176
    %6260 = vmatmul.bf16.gmra.mxu0 %v3175
    %v6261 = vpop.f32.mrf.mxu0
    %v6262 = vadd.f32 %v6248, %v6261
    %v6263 = vpop.f32.mrf.mxu0
    %v6264 = vadd.f32 %v6250, %v6263
    %6265 = vdwg.mxu0
    %6266 = vmatpush.bf16.msra.mxu0 %v5281
    %6267 = vmatpush.bf16.msra.mxu0 %v5274
    %6268 = vmatpush.bf16.msra.mxu0 %v5267
    %6269 = vmatpush.bf16.msra.mxu0 %v5260
    %6270 = vmatpush.bf16.msra.mxu0 %v5253
    %6271 = vmatpush.bf16.msra.mxu0 %v5246
    %6272 = vmatpush.bf16.msra.mxu0 %v5239
    %6273 = vmatpush.bf16.msra.mxu0 %v5232
    %6274 = vmatmul.bf16.gmra.mxu0 %v3176
    %v6275 = vpop.f32.mrf.mxu0
    %v6276 = vadd.f32 %v6262, %v6275
    %v6277 = vpop.f32.mrf.mxu0
    %v6278 = vadd.f32 %v6264, %v6277
    %6279 = vdwg.mxu0
    %6280 = vmatpush.bf16.msra.mxu0 %v5337
    %6281 = vmatpush.bf16.msra.mxu0 %v5330
    %6282 = vmatpush.bf16.msra.mxu0 %v5323
    %6283 = vmatpush.bf16.msra.mxu0 %v5316
    %6284 = vmatpush.bf16.msra.mxu0 %v5309
    %6285 = vmatpush.bf16.msra.mxu0 %v5302
    %6286 = vmatpush.bf16.msra.mxu0 %v5295
    %6287 = vmatpush.bf16.msra.mxu0 %v5288
    %6288 = vmatmul.bf16.gmra.mxu0 %v3177
    %v6289 = vpop.f32.mrf.mxu0
    %v6290 = vadd.f32 %v6276, %v6289
    %v6291 = vpop.f32.mrf.mxu0
    %v6292 = vadd.f32 %v6278, %v6291
    %6293 = vdwg.mxu0
    %6294 = vmatpush.bf16.msra.mxu0 %v5393
    %6295 = vmatpush.bf16.msra.mxu0 %v5386
    %6296 = vmatpush.bf16.msra.mxu0 %v5379
    %6297 = vmatpush.bf16.msra.mxu0 %v5372
    %6298 = vmatpush.bf16.msra.mxu0 %v5365
    %6299 = vmatpush.bf16.msra.mxu0 %v5358
    %6300 = vmatpush.bf16.msra.mxu0 %v5351
    %6301 = vmatpush.bf16.msra.mxu0 %v5344
    %6302 = vmatmul.bf16.gmra.mxu0 %v3178
    %v6303 = vpop.f32.mrf.mxu0
    %v6304 = vadd.f32 %v6290, %v6303
    %v6305 = vpop.f32.mrf.mxu0
    %v6306 = vadd.f32 %v6292, %v6305
    %6307 = vdwg.mxu0
    %6308 = vmatpush.bf16.msra.mxu0 %v5449
    %6309 = vmatpush.bf16.msra.mxu0 %v5442
    %6310 = vmatpush.bf16.msra.mxu0 %v5435
    %6311 = vmatpush.bf16.msra.mxu0 %v5428
    %6312 = vmatpush.bf16.msra.mxu0 %v5421
    %6313 = vmatpush.bf16.msra.mxu0 %v5414
    %6314 = vmatpush.bf16.msra.mxu0 %v5407
    %6315 = vmatpush.bf16.msra.mxu0 %v5400
    %6316 = vmatmul.bf16.gmra.mxu0 %v3179
    %v6317 = vpop.f32.mrf.mxu0
    %v6318 = vadd.f32 %v6304, %v6317
    %v6319 = vpop.f32.mrf.mxu0
    %v6320 = vadd.f32 %v6306, %v6319
    %6321 = vdwg.mxu0
    %6322 = vmatpush.bf16.msra.mxu0 %v5505
    %6323 = vmatpush.bf16.msra.mxu0 %v5498
    %6324 = vmatpush.bf16.msra.mxu0 %v5491
    %6325 = vmatpush.bf16.msra.mxu0 %v5484
    %6326 = vmatpush.bf16.msra.mxu0 %v5477
    %6327 = vmatpush.bf16.msra.mxu0 %v5470
    %6328 = vmatpush.bf16.msra.mxu0 %v5463
    %6329 = vmatpush.bf16.msra.mxu0 %v5456
    %6330 = vmatmul.bf16.gmra.mxu0 %v3180
    %v6331 = vpop.f32.mrf.mxu0
    %v6332 = vadd.f32 %v6318, %v6331
    %v6333 = vpop.f32.mrf.mxu0
    %v6334 = vadd.f32 %v6320, %v6333
    %6335 = vdwg.mxu0
    %6336 = vmatpush.bf16.msra.mxu0 %v5561
    %6337 = vmatpush.bf16.msra.mxu0 %v5554
    %6338 = vmatpush.bf16.msra.mxu0 %v5547
    %6339 = vmatpush.bf16.msra.mxu0 %v5540
    %6340 = vmatpush.bf16.msra.mxu0 %v5533
    %6341 = vmatpush.bf16.msra.mxu0 %v5526
    %6342 = vmatpush.bf16.msra.mxu0 %v5519
    %6343 = vmatpush.bf16.msra.mxu0 %v5512
    %6344 = vmatmul.bf16.gmra.mxu0 %v3181
    %v6345 = vpop.f32.mrf.mxu0
    %v6346 = vadd.f32 %v6332, %v6345
    %v6347 = vpop.f32.mrf.mxu0
    %v6348 = vadd.f32 %v6334, %v6347
    %6349 = vdwg.mxu0
    %6350 = vmatpush.bf16.msra.mxu0 %v5170
    %6351 = vmatpush.bf16.msra.mxu0 %v5163
    %6352 = vmatpush.bf16.msra.mxu0 %v5156
    %6353 = vmatpush.bf16.msra.mxu0 %v5149
    %6354 = vmatpush.bf16.msra.mxu0 %v5142
    %6355 = vmatpush.bf16.msra.mxu0 %v5135
    %6356 = vmatpush.bf16.msra.mxu0 %v5128
    %6357 = vmatpush.bf16.msra.mxu0 %v5121
    %6358 = vmatmul.bf16.gmra.mxu0 %v3174
    %v6359 = vpop.f32.mrf.mxu0
    %v6360 = vadd.f32 %v3699, %v6359
    %v6361 = vpop.f32.mrf.mxu0
    %v6362 = vadd.f32 %v3699, %v6361
    %6363 = vdwg.mxu0
    %6364 = vmatpush.bf16.msra.mxu0 %v5226
    %6365 = vmatpush.bf16.msra.mxu0 %v5219
    %6366 = vmatpush.bf16.msra.mxu0 %v5212
    %6367 = vmatpush.bf16.msra.mxu0 %v5205
    %6368 = vmatpush.bf16.msra.mxu0 %v5198
    %6369 = vmatpush.bf16.msra.mxu0 %v5191
    %6370 = vmatpush.bf16.msra.mxu0 %v5184
    %6371 = vmatpush.bf16.msra.mxu0 %v5177
    %6372 = vmatmul.bf16.gmra.mxu0 %v3175
    %v6373 = vpop.f32.mrf.mxu0
    %v6374 = vadd.f32 %v6360, %v6373
    %v6375 = vpop.f32.mrf.mxu0
    %v6376 = vadd.f32 %v6362, %v6375
    %6377 = vdwg.mxu0
    %6378 = vmatpush.bf16.msra.mxu0 %v5282
    %6379 = vmatpush.bf16.msra.mxu0 %v5275
    %6380 = vmatpush.bf16.msra.mxu0 %v5268
    %6381 = vmatpush.bf16.msra.mxu0 %v5261
    %6382 = vmatpush.bf16.msra.mxu0 %v5254
    %6383 = vmatpush.bf16.msra.mxu0 %v5247
    %6384 = vmatpush.bf16.msra.mxu0 %v5240
    %6385 = vmatpush.bf16.msra.mxu0 %v5233
    %6386 = vmatmul.bf16.gmra.mxu0 %v3176
    %v6387 = vpop.f32.mrf.mxu0
    %v6388 = vadd.f32 %v6374, %v6387
    %v6389 = vpop.f32.mrf.mxu0
    %v6390 = vadd.f32 %v6376, %v6389
    %6391 = vdwg.mxu0
    %6392 = vmatpush.bf16.msra.mxu0 %v5338
    %6393 = vmatpush.bf16.msra.mxu0 %v5331
    %6394 = vmatpush.bf16.msra.mxu0 %v5324
    %6395 = vmatpush.bf16.msra.mxu0 %v5317
    %6396 = vmatpush.bf16.msra.mxu0 %v5310
    %6397 = vmatpush.bf16.msra.mxu0 %v5303
    %6398 = vmatpush.bf16.msra.mxu0 %v5296
    %6399 = vmatpush.bf16.msra.mxu0 %v5289
    %6400 = vmatmul.bf16.gmra.mxu0 %v3177
    %v6401 = vpop.f32.mrf.mxu0
    %v6402 = vadd.f32 %v6388, %v6401
    %v6403 = vpop.f32.mrf.mxu0
    %v6404 = vadd.f32 %v6390, %v6403
    %6405 = vdwg.mxu0
    %6406 = vmatpush.bf16.msra.mxu0 %v5394
    %6407 = vmatpush.bf16.msra.mxu0 %v5387
    %6408 = vmatpush.bf16.msra.mxu0 %v5380
    %6409 = vmatpush.bf16.msra.mxu0 %v5373
    %6410 = vmatpush.bf16.msra.mxu0 %v5366
    %6411 = vmatpush.bf16.msra.mxu0 %v5359
    %6412 = vmatpush.bf16.msra.mxu0 %v5352
    %6413 = vmatpush.bf16.msra.mxu0 %v5345
    %6414 = vmatmul.bf16.gmra.mxu0 %v3178
    %v6415 = vpop.f32.mrf.mxu0
    %v6416 = vadd.f32 %v6402, %v6415
    %v6417 = vpop.f32.mrf.mxu0
    %v6418 = vadd.f32 %v6404, %v6417
    %6419 = vdwg.mxu0
    %6420 = vmatpush.bf16.msra.mxu0 %v5450
    %6421 = vmatpush.bf16.msra.mxu0 %v5443
    %6422 = vmatpush.bf16.msra.mxu0 %v5436
    %6423 = vmatpush.bf16.msra.mxu0 %v5429
    %6424 = vmatpush.bf16.msra.mxu0 %v5422
    %6425 = vmatpush.bf16.msra.mxu0 %v5415
    %6426 = vmatpush.bf16.msra.mxu0 %v5408
    %6427 = vmatpush.bf16.msra.mxu0 %v5401
    %6428 = vmatmul.bf16.gmra.mxu0 %v3179
    %v6429 = vpop.f32.mrf.mxu0
    %v6430 = vadd.f32 %v6416, %v6429
    %v6431 = vpop.f32.mrf.mxu0
    %v6432 = vadd.f32 %v6418, %v6431
    %6433 = vdwg.mxu0
    %6434 = vmatpush.bf16.msra.mxu0 %v5506
    %6435 = vmatpush.bf16.msra.mxu0 %v5499
    %6436 = vmatpush.bf16.msra.mxu0 %v5492
    %6437 = vmatpush.bf16.msra.mxu0 %v5485
    %6438 = vmatpush.bf16.msra.mxu0 %v5478
    %6439 = vmatpush.bf16.msra.mxu0 %v5471
    %6440 = vmatpush.bf16.msra.mxu0 %v5464
    %6441 = vmatpush.bf16.msra.mxu0 %v5457
    %6442 = vmatmul.bf16.gmra.mxu0 %v3180
    %v6443 = vpop.f32.mrf.mxu0
    %v6444 = vadd.f32 %v6430, %v6443
    %v6445 = vpop.f32.mrf.mxu0
    %v6446 = vadd.f32 %v6432, %v6445
    %6447 = vdwg.mxu0
    %6448 = vmatpush.bf16.msra.mxu0 %v5562
    %6449 = vmatpush.bf16.msra.mxu0 %v5555
    %6450 = vmatpush.bf16.msra.mxu0 %v5548
    %6451 = vmatpush.bf16.msra.mxu0 %v5541
    %6452 = vmatpush.bf16.msra.mxu0 %v5534
    %6453 = vmatpush.bf16.msra.mxu0 %v5527
    %6454 = vmatpush.bf16.msra.mxu0 %v5520
    %6455 = vmatpush.bf16.msra.mxu0 %v5513
    %6456 = vmatmul.bf16.gmra.mxu0 %v3181
    %v6457 = vpop.f32.mrf.mxu0
    %v6458 = vadd.f32 %v6444, %v6457
    %v6459 = vpop.f32.mrf.mxu0
    %v6460 = vadd.f32 %v6446, %v6459
    %6461 = vdwg.mxu0
    %6462 = vmatpush.bf16.msra.mxu0 %v5171
    %6463 = vmatpush.bf16.msra.mxu0 %v5164
    %6464 = vmatpush.bf16.msra.mxu0 %v5157
    %6465 = vmatpush.bf16.msra.mxu0 %v5150
    %6466 = vmatpush.bf16.msra.mxu0 %v5143
    %6467 = vmatpush.bf16.msra.mxu0 %v5136
    %6468 = vmatpush.bf16.msra.mxu0 %v5129
    %6469 = vmatpush.bf16.msra.mxu0 %v5122
    %6470 = vmatmul.bf16.gmra.mxu0 %v3174
    %v6471 = vpop.f32.mrf.mxu0
    %v6472 = vadd.f32 %v3700, %v6471
    %v6473 = vpop.f32.mrf.mxu0
    %v6474 = vadd.f32 %v3700, %v6473
    %6475 = vdwg.mxu0
    %6476 = vmatpush.bf16.msra.mxu0 %v5227
    %6477 = vmatpush.bf16.msra.mxu0 %v5220
    %6478 = vmatpush.bf16.msra.mxu0 %v5213
    %6479 = vmatpush.bf16.msra.mxu0 %v5206
    %6480 = vmatpush.bf16.msra.mxu0 %v5199
    %6481 = vmatpush.bf16.msra.mxu0 %v5192
    %6482 = vmatpush.bf16.msra.mxu0 %v5185
    %6483 = vmatpush.bf16.msra.mxu0 %v5178
    %6484 = vmatmul.bf16.gmra.mxu0 %v3175
    %v6485 = vpop.f32.mrf.mxu0
    %v6486 = vadd.f32 %v6472, %v6485
    %v6487 = vpop.f32.mrf.mxu0
    %v6488 = vadd.f32 %v6474, %v6487
    %6489 = vdwg.mxu0
    %6490 = vmatpush.bf16.msra.mxu0 %v5283
    %6491 = vmatpush.bf16.msra.mxu0 %v5276
    %6492 = vmatpush.bf16.msra.mxu0 %v5269
    %6493 = vmatpush.bf16.msra.mxu0 %v5262
    %6494 = vmatpush.bf16.msra.mxu0 %v5255
    %6495 = vmatpush.bf16.msra.mxu0 %v5248
    %6496 = vmatpush.bf16.msra.mxu0 %v5241
    %6497 = vmatpush.bf16.msra.mxu0 %v5234
    %6498 = vmatmul.bf16.gmra.mxu0 %v3176
    %v6499 = vpop.f32.mrf.mxu0
    %v6500 = vadd.f32 %v6486, %v6499
    %v6501 = vpop.f32.mrf.mxu0
    %v6502 = vadd.f32 %v6488, %v6501
    %6503 = vdwg.mxu0
    %6504 = vmatpush.bf16.msra.mxu0 %v5339
    %6505 = vmatpush.bf16.msra.mxu0 %v5332
    %6506 = vmatpush.bf16.msra.mxu0 %v5325
    %6507 = vmatpush.bf16.msra.mxu0 %v5318
    %6508 = vmatpush.bf16.msra.mxu0 %v5311
    %6509 = vmatpush.bf16.msra.mxu0 %v5304
    %6510 = vmatpush.bf16.msra.mxu0 %v5297
    %6511 = vmatpush.bf16.msra.mxu0 %v5290
    %6512 = vmatmul.bf16.gmra.mxu0 %v3177
    %v6513 = vpop.f32.mrf.mxu0
    %v6514 = vadd.f32 %v6500, %v6513
    %v6515 = vpop.f32.mrf.mxu0
    %v6516 = vadd.f32 %v6502, %v6515
    %6517 = vdwg.mxu0
    %6518 = vmatpush.bf16.msra.mxu0 %v5395
    %6519 = vmatpush.bf16.msra.mxu0 %v5388
    %6520 = vmatpush.bf16.msra.mxu0 %v5381
    %6521 = vmatpush.bf16.msra.mxu0 %v5374
    %6522 = vmatpush.bf16.msra.mxu0 %v5367
    %6523 = vmatpush.bf16.msra.mxu0 %v5360
    %6524 = vmatpush.bf16.msra.mxu0 %v5353
    %6525 = vmatpush.bf16.msra.mxu0 %v5346
    %6526 = vmatmul.bf16.gmra.mxu0 %v3178
    %v6527 = vpop.f32.mrf.mxu0
    %v6528 = vadd.f32 %v6514, %v6527
    %v6529 = vpop.f32.mrf.mxu0
    %v6530 = vadd.f32 %v6516, %v6529
    %6531 = vdwg.mxu0
    %6532 = vmatpush.bf16.msra.mxu0 %v5451
    %6533 = vmatpush.bf16.msra.mxu0 %v5444
    %6534 = vmatpush.bf16.msra.mxu0 %v5437
    %6535 = vmatpush.bf16.msra.mxu0 %v5430
    %6536 = vmatpush.bf16.msra.mxu0 %v5423
    %6537 = vmatpush.bf16.msra.mxu0 %v5416
    %6538 = vmatpush.bf16.msra.mxu0 %v5409
    %6539 = vmatpush.bf16.msra.mxu0 %v5402
    %6540 = vmatmul.bf16.gmra.mxu0 %v3179
    %v6541 = vpop.f32.mrf.mxu0
    %v6542 = vadd.f32 %v6528, %v6541
    %v6543 = vpop.f32.mrf.mxu0
    %v6544 = vadd.f32 %v6530, %v6543
    %6545 = vdwg.mxu0
    %6546 = vmatpush.bf16.msra.mxu0 %v5507
    %6547 = vmatpush.bf16.msra.mxu0 %v5500
    %6548 = vmatpush.bf16.msra.mxu0 %v5493
    %6549 = vmatpush.bf16.msra.mxu0 %v5486
    %6550 = vmatpush.bf16.msra.mxu0 %v5479
    %6551 = vmatpush.bf16.msra.mxu0 %v5472
    %6552 = vmatpush.bf16.msra.mxu0 %v5465
    %6553 = vmatpush.bf16.msra.mxu0 %v5458
    %6554 = vmatmul.bf16.gmra.mxu0 %v3180
    %v6555 = vpop.f32.mrf.mxu0
    %v6556 = vadd.f32 %v6542, %v6555
    %v6557 = vpop.f32.mrf.mxu0
    %v6558 = vadd.f32 %v6544, %v6557
    %6559 = vdwg.mxu0
    %6560 = vmatpush.bf16.msra.mxu0 %v5563
    %6561 = vmatpush.bf16.msra.mxu0 %v5556
    %6562 = vmatpush.bf16.msra.mxu0 %v5549
    %6563 = vmatpush.bf16.msra.mxu0 %v5542
    %6564 = vmatpush.bf16.msra.mxu0 %v5535
    %6565 = vmatpush.bf16.msra.mxu0 %v5528
    %6566 = vmatpush.bf16.msra.mxu0 %v5521
    %6567 = vmatpush.bf16.msra.mxu0 %v5514
    %6568 = vmatmul.bf16.gmra.mxu0 %v3181
    %v6569 = vpop.f32.mrf.mxu0
    %v6570 = vadd.f32 %v6556, %v6569
    %v6571 = vpop.f32.mrf.mxu0
    %v6572 = vadd.f32 %v6558, %v6571
    %6573 = vdwg.mxu0
    %6574 = vmatpush.bf16.msra.mxu0 %v5172
    %6575 = vmatpush.bf16.msra.mxu0 %v5165
    %6576 = vmatpush.bf16.msra.mxu0 %v5158
    %6577 = vmatpush.bf16.msra.mxu0 %v5151
    %6578 = vmatpush.bf16.msra.mxu0 %v5144
    %6579 = vmatpush.bf16.msra.mxu0 %v5137
    %6580 = vmatpush.bf16.msra.mxu0 %v5130
    %6581 = vmatpush.bf16.msra.mxu0 %v5123
    %6582 = vmatmul.bf16.gmra.mxu0 %v3174
    %v6583 = vpop.f32.mrf.mxu0
    %v6584 = vadd.f32 %v3701, %v6583
    %v6585 = vpop.f32.mrf.mxu0
    %v6586 = vadd.f32 %v3701, %v6585
    %6587 = vdwg.mxu0
    %6588 = vmatpush.bf16.msra.mxu0 %v5228
    %6589 = vmatpush.bf16.msra.mxu0 %v5221
    %6590 = vmatpush.bf16.msra.mxu0 %v5214
    %6591 = vmatpush.bf16.msra.mxu0 %v5207
    %6592 = vmatpush.bf16.msra.mxu0 %v5200
    %6593 = vmatpush.bf16.msra.mxu0 %v5193
    %6594 = vmatpush.bf16.msra.mxu0 %v5186
    %6595 = vmatpush.bf16.msra.mxu0 %v5179
    %6596 = vmatmul.bf16.gmra.mxu0 %v3175
    %v6597 = vpop.f32.mrf.mxu0
    %v6598 = vadd.f32 %v6584, %v6597
    %v6599 = vpop.f32.mrf.mxu0
    %v6600 = vadd.f32 %v6586, %v6599
    %6601 = vdwg.mxu0
    %6602 = vmatpush.bf16.msra.mxu0 %v5284
    %6603 = vmatpush.bf16.msra.mxu0 %v5277
    %6604 = vmatpush.bf16.msra.mxu0 %v5270
    %6605 = vmatpush.bf16.msra.mxu0 %v5263
    %6606 = vmatpush.bf16.msra.mxu0 %v5256
    %6607 = vmatpush.bf16.msra.mxu0 %v5249
    %6608 = vmatpush.bf16.msra.mxu0 %v5242
    %6609 = vmatpush.bf16.msra.mxu0 %v5235
    %6610 = vmatmul.bf16.gmra.mxu0 %v3176
    %v6611 = vpop.f32.mrf.mxu0
    %v6612 = vadd.f32 %v6598, %v6611
    %v6613 = vpop.f32.mrf.mxu0
    %v6614 = vadd.f32 %v6600, %v6613
    %6615 = vdwg.mxu0
    %6616 = vmatpush.bf16.msra.mxu0 %v5340
    %6617 = vmatpush.bf16.msra.mxu0 %v5333
    %6618 = vmatpush.bf16.msra.mxu0 %v5326
    %6619 = vmatpush.bf16.msra.mxu0 %v5319
    %6620 = vmatpush.bf16.msra.mxu0 %v5312
    %6621 = vmatpush.bf16.msra.mxu0 %v5305
    %6622 = vmatpush.bf16.msra.mxu0 %v5298
    %6623 = vmatpush.bf16.msra.mxu0 %v5291
    %6624 = vmatmul.bf16.gmra.mxu0 %v3177
    %v6625 = vpop.f32.mrf.mxu0
    %v6626 = vadd.f32 %v6612, %v6625
    %v6627 = vpop.f32.mrf.mxu0
    %v6628 = vadd.f32 %v6614, %v6627
    %6629 = vdwg.mxu0
    %6630 = vmatpush.bf16.msra.mxu0 %v5396
    %6631 = vmatpush.bf16.msra.mxu0 %v5389
    %6632 = vmatpush.bf16.msra.mxu0 %v5382
    %6633 = vmatpush.bf16.msra.mxu0 %v5375
    %6634 = vmatpush.bf16.msra.mxu0 %v5368
    %6635 = vmatpush.bf16.msra.mxu0 %v5361
    %6636 = vmatpush.bf16.msra.mxu0 %v5354
    %6637 = vmatpush.bf16.msra.mxu0 %v5347
    %6638 = vmatmul.bf16.gmra.mxu0 %v3178
    %v6639 = vpop.f32.mrf.mxu0
    %v6640 = vadd.f32 %v6626, %v6639
    %v6641 = vpop.f32.mrf.mxu0
    %v6642 = vadd.f32 %v6628, %v6641
    %6643 = vdwg.mxu0
    %6644 = vmatpush.bf16.msra.mxu0 %v5452
    %6645 = vmatpush.bf16.msra.mxu0 %v5445
    %6646 = vmatpush.bf16.msra.mxu0 %v5438
    %6647 = vmatpush.bf16.msra.mxu0 %v5431
    %6648 = vmatpush.bf16.msra.mxu0 %v5424
    %6649 = vmatpush.bf16.msra.mxu0 %v5417
    %6650 = vmatpush.bf16.msra.mxu0 %v5410
    %6651 = vmatpush.bf16.msra.mxu0 %v5403
    %6652 = vmatmul.bf16.gmra.mxu0 %v3179
    %v6653 = vpop.f32.mrf.mxu0
    %v6654 = vadd.f32 %v6640, %v6653
    %v6655 = vpop.f32.mrf.mxu0
    %v6656 = vadd.f32 %v6642, %v6655
    %6657 = vdwg.mxu0
    %6658 = vmatpush.bf16.msra.mxu0 %v5508
    %6659 = vmatpush.bf16.msra.mxu0 %v5501
    %6660 = vmatpush.bf16.msra.mxu0 %v5494
    %6661 = vmatpush.bf16.msra.mxu0 %v5487
    %6662 = vmatpush.bf16.msra.mxu0 %v5480
    %6663 = vmatpush.bf16.msra.mxu0 %v5473
    %6664 = vmatpush.bf16.msra.mxu0 %v5466
    %6665 = vmatpush.bf16.msra.mxu0 %v5459
    %6666 = vmatmul.bf16.gmra.mxu0 %v3180
    %v6667 = vpop.f32.mrf.mxu0
    %v6668 = vadd.f32 %v6654, %v6667
    %v6669 = vpop.f32.mrf.mxu0
    %v6670 = vadd.f32 %v6656, %v6669
    %6671 = vdwg.mxu0
    %6672 = vmatpush.bf16.msra.mxu0 %v5564
    %6673 = vmatpush.bf16.msra.mxu0 %v5557
    %6674 = vmatpush.bf16.msra.mxu0 %v5550
    %6675 = vmatpush.bf16.msra.mxu0 %v5543
    %6676 = vmatpush.bf16.msra.mxu0 %v5536
    %6677 = vmatpush.bf16.msra.mxu0 %v5529
    %6678 = vmatpush.bf16.msra.mxu0 %v5522
    %6679 = vmatpush.bf16.msra.mxu0 %v5515
    %6680 = vmatmul.bf16.gmra.mxu0 %v3181
    %v6681 = vpop.f32.mrf.mxu0
    %v6682 = vadd.f32 %v6668, %v6681
    %v6683 = vpop.f32.mrf.mxu0
    %v6684 = vadd.f32 %v6670, %v6683
    %6685 = vdwg.mxu0
    %6686 = vmatpush.bf16.msra.mxu0 %v5173
    %6687 = vmatpush.bf16.msra.mxu0 %v5166
    %6688 = vmatpush.bf16.msra.mxu0 %v5159
    %6689 = vmatpush.bf16.msra.mxu0 %v5152
    %6690 = vmatpush.bf16.msra.mxu0 %v5145
    %6691 = vmatpush.bf16.msra.mxu0 %v5138
    %6692 = vmatpush.bf16.msra.mxu0 %v5131
    %6693 = vmatpush.bf16.msra.mxu0 %v5124
    %6694 = vmatmul.bf16.gmra.mxu0 %v3174
    %v6695 = vpop.f32.mrf.mxu0
    %v6696 = vadd.f32 %v3702, %v6695
    %v6697 = vpop.f32.mrf.mxu0
    %v6698 = vadd.f32 %v3702, %v6697
    %6699 = vdwg.mxu0
    %6700 = vmatpush.bf16.msra.mxu0 %v5229
    %6701 = vmatpush.bf16.msra.mxu0 %v5222
    %6702 = vmatpush.bf16.msra.mxu0 %v5215
    %6703 = vmatpush.bf16.msra.mxu0 %v5208
    %6704 = vmatpush.bf16.msra.mxu0 %v5201
    %6705 = vmatpush.bf16.msra.mxu0 %v5194
    %6706 = vmatpush.bf16.msra.mxu0 %v5187
    %6707 = vmatpush.bf16.msra.mxu0 %v5180
    %6708 = vmatmul.bf16.gmra.mxu0 %v3175
    %v6709 = vpop.f32.mrf.mxu0
    %v6710 = vadd.f32 %v6696, %v6709
    %v6711 = vpop.f32.mrf.mxu0
    %v6712 = vadd.f32 %v6698, %v6711
    %6713 = vdwg.mxu0
    %6714 = vmatpush.bf16.msra.mxu0 %v5285
    %6715 = vmatpush.bf16.msra.mxu0 %v5278
    %6716 = vmatpush.bf16.msra.mxu0 %v5271
    %6717 = vmatpush.bf16.msra.mxu0 %v5264
    %6718 = vmatpush.bf16.msra.mxu0 %v5257
    %6719 = vmatpush.bf16.msra.mxu0 %v5250
    %6720 = vmatpush.bf16.msra.mxu0 %v5243
    %6721 = vmatpush.bf16.msra.mxu0 %v5236
    %6722 = vmatmul.bf16.gmra.mxu0 %v3176
    %v6723 = vpop.f32.mrf.mxu0
    %v6724 = vadd.f32 %v6710, %v6723
    %v6725 = vpop.f32.mrf.mxu0
    %v6726 = vadd.f32 %v6712, %v6725
    %6727 = vdwg.mxu0
    %6728 = vmatpush.bf16.msra.mxu0 %v5341
    %6729 = vmatpush.bf16.msra.mxu0 %v5334
    %6730 = vmatpush.bf16.msra.mxu0 %v5327
    %6731 = vmatpush.bf16.msra.mxu0 %v5320
    %6732 = vmatpush.bf16.msra.mxu0 %v5313
    %6733 = vmatpush.bf16.msra.mxu0 %v5306
    %6734 = vmatpush.bf16.msra.mxu0 %v5299
    %6735 = vmatpush.bf16.msra.mxu0 %v5292
    %6736 = vmatmul.bf16.gmra.mxu0 %v3177
    %v6737 = vpop.f32.mrf.mxu0
    %v6738 = vadd.f32 %v6724, %v6737
    %v6739 = vpop.f32.mrf.mxu0
    %v6740 = vadd.f32 %v6726, %v6739
    %6741 = vdwg.mxu0
    %6742 = vmatpush.bf16.msra.mxu0 %v5397
    %6743 = vmatpush.bf16.msra.mxu0 %v5390
    %6744 = vmatpush.bf16.msra.mxu0 %v5383
    %6745 = vmatpush.bf16.msra.mxu0 %v5376
    %6746 = vmatpush.bf16.msra.mxu0 %v5369
    %6747 = vmatpush.bf16.msra.mxu0 %v5362
    %6748 = vmatpush.bf16.msra.mxu0 %v5355
    %6749 = vmatpush.bf16.msra.mxu0 %v5348
    %6750 = vmatmul.bf16.gmra.mxu0 %v3178
    %v6751 = vpop.f32.mrf.mxu0
    %v6752 = vadd.f32 %v6738, %v6751
    %v6753 = vpop.f32.mrf.mxu0
    %v6754 = vadd.f32 %v6740, %v6753
    %6755 = vdwg.mxu0
    %6756 = vmatpush.bf16.msra.mxu0 %v5453
    %6757 = vmatpush.bf16.msra.mxu0 %v5446
    %6758 = vmatpush.bf16.msra.mxu0 %v5439
    %6759 = vmatpush.bf16.msra.mxu0 %v5432
    %6760 = vmatpush.bf16.msra.mxu0 %v5425
    %6761 = vmatpush.bf16.msra.mxu0 %v5418
    %6762 = vmatpush.bf16.msra.mxu0 %v5411
    %6763 = vmatpush.bf16.msra.mxu0 %v5404
    %6764 = vmatmul.bf16.gmra.mxu0 %v3179
    %v6765 = vpop.f32.mrf.mxu0
    %v6766 = vadd.f32 %v6752, %v6765
    %v6767 = vpop.f32.mrf.mxu0
    %v6768 = vadd.f32 %v6754, %v6767
    %6769 = vdwg.mxu0
    %6770 = vmatpush.bf16.msra.mxu0 %v5509
    %6771 = vmatpush.bf16.msra.mxu0 %v5502
    %6772 = vmatpush.bf16.msra.mxu0 %v5495
    %6773 = vmatpush.bf16.msra.mxu0 %v5488
    %6774 = vmatpush.bf16.msra.mxu0 %v5481
    %6775 = vmatpush.bf16.msra.mxu0 %v5474
    %6776 = vmatpush.bf16.msra.mxu0 %v5467
    %6777 = vmatpush.bf16.msra.mxu0 %v5460
    %6778 = vmatmul.bf16.gmra.mxu0 %v3180
    %v6779 = vpop.f32.mrf.mxu0
    %v6780 = vadd.f32 %v6766, %v6779
    %v6781 = vpop.f32.mrf.mxu0
    %v6782 = vadd.f32 %v6768, %v6781
    %6783 = vdwg.mxu0
    %6784 = vmatpush.bf16.msra.mxu0 %v5565
    %6785 = vmatpush.bf16.msra.mxu0 %v5558
    %6786 = vmatpush.bf16.msra.mxu0 %v5551
    %6787 = vmatpush.bf16.msra.mxu0 %v5544
    %6788 = vmatpush.bf16.msra.mxu0 %v5537
    %6789 = vmatpush.bf16.msra.mxu0 %v5530
    %6790 = vmatpush.bf16.msra.mxu0 %v5523
    %6791 = vmatpush.bf16.msra.mxu0 %v5516
    %6792 = vmatmul.bf16.gmra.mxu0 %v3181
    %v6793 = vpop.f32.mrf.mxu0
    %v6794 = vadd.f32 %v6780, %v6793
    %v6795 = vpop.f32.mrf.mxu0
    %v6796 = vadd.f32 %v6782, %v6795
    %6797 = vdwg.mxu0
    %v6798 = vsub.f32 0.0, %v6122
    %v6799 = vsub.f32 0.0, %v6234
    %v6800 = vsub.f32 0.0, %v6346
    %v6801 = vsub.f32 0.0, %v6458
    %v6802 = vsub.f32 0.0, %v6570
    %v6803 = vsub.f32 0.0, %v6682
    %v6804 = vsub.f32 0.0, %v6794
    %v6805 = vsub.f32 0.0, %v6124
    %v6806 = vsub.f32 0.0, %v6236
    %v6807 = vsub.f32 0.0, %v6348
    %v6808 = vsub.f32 0.0, %v6460
    %v6809 = vsub.f32 0.0, %v6572
    %v6810 = vsub.f32 0.0, %v6684
    %v6811 = vsub.f32 0.0, %v6796
    %v6812 = vmul.f32 %v6798, 1.442695
    %v6813 = vpow.pop %v6812
    %v6814 = vmul.f32 %v6799, 1.442695
    %v6815 = vpow.pop %v6814
    %v6816 = vmul.f32 %v6800, 1.442695
    %v6817 = vpow.pop %v6816
    %v6818 = vmul.f32 %v6801, 1.442695
    %v6819 = vpow.pop %v6818
    %v6820 = vmul.f32 %v6802, 1.442695
    %v6821 = vpow.pop %v6820
    %v6822 = vmul.f32 %v6803, 1.442695
    %v6823 = vpow.pop %v6822
    %v6824 = vmul.f32 %v6804, 1.442695
    %v6825 = vpow.pop %v6824
    %v6826 = vmul.f32 %v6805, 1.442695
    %v6827 = vpow.pop %v6826
    %v6828 = vmul.f32 %v6806, 1.442695
    %v6829 = vpow.pop %v6828
    %v6830 = vmul.f32 %v6807, 1.442695
    %v6831 = vpow.pop %v6830
    %v6832 = vmul.f32 %v6808, 1.442695
    %v6833 = vpow.pop %v6832
    %v6834 = vmul.f32 %v6809, 1.442695
    %v6835 = vpow.pop %v6834
    %v6836 = vmul.f32 %v6810, 1.442695
    %v6837 = vpow.pop %v6836
    %v6838 = vmul.f32 %v6811, 1.442695
    %v6839 = vpow.pop %v6838
    %v6840 = vadd.f32 %v6813, 1.0
    %v6841 = vadd.f32 %v6815, 1.0
    %v6842 = vadd.f32 %v6817, 1.0
    %v6843 = vadd.f32 %v6819, 1.0
    %v6844 = vadd.f32 %v6821, 1.0
    %v6845 = vadd.f32 %v6823, 1.0
    %v6846 = vadd.f32 %v6825, 1.0
    %v6847 = vadd.f32 %v6827, 1.0
    %v6848 = vadd.f32 %v6829, 1.0
    %v6849 = vadd.f32 %v6831, 1.0
    %v6850 = vadd.f32 %v6833, 1.0
    %v6851 = vadd.f32 %v6835, 1.0
    %v6852 = vadd.f32 %v6837, 1.0
    %v6853 = vadd.f32 %v6839, 1.0
    %v6854 = vrcp.pop %v6840
    %v6855 = vrcp.pop %v6841
    %v6856 = vrcp.pop %v6842
    %v6857 = vrcp.pop %v6843
    %v6858 = vrcp.pop %v6844
    %v6859 = vrcp.pop %v6845
    %v6860 = vrcp.pop %v6846
    %v6861 = vrcp.pop %v6847
    %v6862 = vrcp.pop %v6848
    %v6863 = vrcp.pop %v6849
    %v6864 = vrcp.pop %v6850
    %v6865 = vrcp.pop %v6851
    %v6866 = vrcp.pop %v6852
    %v6867 = vrcp.pop %v6853
    %6868 = vst [vmem:[#allocation14] sm:$0xff] %v6854
    %6869 = vst [vmem:[#allocation14 + $0x8] sm:$0xff] %v6855
    %6870 = vst [vmem:[#allocation14 + $0x10] sm:$0xff] %v6856
    %6871 = vst [vmem:[#allocation14 + $0x18] sm:$0xff] %v6857
    %6872 = vst [vmem:[#allocation14 + $0x20] sm:$0xff] %v6858
    %6873 = vst [vmem:[#allocation14 + $0x28] sm:$0xff] %v6859
    %6874 = vst [vmem:[#allocation14 + $0x30] sm:$0xff] %v6860
    %6875 = vst [vmem:[#allocation14 + $0x38] sm:$0xff] %v6861
    %6876 = vst [vmem:[#allocation14 + $0x40] sm:$0xff] %v6862
    %6877 = vst [vmem:[#allocation14 + $0x48] sm:$0xff] %v6863
    %6878 = vst [vmem:[#allocation14 + $0x50] sm:$0xff] %v6864
    %6879 = vst [vmem:[#allocation14 + $0x58] sm:$0xff] %v6865
    %6880 = vst [vmem:[#allocation14 + $0x60] sm:$0xff] %v6866
    %6881 = vst [vmem:[#allocation14 + $0x68] sm:$0xff] %v6867
    // Predicated region
    $region58: #{tpu_custom_call.1} parent=1 // pred_check
      _
    $region59: #{tpu_custom_call.1} parent=1 // pred_check_branch
      %6883 = sbr.rel (0) target = $region61
    $region60: #{tpu_custom_call.1} parent=1 // pred_region
      %6885 = vsyncadd [#allocation4], 0
      %s6886 = sshll.u32 [#allocation14], 4
      %s6887 = int_to_ptr.vmem [resolvable:$true] %s6886
      %s6888 = sshll.u32 %s7, 4
      %s6889 = int_to_ptr.hbm [resolvable:$true] %s6888
      %6894 = dma.vmem_to_hbm [thread:$0]  %s6887, 1792, %s6889, [#allocation4], 896, 896, 56
    $region61: #{tpu_custom_call.1} parent=1 // pred_fallthru
      _
    // Predicated region
    $region62: #{tpu_custom_call.1} parent=1 // pred_check
      _
    $region63: #{tpu_custom_call.1} parent=1 // pred_check_branch
      %6896 = sbr.rel (0) target = $region65
    $region64: #{tpu_custom_call.1} parent=1 // pred_region
      %6898 = dma.done [#allocation4], 1792
    $region65: #{tpu_custom_call.1} parent=1 // pred_fallthru
      _
    %6899 = vsyncpa [#allocation3], 1
    %6900 = vsyncpa [#allocation6], 1
    %6901 = vsyncpa [#allocation9], 1
    %6902 = vsyncpa [#allocation12], 1
    %6903 = vsyncpa [#allocation4], 1

</llo_original>
